<compile_context>
chip_gen: v5e
topology: v5e:2x2
jax: 0.10.0
libtpu: 0.0.40
codegen_flags: <defaults>
</compile_context>

<pallas_src>
import jax
import jax.numpy as jnp
from jax.experimental import pallas as pl
from jax.experimental.pallas import tpu as pltpu

NEG_SLOPE = 0.2
HIDDEN = 192
HIDDEN_PAD = 256        # 192 lanes padded to a multiple of 128
LOGIT_PAD = 128         # 11 logits padded to one full lane group
NUM_EXPERTS = 11
EMB = 512               # r100 embedding size; cat(f1, f2) -> 1024
COMB = 2 * EMB


def _round_up(x, m):
    return (x + m - 1) // m * m


def _vmem_capacity_bytes():
    try:
        info = pltpu.get_tpu_info()
        cap = getattr(info, "vmem_capacity_bytes", None)
        if cap:
            return int(cap)
    except Exception:
        pass
    return 64 * 1024 * 1024   # conservative default (v7x-sized)


def _const_weight_bytes():
    # Grid-constant comparator operands (bf16 weights + f32 biases), double-buffered.
    elems_bf16 = (COMB * HIDDEN_PAD
                  + (NUM_EXPERTS - 1) * HIDDEN_PAD * HIDDEN_PAD
                  + NUM_EXPERTS * HIDDEN_PAD * LOGIT_PAD)
    elems_f32 = NUM_EXPERTS * HIDDEN_PAD + LOGIT_PAD
    return 2 * (elems_bf16 * 2 + elems_f32 * 4)


def _est_vmem_bytes(tm, tk):
    act = 2 * 2 * tm * tk * 4          # x1/x2 tiles (f32 worst case), double-buffered
    wgt = 2 * tk * EMB * 2             # backbone weight tile (bf16), double-buffered
    acc = 2 * tm * EMB * 4             # f32 accumulators (scratch)
    io = 2 * 2 * tm * LOGIT_PAD * 4    # y tile + output tile, double-buffered
    return act + wgt + acc + io + _const_weight_bytes() + (2 << 20)   # slack


# ----------------------------------------------------------------------------
# Fused kernel
# ----------------------------------------------------------------------------
def _mtcf_kernel(x1_ref, x2_ref, wb_ref, y_ref,
                 w1t_ref, w1b_ref, w1r_ref, b1_ref, w2_ref, b2_ref,
                 o_ref, acc1_ref, acc2_ref):
    k = pl.program_id(1)
    nk = pl.num_programs(1)

    @pl.when(k == 0)
    def _():
        acc1_ref[...] = jnp.zeros_like(acc1_ref)
        acc2_ref[...] = jnp.zeros_like(acc2_ref)

    # Backbone (stand-in linear projection): one bf16 weight K-tile streamed from
    # HBM is used for BOTH images -> weight HBM traffic paid once. f32 MXU accum.
    w = wb_ref[...]
    x1 = x1_ref[...].astype(jnp.bfloat16)   # no-op if the wrapper already fed bf16
    x2 = x2_ref[...].astype(jnp.bfloat16)
    acc1_ref[...] += jnp.dot(x1, w, preferred_element_type=jnp.float32)
    acc2_ref[...] += jnp.dot(x2, w, preferred_element_type=jnp.float32)

    @pl.when(k == nk - 1)
    def _():
        def leaky(v):
            return jnp.where(v > 0, v, NEG_SLOPE * v)

        # Dropout(p=0.2) in eval mode is identity.
        f1 = acc1_ref[...].astype(jnp.bfloat16)             # (tm, 512)
        f2 = acc2_ref[...].astype(jnp.bfloat16)

        # Expert 0: concat(f1, f2) @ W1_0 computed as two half-dots -> no (tm, 1024)
        # concatenate / VMEM materialization.  Backbone bias is folded into b1[0]
        # on the host, so the dots read the accumulators directly.
        z = leaky(jnp.dot(f1, w1t_ref[...], preferred_element_type=jnp.float32)
                  + jnp.dot(f2, w1b_ref[...], preferred_element_type=jnp.float32)
                  + b1_ref[0])
        zb = z.astype(jnp.bfloat16)
        # fc2 logit on the MXU: w2_ref[i] is (256, 128) with expert i's weight
        # vector in column i -> logits accumulate straight into a 128-lane array
        # (no XLU cross-lane reduce, no 11-way width-1 concatenate).
        logits = jnp.dot(zb, w2_ref[0], preferred_element_type=jnp.float32)

        # Experts 1..10: 192 -> 192 cascade (statically unrolled), bf16 on the MXU.
        for i in range(1, NUM_EXPERTS):
            z = leaky(jnp.dot(zb, w1r_ref[i - 1],
                              preferred_element_type=jnp.float32) + b1_ref[i])
            zb = z.astype(jnp.bfloat16)
            logits = logits + jnp.dot(zb, w2_ref[i],
                                      preferred_element_type=jnp.float32)

        logits = logits + b2_ref[...]                        # (tm, 128)
        # Sigmoid: exp on the EUP + approx reciprocal (keeps the divide off the VPU).
        preds = pl.reciprocal(1.0 + jnp.exp(-logits), approx=True)
        o_ref[...] = preds * y_ref[...]                      # gate by y (lane-padded)


# ----------------------------------------------------------------------------
# Wrapper
# ----------------------------------------------------------------------------
@jax.jit
def mtcf_forward(image1, image2, y, params):
    B = image1.shape[0]
    x1 = image1.reshape(B, -1)
    x2 = image2.reshape(B, -1)
    in_flat = x1.shape[1]

    # ---- generation-aware tile selection (all static at trace time) ----
    budget = int(0.70 * _vmem_capacity_bytes())   # ~90 MiB on 128 MiB parts, ~45 MiB on v7x
    tm = min(256 if B >= 256 else 128, _round_up(B, 8))
    bp = _round_up(B, tm)

    kp_min = _round_up(in_flat, 128)
    tk = 128
    for cand in [kp_min] + [c for c in (8192, 4096, 2048, 1024, 512, 256, 128)
                            if c < kp_min]:
        if _est_vmem_bytes(tm, cand) <= budget:
            tk = cand
            break
    kp = _round_up(in_flat, tk)

    # ---- operand prep: avoid per-call f32<->bf16 HBM round trips ----
    def prep_act(x):
        if x.shape == (bp, kp):
            return x                          # feed f32 directly; cast in-kernel
        xp = jnp.pad(x, ((0, bp - B), (0, kp - in_flat)))
        return xp.astype(jnp.bfloat16)        # pad + cast fuse into a single pass

    x1p = prep_act(x1)
    x2p = prep_act(x2)

    wbp = params["wb"]                        # pre-padded + pre-cast bf16 (init_params)
    if wbp.shape[0] != kp:
        wbp = jnp.pad(wbp, ((0, kp - wbp.shape[0]), (0, 0)))

    yp = jnp.pad(y.astype(jnp.float32),
                 ((0, bp - B), (0, LOGIT_PAD - NUM_EXPERTS)))

    grid = (bp // tm, kp // tk)

    in_specs = [
        pl.BlockSpec((tm, tk), lambda i, k: (i, k)),                  # x1
        pl.BlockSpec((tm, tk), lambda i, k: (i, k)),                  # x2
        pl.BlockSpec((tk, EMB), lambda i, k: (k, 0)),                 # wb (bf16)
        pl.BlockSpec((tm, LOGIT_PAD), lambda i, k: (i, 0)),           # y (lane-padded)
        pl.BlockSpec((EMB, HIDDEN_PAD), lambda i, k: (0, 0)),         # w1_0 top half
        pl.BlockSpec((EMB, HIDDEN_PAD), lambda i, k: (0, 0)),         # w1_0 bottom half
        pl.BlockSpec((NUM_EXPERTS - 1, HIDDEN_PAD, HIDDEN_PAD),
                     lambda i, k: (0, 0, 0)),                         # w1 cascade
        pl.BlockSpec((NUM_EXPERTS, 1, HIDDEN_PAD),
                     lambda i, k: (0, 0, 0)),                         # b1 (fold incl.)
        pl.BlockSpec((NUM_EXPERTS, HIDDEN_PAD, LOGIT_PAD),
                     lambda i, k: (0, 0, 0)),                         # w2 projections
        pl.BlockSpec((1, LOGIT_PAD), lambda i, k: (0, 0)),            # b2
    ]

    out = pl.pallas_call(
        _mtcf_kernel,
        out_shape=jax.ShapeDtypeStruct((bp, LOGIT_PAD), jnp.float32),
        grid=grid,
        in_specs=in_specs,
        out_specs=pl.BlockSpec((tm, LOGIT_PAD), lambda i, k: (i, 0)),
        scratch_shapes=[pltpu.VMEM((tm, EMB), jnp.float32),
                        pltpu.VMEM((tm, EMB), jnp.float32)],
        compiler_params=pltpu.CompilerParams(
            dimension_semantics=("parallel", "arbitrary"),
            vmem_limit_bytes=min(budget, 100 * 1024 * 1024),
        ),
    )(x1p, x2p, wbp, yp,
      params["w1t"], params["w1b"], params["w1r"],
      params["b1"], params["w2"], params["b2"])

    return out[:B, :NUM_EXPERTS]


# ----------------------------------------------------------------------------
# Parameters (PyTorch-equivalent values packed into kernel layout, once)
# ----------------------------------------------------------------------------
def init_params(key, in_flat):
    ks = jax.random.split(key, 8)
    s = 0.05
    wb = s * jax.random.normal(ks[0], (in_flat, EMB), jnp.float32)
    bb = s * jax.random.normal(ks[1], (1, EMB), jnp.float32)

    w1_0 = s * jax.random.normal(ks[2], (COMB, HIDDEN), jnp.float32)
    b1_0 = s * jax.random.normal(ks[3], (HIDDEN,), jnp.float32)
    w1_r = s * jax.random.normal(ks[4], (NUM_EXPERTS - 1, HIDDEN, HIDDEN),
                                 jnp.float32)
    b1_r = s * jax.random.normal(ks[5], (NUM_EXPERTS - 1, HIDDEN), jnp.float32)
    w2 = s * jax.random.normal(ks[6], (NUM_EXPERTS, HIDDEN), jnp.float32)
    b2 = s * jax.random.normal(ks[7], (NUM_EXPERTS,), jnp.float32)

    # Backbone weight: pad K-rows to a multiple of 128 and cast to bf16 ONCE here
    # (static weights) instead of every forward call.
    kp0 = _round_up(in_flat, 128)
    wb_p = jnp.zeros((kp0, EMB), jnp.bfloat16).at[:in_flat].set(
        wb.astype(jnp.bfloat16))

    # Expert-0 fc1 weight split into the f1 / f2 halves (removes the in-kernel
    # (tm, 1024) concat), lane-padded 192 -> 256, streamed as bf16.
    w1t = jnp.zeros((EMB, HIDDEN_PAD), jnp.float32).at[:, :HIDDEN].set(w1_0[:EMB])
    w1b = jnp.zeros((EMB, HIDDEN_PAD), jnp.float32).at[:, :HIDDEN].set(w1_0[EMB:])

    # Fold the backbone bias into expert-0's fc1 bias: concat(bb, bb) @ W1_0 + b1_0.
    b1_eff0 = b1_0 + (bb @ w1_0[:EMB] + bb @ w1_0[EMB:])[0]
    b1_all = jnp.concatenate([b1_eff0[None, :], b1_r], axis=0)   # (11, 192)
    b1_p = jnp.zeros((NUM_EXPERTS, 1, HIDDEN_PAD), jnp.float32)
    b1_p = b1_p.at[:, 0, :HIDDEN].set(b1_all)

    w1r_p = jnp.zeros((NUM_EXPERTS - 1, HIDDEN_PAD, HIDDEN_PAD), jnp.float32)
    w1r_p = w1r_p.at[:, :HIDDEN, :HIDDEN].set(w1_r)

    # Expert i's fc2 weight vector goes into column i of its projection so the
    # 11 logits assemble directly into a 128-lane accumulator on the MXU.
    w2_p = jnp.zeros((NUM_EXPERTS, HIDDEN_PAD, LOGIT_PAD), jnp.float32)
    for i in range(NUM_EXPERTS):
        w2_p = w2_p.at[i, :HIDDEN, i].set(w2[i])

    b2_p = jnp.zeros((1, LOGIT_PAD), jnp.float32).at[0, :NUM_EXPERTS].set(b2)

    return {
        "wb": wb_p,                                # bf16, K-padded
        "w1t": w1t.astype(jnp.bfloat16),
        "w1b": w1b.astype(jnp.bfloat16),
        "w1r": w1r_p.astype(jnp.bfloat16),
        "b1": b1_p,                                # f32 (added to f32 accum)
        "w2": w2_p.astype(jnp.bfloat16),
        "b2": b2_p,                                # f32
    }


if __name__ == "__main__":
    key = jax.random.PRNGKey(0)
    k_img1, k_img2, k_y, k_p = jax.random.split(key, 4)

    B, C, H, W = 2, 3, 16, 16
    image1 = jax.random.normal(k_img1, (B, C, H, W), jnp.float32)
    image2 = jax.random.normal(k_img2, (B, C, H, W), jnp.float32)
    # y gates the per-relation predictions (KinshipComparator: predictions * y).
    y = jax.random.bernoulli(k_y, 0.5, (B, NUM_EXPERTS)).astype(jnp.float32)

    params = init_params(k_p, C * H * W)

    out = mtcf_forward(image1, image2, y, params)
    out = jax.block_until_ready(out)
    assert out.shape == (B, NUM_EXPERTS) and out.dtype == jnp.float32
    assert bool(jnp.all(jnp.isfinite(out)))
    print("KERNEL_OK")
</pallas_src>

<mosaic_0001>
module attributes {stable_mosaic.version = 11 : i64} {
  func.func @_mtcf_kernel(%arg0: i32, %arg1: i32, %arg2: memref<8x768xbf16, #tpu.memory_space<vmem>>, %arg3: memref<8x768xbf16, #tpu.memory_space<vmem>>, %arg4: memref<768x512xbf16, #tpu.memory_space<vmem>>, %arg5: memref<8x128xf32, #tpu.memory_space<vmem>>, %arg6: memref<512x256xbf16, #tpu.memory_space<vmem>>, %arg7: memref<512x256xbf16, #tpu.memory_space<vmem>>, %arg8: memref<10x256x256xbf16, #tpu.memory_space<vmem>>, %arg9: memref<11x1x256xf32, #tpu.memory_space<vmem>>, %arg10: memref<11x256x128xbf16, #tpu.memory_space<vmem>>, %arg11: memref<1x128xf32, #tpu.memory_space<vmem>>, %arg12: memref<8x128xf32, #tpu.memory_space<vmem>>, %arg13: memref<8x512xf32, #tpu.memory_space<vmem>>, %arg14: memref<8x512xf32, #tpu.memory_space<vmem>>) attributes {dimension_semantics = [#tpu.dimension_semantics<parallel>, #tpu.dimension_semantics<arbitrary>], iteration_bounds = array<i64: 1, 1>, scalar_prefetch = 0 : i64, scratch_operands = 2 : i64, tpu.core_type = #tpu.core_type<tc>, window_params = [{transform_indices = @transform_0, window_bounds = array<i64: 8, 768>}, {transform_indices = @transform_1, window_bounds = array<i64: 8, 768>}, {transform_indices = @transform_2, window_bounds = array<i64: 768, 512>}, {transform_indices = @transform_3, window_bounds = array<i64: 8, 128>}, {pipeline_mode = #tpu.pipeline_mode<synchronous>, transform_indices = @transform_4, window_bounds = array<i64: 512, 256>}, {pipeline_mode = #tpu.pipeline_mode<synchronous>, transform_indices = @transform_5, window_bounds = array<i64: 512, 256>}, {pipeline_mode = #tpu.pipeline_mode<synchronous>, transform_indices = @transform_6, window_bounds = array<i64: 10, 256, 256>}, {pipeline_mode = #tpu.pipeline_mode<synchronous>, transform_indices = @transform_7, window_bounds = array<i64: 11, 1, 256>}, {pipeline_mode = #tpu.pipeline_mode<synchronous>, transform_indices = @transform_8, window_bounds = array<i64: 11, 256, 128>}, {pipeline_mode = #tpu.pipeline_mode<synchronous>, transform_indices = @transform_9, window_bounds = array<i64: 1, 128>}, {transform_indices = @transform_10, window_bounds = array<i64: 8, 128>}]} {
    %c0_i32 = arith.constant 0 : i32
    %0 = arith.cmpi eq, %arg1, %c0_i32 : i32
    %1 = arith.extui %0 : i1 to i32
    %c0_i32_0 = arith.constant 0 : i32
    %2 = arith.cmpi ne, %1, %c0_i32_0 : i32
    scf.if %2 {
      %cst_17 = arith.constant 0.000000e+00 : f32
      %17 = vector.broadcast %cst_17 : f32 to vector<8x512xf32>
      %c0_18 = arith.constant 0 : index
      %c0_19 = arith.constant 0 : index
      %18 = vector.load %arg13[%c0_18, %c0_19] : memref<8x512xf32, #tpu.memory_space<vmem>>, vector<8x512xf32>
      tpu.vector_store %arg13[%c0_18, %c0_19], %17 {strides = array<i32>} : memref<8x512xf32, #tpu.memory_space<vmem>>, vector<8x512xf32>,
      %cst_20 = arith.constant 0.000000e+00 : f32
      %19 = vector.broadcast %cst_20 : f32 to vector<8x512xf32>
      %c0_21 = arith.constant 0 : index
      %c0_22 = arith.constant 0 : index
      %20 = vector.load %arg14[%c0_21, %c0_22] : memref<8x512xf32, #tpu.memory_space<vmem>>, vector<8x512xf32>
      tpu.vector_store %arg14[%c0_21, %c0_22], %19 {strides = array<i32>} : memref<8x512xf32, #tpu.memory_space<vmem>>, vector<8x512xf32>,
    } else {
    }
    %c0 = arith.constant 0 : index
    %c0_1 = arith.constant 0 : index
    %3 = vector.load %arg4[%c0, %c0_1] : memref<768x512xbf16, #tpu.memory_space<vmem>>, vector<768x512xbf16>
    %c0_2 = arith.constant 0 : index
    %c0_3 = arith.constant 0 : index
    %4 = vector.load %arg2[%c0_2, %c0_3] : memref<8x768xbf16, #tpu.memory_space<vmem>>, vector<8x768xbf16>
    %c0_4 = arith.constant 0 : index
    %c0_5 = arith.constant 0 : index
    %5 = vector.load %arg3[%c0_4, %c0_5] : memref<8x768xbf16, #tpu.memory_space<vmem>>, vector<8x768xbf16>
    %c0_6 = arith.constant 0 : index
    %c0_7 = arith.constant 0 : index
    %6 = vector.load %arg13[%c0_6, %c0_7] : memref<8x512xf32, #tpu.memory_space<vmem>>, vector<8x512xf32>
    %cst = arith.constant dense<0.000000e+00> : vector<8x512xf32>
    %7 = tpu.matmul %4, %3, %cst {dimension_numbers = #tpu.dot_dimension_numbers<[1], [0], [0], [1], [0, 0, 1, 1], [], []>} : vector<8x768xbf16>, vector<768x512xbf16>, vector<8x512xf32> -> vector<8x512xf32>
    %8 = arith.addf %6, %7 : vector<8x512xf32>
    %c0_8 = arith.constant 0 : index
    %c0_9 = arith.constant 0 : index
    %9 = vector.load %arg13[%c0_8, %c0_9] : memref<8x512xf32, #tpu.memory_space<vmem>>, vector<8x512xf32>
    tpu.vector_store %arg13[%c0_8, %c0_9], %8 {strides = array<i32>} : memref<8x512xf32, #tpu.memory_space<vmem>>, vector<8x512xf32>,
    %c0_10 = arith.constant 0 : index
    %c0_11 = arith.constant 0 : index
    %10 = vector.load %arg14[%c0_10, %c0_11] : memref<8x512xf32, #tpu.memory_space<vmem>>, vector<8x512xf32>
    %cst_12 = arith.constant dense<0.000000e+00> : vector<8x512xf32>
    %11 = tpu.matmul %5, %3, %cst_12 {dimension_numbers = #tpu.dot_dimension_numbers<[1], [0], [0], [1], [0, 0, 1, 1], [], []>} : vector<8x768xbf16>, vector<768x512xbf16>, vector<8x512xf32> -> vector<8x512xf32>
    %12 = arith.addf %10, %11 : vector<8x512xf32>
    %c0_13 = arith.constant 0 : index
    %c0_14 = arith.constant 0 : index
    %13 = vector.load %arg14[%c0_13, %c0_14] : memref<8x512xf32, #tpu.memory_space<vmem>>, vector<8x512xf32>
    tpu.vector_store %arg14[%c0_13, %c0_14], %12 {strides = array<i32>} : memref<8x512xf32, #tpu.memory_space<vmem>>, vector<8x512xf32>,
    %c0_i32_15 = arith.constant 0 : i32
    %14 = arith.cmpi eq, %arg1, %c0_i32_15 : i32
    %15 = arith.extui %14 : i1 to i32
    %c0_i32_16 = arith.constant 0 : i32
    %16 = arith.cmpi ne, %15, %c0_i32_16 : i32
    scf.if %16 {
      %c0_17 = arith.constant 0 : index
      %c0_18 = arith.constant 0 : index
      %17 = vector.load %arg13[%c0_17, %c0_18] : memref<8x512xf32, #tpu.memory_space<vmem>>, vector<8x512xf32>
      %18 = arith.truncf %17 : vector<8x512xf32> to vector<8x512xbf16>
      %c0_19 = arith.constant 0 : index
      %c0_20 = arith.constant 0 : index
      %19 = vector.load %arg14[%c0_19, %c0_20] : memref<8x512xf32, #tpu.memory_space<vmem>>, vector<8x512xf32>
      %20 = arith.truncf %19 : vector<8x512xf32> to vector<8x512xbf16>
      %c0_21 = arith.constant 0 : index
      %c0_22 = arith.constant 0 : index
      %21 = vector.load %arg6[%c0_21, %c0_22] : memref<512x256xbf16, #tpu.memory_space<vmem>>, vector<512x256xbf16>
      %cst_23 = arith.constant dense<0.000000e+00> : vector<8x256xf32>
      %22 = tpu.matmul %18, %21, %cst_23 {dimension_numbers = #tpu.dot_dimension_numbers<[1], [0], [0], [1], [0, 0, 1, 1], [], []>} : vector<8x512xbf16>, vector<512x256xbf16>, vector<8x256xf32> -> vector<8x256xf32>
      %c0_24 = arith.constant 0 : index
      %c0_25 = arith.constant 0 : index
      %23 = vector.load %arg7[%c0_24, %c0_25] : memref<512x256xbf16, #tpu.memory_space<vmem>>, vector<512x256xbf16>
      %cst_26 = arith.constant dense<0.000000e+00> : vector<8x256xf32>
      %24 = tpu.matmul %20, %23, %cst_26 {dimension_numbers = #tpu.dot_dimension_numbers<[1], [0], [0], [1], [0, 0, 1, 1], [], []>} : vector<8x512xbf16>, vector<512x256xbf16>, vector<8x256xf32> -> vector<8x256xf32>
      %25 = arith.addf %22, %24 : vector<8x256xf32>
      %c0_27 = arith.constant 0 : index
      %c0_28 = arith.constant 0 : index
      %c0_29 = arith.constant 0 : index
      %26 = vector.load %arg9[%c0_27, %c0_28, %c0_29] : memref<11x1x256xf32, #tpu.memory_space<vmem>>, vector<1x1x256xf32>
      %27 = vector.shape_cast %26 : vector<1x1x256xf32> to vector<1x256xf32>
      %28 = vector.broadcast %27 : vector<1x256xf32> to vector<8x256xf32>
      %29 = arith.addf %25, %28 : vector<8x256xf32>
      %cst_30 = arith.constant 0.000000e+00 : f32
      %30 = vector.broadcast %cst_30 : f32 to vector<8x256xf32>
      %31 = arith.cmpf ogt, %29, %30 : vector<8x256xf32>
      %cst_31 = arith.constant 2.000000e-01 : f32
      %32 = vector.broadcast %cst_31 : f32 to vector<8x256xf32>
      %33 = arith.mulf %32, %29 : vector<8x256xf32>
      %34 = arith.select %31, %29, %33 : vector<8x256xi1>, vector<8x256xf32>
      %35 = arith.truncf %34 : vector<8x256xf32> to vector<8x256xbf16>
      %c0_32 = arith.constant 0 : index
      %c0_33 = arith.constant 0 : index
      %c0_34 = arith.constant 0 : index
      %36 = vector.load %arg10[%c0_32, %c0_33, %c0_34] : memref<11x256x128xbf16, #tpu.memory_space<vmem>>, vector<1x256x128xbf16>
      %37 = vector.shape_cast %36 : vector<1x256x128xbf16> to vector<256x128xbf16>
      %cst_35 = arith.constant dense<0.000000e+00> : vector<8x128xf32>
      %38 = tpu.matmul %35, %37, %cst_35 {dimension_numbers = #tpu.dot_dimension_numbers<[1], [0], [0], [1], [0, 0, 1, 1], [], []>} : vector<8x256xbf16>, vector<256x128xbf16>, vector<8x128xf32> -> vector<8x128xf32>
      %c0_36 = arith.constant 0 : index
      %c0_37 = arith.constant 0 : index
      %c0_38 = arith.constant 0 : index
      %39 = vector.load %arg8[%c0_36, %c0_37, %c0_38] : memref<10x256x256xbf16, #tpu.memory_space<vmem>>, vector<1x256x256xbf16>
      %40 = vector.shape_cast %39 : vector<1x256x256xbf16> to vector<256x256xbf16>
      %cst_39 = arith.constant dense<0.000000e+00> : vector<8x256xf32>
      %41 = tpu.matmul %35, %40, %cst_39 {dimension_numbers = #tpu.dot_dimension_numbers<[1], [0], [0], [1], [0, 0, 1, 1], [], []>} : vector<8x256xbf16>, vector<256x256xbf16>, vector<8x256xf32> -> vector<8x256xf32>
      %c1 = arith.constant 1 : index
      %c0_40 = arith.constant 0 : index
      %c0_41 = arith.constant 0 : index
      %42 = vector.load %arg9[%c1, %c0_40, %c0_41] : memref<11x1x256xf32, #tpu.memory_space<vmem>>, vector<1x1x256xf32>
      %43 = vector.shape_cast %42 : vector<1x1x256xf32> to vector<1x256xf32>
      %44 = vector.broadcast %43 : vector<1x256xf32> to vector<8x256xf32>
      %45 = arith.addf %41, %44 : vector<8x256xf32>
      %cst_42 = arith.constant 0.000000e+00 : f32
      %46 = vector.broadcast %cst_42 : f32 to vector<8x256xf32>
      %47 = arith.cmpf ogt, %45, %46 : vector<8x256xf32>
      %cst_43 = arith.constant 2.000000e-01 : f32
      %48 = vector.broadcast %cst_43 : f32 to vector<8x256xf32>
      %49 = arith.mulf %48, %45 : vector<8x256xf32>
      %50 = arith.select %47, %45, %49 : vector<8x256xi1>, vector<8x256xf32>
      %51 = arith.truncf %50 : vector<8x256xf32> to vector<8x256xbf16>
      %c1_44 = arith.constant 1 : index
      %c0_45 = arith.constant 0 : index
      %c0_46 = arith.constant 0 : index
      %52 = vector.load %arg10[%c1_44, %c0_45, %c0_46] : memref<11x256x128xbf16, #tpu.memory_space<vmem>>, vector<1x256x128xbf16>
      %53 = vector.shape_cast %52 : vector<1x256x128xbf16> to vector<256x128xbf16>
      %cst_47 = arith.constant dense<0.000000e+00> : vector<8x128xf32>
      %54 = tpu.matmul %51, %53, %cst_47 {dimension_numbers = #tpu.dot_dimension_numbers<[1], [0], [0], [1], [0, 0, 1, 1], [], []>} : vector<8x256xbf16>, vector<256x128xbf16>, vector<8x128xf32> -> vector<8x128xf32>
      %55 = arith.addf %38, %54 : vector<8x128xf32>
      %c1_48 = arith.constant 1 : index
      %c0_49 = arith.constant 0 : index
      %c0_50 = arith.constant 0 : index
      %56 = vector.load %arg8[%c1_48, %c0_49, %c0_50] : memref<10x256x256xbf16, #tpu.memory_space<vmem>>, vector<1x256x256xbf16>
      %57 = vector.shape_cast %56 : vector<1x256x256xbf16> to vector<256x256xbf16>
      %cst_51 = arith.constant dense<0.000000e+00> : vector<8x256xf32>
      %58 = tpu.matmul %51, %57, %cst_51 {dimension_numbers = #tpu.dot_dimension_numbers<[1], [0], [0], [1], [0, 0, 1, 1], [], []>} : vector<8x256xbf16>, vector<256x256xbf16>, vector<8x256xf32> -> vector<8x256xf32>
      %c2 = arith.constant 2 : index
      %c0_52 = arith.constant 0 : index
      %c0_53 = arith.constant 0 : index
      %59 = vector.load %arg9[%c2, %c0_52, %c0_53] : memref<11x1x256xf32, #tpu.memory_space<vmem>>, vector<1x1x256xf32>
      %60 = vector.shape_cast %59 : vector<1x1x256xf32> to vector<1x256xf32>
      %61 = vector.broadcast %60 : vector<1x256xf32> to vector<8x256xf32>
      %62 = arith.addf %58, %61 : vector<8x256xf32>
      %cst_54 = arith.constant 0.000000e+00 : f32
      %63 = vector.broadcast %cst_54 : f32 to vector<8x256xf32>
      %64 = arith.cmpf ogt, %62, %63 : vector<8x256xf32>
      %cst_55 = arith.constant 2.000000e-01 : f32
      %65 = vector.broadcast %cst_55 : f32 to vector<8x256xf32>
      %66 = arith.mulf %65, %62 : vector<8x256xf32>
      %67 = arith.select %64, %62, %66 : vector<8x256xi1>, vector<8x256xf32>
      %68 = arith.truncf %67 : vector<8x256xf32> to vector<8x256xbf16>
      %c2_56 = arith.constant 2 : index
      %c0_57 = arith.constant 0 : index
      %c0_58 = arith.constant 0 : index
      %69 = vector.load %arg10[%c2_56, %c0_57, %c0_58] : memref<11x256x128xbf16, #tpu.memory_space<vmem>>, vector<1x256x128xbf16>
      %70 = vector.shape_cast %69 : vector<1x256x128xbf16> to vector<256x128xbf16>
      %cst_59 = arith.constant dense<0.000000e+00> : vector<8x128xf32>
      %71 = tpu.matmul %68, %70, %cst_59 {dimension_numbers = #tpu.dot_dimension_numbers<[1], [0], [0], [1], [0, 0, 1, 1], [], []>} : vector<8x256xbf16>, vector<256x128xbf16>, vector<8x128xf32> -> vector<8x128xf32>
      %72 = arith.addf %55, %71 : vector<8x128xf32>
      %c2_60 = arith.constant 2 : index
      %c0_61 = arith.constant 0 : index
      %c0_62 = arith.constant 0 : index
      %73 = vector.load %arg8[%c2_60, %c0_61, %c0_62] : memref<10x256x256xbf16, #tpu.memory_space<vmem>>, vector<1x256x256xbf16>
      %74 = vector.shape_cast %73 : vector<1x256x256xbf16> to vector<256x256xbf16>
      %cst_63 = arith.constant dense<0.000000e+00> : vector<8x256xf32>
      %75 = tpu.matmul %68, %74, %cst_63 {dimension_numbers = #tpu.dot_dimension_numbers<[1], [0], [0], [1], [0, 0, 1, 1], [], []>} : vector<8x256xbf16>, vector<256x256xbf16>, vector<8x256xf32> -> vector<8x256xf32>
      %c3 = arith.constant 3 : index
      %c0_64 = arith.constant 0 : index
      %c0_65 = arith.constant 0 : index
      %76 = vector.load %arg9[%c3, %c0_64, %c0_65] : memref<11x1x256xf32, #tpu.memory_space<vmem>>, vector<1x1x256xf32>
      %77 = vector.shape_cast %76 : vector<1x1x256xf32> to vector<1x256xf32>
      %78 = vector.broadcast %77 : vector<1x256xf32> to vector<8x256xf32>
      %79 = arith.addf %75, %78 : vector<8x256xf32>
      %cst_66 = arith.constant 0.000000e+00 : f32
      %80 = vector.broadcast %cst_66 : f32 to vector<8x256xf32>
      %81 = arith.cmpf ogt, %79, %80 : vector<8x256xf32>
      %cst_67 = arith.constant 2.000000e-01 : f32
      %82 = vector.broadcast %cst_67 : f32 to vector<8x256xf32>
      %83 = arith.mulf %82, %79 : vector<8x256xf32>
      %84 = arith.select %81, %79, %83 : vector<8x256xi1>, vector<8x256xf32>
      %85 = arith.truncf %84 : vector<8x256xf32> to vector<8x256xbf16>
      %c3_68 = arith.constant 3 : index
      %c0_69 = arith.constant 0 : index
      %c0_70 = arith.constant 0 : index
      %86 = vector.load %arg10[%c3_68, %c0_69, %c0_70] : memref<11x256x128xbf16, #tpu.memory_space<vmem>>, vector<1x256x128xbf16>
      %87 = vector.shape_cast %86 : vector<1x256x128xbf16> to vector<256x128xbf16>
      %cst_71 = arith.constant dense<0.000000e+00> : vector<8x128xf32>
      %88 = tpu.matmul %85, %87, %cst_71 {dimension_numbers = #tpu.dot_dimension_numbers<[1], [0], [0], [1], [0, 0, 1, 1], [], []>} : vector<8x256xbf16>, vector<256x128xbf16>, vector<8x128xf32> -> vector<8x128xf32>
      %89 = arith.addf %72, %88 : vector<8x128xf32>
      %c3_72 = arith.constant 3 : index
      %c0_73 = arith.constant 0 : index
      %c0_74 = arith.constant 0 : index
      %90 = vector.load %arg8[%c3_72, %c0_73, %c0_74] : memref<10x256x256xbf16, #tpu.memory_space<vmem>>, vector<1x256x256xbf16>
      %91 = vector.shape_cast %90 : vector<1x256x256xbf16> to vector<256x256xbf16>
      %cst_75 = arith.constant dense<0.000000e+00> : vector<8x256xf32>
      %92 = tpu.matmul %85, %91, %cst_75 {dimension_numbers = #tpu.dot_dimension_numbers<[1], [0], [0], [1], [0, 0, 1, 1], [], []>} : vector<8x256xbf16>, vector<256x256xbf16>, vector<8x256xf32> -> vector<8x256xf32>
      %c4 = arith.constant 4 : index
      %c0_76 = arith.constant 0 : index
      %c0_77 = arith.constant 0 : index
      %93 = vector.load %arg9[%c4, %c0_76, %c0_77] : memref<11x1x256xf32, #tpu.memory_space<vmem>>, vector<1x1x256xf32>
      %94 = vector.shape_cast %93 : vector<1x1x256xf32> to vector<1x256xf32>
      %95 = vector.broadcast %94 : vector<1x256xf32> to vector<8x256xf32>
      %96 = arith.addf %92, %95 : vector<8x256xf32>
      %cst_78 = arith.constant 0.000000e+00 : f32
      %97 = vector.broadcast %cst_78 : f32 to vector<8x256xf32>
      %98 = arith.cmpf ogt, %96, %97 : vector<8x256xf32>
      %cst_79 = arith.constant 2.000000e-01 : f32
      %99 = vector.broadcast %cst_79 : f32 to vector<8x256xf32>
      %100 = arith.mulf %99, %96 : vector<8x256xf32>
      %101 = arith.select %98, %96, %100 : vector<8x256xi1>, vector<8x256xf32>
      %102 = arith.truncf %101 : vector<8x256xf32> to vector<8x256xbf16>
      %c4_80 = arith.constant 4 : index
      %c0_81 = arith.constant 0 : index
      %c0_82 = arith.constant 0 : index
      %103 = vector.load %arg10[%c4_80, %c0_81, %c0_82] : memref<11x256x128xbf16, #tpu.memory_space<vmem>>, vector<1x256x128xbf16>
      %104 = vector.shape_cast %103 : vector<1x256x128xbf16> to vector<256x128xbf16>
      %cst_83 = arith.constant dense<0.000000e+00> : vector<8x128xf32>
      %105 = tpu.matmul %102, %104, %cst_83 {dimension_numbers = #tpu.dot_dimension_numbers<[1], [0], [0], [1], [0, 0, 1, 1], [], []>} : vector<8x256xbf16>, vector<256x128xbf16>, vector<8x128xf32> -> vector<8x128xf32>
      %106 = arith.addf %89, %105 : vector<8x128xf32>
      %c4_84 = arith.constant 4 : index
      %c0_85 = arith.constant 0 : index
      %c0_86 = arith.constant 0 : index
      %107 = vector.load %arg8[%c4_84, %c0_85, %c0_86] : memref<10x256x256xbf16, #tpu.memory_space<vmem>>, vector<1x256x256xbf16>
      %108 = vector.shape_cast %107 : vector<1x256x256xbf16> to vector<256x256xbf16>
      %cst_87 = arith.constant dense<0.000000e+00> : vector<8x256xf32>
      %109 = tpu.matmul %102, %108, %cst_87 {dimension_numbers = #tpu.dot_dimension_numbers<[1], [0], [0], [1], [0, 0, 1, 1], [], []>} : vector<8x256xbf16>, vector<256x256xbf16>, vector<8x256xf32> -> vector<8x256xf32>
      %c5 = arith.constant 5 : index
      %c0_88 = arith.constant 0 : index
      %c0_89 = arith.constant 0 : index
      %110 = vector.load %arg9[%c5, %c0_88, %c0_89] : memref<11x1x256xf32, #tpu.memory_space<vmem>>, vector<1x1x256xf32>
      %111 = vector.shape_cast %110 : vector<1x1x256xf32> to vector<1x256xf32>
      %112 = vector.broadcast %111 : vector<1x256xf32> to vector<8x256xf32>
      %113 = arith.addf %109, %112 : vector<8x256xf32>
      %cst_90 = arith.constant 0.000000e+00 : f32
      %114 = vector.broadcast %cst_90 : f32 to vector<8x256xf32>
      %115 = arith.cmpf ogt, %113, %114 : vector<8x256xf32>
      %cst_91 = arith.constant 2.000000e-01 : f32
      %116 = vector.broadcast %cst_91 : f32 to vector<8x256xf32>
      %117 = arith.mulf %116, %113 : vector<8x256xf32>
      %118 = arith.select %115, %113, %117 : vector<8x256xi1>, vector<8x256xf32>
      %119 = arith.truncf %118 : vector<8x256xf32> to vector<8x256xbf16>
      %c5_92 = arith.constant 5 : index
      %c0_93 = arith.constant 0 : index
      %c0_94 = arith.constant 0 : index
      %120 = vector.load %arg10[%c5_92, %c0_93, %c0_94] : memref<11x256x128xbf16, #tpu.memory_space<vmem>>, vector<1x256x128xbf16>
      %121 = vector.shape_cast %120 : vector<1x256x128xbf16> to vector<256x128xbf16>
      %cst_95 = arith.constant dense<0.000000e+00> : vector<8x128xf32>
      %122 = tpu.matmul %119, %121, %cst_95 {dimension_numbers = #tpu.dot_dimension_numbers<[1], [0], [0], [1], [0, 0, 1, 1], [], []>} : vector<8x256xbf16>, vector<256x128xbf16>, vector<8x128xf32> -> vector<8x128xf32>
      %123 = arith.addf %106, %122 : vector<8x128xf32>
      %c5_96 = arith.constant 5 : index
      %c0_97 = arith.constant 0 : index
      %c0_98 = arith.constant 0 : index
      %124 = vector.load %arg8[%c5_96, %c0_97, %c0_98] : memref<10x256x256xbf16, #tpu.memory_space<vmem>>, vector<1x256x256xbf16>
      %125 = vector.shape_cast %124 : vector<1x256x256xbf16> to vector<256x256xbf16>
      %cst_99 = arith.constant dense<0.000000e+00> : vector<8x256xf32>
      %126 = tpu.matmul %119, %125, %cst_99 {dimension_numbers = #tpu.dot_dimension_numbers<[1], [0], [0], [1], [0, 0, 1, 1], [], []>} : vector<8x256xbf16>, vector<256x256xbf16>, vector<8x256xf32> -> vector<8x256xf32>
      %c6 = arith.constant 6 : index
      %c0_100 = arith.constant 0 : index
      %c0_101 = arith.constant 0 : index
      %127 = vector.load %arg9[%c6, %c0_100, %c0_101] : memref<11x1x256xf32, #tpu.memory_space<vmem>>, vector<1x1x256xf32>
      %128 = vector.shape_cast %127 : vector<1x1x256xf32> to vector<1x256xf32>
      %129 = vector.broadcast %128 : vector<1x256xf32> to vector<8x256xf32>
      %130 = arith.addf %126, %129 : vector<8x256xf32>
      %cst_102 = arith.constant 0.000000e+00 : f32
      %131 = vector.broadcast %cst_102 : f32 to vector<8x256xf32>
      %132 = arith.cmpf ogt, %130, %131 : vector<8x256xf32>
      %cst_103 = arith.constant 2.000000e-01 : f32
      %133 = vector.broadcast %cst_103 : f32 to vector<8x256xf32>
      %134 = arith.mulf %133, %130 : vector<8x256xf32>
      %135 = arith.select %132, %130, %134 : vector<8x256xi1>, vector<8x256xf32>
      %136 = arith.truncf %135 : vector<8x256xf32> to vector<8x256xbf16>
      %c6_104 = arith.constant 6 : index
      %c0_105 = arith.constant 0 : index
      %c0_106 = arith.constant 0 : index
      %137 = vector.load %arg10[%c6_104, %c0_105, %c0_106] : memref<11x256x128xbf16, #tpu.memory_space<vmem>>, vector<1x256x128xbf16>
      %138 = vector.shape_cast %137 : vector<1x256x128xbf16> to vector<256x128xbf16>
      %cst_107 = arith.constant dense<0.000000e+00> : vector<8x128xf32>
      %139 = tpu.matmul %136, %138, %cst_107 {dimension_numbers = #tpu.dot_dimension_numbers<[1], [0], [0], [1], [0, 0, 1, 1], [], []>} : vector<8x256xbf16>, vector<256x128xbf16>, vector<8x128xf32> -> vector<8x128xf32>
      %140 = arith.addf %123, %139 : vector<8x128xf32>
      %c6_108 = arith.constant 6 : index
      %c0_109 = arith.constant 0 : index
      %c0_110 = arith.constant 0 : index
      %141 = vector.load %arg8[%c6_108, %c0_109, %c0_110] : memref<10x256x256xbf16, #tpu.memory_space<vmem>>, vector<1x256x256xbf16>
      %142 = vector.shape_cast %141 : vector<1x256x256xbf16> to vector<256x256xbf16>
      %cst_111 = arith.constant dense<0.000000e+00> : vector<8x256xf32>
      %143 = tpu.matmul %136, %142, %cst_111 {dimension_numbers = #tpu.dot_dimension_numbers<[1], [0], [0], [1], [0, 0, 1, 1], [], []>} : vector<8x256xbf16>, vector<256x256xbf16>, vector<8x256xf32> -> vector<8x256xf32>
      %c7 = arith.constant 7 : index
      %c0_112 = arith.constant 0 : index
      %c0_113 = arith.constant 0 : index
      %144 = vector.load %arg9[%c7, %c0_112, %c0_113] : memref<11x1x256xf32, #tpu.memory_space<vmem>>, vector<1x1x256xf32>
      %145 = vector.shape_cast %144 : vector<1x1x256xf32> to vector<1x256xf32>
      %146 = vector.broadcast %145 : vector<1x256xf32> to vector<8x256xf32>
      %147 = arith.addf %143, %146 : vector<8x256xf32>
      %cst_114 = arith.constant 0.000000e+00 : f32
      %148 = vector.broadcast %cst_114 : f32 to vector<8x256xf32>
      %149 = arith.cmpf ogt, %147, %148 : vector<8x256xf32>
      %cst_115 = arith.constant 2.000000e-01 : f32
      %150 = vector.broadcast %cst_115 : f32 to vector<8x256xf32>
      %151 = arith.mulf %150, %147 : vector<8x256xf32>
      %152 = arith.select %149, %147, %151 : vector<8x256xi1>, vector<8x256xf32>
      %153 = arith.truncf %152 : vector<8x256xf32> to vector<8x256xbf16>
      %c7_116 = arith.constant 7 : index
      %c0_117 = arith.constant 0 : index
      %c0_118 = arith.constant 0 : index
      %154 = vector.load %arg10[%c7_116, %c0_117, %c0_118] : memref<11x256x128xbf16, #tpu.memory_space<vmem>>, vector<1x256x128xbf16>
      %155 = vector.shape_cast %154 : vector<1x256x128xbf16> to vector<256x128xbf16>
      %cst_119 = arith.constant dense<0.000000e+00> : vector<8x128xf32>
      %156 = tpu.matmul %153, %155, %cst_119 {dimension_numbers = #tpu.dot_dimension_numbers<[1], [0], [0], [1], [0, 0, 1, 1], [], []>} : vector<8x256xbf16>, vector<256x128xbf16>, vector<8x128xf32> -> vector<8x128xf32>
      %157 = arith.addf %140, %156 : vector<8x128xf32>
      %c7_120 = arith.constant 7 : index
      %c0_121 = arith.constant 0 : index
      %c0_122 = arith.constant 0 : index
      %158 = vector.load %arg8[%c7_120, %c0_121, %c0_122] : memref<10x256x256xbf16, #tpu.memory_space<vmem>>, vector<1x256x256xbf16>
      %159 = vector.shape_cast %158 : vector<1x256x256xbf16> to vector<256x256xbf16>
      %cst_123 = arith.constant dense<0.000000e+00> : vector<8x256xf32>
      %160 = tpu.matmul %153, %159, %cst_123 {dimension_numbers = #tpu.dot_dimension_numbers<[1], [0], [0], [1], [0, 0, 1, 1], [], []>} : vector<8x256xbf16>, vector<256x256xbf16>, vector<8x256xf32> -> vector<8x256xf32>
      %c8 = arith.constant 8 : index
      %c0_124 = arith.constant 0 : index
      %c0_125 = arith.constant 0 : index
      %161 = vector.load %arg9[%c8, %c0_124, %c0_125] : memref<11x1x256xf32, #tpu.memory_space<vmem>>, vector<1x1x256xf32>
      %162 = vector.shape_cast %161 : vector<1x1x256xf32> to vector<1x256xf32>
      %163 = vector.broadcast %162 : vector<1x256xf32> to vector<8x256xf32>
      %164 = arith.addf %160, %163 : vector<8x256xf32>
      %cst_126 = arith.constant 0.000000e+00 : f32
      %165 = vector.broadcast %cst_126 : f32 to vector<8x256xf32>
      %166 = arith.cmpf ogt, %164, %165 : vector<8x256xf32>
      %cst_127 = arith.constant 2.000000e-01 : f32
      %167 = vector.broadcast %cst_127 : f32 to vector<8x256xf32>
      %168 = arith.mulf %167, %164 : vector<8x256xf32>
      %169 = arith.select %166, %164, %168 : vector<8x256xi1>, vector<8x256xf32>
      %170 = arith.truncf %169 : vector<8x256xf32> to vector<8x256xbf16>
      %c8_128 = arith.constant 8 : index
      %c0_129 = arith.constant 0 : index
      %c0_130 = arith.constant 0 : index
      %171 = vector.load %arg10[%c8_128, %c0_129, %c0_130] : memref<11x256x128xbf16, #tpu.memory_space<vmem>>, vector<1x256x128xbf16>
      %172 = vector.shape_cast %171 : vector<1x256x128xbf16> to vector<256x128xbf16>
      %cst_131 = arith.constant dense<0.000000e+00> : vector<8x128xf32>
      %173 = tpu.matmul %170, %172, %cst_131 {dimension_numbers = #tpu.dot_dimension_numbers<[1], [0], [0], [1], [0, 0, 1, 1], [], []>} : vector<8x256xbf16>, vector<256x128xbf16>, vector<8x128xf32> -> vector<8x128xf32>
      %174 = arith.addf %157, %173 : vector<8x128xf32>
      %c8_132 = arith.constant 8 : index
      %c0_133 = arith.constant 0 : index
      %c0_134 = arith.constant 0 : index
      %175 = vector.load %arg8[%c8_132, %c0_133, %c0_134] : memref<10x256x256xbf16, #tpu.memory_space<vmem>>, vector<1x256x256xbf16>
      %176 = vector.shape_cast %175 : vector<1x256x256xbf16> to vector<256x256xbf16>
      %cst_135 = arith.constant dense<0.000000e+00> : vector<8x256xf32>
      %177 = tpu.matmul %170, %176, %cst_135 {dimension_numbers = #tpu.dot_dimension_numbers<[1], [0], [0], [1], [0, 0, 1, 1], [], []>} : vector<8x256xbf16>, vector<256x256xbf16>, vector<8x256xf32> -> vector<8x256xf32>
      %c9 = arith.constant 9 : index
      %c0_136 = arith.constant 0 : index
      %c0_137 = arith.constant 0 : index
      %178 = vector.load %arg9[%c9, %c0_136, %c0_137] : memref<11x1x256xf32, #tpu.memory_space<vmem>>, vector<1x1x256xf32>
      %179 = vector.shape_cast %178 : vector<1x1x256xf32> to vector<1x256xf32>
      %180 = vector.broadcast %179 : vector<1x256xf32> to vector<8x256xf32>
      %181 = arith.addf %177, %180 : vector<8x256xf32>
      %cst_138 = arith.constant 0.000000e+00 : f32
      %182 = vector.broadcast %cst_138 : f32 to vector<8x256xf32>
      %183 = arith.cmpf ogt, %181, %182 : vector<8x256xf32>
      %cst_139 = arith.constant 2.000000e-01 : f32
      %184 = vector.broadcast %cst_139 : f32 to vector<8x256xf32>
      %185 = arith.mulf %184, %181 : vector<8x256xf32>
      %186 = arith.select %183, %181, %185 : vector<8x256xi1>, vector<8x256xf32>
      %187 = arith.truncf %186 : vector<8x256xf32> to vector<8x256xbf16>
      %c9_140 = arith.constant 9 : index
      %c0_141 = arith.constant 0 : index
      %c0_142 = arith.constant 0 : index
      %188 = vector.load %arg10[%c9_140, %c0_141, %c0_142] : memref<11x256x128xbf16, #tpu.memory_space<vmem>>, vector<1x256x128xbf16>
      %189 = vector.shape_cast %188 : vector<1x256x128xbf16> to vector<256x128xbf16>
      %cst_143 = arith.constant dense<0.000000e+00> : vector<8x128xf32>
      %190 = tpu.matmul %187, %189, %cst_143 {dimension_numbers = #tpu.dot_dimension_numbers<[1], [0], [0], [1], [0, 0, 1, 1], [], []>} : vector<8x256xbf16>, vector<256x128xbf16>, vector<8x128xf32> -> vector<8x128xf32>
      %191 = arith.addf %174, %190 : vector<8x128xf32>
      %c9_144 = arith.constant 9 : index
      %c0_145 = arith.constant 0 : index
      %c0_146 = arith.constant 0 : index
      %192 = vector.load %arg8[%c9_144, %c0_145, %c0_146] : memref<10x256x256xbf16, #tpu.memory_space<vmem>>, vector<1x256x256xbf16>
      %193 = vector.shape_cast %192 : vector<1x256x256xbf16> to vector<256x256xbf16>
      %cst_147 = arith.constant dense<0.000000e+00> : vector<8x256xf32>
      %194 = tpu.matmul %187, %193, %cst_147 {dimension_numbers = #tpu.dot_dimension_numbers<[1], [0], [0], [1], [0, 0, 1, 1], [], []>} : vector<8x256xbf16>, vector<256x256xbf16>, vector<8x256xf32> -> vector<8x256xf32>
      %c10 = arith.constant 10 : index
      %c0_148 = arith.constant 0 : index
      %c0_149 = arith.constant 0 : index
      %195 = vector.load %arg9[%c10, %c0_148, %c0_149] : memref<11x1x256xf32, #tpu.memory_space<vmem>>, vector<1x1x256xf32>
      %196 = vector.shape_cast %195 : vector<1x1x256xf32> to vector<1x256xf32>
      %197 = vector.broadcast %196 : vector<1x256xf32> to vector<8x256xf32>
      %198 = arith.addf %194, %197 : vector<8x256xf32>
      %cst_150 = arith.constant 0.000000e+00 : f32
      %199 = vector.broadcast %cst_150 : f32 to vector<8x256xf32>
      %200 = arith.cmpf ogt, %198, %199 : vector<8x256xf32>
      %cst_151 = arith.constant 2.000000e-01 : f32
      %201 = vector.broadcast %cst_151 : f32 to vector<8x256xf32>
      %202 = arith.mulf %201, %198 : vector<8x256xf32>
      %203 = arith.select %200, %198, %202 : vector<8x256xi1>, vector<8x256xf32>
      %204 = arith.truncf %203 : vector<8x256xf32> to vector<8x256xbf16>
      %c10_152 = arith.constant 10 : index
      %c0_153 = arith.constant 0 : index
      %c0_154 = arith.constant 0 : index
      %205 = vector.load %arg10[%c10_152, %c0_153, %c0_154] : memref<11x256x128xbf16, #tpu.memory_space<vmem>>, vector<1x256x128xbf16>
      %206 = vector.shape_cast %205 : vector<1x256x128xbf16> to vector<256x128xbf16>
      %cst_155 = arith.constant dense<0.000000e+00> : vector<8x128xf32>
      %207 = tpu.matmul %204, %206, %cst_155 {dimension_numbers = #tpu.dot_dimension_numbers<[1], [0], [0], [1], [0, 0, 1, 1], [], []>} : vector<8x256xbf16>, vector<256x128xbf16>, vector<8x128xf32> -> vector<8x128xf32>
      %208 = arith.addf %191, %207 : vector<8x128xf32>
      %c0_156 = arith.constant 0 : index
      %c0_157 = arith.constant 0 : index
      %209 = vector.load %arg11[%c0_156, %c0_157] : memref<1x128xf32, #tpu.memory_space<vmem>>, vector<1x128xf32>
      %210 = vector.broadcast %209 : vector<1x128xf32> to vector<8x128xf32>
      %211 = arith.addf %208, %210 : vector<8x128xf32>
      %cst_158 = arith.constant 0.000000e+00 : f32
      %212 = vector.broadcast %cst_158 : f32 to vector<8x128xf32>
      %213 = arith.subf %212, %211 : vector<8x128xf32>
      %214 = math.exp %213 : vector<8x128xf32>
      %cst_159 = arith.constant 1.000000e+00 : f32
      %215 = vector.broadcast %cst_159 : f32 to vector<8x128xf32>
      %216 = arith.addf %215, %214 : vector<8x128xf32>
      %217 = tpu.reciprocal %216 {approx = true} : vector<8x128xf32> -> vector<8x128xf32>
      %c0_160 = arith.constant 0 : index
      %c0_161 = arith.constant 0 : index
      %218 = vector.load %arg5[%c0_160, %c0_161] : memref<8x128xf32, #tpu.memory_space<vmem>>, vector<8x128xf32>
      %219 = arith.mulf %217, %218 : vector<8x128xf32>
      %c0_162 = arith.constant 0 : index
      %c0_163 = arith.constant 0 : index
      %220 = vector.load %arg12[%c0_162, %c0_163] : memref<8x128xf32, #tpu.memory_space<vmem>>, vector<8x128xf32>
      tpu.vector_store %arg12[%c0_162, %c0_163], %219 {strides = array<i32>} : memref<8x128xf32, #tpu.memory_space<vmem>>, vector<8x128xf32>,
    } else {
    }
    return
  }
  func.func @transform_0(%arg0: i32, %arg1: i32) -> (i32, i32) {
    %c0_i32 = arith.constant 0 : i32
    return %arg0, %arg1 : i32, i32
  }
  func.func @transform_1(%arg0: i32, %arg1: i32) -> (i32, i32) {
    %c0_i32 = arith.constant 0 : i32
    return %arg0, %arg1 : i32, i32
  }
  func.func @transform_2(%arg0: i32, %arg1: i32) -> (i32, i32) {
    %c0_i32 = arith.constant 0 : i32
    %c0_i32_0 = arith.constant 0 : i32
    return %arg1, %c0_i32 : i32, i32
  }
  func.func @transform_3(%arg0: i32, %arg1: i32) -> (i32, i32) {
    %c0_i32 = arith.constant 0 : i32
    %c0_i32_0 = arith.constant 0 : i32
    return %arg0, %c0_i32 : i32, i32
  }
  func.func @transform_4(%arg0: i32, %arg1: i32) -> (i32, i32) {
    %c0_i32 = arith.constant 0 : i32
    %c0_i32_0 = arith.constant 0 : i32
    %c0_i32_1 = arith.constant 0 : i32
    return %c0_i32, %c0_i32_0 : i32, i32
  }
  func.func @transform_5(%arg0: i32, %arg1: i32) -> (i32, i32) {
    %c0_i32 = arith.constant 0 : i32
    %c0_i32_0 = arith.constant 0 : i32
    %c0_i32_1 = arith.constant 0 : i32
    return %c0_i32, %c0_i32_0 : i32, i32
  }
  func.func @transform_6(%arg0: i32, %arg1: i32) -> (i32, i32, i32) {
    %c0_i32 = arith.constant 0 : i32
    %c0_i32_0 = arith.constant 0 : i32
    %c0_i32_1 = arith.constant 0 : i32
    %c0_i32_2 = arith.constant 0 : i32
    return %c0_i32, %c0_i32_0, %c0_i32_1 : i32, i32, i32
  }
  func.func @transform_7(%arg0: i32, %arg1: i32) -> (i32, i32, i32) {
    %c0_i32 = arith.constant 0 : i32
    %c0_i32_0 = arith.constant 0 : i32
    %c0_i32_1 = arith.constant 0 : i32
    %c0_i32_2 = arith.constant 0 : i32
    return %c0_i32, %c0_i32_0, %c0_i32_1 : i32, i32, i32
  }
  func.func @transform_8(%arg0: i32, %arg1: i32) -> (i32, i32, i32) {
    %c0_i32 = arith.constant 0 : i32
    %c0_i32_0 = arith.constant 0 : i32
    %c0_i32_1 = arith.constant 0 : i32
    %c0_i32_2 = arith.constant 0 : i32
    return %c0_i32, %c0_i32_0, %c0_i32_1 : i32, i32, i32
  }
  func.func @transform_9(%arg0: i32, %arg1: i32) -> (i32, i32) {
    %c0_i32 = arith.constant 0 : i32
    %c0_i32_0 = arith.constant 0 : i32
    %c0_i32_1 = arith.constant 0 : i32
    return %c0_i32, %c0_i32_0 : i32, i32
  }
  func.func @transform_10(%arg0: i32, %arg1: i32) -> (i32, i32) {
    %c0_i32 = arith.constant 0 : i32
    %c0_i32_0 = arith.constant 0 : i32
    return %arg0, %c0_i32 : i32, i32
  }
}

</mosaic_0001>

<llo_original>
// kernel: mtcf_forward.1
$region0: #{mtcf_forward.1}
  #allocation0 [shape = 'u32[]', space=smem, size = 0x4, offset = 0x4, fixed_abs, tag = 'smem constant byte address 0x4 - core index']
  #allocation1 [shape = 'u32[72,128]{1,0:T(1,128)}', space=vmem, size = 0x9000, scoped, tag = 'internal scratch']
  #allocation2 [shape = 'f32[8,512]{1,0:T(8,128)}', space=vmem, size = 0x4000, scoped, tag = 'scratch operand']
  #allocation3 [shape = 'f32[8,512]{1,0:T(8,128)}', space=vmem, size = 0x4000, scoped, tag = 'scratch operand']
  %s0 = inlined_call_operand.vmem [shape: bf16[8,768], index: 0, kind: input, shape index: {}]
  %s1 = inlined_call_operand.vmem [shape: bf16[8,768], index: 1, kind: input, shape index: {}]
  %s2 = inlined_call_operand.hbm [shape: bf16[768,512], index: 2, kind: input, shape index: {}]
  %s3 = inlined_call_operand.vmem [shape: f32[8,128], index: 3, kind: input, shape index: {}]
  %s4 = inlined_call_operand.hbm [shape: bf16[512,256], index: 4, kind: input, shape index: {}]
  %s5 = inlined_call_operand.hbm [shape: bf16[512,256], index: 5, kind: input, shape index: {}]
  %s6 = inlined_call_operand.hbm [shape: bf16[10,256,256], index: 6, kind: input, shape index: {}]
  %s7 = inlined_call_operand.hbm [shape: f32[11,1,256], index: 7, kind: input, shape index: {}]
  %s8 = inlined_call_operand.hbm [shape: bf16[11,256,128], index: 8, kind: input, shape index: {}]
  %s9 = inlined_call_operand.hbm [shape: f32[1,128], index: 9, kind: input, shape index: {}]
  %s10 = inlined_call_operand.vmem [shape: f32[8,128], index: 10, kind: output, shape index: {}]
  %s11 = sld [smem:[#allocation0]]
  $region86: #{mtcf_forward.1} parent=0
    _
  %s13 = ssub.s32 1, %s11
  %s14 = scalar_select 0, %s13, %s11
  $region1: #{mtcf_forward.1} parent=0
    #allocation4 [shape = 'u8[786432]{0}', space=vmem, size = 0xc0000, scoped, tag = 'input window, operand 2, single buffered']
    #allocation5 [shape = 's32[1]{0}', space=sflag, size = 0x4, scoped, tag = 'scoped memory for mtcf_forward.1']
    #allocation6 [shape = 'u8[262144]{0}', space=vmem, size = 0x40000, scoped, tag = 'input window, operand 4, single buffered']
    #allocation7 [shape = 's32[1]{0}', space=sflag, size = 0x4, scoped, tag = 'scoped memory for mtcf_forward.1']
    #allocation8 [shape = 'u8[262144]{0}', space=vmem, size = 0x40000, scoped, tag = 'input window, operand 5, single buffered']
    #allocation9 [shape = 'u8[1310720]{0}', space=vmem, size = 0x140000, scoped, tag = 'input window, operand 6, single buffered']
    #allocation10 [shape = 's32[1]{0}', space=sflag, size = 0x4, scoped, tag = 'scoped memory for mtcf_forward.1']
    #allocation11 [shape = 'u8[11264]{0}', space=vmem, size = 0x2c00, scoped, tag = 'input window, operand 7, single buffered']
    #allocation12 [shape = 'u8[720896]{0}', space=vmem, size = 0xb0000, scoped, tag = 'input window, operand 8, single buffered']
    #allocation13 [shape = 's32[1]{0}', space=sflag, size = 0x4, scoped, tag = 'scoped memory for mtcf_forward.1']
    #allocation14 [shape = 'u8[512]{0}', space=vmem, size = 0x400, scoped, tag = 'input window, operand 9, single buffered']
    %15 = vsyncpa [#allocation5], 0
    %16 = vsyncpa [#allocation7], 0
    %17 = vsyncpa [#allocation10], 0
    %18 = vsyncpa [#allocation13], 0
    // Predicated region
    $region2: #{mtcf_forward.1} parent=1 // pred_check
      _
    $region3: #{mtcf_forward.1} parent=1 // pred_check_branch
      %20 = sbr.rel (0) target = $region5
    $region4: #{mtcf_forward.1} parent=1 // pred_region
      _
    $region5: #{mtcf_forward.1} parent=1 // pred_fallthru
      _
    // Predicated region
    $region6: #{mtcf_forward.1} parent=1 // pred_check
      _
    $region7: #{mtcf_forward.1} parent=1 // pred_check_branch
      %22 = sbr.rel (0) target = $region9
    $region8: #{mtcf_forward.1} parent=1 // pred_region
      _
    $region9: #{mtcf_forward.1} parent=1 // pred_fallthru
      _
    // Predicated region
    $region10: #{mtcf_forward.1} parent=1 // pred_check
      _
    $region11: #{mtcf_forward.1} parent=1 // pred_check_branch
      %24 = sbr.rel (0) target = $region13
    $region12: #{mtcf_forward.1} parent=1 // pred_region
      %26 = vsyncadd [#allocation5], 0
      %s27 = sshll.u32 %s2, 4
      %s28 = int_to_ptr.hbm [resolvable:$true] %s27
      %s29 = sshll.u32 [#allocation4], 4
      %s30 = int_to_ptr.vmem [resolvable:$true] %s29
      %35 = dma.hbm_to_vmem [thread:$0]  %s28, 24576, %s30, [#allocation5], 256, 256, 16
    $region13: #{mtcf_forward.1} parent=1 // pred_fallthru
      _
    // Predicated region
    $region14: #{mtcf_forward.1} parent=1 // pred_check
      _
    $region15: #{mtcf_forward.1} parent=1 // pred_check_branch
      %37 = sbr.rel (0) target = $region17
    $region16: #{mtcf_forward.1} parent=1 // pred_region
      _
    $region17: #{mtcf_forward.1} parent=1 // pred_fallthru
      _
    // Predicated region
    $region18: #{mtcf_forward.1} parent=1 // pred_check
      _
    $region19: #{mtcf_forward.1} parent=1 // pred_check_branch
      %39 = sbr.rel (0) target = $region21
    $region20: #{mtcf_forward.1} parent=1 // pred_region
      %41 = vsyncadd [#allocation7], 0
      %s42 = sshll.u32 %s4, 4
      %s43 = int_to_ptr.hbm [resolvable:$true] %s42
      %s44 = sshll.u32 [#allocation6], 4
      %s45 = int_to_ptr.vmem [resolvable:$true] %s44
      %50 = dma.hbm_to_vmem [thread:$0]  %s43, 8192, %s45, [#allocation7], 128, 128, 8
    $region21: #{mtcf_forward.1} parent=1 // pred_fallthru
      _
    // Predicated region
    $region22: #{mtcf_forward.1} parent=1 // pred_check
      _
    $region23: #{mtcf_forward.1} parent=1 // pred_check_branch
      %52 = sbr.rel (0) target = $region25
    $region24: #{mtcf_forward.1} parent=1 // pred_region
      %54 = vsyncadd [#allocation7], 0
      %s55 = sshll.u32 %s5, 4
      %s56 = int_to_ptr.hbm [resolvable:$true] %s55
      %s57 = sshll.u32 [#allocation8], 4
      %s58 = int_to_ptr.vmem [resolvable:$true] %s57
      %63 = dma.hbm_to_vmem [thread:$0]  %s56, 8192, %s58, [#allocation7], 128, 128, 8
    $region25: #{mtcf_forward.1} parent=1 // pred_fallthru
      _
    // Predicated region
    $region26: #{mtcf_forward.1} parent=1 // pred_check
      _
    $region27: #{mtcf_forward.1} parent=1 // pred_check_branch
      %65 = sbr.rel (0) target = $region29
    $region28: #{mtcf_forward.1} parent=1 // pred_region
      %67 = vsyncadd [#allocation10], 0
      %s68 = sshll.u32 %s6, 4
      %s69 = int_to_ptr.hbm [resolvable:$true] %s68
      %s70 = sshll.u32 [#allocation9], 4
      %s71 = int_to_ptr.vmem [resolvable:$true] %s70
      %76 = dma.hbm_to_vmem [thread:$0]  %s69, 40960, %s71, [#allocation10], 128, 128, 8
    $region29: #{mtcf_forward.1} parent=1 // pred_fallthru
      _
    // Predicated region
    $region30: #{mtcf_forward.1} parent=1 // pred_check
      _
    $region31: #{mtcf_forward.1} parent=1 // pred_check_branch
      %78 = sbr.rel (0) target = $region33
    $region32: #{mtcf_forward.1} parent=1 // pred_region
      %80 = vsyncadd [#allocation10], 0
      %s81 = sshll.u32 %s7, 4
      %s82 = int_to_ptr.hbm [resolvable:$true] %s81
      %s83 = sshll.u32 [#allocation11], 4
      %s84 = int_to_ptr.vmem [resolvable:$true] %s83
      %89 = dma.hbm_to_vmem [thread:$0]  %s82, 352, %s84, [#allocation10], 32, 32, 2
    $region33: #{mtcf_forward.1} parent=1 // pred_fallthru
      _
    // Predicated region
    $region34: #{mtcf_forward.1} parent=1 // pred_check
      _
    $region35: #{mtcf_forward.1} parent=1 // pred_check_branch
      %91 = sbr.rel (0) target = $region37
    $region36: #{mtcf_forward.1} parent=1 // pred_region
      %93 = vsyncadd [#allocation13], 0
      %s94 = sshll.u32 %s8, 4
      %s95 = int_to_ptr.hbm [resolvable:$true] %s94
      %s96 = sshll.u32 [#allocation12], 4
      %s97 = int_to_ptr.vmem [resolvable:$true] %s96
      %102 = dma.hbm_to_vmem [thread:$0]  %s95, 22528, %s97, [#allocation13], 64, 64, 4
    $region37: #{mtcf_forward.1} parent=1 // pred_fallthru
      _
    // Predicated region
    $region38: #{mtcf_forward.1} parent=1 // pred_check
      _
    $region39: #{mtcf_forward.1} parent=1 // pred_check_branch
      %104 = sbr.rel (0) target = $region41
    $region40: #{mtcf_forward.1} parent=1 // pred_region
      %106 = vsyncadd [#allocation13], 0
      %s108 = sshll.u32 %s9, 4
      %s109 = int_to_ptr.hbm [resolvable:$true] %s108
      %s110 = sshll.u32 [#allocation14], 4
      %s111 = int_to_ptr.vmem [resolvable:$true] %s110
      %113 = dma.hbm_to_vmem [thread:$0]  %s109, 16, %s111, [#allocation13]
    $region41: #{mtcf_forward.1} parent=1 // pred_fallthru
      _
    // Predicated region
    $region42: #{mtcf_forward.1} parent=1 // pred_check
      _
    $region43: #{mtcf_forward.1} parent=1 // pred_check_branch
      %115 = sbr.rel (0) target = $region45
    $region44: #{mtcf_forward.1} parent=1 // pred_region
      %117 = dma.done [#allocation5], 24576
    $region45: #{mtcf_forward.1} parent=1 // pred_fallthru
      _
    // Predicated region
    $region46: #{mtcf_forward.1} parent=1 // pred_check
      _
    $region47: #{mtcf_forward.1} parent=1 // pred_check_branch
      %119 = sbr.rel (0) target = $region49
    $region48: #{mtcf_forward.1} parent=1 // pred_region
      %121 = dma.done [#allocation7], 8192
    $region49: #{mtcf_forward.1} parent=1 // pred_fallthru
      _
    // Predicated region
    $region50: #{mtcf_forward.1} parent=1 // pred_check
      _
    $region51: #{mtcf_forward.1} parent=1 // pred_check_branch
      %123 = sbr.rel (0) target = $region53
    $region52: #{mtcf_forward.1} parent=1 // pred_region
      %125 = dma.done [#allocation7], 8192
    $region53: #{mtcf_forward.1} parent=1 // pred_fallthru
      _
    // Predicated region
    $region54: #{mtcf_forward.1} parent=1 // pred_check
      _
    $region55: #{mtcf_forward.1} parent=1 // pred_check_branch
      %127 = sbr.rel (0) target = $region57
    $region56: #{mtcf_forward.1} parent=1 // pred_region
      %129 = dma.done [#allocation10], 40960
    $region57: #{mtcf_forward.1} parent=1 // pred_fallthru
      _
    // Predicated region
    $region58: #{mtcf_forward.1} parent=1 // pred_check
      _
    $region59: #{mtcf_forward.1} parent=1 // pred_check_branch
      %131 = sbr.rel (0) target = $region61
    $region60: #{mtcf_forward.1} parent=1 // pred_region
      %133 = dma.done [#allocation10], 352
    $region61: #{mtcf_forward.1} parent=1 // pred_fallthru
      _
    // Predicated region
    $region62: #{mtcf_forward.1} parent=1 // pred_check
      _
    $region63: #{mtcf_forward.1} parent=1 // pred_check_branch
      %135 = sbr.rel (0) target = $region65
    $region64: #{mtcf_forward.1} parent=1 // pred_region
      %137 = dma.done [#allocation13], 22528
    $region65: #{mtcf_forward.1} parent=1 // pred_fallthru
      _
    // Predicated region
    $region66: #{mtcf_forward.1} parent=1 // pred_check
      _
    $region67: #{mtcf_forward.1} parent=1 // pred_check_branch
      %139 = sbr.rel (0) target = $region69
    $region68: #{mtcf_forward.1} parent=1 // pred_region
      %141 = dma.done [#allocation13], 16
    $region69: #{mtcf_forward.1} parent=1 // pred_fallthru
      _
    %p142 = scmp.eq.s32.totalorder 0, 0
    // Predicated region
    $region70: #{mtcf_forward.1} parent=1 // pred_check
      %p143 = pneg %p142
    $region71: #{mtcf_forward.1} parent=1 // pred_check_branch
      %145 = sbr.rel (%p143) target = $region73
    $region72: #{mtcf_forward.1} parent=1 // pred_region
      %146 = vst [vmem:[#allocation2] sm:$0xff] 0.0
      %147 = vst [vmem:[#allocation2 + $0x8] sm:$0xff] 0.0
      %148 = vst [vmem:[#allocation2 + $0x10] sm:$0xff] 0.0
      %149 = vst [vmem:[#allocation2 + $0x18] sm:$0xff] 0.0
      %150 = vst [vmem:[#allocation3] sm:$0xff] 0.0
      %151 = vst [vmem:[#allocation3 + $0x8] sm:$0xff] 0.0
      %152 = vst [vmem:[#allocation3 + $0x10] sm:$0xff] 0.0
      %153 = vst [vmem:[#allocation3 + $0x18] sm:$0xff] 0.0
    $region73: #{mtcf_forward.1} parent=1 // pred_fallthru
      _
    %v154 = vld [vmem:[#allocation4] sm:$0xff]
    %v155 = vld [vmem:[#allocation4 + $0x8] sm:$0xff]
    %v156 = vld [vmem:[#allocation4 + $0x10] sm:$0xff]
    %v157 = vld [vmem:[#allocation4 + $0x18] sm:$0xff]
    %v158 = vld [vmem:[#allocation4 + $0x20] sm:$0xff]
    %v159 = vld [vmem:[#allocation4 + $0x28] sm:$0xff]
    %v160 = vld [vmem:[#allocation4 + $0x30] sm:$0xff]
    %v161 = vld [vmem:[#allocation4 + $0x38] sm:$0xff]
    %v162 = vld [vmem:[#allocation4 + $0x40] sm:$0xff]
    %v163 = vld [vmem:[#allocation4 + $0x48] sm:$0xff]
    %v164 = vld [vmem:[#allocation4 + $0x50] sm:$0xff]
    %v165 = vld [vmem:[#allocation4 + $0x58] sm:$0xff]
    %v166 = vld [vmem:[#allocation4 + $0x60] sm:$0xff]
    %v167 = vld [vmem:[#allocation4 + $0x68] sm:$0xff]
    %v168 = vld [vmem:[#allocation4 + $0x70] sm:$0xff]
    %v169 = vld [vmem:[#allocation4 + $0x78] sm:$0xff]
    %v170 = vld [vmem:[#allocation4 + $0x80] sm:$0xff]
    %v171 = vld [vmem:[#allocation4 + $0x88] sm:$0xff]
    %v172 = vld [vmem:[#allocation4 + $0x90] sm:$0xff]
    %v173 = vld [vmem:[#allocation4 + $0x98] sm:$0xff]
    %v174 = vld [vmem:[#allocation4 + $0xa0] sm:$0xff]
    %v175 = vld [vmem:[#allocation4 + $0xa8] sm:$0xff]
    %v176 = vld [vmem:[#allocation4 + $0xb0] sm:$0xff]
    %v177 = vld [vmem:[#allocation4 + $0xb8] sm:$0xff]
    %v178 = vld [vmem:[#allocation4 + $0xc0] sm:$0xff]
    %v179 = vld [vmem:[#allocation4 + $0xc8] sm:$0xff]
    %v180 = vld [vmem:[#allocation4 + $0xd0] sm:$0xff]
    %v181 = vld [vmem:[#allocation4 + $0xd8] sm:$0xff]
    %v182 = vld [vmem:[#allocation4 + $0xe0] sm:$0xff]
    %v183 = vld [vmem:[#allocation4 + $0xe8] sm:$0xff]
    %v184 = vld [vmem:[#allocation4 + $0xf0] sm:$0xff]
    %v185 = vld [vmem:[#allocation4 + $0xf8] sm:$0xff]
    %v186 = vld [vmem:[#allocation4 + $0x100] sm:$0xff]
    %v187 = vld [vmem:[#allocation4 + $0x108] sm:$0xff]
    %v188 = vld [vmem:[#allocation4 + $0x110] sm:$0xff]
    %v189 = vld [vmem:[#allocation4 + $0x118] sm:$0xff]
    %v190 = vld [vmem:[#allocation4 + $0x120] sm:$0xff]
    %v191 = vld [vmem:[#allocation4 + $0x128] sm:$0xff]
    %v192 = vld [vmem:[#allocation4 + $0x130] sm:$0xff]
    %v193 = vld [vmem:[#allocation4 + $0x138] sm:$0xff]
    %v194 = vld [vmem:[#allocation4 + $0x140] sm:$0xff]
    %v195 = vld [vmem:[#allocation4 + $0x148] sm:$0xff]
    %v196 = vld [vmem:[#allocation4 + $0x150] sm:$0xff]
    %v197 = vld [vmem:[#allocation4 + $0x158] sm:$0xff]
    %v198 = vld [vmem:[#allocation4 + $0x160] sm:$0xff]
    %v199 = vld [vmem:[#allocation4 + $0x168] sm:$0xff]
    %v200 = vld [vmem:[#allocation4 + $0x170] sm:$0xff]
    %v201 = vld [vmem:[#allocation4 + $0x178] sm:$0xff]
    %v202 = vld [vmem:[#allocation4 + $0x180] sm:$0xff]
    %v203 = vld [vmem:[#allocation4 + $0x188] sm:$0xff]
    %v204 = vld [vmem:[#allocation4 + $0x190] sm:$0xff]
    %v205 = vld [vmem:[#allocation4 + $0x198] sm:$0xff]
    %v206 = vld [vmem:[#allocation4 + $0x1a0] sm:$0xff]
    %v207 = vld [vmem:[#allocation4 + $0x1a8] sm:$0xff]
    %v208 = vld [vmem:[#allocation4 + $0x1b0] sm:$0xff]
    %v209 = vld [vmem:[#allocation4 + $0x1b8] sm:$0xff]
    %v210 = vld [vmem:[#allocation4 + $0x1c0] sm:$0xff]
    %v211 = vld [vmem:[#allocation4 + $0x1c8] sm:$0xff]
    %v212 = vld [vmem:[#allocation4 + $0x1d0] sm:$0xff]
    %v213 = vld [vmem:[#allocation4 + $0x1d8] sm:$0xff]
    %v214 = vld [vmem:[#allocation4 + $0x1e0] sm:$0xff]
    %v215 = vld [vmem:[#allocation4 + $0x1e8] sm:$0xff]
    %v216 = vld [vmem:[#allocation4 + $0x1f0] sm:$0xff]
    %v217 = vld [vmem:[#allocation4 + $0x1f8] sm:$0xff]
    %v218 = vld [vmem:[#allocation4 + $0x200] sm:$0xff]
    %v219 = vld [vmem:[#allocation4 + $0x208] sm:$0xff]
    %v220 = vld [vmem:[#allocation4 + $0x210] sm:$0xff]
    %v221 = vld [vmem:[#allocation4 + $0x218] sm:$0xff]
    %v222 = vld [vmem:[#allocation4 + $0x220] sm:$0xff]
    %v223 = vld [vmem:[#allocation4 + $0x228] sm:$0xff]
    %v224 = vld [vmem:[#allocation4 + $0x230] sm:$0xff]
    %v225 = vld [vmem:[#allocation4 + $0x238] sm:$0xff]
    %v226 = vld [vmem:[#allocation4 + $0x240] sm:$0xff]
    %v227 = vld [vmem:[#allocation4 + $0x248] sm:$0xff]
    %v228 = vld [vmem:[#allocation4 + $0x250] sm:$0xff]
    %v229 = vld [vmem:[#allocation4 + $0x258] sm:$0xff]
    %v230 = vld [vmem:[#allocation4 + $0x260] sm:$0xff]
    %v231 = vld [vmem:[#allocation4 + $0x268] sm:$0xff]
    %v232 = vld [vmem:[#allocation4 + $0x270] sm:$0xff]
    %v233 = vld [vmem:[#allocation4 + $0x278] sm:$0xff]
    %v234 = vld [vmem:[#allocation4 + $0x280] sm:$0xff]
    %v235 = vld [vmem:[#allocation4 + $0x288] sm:$0xff]
    %v236 = vld [vmem:[#allocation4 + $0x290] sm:$0xff]
    %v237 = vld [vmem:[#allocation4 + $0x298] sm:$0xff]
    %v238 = vld [vmem:[#allocation4 + $0x2a0] sm:$0xff]
    %v239 = vld [vmem:[#allocation4 + $0x2a8] sm:$0xff]
    %v240 = vld [vmem:[#allocation4 + $0x2b0] sm:$0xff]
    %v241 = vld [vmem:[#allocation4 + $0x2b8] sm:$0xff]
    %v242 = vld [vmem:[#allocation4 + $0x2c0] sm:$0xff]
    %v243 = vld [vmem:[#allocation4 + $0x2c8] sm:$0xff]
    %v244 = vld [vmem:[#allocation4 + $0x2d0] sm:$0xff]
    %v245 = vld [vmem:[#allocation4 + $0x2d8] sm:$0xff]
    %v246 = vld [vmem:[#allocation4 + $0x2e0] sm:$0xff]
    %v247 = vld [vmem:[#allocation4 + $0x2e8] sm:$0xff]
    %v248 = vld [vmem:[#allocation4 + $0x2f0] sm:$0xff]
    %v249 = vld [vmem:[#allocation4 + $0x2f8] sm:$0xff]
    %v250 = vld [vmem:[#allocation4 + $0x300] sm:$0xff]
    %v251 = vld [vmem:[#allocation4 + $0x308] sm:$0xff]
    %v252 = vld [vmem:[#allocation4 + $0x310] sm:$0xff]
    %v253 = vld [vmem:[#allocation4 + $0x318] sm:$0xff]
    %v254 = vld [vmem:[#allocation4 + $0x320] sm:$0xff]
    %v255 = vld [vmem:[#allocation4 + $0x328] sm:$0xff]
    %v256 = vld [vmem:[#allocation4 + $0x330] sm:$0xff]
    %v257 = vld [vmem:[#allocation4 + $0x338] sm:$0xff]
    %v258 = vld [vmem:[#allocation4 + $0x340] sm:$0xff]
    %v259 = vld [vmem:[#allocation4 + $0x348] sm:$0xff]
    %v260 = vld [vmem:[#allocation4 + $0x350] sm:$0xff]
    %v261 = vld [vmem:[#allocation4 + $0x358] sm:$0xff]
    %v262 = vld [vmem:[#allocation4 + $0x360] sm:$0xff]
    %v263 = vld [vmem:[#allocation4 + $0x368] sm:$0xff]
    %v264 = vld [vmem:[#allocation4 + $0x370] sm:$0xff]
    %v265 = vld [vmem:[#allocation4 + $0x378] sm:$0xff]
    %v266 = vld [vmem:[#allocation4 + $0x380] sm:$0xff]
    %v267 = vld [vmem:[#allocation4 + $0x388] sm:$0xff]
    %v268 = vld [vmem:[#allocation4 + $0x390] sm:$0xff]
    %v269 = vld [vmem:[#allocation4 + $0x398] sm:$0xff]
    %v270 = vld [vmem:[#allocation4 + $0x3a0] sm:$0xff]
    %v271 = vld [vmem:[#allocation4 + $0x3a8] sm:$0xff]
    %v272 = vld [vmem:[#allocation4 + $0x3b0] sm:$0xff]
    %v273 = vld [vmem:[#allocation4 + $0x3b8] sm:$0xff]
    %v274 = vld [vmem:[#allocation4 + $0x3c0] sm:$0xff]
    %v275 = vld [vmem:[#allocation4 + $0x3c8] sm:$0xff]
    %v276 = vld [vmem:[#allocation4 + $0x3d0] sm:$0xff]
    %v277 = vld [vmem:[#allocation4 + $0x3d8] sm:$0xff]
    %v278 = vld [vmem:[#allocation4 + $0x3e0] sm:$0xff]
    %v279 = vld [vmem:[#allocation4 + $0x3e8] sm:$0xff]
    %v280 = vld [vmem:[#allocation4 + $0x3f0] sm:$0xff]
    %v281 = vld [vmem:[#allocation4 + $0x3f8] sm:$0xff]
    %v282 = vld [vmem:[#allocation4 + $0x400] sm:$0xff]
    %v283 = vld [vmem:[#allocation4 + $0x408] sm:$0xff]
    %v284 = vld [vmem:[#allocation4 + $0x410] sm:$0xff]
    %v285 = vld [vmem:[#allocation4 + $0x418] sm:$0xff]
    %v286 = vld [vmem:[#allocation4 + $0x420] sm:$0xff]
    %v287 = vld [vmem:[#allocation4 + $0x428] sm:$0xff]
    %v288 = vld [vmem:[#allocation4 + $0x430] sm:$0xff]
    %v289 = vld [vmem:[#allocation4 + $0x438] sm:$0xff]
    %v290 = vld [vmem:[#allocation4 + $0x440] sm:$0xff]
    %v291 = vld [vmem:[#allocation4 + $0x448] sm:$0xff]
    %v292 = vld [vmem:[#allocation4 + $0x450] sm:$0xff]
    %v293 = vld [vmem:[#allocation4 + $0x458] sm:$0xff]
    %v294 = vld [vmem:[#allocation4 + $0x460] sm:$0xff]
    %v295 = vld [vmem:[#allocation4 + $0x468] sm:$0xff]
    %v296 = vld [vmem:[#allocation4 + $0x470] sm:$0xff]
    %v297 = vld [vmem:[#allocation4 + $0x478] sm:$0xff]
    %v298 = vld [vmem:[#allocation4 + $0x480] sm:$0xff]
    %v299 = vld [vmem:[#allocation4 + $0x488] sm:$0xff]
    %v300 = vld [vmem:[#allocation4 + $0x490] sm:$0xff]
    %v301 = vld [vmem:[#allocation4 + $0x498] sm:$0xff]
    %v302 = vld [vmem:[#allocation4 + $0x4a0] sm:$0xff]
    %v303 = vld [vmem:[#allocation4 + $0x4a8] sm:$0xff]
    %v304 = vld [vmem:[#allocation4 + $0x4b0] sm:$0xff]
    %v305 = vld [vmem:[#allocation4 + $0x4b8] sm:$0xff]
    %v306 = vld [vmem:[#allocation4 + $0x4c0] sm:$0xff]
    %v307 = vld [vmem:[#allocation4 + $0x4c8] sm:$0xff]
    %v308 = vld [vmem:[#allocation4 + $0x4d0] sm:$0xff]
    %v309 = vld [vmem:[#allocation4 + $0x4d8] sm:$0xff]
    %v310 = vld [vmem:[#allocation4 + $0x4e0] sm:$0xff]
    %v311 = vld [vmem:[#allocation4 + $0x4e8] sm:$0xff]
    %v312 = vld [vmem:[#allocation4 + $0x4f0] sm:$0xff]
    %v313 = vld [vmem:[#allocation4 + $0x4f8] sm:$0xff]
    %v314 = vld [vmem:[#allocation4 + $0x500] sm:$0xff]
    %v315 = vld [vmem:[#allocation4 + $0x508] sm:$0xff]
    %v316 = vld [vmem:[#allocation4 + $0x510] sm:$0xff]
    %v317 = vld [vmem:[#allocation4 + $0x518] sm:$0xff]
    %v318 = vld [vmem:[#allocation4 + $0x520] sm:$0xff]
    %v319 = vld [vmem:[#allocation4 + $0x528] sm:$0xff]
    %v320 = vld [vmem:[#allocation4 + $0x530] sm:$0xff]
    %v321 = vld [vmem:[#allocation4 + $0x538] sm:$0xff]
    %v322 = vld [vmem:[#allocation4 + $0x540] sm:$0xff]
    %v323 = vld [vmem:[#allocation4 + $0x548] sm:$0xff]
    %v324 = vld [vmem:[#allocation4 + $0x550] sm:$0xff]
    %v325 = vld [vmem:[#allocation4 + $0x558] sm:$0xff]
    %v326 = vld [vmem:[#allocation4 + $0x560] sm:$0xff]
    %v327 = vld [vmem:[#allocation4 + $0x568] sm:$0xff]
    %v328 = vld [vmem:[#allocation4 + $0x570] sm:$0xff]
    %v329 = vld [vmem:[#allocation4 + $0x578] sm:$0xff]
    %v330 = vld [vmem:[#allocation4 + $0x580] sm:$0xff]
    %v331 = vld [vmem:[#allocation4 + $0x588] sm:$0xff]
    %v332 = vld [vmem:[#allocation4 + $0x590] sm:$0xff]
    %v333 = vld [vmem:[#allocation4 + $0x598] sm:$0xff]
    %v334 = vld [vmem:[#allocation4 + $0x5a0] sm:$0xff]
    %v335 = vld [vmem:[#allocation4 + $0x5a8] sm:$0xff]
    %v336 = vld [vmem:[#allocation4 + $0x5b0] sm:$0xff]
    %v337 = vld [vmem:[#allocation4 + $0x5b8] sm:$0xff]
    %v338 = vld [vmem:[#allocation4 + $0x5c0] sm:$0xff]
    %v339 = vld [vmem:[#allocation4 + $0x5c8] sm:$0xff]
    %v340 = vld [vmem:[#allocation4 + $0x5d0] sm:$0xff]
    %v341 = vld [vmem:[#allocation4 + $0x5d8] sm:$0xff]
    %v342 = vld [vmem:[#allocation4 + $0x5e0] sm:$0xff]
    %v343 = vld [vmem:[#allocation4 + $0x5e8] sm:$0xff]
    %v344 = vld [vmem:[#allocation4 + $0x5f0] sm:$0xff]
    %v345 = vld [vmem:[#allocation4 + $0x5f8] sm:$0xff]
    %v346 = vld [vmem:[%s0] sm:$0xff]
    %v347 = vld [vmem:[%s0 + $0x8] sm:$0xff]
    %v348 = vld [vmem:[%s0 + $0x10] sm:$0xff]
    %v349 = vld [vmem:[%s1] sm:$0xff]
    %v350 = vld [vmem:[%s1 + $0x8] sm:$0xff]
    %v351 = vld [vmem:[%s1 + $0x10] sm:$0xff]
    %v352 = vld [vmem:[#allocation2] sm:$0xff]
    %v353 = vld [vmem:[#allocation2 + $0x8] sm:$0xff]
    %v354 = vld [vmem:[#allocation2 + $0x10] sm:$0xff]
    %v355 = vld [vmem:[#allocation2 + $0x18] sm:$0xff]
    %v359 = vunpack.c.l.b16 %v346
    %v360 = vunpack.c.h.b16 %v346
    %v361 = vunpack.c.l.b16 %v347
    %v362 = vunpack.c.h.b16 %v347
    %v363 = vunpack.c.l.b16 %v348
    %v364 = vunpack.c.h.b16 %v348
    %v365 = vpack.c.b16 %v359, %v359
    %v366 = vpack.c.b16 %v360, %v360
    %v367 = vpack.c.b16 %v361, %v361
    %v368 = vpack.c.b16 %v362, %v362
    %v369 = vpack.c.b16 %v363, %v363
    %v370 = vpack.c.b16 %v364, %v364
    %v569 = vunpack.c.l.b16 %v154
    %v570 = vunpack.c.h.b16 %v154
    %v571 = vunpack.c.l.b16 %v155
    %v572 = vunpack.c.h.b16 %v155
    %v573 = vunpack.c.l.b16 %v156
    %v574 = vunpack.c.h.b16 %v156
    %v575 = vunpack.c.l.b16 %v157
    %v576 = vunpack.c.h.b16 %v157
    %v577 = vunpack.c.l.b16 %v158
    %v578 = vunpack.c.h.b16 %v158
    %v579 = vunpack.c.l.b16 %v159
    %v580 = vunpack.c.h.b16 %v159
    %v581 = vunpack.c.l.b16 %v160
    %v582 = vunpack.c.h.b16 %v160
    %v583 = vunpack.c.l.b16 %v161
    %v584 = vunpack.c.h.b16 %v161
    %v585 = vunpack.c.l.b16 %v162
    %v586 = vunpack.c.h.b16 %v162
    %v587 = vunpack.c.l.b16 %v163
    %v588 = vunpack.c.h.b16 %v163
    %v589 = vunpack.c.l.b16 %v164
    %v590 = vunpack.c.h.b16 %v164
    %v591 = vunpack.c.l.b16 %v165
    %v592 = vunpack.c.h.b16 %v165
    %v593 = vunpack.c.l.b16 %v166
    %v594 = vunpack.c.h.b16 %v166
    %v595 = vunpack.c.l.b16 %v167
    %v596 = vunpack.c.h.b16 %v167
    %v597 = vunpack.c.l.b16 %v168
    %v598 = vunpack.c.h.b16 %v168
    %v599 = vunpack.c.l.b16 %v169
    %v600 = vunpack.c.h.b16 %v169
    %v601 = vunpack.c.l.b16 %v170
    %v602 = vunpack.c.h.b16 %v170
    %v603 = vunpack.c.l.b16 %v171
    %v604 = vunpack.c.h.b16 %v171
    %v605 = vunpack.c.l.b16 %v172
    %v606 = vunpack.c.h.b16 %v172
    %v607 = vunpack.c.l.b16 %v173
    %v608 = vunpack.c.h.b16 %v173
    %v609 = vunpack.c.l.b16 %v174
    %v610 = vunpack.c.h.b16 %v174
    %v611 = vunpack.c.l.b16 %v175
    %v612 = vunpack.c.h.b16 %v175
    %v613 = vunpack.c.l.b16 %v176
    %v614 = vunpack.c.h.b16 %v176
    %v615 = vunpack.c.l.b16 %v177
    %v616 = vunpack.c.h.b16 %v177
    %v617 = vunpack.c.l.b16 %v178
    %v618 = vunpack.c.h.b16 %v178
    %v619 = vunpack.c.l.b16 %v179
    %v620 = vunpack.c.h.b16 %v179
    %v621 = vunpack.c.l.b16 %v180
    %v622 = vunpack.c.h.b16 %v180
    %v623 = vunpack.c.l.b16 %v181
    %v624 = vunpack.c.h.b16 %v181
    %v625 = vunpack.c.l.b16 %v182
    %v626 = vunpack.c.h.b16 %v182
    %v627 = vunpack.c.l.b16 %v183
    %v628 = vunpack.c.h.b16 %v183
    %v629 = vunpack.c.l.b16 %v184
    %v630 = vunpack.c.h.b16 %v184
    %v631 = vunpack.c.l.b16 %v185
    %v632 = vunpack.c.h.b16 %v185
    %v633 = vunpack.c.l.b16 %v186
    %v634 = vunpack.c.h.b16 %v186
    %v635 = vunpack.c.l.b16 %v187
    %v636 = vunpack.c.h.b16 %v187
    %v637 = vunpack.c.l.b16 %v188
    %v638 = vunpack.c.h.b16 %v188
    %v639 = vunpack.c.l.b16 %v189
    %v640 = vunpack.c.h.b16 %v189
    %v641 = vunpack.c.l.b16 %v190
    %v642 = vunpack.c.h.b16 %v190
    %v643 = vunpack.c.l.b16 %v191
    %v644 = vunpack.c.h.b16 %v191
    %v645 = vunpack.c.l.b16 %v192
    %v646 = vunpack.c.h.b16 %v192
    %v647 = vunpack.c.l.b16 %v193
    %v648 = vunpack.c.h.b16 %v193
    %v649 = vunpack.c.l.b16 %v194
    %v650 = vunpack.c.h.b16 %v194
    %v651 = vunpack.c.l.b16 %v195
    %v652 = vunpack.c.h.b16 %v195
    %v653 = vunpack.c.l.b16 %v196
    %v654 = vunpack.c.h.b16 %v196
    %v655 = vunpack.c.l.b16 %v197
    %v656 = vunpack.c.h.b16 %v197
    %v657 = vunpack.c.l.b16 %v198
    %v658 = vunpack.c.h.b16 %v198
    %v659 = vunpack.c.l.b16 %v199
    %v660 = vunpack.c.h.b16 %v199
    %v661 = vunpack.c.l.b16 %v200
    %v662 = vunpack.c.h.b16 %v200
    %v663 = vunpack.c.l.b16 %v201
    %v664 = vunpack.c.h.b16 %v201
    %v665 = vunpack.c.l.b16 %v202
    %v666 = vunpack.c.h.b16 %v202
    %v667 = vunpack.c.l.b16 %v203
    %v668 = vunpack.c.h.b16 %v203
    %v669 = vunpack.c.l.b16 %v204
    %v670 = vunpack.c.h.b16 %v204
    %v671 = vunpack.c.l.b16 %v205
    %v672 = vunpack.c.h.b16 %v205
    %v673 = vunpack.c.l.b16 %v206
    %v674 = vunpack.c.h.b16 %v206
    %v675 = vunpack.c.l.b16 %v207
    %v676 = vunpack.c.h.b16 %v207
    %v677 = vunpack.c.l.b16 %v208
    %v678 = vunpack.c.h.b16 %v208
    %v679 = vunpack.c.l.b16 %v209
    %v680 = vunpack.c.h.b16 %v209
    %v681 = vunpack.c.l.b16 %v210
    %v682 = vunpack.c.h.b16 %v210
    %v683 = vunpack.c.l.b16 %v211
    %v684 = vunpack.c.h.b16 %v211
    %v685 = vunpack.c.l.b16 %v212
    %v686 = vunpack.c.h.b16 %v212
    %v687 = vunpack.c.l.b16 %v213
    %v688 = vunpack.c.h.b16 %v213
    %v689 = vunpack.c.l.b16 %v214
    %v690 = vunpack.c.h.b16 %v214
    %v691 = vunpack.c.l.b16 %v215
    %v692 = vunpack.c.h.b16 %v215
    %v693 = vunpack.c.l.b16 %v216
    %v694 = vunpack.c.h.b16 %v216
    %v695 = vunpack.c.l.b16 %v217
    %v696 = vunpack.c.h.b16 %v217
    %v697 = vunpack.c.l.b16 %v218
    %v698 = vunpack.c.h.b16 %v218
    %v699 = vunpack.c.l.b16 %v219
    %v700 = vunpack.c.h.b16 %v219
    %v701 = vunpack.c.l.b16 %v220
    %v702 = vunpack.c.h.b16 %v220
    %v703 = vunpack.c.l.b16 %v221
    %v704 = vunpack.c.h.b16 %v221
    %v705 = vunpack.c.l.b16 %v222
    %v706 = vunpack.c.h.b16 %v222
    %v707 = vunpack.c.l.b16 %v223
    %v708 = vunpack.c.h.b16 %v223
    %v709 = vunpack.c.l.b16 %v224
    %v710 = vunpack.c.h.b16 %v224
    %v711 = vunpack.c.l.b16 %v225
    %v712 = vunpack.c.h.b16 %v225
    %v713 = vunpack.c.l.b16 %v226
    %v714 = vunpack.c.h.b16 %v226
    %v715 = vunpack.c.l.b16 %v227
    %v716 = vunpack.c.h.b16 %v227
    %v717 = vunpack.c.l.b16 %v228
    %v718 = vunpack.c.h.b16 %v228
    %v719 = vunpack.c.l.b16 %v229
    %v720 = vunpack.c.h.b16 %v229
    %v721 = vunpack.c.l.b16 %v230
    %v722 = vunpack.c.h.b16 %v230
    %v723 = vunpack.c.l.b16 %v231
    %v724 = vunpack.c.h.b16 %v231
    %v725 = vunpack.c.l.b16 %v232
    %v726 = vunpack.c.h.b16 %v232
    %v727 = vunpack.c.l.b16 %v233
    %v728 = vunpack.c.h.b16 %v233
    %v729 = vunpack.c.l.b16 %v234
    %v730 = vunpack.c.h.b16 %v234
    %v731 = vunpack.c.l.b16 %v235
    %v732 = vunpack.c.h.b16 %v235
    %v733 = vunpack.c.l.b16 %v236
    %v734 = vunpack.c.h.b16 %v236
    %v735 = vunpack.c.l.b16 %v237
    %v736 = vunpack.c.h.b16 %v237
    %v737 = vunpack.c.l.b16 %v238
    %v738 = vunpack.c.h.b16 %v238
    %v739 = vunpack.c.l.b16 %v239
    %v740 = vunpack.c.h.b16 %v239
    %v741 = vunpack.c.l.b16 %v240
    %v742 = vunpack.c.h.b16 %v240
    %v743 = vunpack.c.l.b16 %v241
    %v744 = vunpack.c.h.b16 %v241
    %v745 = vunpack.c.l.b16 %v242
    %v746 = vunpack.c.h.b16 %v242
    %v747 = vunpack.c.l.b16 %v243
    %v748 = vunpack.c.h.b16 %v243
    %v749 = vunpack.c.l.b16 %v244
    %v750 = vunpack.c.h.b16 %v244
    %v751 = vunpack.c.l.b16 %v245
    %v752 = vunpack.c.h.b16 %v245
    %v753 = vunpack.c.l.b16 %v246
    %v754 = vunpack.c.h.b16 %v246
    %v755 = vunpack.c.l.b16 %v247
    %v756 = vunpack.c.h.b16 %v247
    %v757 = vunpack.c.l.b16 %v248
    %v758 = vunpack.c.h.b16 %v248
    %v759 = vunpack.c.l.b16 %v249
    %v760 = vunpack.c.h.b16 %v249
    %v761 = vunpack.c.l.b16 %v250
    %v762 = vunpack.c.h.b16 %v250
    %v763 = vunpack.c.l.b16 %v251
    %v764 = vunpack.c.h.b16 %v251
    %v765 = vunpack.c.l.b16 %v252
    %v766 = vunpack.c.h.b16 %v252
    %v767 = vunpack.c.l.b16 %v253
    %v768 = vunpack.c.h.b16 %v253
    %v769 = vunpack.c.l.b16 %v254
    %v770 = vunpack.c.h.b16 %v254
    %v771 = vunpack.c.l.b16 %v255
    %v772 = vunpack.c.h.b16 %v255
    %v773 = vunpack.c.l.b16 %v256
    %v774 = vunpack.c.h.b16 %v256
    %v775 = vunpack.c.l.b16 %v257
    %v776 = vunpack.c.h.b16 %v257
    %v777 = vunpack.c.l.b16 %v258
    %v778 = vunpack.c.h.b16 %v258
    %v779 = vunpack.c.l.b16 %v259
    %v780 = vunpack.c.h.b16 %v259
    %v781 = vunpack.c.l.b16 %v260
    %v782 = vunpack.c.h.b16 %v260
    %v783 = vunpack.c.l.b16 %v261
    %v784 = vunpack.c.h.b16 %v261
    %v785 = vunpack.c.l.b16 %v262
    %v786 = vunpack.c.h.b16 %v262
    %v787 = vunpack.c.l.b16 %v263
    %v788 = vunpack.c.h.b16 %v263
    %v789 = vunpack.c.l.b16 %v264
    %v790 = vunpack.c.h.b16 %v264
    %v791 = vunpack.c.l.b16 %v265
    %v792 = vunpack.c.h.b16 %v265
    %v793 = vunpack.c.l.b16 %v266
    %v794 = vunpack.c.h.b16 %v266
    %v795 = vunpack.c.l.b16 %v267
    %v796 = vunpack.c.h.b16 %v267
    %v797 = vunpack.c.l.b16 %v268
    %v798 = vunpack.c.h.b16 %v268
    %v799 = vunpack.c.l.b16 %v269
    %v800 = vunpack.c.h.b16 %v269
    %v801 = vunpack.c.l.b16 %v270
    %v802 = vunpack.c.h.b16 %v270
    %v803 = vunpack.c.l.b16 %v271
    %v804 = vunpack.c.h.b16 %v271
    %v805 = vunpack.c.l.b16 %v272
    %v806 = vunpack.c.h.b16 %v272
    %v807 = vunpack.c.l.b16 %v273
    %v808 = vunpack.c.h.b16 %v273
    %v809 = vunpack.c.l.b16 %v274
    %v810 = vunpack.c.h.b16 %v274
    %v811 = vunpack.c.l.b16 %v275
    %v812 = vunpack.c.h.b16 %v275
    %v813 = vunpack.c.l.b16 %v276
    %v814 = vunpack.c.h.b16 %v276
    %v815 = vunpack.c.l.b16 %v277
    %v816 = vunpack.c.h.b16 %v277
    %v817 = vunpack.c.l.b16 %v278
    %v818 = vunpack.c.h.b16 %v278
    %v819 = vunpack.c.l.b16 %v279
    %v820 = vunpack.c.h.b16 %v279
    %v821 = vunpack.c.l.b16 %v280
    %v822 = vunpack.c.h.b16 %v280
    %v823 = vunpack.c.l.b16 %v281
    %v824 = vunpack.c.h.b16 %v281
    %v825 = vunpack.c.l.b16 %v282
    %v826 = vunpack.c.h.b16 %v282
    %v827 = vunpack.c.l.b16 %v283
    %v828 = vunpack.c.h.b16 %v283
    %v829 = vunpack.c.l.b16 %v284
    %v830 = vunpack.c.h.b16 %v284
    %v831 = vunpack.c.l.b16 %v285
    %v832 = vunpack.c.h.b16 %v285
    %v833 = vunpack.c.l.b16 %v286
    %v834 = vunpack.c.h.b16 %v286
    %v835 = vunpack.c.l.b16 %v287
    %v836 = vunpack.c.h.b16 %v287
    %v837 = vunpack.c.l.b16 %v288
    %v838 = vunpack.c.h.b16 %v288
    %v839 = vunpack.c.l.b16 %v289
    %v840 = vunpack.c.h.b16 %v289
    %v841 = vunpack.c.l.b16 %v290
    %v842 = vunpack.c.h.b16 %v290
    %v843 = vunpack.c.l.b16 %v291
    %v844 = vunpack.c.h.b16 %v291
    %v845 = vunpack.c.l.b16 %v292
    %v846 = vunpack.c.h.b16 %v292
    %v847 = vunpack.c.l.b16 %v293
    %v848 = vunpack.c.h.b16 %v293
    %v849 = vunpack.c.l.b16 %v294
    %v850 = vunpack.c.h.b16 %v294
    %v851 = vunpack.c.l.b16 %v295
    %v852 = vunpack.c.h.b16 %v295
    %v853 = vunpack.c.l.b16 %v296
    %v854 = vunpack.c.h.b16 %v296
    %v855 = vunpack.c.l.b16 %v297
    %v856 = vunpack.c.h.b16 %v297
    %v857 = vunpack.c.l.b16 %v298
    %v858 = vunpack.c.h.b16 %v298
    %v859 = vunpack.c.l.b16 %v299
    %v860 = vunpack.c.h.b16 %v299
    %v861 = vunpack.c.l.b16 %v300
    %v862 = vunpack.c.h.b16 %v300
    %v863 = vunpack.c.l.b16 %v301
    %v864 = vunpack.c.h.b16 %v301
    %v865 = vunpack.c.l.b16 %v302
    %v866 = vunpack.c.h.b16 %v302
    %v867 = vunpack.c.l.b16 %v303
    %v868 = vunpack.c.h.b16 %v303
    %v869 = vunpack.c.l.b16 %v304
    %v870 = vunpack.c.h.b16 %v304
    %v871 = vunpack.c.l.b16 %v305
    %v872 = vunpack.c.h.b16 %v305
    %v873 = vunpack.c.l.b16 %v306
    %v874 = vunpack.c.h.b16 %v306
    %v875 = vunpack.c.l.b16 %v307
    %v876 = vunpack.c.h.b16 %v307
    %v877 = vunpack.c.l.b16 %v308
    %v878 = vunpack.c.h.b16 %v308
    %v879 = vunpack.c.l.b16 %v309
    %v880 = vunpack.c.h.b16 %v309
    %v881 = vunpack.c.l.b16 %v310
    %v882 = vunpack.c.h.b16 %v310
    %v883 = vunpack.c.l.b16 %v311
    %v884 = vunpack.c.h.b16 %v311
    %v885 = vunpack.c.l.b16 %v312
    %v886 = vunpack.c.h.b16 %v312
    %v887 = vunpack.c.l.b16 %v313
    %v888 = vunpack.c.h.b16 %v313
    %v889 = vunpack.c.l.b16 %v314
    %v890 = vunpack.c.h.b16 %v314
    %v891 = vunpack.c.l.b16 %v315
    %v892 = vunpack.c.h.b16 %v315
    %v893 = vunpack.c.l.b16 %v316
    %v894 = vunpack.c.h.b16 %v316
    %v895 = vunpack.c.l.b16 %v317
    %v896 = vunpack.c.h.b16 %v317
    %v897 = vunpack.c.l.b16 %v318
    %v898 = vunpack.c.h.b16 %v318
    %v899 = vunpack.c.l.b16 %v319
    %v900 = vunpack.c.h.b16 %v319
    %v901 = vunpack.c.l.b16 %v320
    %v902 = vunpack.c.h.b16 %v320
    %v903 = vunpack.c.l.b16 %v321
    %v904 = vunpack.c.h.b16 %v321
    %v905 = vunpack.c.l.b16 %v322
    %v906 = vunpack.c.h.b16 %v322
    %v907 = vunpack.c.l.b16 %v323
    %v908 = vunpack.c.h.b16 %v323
    %v909 = vunpack.c.l.b16 %v324
    %v910 = vunpack.c.h.b16 %v324
    %v911 = vunpack.c.l.b16 %v325
    %v912 = vunpack.c.h.b16 %v325
    %v913 = vunpack.c.l.b16 %v326
    %v914 = vunpack.c.h.b16 %v326
    %v915 = vunpack.c.l.b16 %v327
    %v916 = vunpack.c.h.b16 %v327
    %v917 = vunpack.c.l.b16 %v328
    %v918 = vunpack.c.h.b16 %v328
    %v919 = vunpack.c.l.b16 %v329
    %v920 = vunpack.c.h.b16 %v329
    %v921 = vunpack.c.l.b16 %v330
    %v922 = vunpack.c.h.b16 %v330
    %v923 = vunpack.c.l.b16 %v331
    %v924 = vunpack.c.h.b16 %v331
    %v925 = vunpack.c.l.b16 %v332
    %v926 = vunpack.c.h.b16 %v332
    %v927 = vunpack.c.l.b16 %v333
    %v928 = vunpack.c.h.b16 %v333
    %v929 = vunpack.c.l.b16 %v334
    %v930 = vunpack.c.h.b16 %v334
    %v931 = vunpack.c.l.b16 %v335
    %v932 = vunpack.c.h.b16 %v335
    %v933 = vunpack.c.l.b16 %v336
    %v934 = vunpack.c.h.b16 %v336
    %v935 = vunpack.c.l.b16 %v337
    %v936 = vunpack.c.h.b16 %v337
    %v937 = vunpack.c.l.b16 %v338
    %v938 = vunpack.c.h.b16 %v338
    %v939 = vunpack.c.l.b16 %v339
    %v940 = vunpack.c.h.b16 %v339
    %v941 = vunpack.c.l.b16 %v340
    %v942 = vunpack.c.h.b16 %v340
    %v943 = vunpack.c.l.b16 %v341
    %v944 = vunpack.c.h.b16 %v341
    %v945 = vunpack.c.l.b16 %v342
    %v946 = vunpack.c.h.b16 %v342
    %v947 = vunpack.c.l.b16 %v343
    %v948 = vunpack.c.h.b16 %v343
    %v949 = vunpack.c.l.b16 %v344
    %v950 = vunpack.c.h.b16 %v344
    %v951 = vunpack.c.l.b16 %v345
    %v952 = vunpack.c.h.b16 %v345
    %v953 = vpack.c.b16 %v573, %v569
    %v954 = vpack.c.b16 %v574, %v570
    %v955 = vpack.c.b16 %v575, %v571
    %v956 = vpack.c.b16 %v576, %v572
    %v957 = vpack.c.b16 %v581, %v577
    %v958 = vpack.c.b16 %v582, %v578
    %v959 = vpack.c.b16 %v583, %v579
    %v960 = vpack.c.b16 %v584, %v580
    %v961 = vpack.c.b16 %v589, %v585
    %v962 = vpack.c.b16 %v590, %v586
    %v963 = vpack.c.b16 %v591, %v587
    %v964 = vpack.c.b16 %v592, %v588
    %v965 = vpack.c.b16 %v597, %v593
    %v966 = vpack.c.b16 %v598, %v594
    %v967 = vpack.c.b16 %v599, %v595
    %v968 = vpack.c.b16 %v600, %v596
    %v969 = vpack.c.b16 %v605, %v601
    %v970 = vpack.c.b16 %v606, %v602
    %v971 = vpack.c.b16 %v607, %v603
    %v972 = vpack.c.b16 %v608, %v604
    %v973 = vpack.c.b16 %v613, %v609
    %v974 = vpack.c.b16 %v614, %v610
    %v975 = vpack.c.b16 %v615, %v611
    %v976 = vpack.c.b16 %v616, %v612
    %v977 = vpack.c.b16 %v621, %v617
    %v978 = vpack.c.b16 %v622, %v618
    %v979 = vpack.c.b16 %v623, %v619
    %v980 = vpack.c.b16 %v624, %v620
    %v981 = vpack.c.b16 %v629, %v625
    %v982 = vpack.c.b16 %v630, %v626
    %v983 = vpack.c.b16 %v631, %v627
    %v984 = vpack.c.b16 %v632, %v628
    %v985 = vpack.c.b16 %v637, %v633
    %v986 = vpack.c.b16 %v638, %v634
    %v987 = vpack.c.b16 %v639, %v635
    %v988 = vpack.c.b16 %v640, %v636
    %v989 = vpack.c.b16 %v645, %v641
    %v990 = vpack.c.b16 %v646, %v642
    %v991 = vpack.c.b16 %v647, %v643
    %v992 = vpack.c.b16 %v648, %v644
    %v993 = vpack.c.b16 %v653, %v649
    %v994 = vpack.c.b16 %v654, %v650
    %v995 = vpack.c.b16 %v655, %v651
    %v996 = vpack.c.b16 %v656, %v652
    %v997 = vpack.c.b16 %v661, %v657
    %v998 = vpack.c.b16 %v662, %v658
    %v999 = vpack.c.b16 %v663, %v659
    %v1000 = vpack.c.b16 %v664, %v660
    %v1001 = vpack.c.b16 %v669, %v665
    %v1002 = vpack.c.b16 %v670, %v666
    %v1003 = vpack.c.b16 %v671, %v667
    %v1004 = vpack.c.b16 %v672, %v668
    %v1005 = vpack.c.b16 %v677, %v673
    %v1006 = vpack.c.b16 %v678, %v674
    %v1007 = vpack.c.b16 %v679, %v675
    %v1008 = vpack.c.b16 %v680, %v676
    %v1009 = vpack.c.b16 %v685, %v681
    %v1010 = vpack.c.b16 %v686, %v682
    %v1011 = vpack.c.b16 %v687, %v683
    %v1012 = vpack.c.b16 %v688, %v684
    %v1013 = vpack.c.b16 %v693, %v689
    %v1014 = vpack.c.b16 %v694, %v690
    %v1015 = vpack.c.b16 %v695, %v691
    %v1016 = vpack.c.b16 %v696, %v692
    %v1017 = vpack.c.b16 %v701, %v697
    %v1018 = vpack.c.b16 %v702, %v698
    %v1019 = vpack.c.b16 %v703, %v699
    %v1020 = vpack.c.b16 %v704, %v700
    %v1021 = vpack.c.b16 %v709, %v705
    %v1022 = vpack.c.b16 %v710, %v706
    %v1023 = vpack.c.b16 %v711, %v707
    %v1024 = vpack.c.b16 %v712, %v708
    %v1025 = vpack.c.b16 %v717, %v713
    %v1026 = vpack.c.b16 %v718, %v714
    %v1027 = vpack.c.b16 %v719, %v715
    %v1028 = vpack.c.b16 %v720, %v716
    %v1029 = vpack.c.b16 %v725, %v721
    %v1030 = vpack.c.b16 %v726, %v722
    %v1031 = vpack.c.b16 %v727, %v723
    %v1032 = vpack.c.b16 %v728, %v724
    %v1033 = vpack.c.b16 %v733, %v729
    %v1034 = vpack.c.b16 %v734, %v730
    %v1035 = vpack.c.b16 %v735, %v731
    %v1036 = vpack.c.b16 %v736, %v732
    %v1037 = vpack.c.b16 %v741, %v737
    %v1038 = vpack.c.b16 %v742, %v738
    %v1039 = vpack.c.b16 %v743, %v739
    %v1040 = vpack.c.b16 %v744, %v740
    %v1041 = vpack.c.b16 %v749, %v745
    %v1042 = vpack.c.b16 %v750, %v746
    %v1043 = vpack.c.b16 %v751, %v747
    %v1044 = vpack.c.b16 %v752, %v748
    %v1045 = vpack.c.b16 %v757, %v753
    %v1046 = vpack.c.b16 %v758, %v754
    %v1047 = vpack.c.b16 %v759, %v755
    %v1048 = vpack.c.b16 %v760, %v756
    %v1049 = vpack.c.b16 %v765, %v761
    %v1050 = vpack.c.b16 %v766, %v762
    %v1051 = vpack.c.b16 %v767, %v763
    %v1052 = vpack.c.b16 %v768, %v764
    %v1053 = vpack.c.b16 %v773, %v769
    %v1054 = vpack.c.b16 %v774, %v770
    %v1055 = vpack.c.b16 %v775, %v771
    %v1056 = vpack.c.b16 %v776, %v772
    %v1057 = vpack.c.b16 %v781, %v777
    %v1058 = vpack.c.b16 %v782, %v778
    %v1059 = vpack.c.b16 %v783, %v779
    %v1060 = vpack.c.b16 %v784, %v780
    %v1061 = vpack.c.b16 %v789, %v785
    %v1062 = vpack.c.b16 %v790, %v786
    %v1063 = vpack.c.b16 %v791, %v787
    %v1064 = vpack.c.b16 %v792, %v788
    %v1065 = vpack.c.b16 %v797, %v793
    %v1066 = vpack.c.b16 %v798, %v794
    %v1067 = vpack.c.b16 %v799, %v795
    %v1068 = vpack.c.b16 %v800, %v796
    %v1069 = vpack.c.b16 %v805, %v801
    %v1070 = vpack.c.b16 %v806, %v802
    %v1071 = vpack.c.b16 %v807, %v803
    %v1072 = vpack.c.b16 %v808, %v804
    %v1073 = vpack.c.b16 %v813, %v809
    %v1074 = vpack.c.b16 %v814, %v810
    %v1075 = vpack.c.b16 %v815, %v811
    %v1076 = vpack.c.b16 %v816, %v812
    %v1077 = vpack.c.b16 %v821, %v817
    %v1078 = vpack.c.b16 %v822, %v818
    %v1079 = vpack.c.b16 %v823, %v819
    %v1080 = vpack.c.b16 %v824, %v820
    %v1081 = vpack.c.b16 %v829, %v825
    %v1082 = vpack.c.b16 %v830, %v826
    %v1083 = vpack.c.b16 %v831, %v827
    %v1084 = vpack.c.b16 %v832, %v828
    %v1085 = vpack.c.b16 %v837, %v833
    %v1086 = vpack.c.b16 %v838, %v834
    %v1087 = vpack.c.b16 %v839, %v835
    %v1088 = vpack.c.b16 %v840, %v836
    %v1089 = vpack.c.b16 %v845, %v841
    %v1090 = vpack.c.b16 %v846, %v842
    %v1091 = vpack.c.b16 %v847, %v843
    %v1092 = vpack.c.b16 %v848, %v844
    %v1093 = vpack.c.b16 %v853, %v849
    %v1094 = vpack.c.b16 %v854, %v850
    %v1095 = vpack.c.b16 %v855, %v851
    %v1096 = vpack.c.b16 %v856, %v852
    %v1097 = vpack.c.b16 %v861, %v857
    %v1098 = vpack.c.b16 %v862, %v858
    %v1099 = vpack.c.b16 %v863, %v859
    %v1100 = vpack.c.b16 %v864, %v860
    %v1101 = vpack.c.b16 %v869, %v865
    %v1102 = vpack.c.b16 %v870, %v866
    %v1103 = vpack.c.b16 %v871, %v867
    %v1104 = vpack.c.b16 %v872, %v868
    %v1105 = vpack.c.b16 %v877, %v873
    %v1106 = vpack.c.b16 %v878, %v874
    %v1107 = vpack.c.b16 %v879, %v875
    %v1108 = vpack.c.b16 %v880, %v876
    %v1109 = vpack.c.b16 %v885, %v881
    %v1110 = vpack.c.b16 %v886, %v882
    %v1111 = vpack.c.b16 %v887, %v883
    %v1112 = vpack.c.b16 %v888, %v884
    %v1113 = vpack.c.b16 %v893, %v889
    %v1114 = vpack.c.b16 %v894, %v890
    %v1115 = vpack.c.b16 %v895, %v891
    %v1116 = vpack.c.b16 %v896, %v892
    %v1117 = vpack.c.b16 %v901, %v897
    %v1118 = vpack.c.b16 %v902, %v898
    %v1119 = vpack.c.b16 %v903, %v899
    %v1120 = vpack.c.b16 %v904, %v900
    %v1121 = vpack.c.b16 %v909, %v905
    %v1122 = vpack.c.b16 %v910, %v906
    %v1123 = vpack.c.b16 %v911, %v907
    %v1124 = vpack.c.b16 %v912, %v908
    %v1125 = vpack.c.b16 %v917, %v913
    %v1126 = vpack.c.b16 %v918, %v914
    %v1127 = vpack.c.b16 %v919, %v915
    %v1128 = vpack.c.b16 %v920, %v916
    %v1129 = vpack.c.b16 %v925, %v921
    %v1130 = vpack.c.b16 %v926, %v922
    %v1131 = vpack.c.b16 %v927, %v923
    %v1132 = vpack.c.b16 %v928, %v924
    %v1133 = vpack.c.b16 %v933, %v929
    %v1134 = vpack.c.b16 %v934, %v930
    %v1135 = vpack.c.b16 %v935, %v931
    %v1136 = vpack.c.b16 %v936, %v932
    %v1137 = vpack.c.b16 %v941, %v937
    %v1138 = vpack.c.b16 %v942, %v938
    %v1139 = vpack.c.b16 %v943, %v939
    %v1140 = vpack.c.b16 %v944, %v940
    %v1141 = vpack.c.b16 %v949, %v945
    %v1142 = vpack.c.b16 %v950, %v946
    %v1143 = vpack.c.b16 %v951, %v947
    %v1144 = vpack.c.b16 %v952, %v948
    %1337 = vmatpush.bf16.msra.mxu0 %v981
    %1338 = vmatpush.bf16.msra.mxu0 %v977
    %1339 = vmatpush.bf16.msra.mxu0 %v973
    %1340 = vmatpush.bf16.msra.mxu0 %v969
    %1341 = vmatpush.bf16.msra.mxu0 %v965
    %1342 = vmatpush.bf16.msra.mxu0 %v961
    %1343 = vmatpush.bf16.msra.mxu0 %v957
    %1344 = vmatpush.bf16.msra.mxu0 %v953
    %1345 = vmatmul.bf16.gmra.mxu0 %v365
    %v1346 = vpop.f32.mrf.mxu0
    %v1347 = vadd.f32 0.0, %v1346
    %v1348 = vpop.f32.mrf.mxu0
    %1349 = vdwg.mxu0
    %1350 = vmatpush.bf16.msra.mxu0 %v1013
    %1351 = vmatpush.bf16.msra.mxu0 %v1009
    %1352 = vmatpush.bf16.msra.mxu0 %v1005
    %1353 = vmatpush.bf16.msra.mxu0 %v1001
    %1354 = vmatpush.bf16.msra.mxu0 %v997
    %1355 = vmatpush.bf16.msra.mxu0 %v993
    %1356 = vmatpush.bf16.msra.mxu0 %v989
    %1357 = vmatpush.bf16.msra.mxu0 %v985
    %1358 = vmatmul.bf16.gmra.mxu0 %v366
    %v1359 = vpop.f32.mrf.mxu0
    %v1360 = vadd.f32 %v1347, %v1359
    %v1361 = vpop.f32.mrf.mxu0
    %1362 = vdwg.mxu0
    %1363 = vmatpush.bf16.msra.mxu0 %v1045
    %1364 = vmatpush.bf16.msra.mxu0 %v1041
    %1365 = vmatpush.bf16.msra.mxu0 %v1037
    %1366 = vmatpush.bf16.msra.mxu0 %v1033
    %1367 = vmatpush.bf16.msra.mxu0 %v1029
    %1368 = vmatpush.bf16.msra.mxu0 %v1025
    %1369 = vmatpush.bf16.msra.mxu0 %v1021
    %1370 = vmatpush.bf16.msra.mxu0 %v1017
    %1371 = vmatmul.bf16.gmra.mxu0 %v367
    %v1372 = vpop.f32.mrf.mxu0
    %v1373 = vadd.f32 %v1360, %v1372
    %v1374 = vpop.f32.mrf.mxu0
    %1375 = vdwg.mxu0
    %1376 = vmatpush.bf16.msra.mxu0 %v1077
    %1377 = vmatpush.bf16.msra.mxu0 %v1073
    %1378 = vmatpush.bf16.msra.mxu0 %v1069
    %1379 = vmatpush.bf16.msra.mxu0 %v1065
    %1380 = vmatpush.bf16.msra.mxu0 %v1061
    %1381 = vmatpush.bf16.msra.mxu0 %v1057
    %1382 = vmatpush.bf16.msra.mxu0 %v1053
    %1383 = vmatpush.bf16.msra.mxu0 %v1049
    %1384 = vmatmul.bf16.gmra.mxu0 %v368
    %v1385 = vpop.f32.mrf.mxu0
    %v1386 = vadd.f32 %v1373, %v1385
    %v1387 = vpop.f32.mrf.mxu0
    %1388 = vdwg.mxu0
    %1389 = vmatpush.bf16.msra.mxu0 %v1109
    %1390 = vmatpush.bf16.msra.mxu0 %v1105
    %1391 = vmatpush.bf16.msra.mxu0 %v1101
    %1392 = vmatpush.bf16.msra.mxu0 %v1097
    %1393 = vmatpush.bf16.msra.mxu0 %v1093
    %1394 = vmatpush.bf16.msra.mxu0 %v1089
    %1395 = vmatpush.bf16.msra.mxu0 %v1085
    %1396 = vmatpush.bf16.msra.mxu0 %v1081
    %1397 = vmatmul.bf16.gmra.mxu0 %v369
    %v1398 = vpop.f32.mrf.mxu0
    %v1399 = vadd.f32 %v1386, %v1398
    %v1400 = vpop.f32.mrf.mxu0
    %1401 = vdwg.mxu0
    %1402 = vmatpush.bf16.msra.mxu0 %v1141
    %1403 = vmatpush.bf16.msra.mxu0 %v1137
    %1404 = vmatpush.bf16.msra.mxu0 %v1133
    %1405 = vmatpush.bf16.msra.mxu0 %v1129
    %1406 = vmatpush.bf16.msra.mxu0 %v1125
    %1407 = vmatpush.bf16.msra.mxu0 %v1121
    %1408 = vmatpush.bf16.msra.mxu0 %v1117
    %1409 = vmatpush.bf16.msra.mxu0 %v1113
    %1410 = vmatmul.bf16.gmra.mxu0 %v370
    %v1411 = vpop.f32.mrf.mxu0
    %v1412 = vadd.f32 %v1399, %v1411
    %v1413 = vpop.f32.mrf.mxu0
    %1414 = vdwg.mxu0
    %1415 = vmatpush.bf16.msra.mxu0 %v982
    %1416 = vmatpush.bf16.msra.mxu0 %v978
    %1417 = vmatpush.bf16.msra.mxu0 %v974
    %1418 = vmatpush.bf16.msra.mxu0 %v970
    %1419 = vmatpush.bf16.msra.mxu0 %v966
    %1420 = vmatpush.bf16.msra.mxu0 %v962
    %1421 = vmatpush.bf16.msra.mxu0 %v958
    %1422 = vmatpush.bf16.msra.mxu0 %v954
    %1423 = vmatmul.bf16.gmra.mxu0 %v365
    %v1424 = vpop.f32.mrf.mxu0
    %v1425 = vadd.f32 0.0, %v1424
    %v1426 = vpop.f32.mrf.mxu0
    %1427 = vdwg.mxu0
    %1428 = vmatpush.bf16.msra.mxu0 %v1014
    %1429 = vmatpush.bf16.msra.mxu0 %v1010
    %1430 = vmatpush.bf16.msra.mxu0 %v1006
    %1431 = vmatpush.bf16.msra.mxu0 %v1002
    %1432 = vmatpush.bf16.msra.mxu0 %v998
    %1433 = vmatpush.bf16.msra.mxu0 %v994
    %1434 = vmatpush.bf16.msra.mxu0 %v990
    %1435 = vmatpush.bf16.msra.mxu0 %v986
    %1436 = vmatmul.bf16.gmra.mxu0 %v366
    %v1437 = vpop.f32.mrf.mxu0
    %v1438 = vadd.f32 %v1425, %v1437
    %v1439 = vpop.f32.mrf.mxu0
    %1440 = vdwg.mxu0
    %1441 = vmatpush.bf16.msra.mxu0 %v1046
    %1442 = vmatpush.bf16.msra.mxu0 %v1042
    %1443 = vmatpush.bf16.msra.mxu0 %v1038
    %1444 = vmatpush.bf16.msra.mxu0 %v1034
    %1445 = vmatpush.bf16.msra.mxu0 %v1030
    %1446 = vmatpush.bf16.msra.mxu0 %v1026
    %1447 = vmatpush.bf16.msra.mxu0 %v1022
    %1448 = vmatpush.bf16.msra.mxu0 %v1018
    %1449 = vmatmul.bf16.gmra.mxu0 %v367
    %v1450 = vpop.f32.mrf.mxu0
    %v1451 = vadd.f32 %v1438, %v1450
    %v1452 = vpop.f32.mrf.mxu0
    %1453 = vdwg.mxu0
    %1454 = vmatpush.bf16.msra.mxu0 %v1078
    %1455 = vmatpush.bf16.msra.mxu0 %v1074
    %1456 = vmatpush.bf16.msra.mxu0 %v1070
    %1457 = vmatpush.bf16.msra.mxu0 %v1066
    %1458 = vmatpush.bf16.msra.mxu0 %v1062
    %1459 = vmatpush.bf16.msra.mxu0 %v1058
    %1460 = vmatpush.bf16.msra.mxu0 %v1054
    %1461 = vmatpush.bf16.msra.mxu0 %v1050
    %1462 = vmatmul.bf16.gmra.mxu0 %v368
    %v1463 = vpop.f32.mrf.mxu0
    %v1464 = vadd.f32 %v1451, %v1463
    %v1465 = vpop.f32.mrf.mxu0
    %1466 = vdwg.mxu0
    %1467 = vmatpush.bf16.msra.mxu0 %v1110
    %1468 = vmatpush.bf16.msra.mxu0 %v1106
    %1469 = vmatpush.bf16.msra.mxu0 %v1102
    %1470 = vmatpush.bf16.msra.mxu0 %v1098
    %1471 = vmatpush.bf16.msra.mxu0 %v1094
    %1472 = vmatpush.bf16.msra.mxu0 %v1090
    %1473 = vmatpush.bf16.msra.mxu0 %v1086
    %1474 = vmatpush.bf16.msra.mxu0 %v1082
    %1475 = vmatmul.bf16.gmra.mxu0 %v369
    %v1476 = vpop.f32.mrf.mxu0
    %v1477 = vadd.f32 %v1464, %v1476
    %v1478 = vpop.f32.mrf.mxu0
    %1479 = vdwg.mxu0
    %1480 = vmatpush.bf16.msra.mxu0 %v1142
    %1481 = vmatpush.bf16.msra.mxu0 %v1138
    %1482 = vmatpush.bf16.msra.mxu0 %v1134
    %1483 = vmatpush.bf16.msra.mxu0 %v1130
    %1484 = vmatpush.bf16.msra.mxu0 %v1126
    %1485 = vmatpush.bf16.msra.mxu0 %v1122
    %1486 = vmatpush.bf16.msra.mxu0 %v1118
    %1487 = vmatpush.bf16.msra.mxu0 %v1114
    %1488 = vmatmul.bf16.gmra.mxu0 %v370
    %v1489 = vpop.f32.mrf.mxu0
    %v1490 = vadd.f32 %v1477, %v1489
    %v1491 = vpop.f32.mrf.mxu0
    %1492 = vdwg.mxu0
    %1493 = vmatpush.bf16.msra.mxu0 %v983
    %1494 = vmatpush.bf16.msra.mxu0 %v979
    %1495 = vmatpush.bf16.msra.mxu0 %v975
    %1496 = vmatpush.bf16.msra.mxu0 %v971
    %1497 = vmatpush.bf16.msra.mxu0 %v967
    %1498 = vmatpush.bf16.msra.mxu0 %v963
    %1499 = vmatpush.bf16.msra.mxu0 %v959
    %1500 = vmatpush.bf16.msra.mxu0 %v955
    %1501 = vmatmul.bf16.gmra.mxu0 %v365
    %v1502 = vpop.f32.mrf.mxu0
    %v1503 = vadd.f32 0.0, %v1502
    %v1504 = vpop.f32.mrf.mxu0
    %1505 = vdwg.mxu0
    %1506 = vmatpush.bf16.msra.mxu0 %v1015
    %1507 = vmatpush.bf16.msra.mxu0 %v1011
    %1508 = vmatpush.bf16.msra.mxu0 %v1007
    %1509 = vmatpush.bf16.msra.mxu0 %v1003
    %1510 = vmatpush.bf16.msra.mxu0 %v999
    %1511 = vmatpush.bf16.msra.mxu0 %v995
    %1512 = vmatpush.bf16.msra.mxu0 %v991
    %1513 = vmatpush.bf16.msra.mxu0 %v987
    %1514 = vmatmul.bf16.gmra.mxu0 %v366
    %v1515 = vpop.f32.mrf.mxu0
    %v1516 = vadd.f32 %v1503, %v1515
    %v1517 = vpop.f32.mrf.mxu0
    %1518 = vdwg.mxu0
    %1519 = vmatpush.bf16.msra.mxu0 %v1047
    %1520 = vmatpush.bf16.msra.mxu0 %v1043
    %1521 = vmatpush.bf16.msra.mxu0 %v1039
    %1522 = vmatpush.bf16.msra.mxu0 %v1035
    %1523 = vmatpush.bf16.msra.mxu0 %v1031
    %1524 = vmatpush.bf16.msra.mxu0 %v1027
    %1525 = vmatpush.bf16.msra.mxu0 %v1023
    %1526 = vmatpush.bf16.msra.mxu0 %v1019
    %1527 = vmatmul.bf16.gmra.mxu0 %v367
    %v1528 = vpop.f32.mrf.mxu0
    %v1529 = vadd.f32 %v1516, %v1528
    %v1530 = vpop.f32.mrf.mxu0
    %1531 = vdwg.mxu0
    %1532 = vmatpush.bf16.msra.mxu0 %v1079
    %1533 = vmatpush.bf16.msra.mxu0 %v1075
    %1534 = vmatpush.bf16.msra.mxu0 %v1071
    %1535 = vmatpush.bf16.msra.mxu0 %v1067
    %1536 = vmatpush.bf16.msra.mxu0 %v1063
    %1537 = vmatpush.bf16.msra.mxu0 %v1059
    %1538 = vmatpush.bf16.msra.mxu0 %v1055
    %1539 = vmatpush.bf16.msra.mxu0 %v1051
    %1540 = vmatmul.bf16.gmra.mxu0 %v368
    %v1541 = vpop.f32.mrf.mxu0
    %v1542 = vadd.f32 %v1529, %v1541
    %v1543 = vpop.f32.mrf.mxu0
    %1544 = vdwg.mxu0
    %1545 = vmatpush.bf16.msra.mxu0 %v1111
    %1546 = vmatpush.bf16.msra.mxu0 %v1107
    %1547 = vmatpush.bf16.msra.mxu0 %v1103
    %1548 = vmatpush.bf16.msra.mxu0 %v1099
    %1549 = vmatpush.bf16.msra.mxu0 %v1095
    %1550 = vmatpush.bf16.msra.mxu0 %v1091
    %1551 = vmatpush.bf16.msra.mxu0 %v1087
    %1552 = vmatpush.bf16.msra.mxu0 %v1083
    %1553 = vmatmul.bf16.gmra.mxu0 %v369
    %v1554 = vpop.f32.mrf.mxu0
    %v1555 = vadd.f32 %v1542, %v1554
    %v1556 = vpop.f32.mrf.mxu0
    %1557 = vdwg.mxu0
    %1558 = vmatpush.bf16.msra.mxu0 %v1143
    %1559 = vmatpush.bf16.msra.mxu0 %v1139
    %1560 = vmatpush.bf16.msra.mxu0 %v1135
    %1561 = vmatpush.bf16.msra.mxu0 %v1131
    %1562 = vmatpush.bf16.msra.mxu0 %v1127
    %1563 = vmatpush.bf16.msra.mxu0 %v1123
    %1564 = vmatpush.bf16.msra.mxu0 %v1119
    %1565 = vmatpush.bf16.msra.mxu0 %v1115
    %1566 = vmatmul.bf16.gmra.mxu0 %v370
    %v1567 = vpop.f32.mrf.mxu0
    %v1568 = vadd.f32 %v1555, %v1567
    %v1569 = vpop.f32.mrf.mxu0
    %1570 = vdwg.mxu0
    %1571 = vmatpush.bf16.msra.mxu0 %v984
    %1572 = vmatpush.bf16.msra.mxu0 %v980
    %1573 = vmatpush.bf16.msra.mxu0 %v976
    %1574 = vmatpush.bf16.msra.mxu0 %v972
    %1575 = vmatpush.bf16.msra.mxu0 %v968
    %1576 = vmatpush.bf16.msra.mxu0 %v964
    %1577 = vmatpush.bf16.msra.mxu0 %v960
    %1578 = vmatpush.bf16.msra.mxu0 %v956
    %1579 = vmatmul.bf16.gmra.mxu0 %v365
    %v1580 = vpop.f32.mrf.mxu0
    %v1581 = vadd.f32 0.0, %v1580
    %v1582 = vpop.f32.mrf.mxu0
    %1583 = vdwg.mxu0
    %1584 = vmatpush.bf16.msra.mxu0 %v1016
    %1585 = vmatpush.bf16.msra.mxu0 %v1012
    %1586 = vmatpush.bf16.msra.mxu0 %v1008
    %1587 = vmatpush.bf16.msra.mxu0 %v1004
    %1588 = vmatpush.bf16.msra.mxu0 %v1000
    %1589 = vmatpush.bf16.msra.mxu0 %v996
    %1590 = vmatpush.bf16.msra.mxu0 %v992
    %1591 = vmatpush.bf16.msra.mxu0 %v988
    %1592 = vmatmul.bf16.gmra.mxu0 %v366
    %v1593 = vpop.f32.mrf.mxu0
    %v1594 = vadd.f32 %v1581, %v1593
    %v1595 = vpop.f32.mrf.mxu0
    %1596 = vdwg.mxu0
    %1597 = vmatpush.bf16.msra.mxu0 %v1048
    %1598 = vmatpush.bf16.msra.mxu0 %v1044
    %1599 = vmatpush.bf16.msra.mxu0 %v1040
    %1600 = vmatpush.bf16.msra.mxu0 %v1036
    %1601 = vmatpush.bf16.msra.mxu0 %v1032
    %1602 = vmatpush.bf16.msra.mxu0 %v1028
    %1603 = vmatpush.bf16.msra.mxu0 %v1024
    %1604 = vmatpush.bf16.msra.mxu0 %v1020
    %1605 = vmatmul.bf16.gmra.mxu0 %v367
    %v1606 = vpop.f32.mrf.mxu0
    %v1607 = vadd.f32 %v1594, %v1606
    %v1608 = vpop.f32.mrf.mxu0
    %1609 = vdwg.mxu0
    %1610 = vmatpush.bf16.msra.mxu0 %v1080
    %1611 = vmatpush.bf16.msra.mxu0 %v1076
    %1612 = vmatpush.bf16.msra.mxu0 %v1072
    %1613 = vmatpush.bf16.msra.mxu0 %v1068
    %1614 = vmatpush.bf16.msra.mxu0 %v1064
    %1615 = vmatpush.bf16.msra.mxu0 %v1060
    %1616 = vmatpush.bf16.msra.mxu0 %v1056
    %1617 = vmatpush.bf16.msra.mxu0 %v1052
    %1618 = vmatmul.bf16.gmra.mxu0 %v368
    %v1619 = vpop.f32.mrf.mxu0
    %v1620 = vadd.f32 %v1607, %v1619
    %v1621 = vpop.f32.mrf.mxu0
    %1622 = vdwg.mxu0
    %1623 = vmatpush.bf16.msra.mxu0 %v1112
    %1624 = vmatpush.bf16.msra.mxu0 %v1108
    %1625 = vmatpush.bf16.msra.mxu0 %v1104
    %1626 = vmatpush.bf16.msra.mxu0 %v1100
    %1627 = vmatpush.bf16.msra.mxu0 %v1096
    %1628 = vmatpush.bf16.msra.mxu0 %v1092
    %1629 = vmatpush.bf16.msra.mxu0 %v1088
    %1630 = vmatpush.bf16.msra.mxu0 %v1084
    %1631 = vmatmul.bf16.gmra.mxu0 %v369
    %v1632 = vpop.f32.mrf.mxu0
    %v1633 = vadd.f32 %v1620, %v1632
    %v1634 = vpop.f32.mrf.mxu0
    %1635 = vdwg.mxu0
    %1636 = vmatpush.bf16.msra.mxu0 %v1144
    %1637 = vmatpush.bf16.msra.mxu0 %v1140
    %1638 = vmatpush.bf16.msra.mxu0 %v1136
    %1639 = vmatpush.bf16.msra.mxu0 %v1132
    %1640 = vmatpush.bf16.msra.mxu0 %v1128
    %1641 = vmatpush.bf16.msra.mxu0 %v1124
    %1642 = vmatpush.bf16.msra.mxu0 %v1120
    %1643 = vmatpush.bf16.msra.mxu0 %v1116
    %1644 = vmatmul.bf16.gmra.mxu0 %v370
    %v1645 = vpop.f32.mrf.mxu0
    %v1646 = vadd.f32 %v1633, %v1645
    %v1647 = vpop.f32.mrf.mxu0
    %1648 = vdwg.mxu0
    %v1649 = vadd.f32 %v352, %v1412
    %v1650 = vadd.f32 %v353, %v1490
    %v1651 = vadd.f32 %v354, %v1568
    %v1652 = vadd.f32 %v355, %v1646
    %1653 = vst [vmem:[#allocation2] sm:$0xff] %v1649
    %1654 = vst [vmem:[#allocation2 + $0x8] sm:$0xff] %v1650
    %1655 = vst [vmem:[#allocation2 + $0x10] sm:$0xff] %v1651
    %1656 = vst [vmem:[#allocation2 + $0x18] sm:$0xff] %v1652
    %v1657 = vld [vmem:[#allocation3] sm:$0xff]
    %v1658 = vld [vmem:[#allocation3 + $0x8] sm:$0xff]
    %v1659 = vld [vmem:[#allocation3 + $0x10] sm:$0xff]
    %v1660 = vld [vmem:[#allocation3 + $0x18] sm:$0xff]
    %v1664 = vunpack.c.l.b16 %v349
    %v1665 = vunpack.c.h.b16 %v349
    %v1666 = vunpack.c.l.b16 %v350
    %v1667 = vunpack.c.h.b16 %v350
    %v1668 = vunpack.c.l.b16 %v351
    %v1669 = vunpack.c.h.b16 %v351
    %v1670 = vpack.c.b16 %v1664, %v1664
    %v1671 = vpack.c.b16 %v1665, %v1665
    %v1672 = vpack.c.b16 %v1666, %v1666
    %v1673 = vpack.c.b16 %v1667, %v1667
    %v1674 = vpack.c.b16 %v1668, %v1668
    %v1675 = vpack.c.b16 %v1669, %v1669
    %1682 = vmatpush.bf16.msra.mxu0 %v981
    %1683 = vmatpush.bf16.msra.mxu0 %v977
    %1684 = vmatpush.bf16.msra.mxu0 %v973
    %1685 = vmatpush.bf16.msra.mxu0 %v969
    %1686 = vmatpush.bf16.msra.mxu0 %v965
    %1687 = vmatpush.bf16.msra.mxu0 %v961
    %1688 = vmatpush.bf16.msra.mxu0 %v957
    %1689 = vmatpush.bf16.msra.mxu0 %v953
    %1690 = vmatmul.bf16.gmra.mxu0 %v1670
    %v1691 = vpop.f32.mrf.mxu0
    %v1692 = vadd.f32 0.0, %v1691
    %v1693 = vpop.f32.mrf.mxu0
    %1694 = vdwg.mxu0
    %1695 = vmatpush.bf16.msra.mxu0 %v1013
    %1696 = vmatpush.bf16.msra.mxu0 %v1009
    %1697 = vmatpush.bf16.msra.mxu0 %v1005
    %1698 = vmatpush.bf16.msra.mxu0 %v1001
    %1699 = vmatpush.bf16.msra.mxu0 %v997
    %1700 = vmatpush.bf16.msra.mxu0 %v993
    %1701 = vmatpush.bf16.msra.mxu0 %v989
    %1702 = vmatpush.bf16.msra.mxu0 %v985
    %1703 = vmatmul.bf16.gmra.mxu0 %v1671
    %v1704 = vpop.f32.mrf.mxu0
    %v1705 = vadd.f32 %v1692, %v1704
    %v1706 = vpop.f32.mrf.mxu0
    %1707 = vdwg.mxu0
    %1708 = vmatpush.bf16.msra.mxu0 %v1045
    %1709 = vmatpush.bf16.msra.mxu0 %v1041
    %1710 = vmatpush.bf16.msra.mxu0 %v1037
    %1711 = vmatpush.bf16.msra.mxu0 %v1033
    %1712 = vmatpush.bf16.msra.mxu0 %v1029
    %1713 = vmatpush.bf16.msra.mxu0 %v1025
    %1714 = vmatpush.bf16.msra.mxu0 %v1021
    %1715 = vmatpush.bf16.msra.mxu0 %v1017
    %1716 = vmatmul.bf16.gmra.mxu0 %v1672
    %v1717 = vpop.f32.mrf.mxu0
    %v1718 = vadd.f32 %v1705, %v1717
    %v1719 = vpop.f32.mrf.mxu0
    %1720 = vdwg.mxu0
    %1721 = vmatpush.bf16.msra.mxu0 %v1077
    %1722 = vmatpush.bf16.msra.mxu0 %v1073
    %1723 = vmatpush.bf16.msra.mxu0 %v1069
    %1724 = vmatpush.bf16.msra.mxu0 %v1065
    %1725 = vmatpush.bf16.msra.mxu0 %v1061
    %1726 = vmatpush.bf16.msra.mxu0 %v1057
    %1727 = vmatpush.bf16.msra.mxu0 %v1053
    %1728 = vmatpush.bf16.msra.mxu0 %v1049
    %1729 = vmatmul.bf16.gmra.mxu0 %v1673
    %v1730 = vpop.f32.mrf.mxu0
    %v1731 = vadd.f32 %v1718, %v1730
    %v1732 = vpop.f32.mrf.mxu0
    %1733 = vdwg.mxu0
    %1734 = vmatpush.bf16.msra.mxu0 %v1109
    %1735 = vmatpush.bf16.msra.mxu0 %v1105
    %1736 = vmatpush.bf16.msra.mxu0 %v1101
    %1737 = vmatpush.bf16.msra.mxu0 %v1097
    %1738 = vmatpush.bf16.msra.mxu0 %v1093
    %1739 = vmatpush.bf16.msra.mxu0 %v1089
    %1740 = vmatpush.bf16.msra.mxu0 %v1085
    %1741 = vmatpush.bf16.msra.mxu0 %v1081
    %1742 = vmatmul.bf16.gmra.mxu0 %v1674
    %v1743 = vpop.f32.mrf.mxu0
    %v1744 = vadd.f32 %v1731, %v1743
    %v1745 = vpop.f32.mrf.mxu0
    %1746 = vdwg.mxu0
    %1747 = vmatpush.bf16.msra.mxu0 %v1141
    %1748 = vmatpush.bf16.msra.mxu0 %v1137
    %1749 = vmatpush.bf16.msra.mxu0 %v1133
    %1750 = vmatpush.bf16.msra.mxu0 %v1129
    %1751 = vmatpush.bf16.msra.mxu0 %v1125
    %1752 = vmatpush.bf16.msra.mxu0 %v1121
    %1753 = vmatpush.bf16.msra.mxu0 %v1117
    %1754 = vmatpush.bf16.msra.mxu0 %v1113
    %1755 = vmatmul.bf16.gmra.mxu0 %v1675
    %v1756 = vpop.f32.mrf.mxu0
    %v1757 = vadd.f32 %v1744, %v1756
    %v1758 = vpop.f32.mrf.mxu0
    %1759 = vdwg.mxu0
    %1760 = vmatpush.bf16.msra.mxu0 %v982
    %1761 = vmatpush.bf16.msra.mxu0 %v978
    %1762 = vmatpush.bf16.msra.mxu0 %v974
    %1763 = vmatpush.bf16.msra.mxu0 %v970
    %1764 = vmatpush.bf16.msra.mxu0 %v966
    %1765 = vmatpush.bf16.msra.mxu0 %v962
    %1766 = vmatpush.bf16.msra.mxu0 %v958
    %1767 = vmatpush.bf16.msra.mxu0 %v954
    %1768 = vmatmul.bf16.gmra.mxu0 %v1670
    %v1769 = vpop.f32.mrf.mxu0
    %v1770 = vadd.f32 0.0, %v1769
    %v1771 = vpop.f32.mrf.mxu0
    %1772 = vdwg.mxu0
    %1773 = vmatpush.bf16.msra.mxu0 %v1014
    %1774 = vmatpush.bf16.msra.mxu0 %v1010
    %1775 = vmatpush.bf16.msra.mxu0 %v1006
    %1776 = vmatpush.bf16.msra.mxu0 %v1002
    %1777 = vmatpush.bf16.msra.mxu0 %v998
    %1778 = vmatpush.bf16.msra.mxu0 %v994
    %1779 = vmatpush.bf16.msra.mxu0 %v990
    %1780 = vmatpush.bf16.msra.mxu0 %v986
    %1781 = vmatmul.bf16.gmra.mxu0 %v1671
    %v1782 = vpop.f32.mrf.mxu0
    %v1783 = vadd.f32 %v1770, %v1782
    %v1784 = vpop.f32.mrf.mxu0
    %1785 = vdwg.mxu0
    %1786 = vmatpush.bf16.msra.mxu0 %v1046
    %1787 = vmatpush.bf16.msra.mxu0 %v1042
    %1788 = vmatpush.bf16.msra.mxu0 %v1038
    %1789 = vmatpush.bf16.msra.mxu0 %v1034
    %1790 = vmatpush.bf16.msra.mxu0 %v1030
    %1791 = vmatpush.bf16.msra.mxu0 %v1026
    %1792 = vmatpush.bf16.msra.mxu0 %v1022
    %1793 = vmatpush.bf16.msra.mxu0 %v1018
    %1794 = vmatmul.bf16.gmra.mxu0 %v1672
    %v1795 = vpop.f32.mrf.mxu0
    %v1796 = vadd.f32 %v1783, %v1795
    %v1797 = vpop.f32.mrf.mxu0
    %1798 = vdwg.mxu0
    %1799 = vmatpush.bf16.msra.mxu0 %v1078
    %1800 = vmatpush.bf16.msra.mxu0 %v1074
    %1801 = vmatpush.bf16.msra.mxu0 %v1070
    %1802 = vmatpush.bf16.msra.mxu0 %v1066
    %1803 = vmatpush.bf16.msra.mxu0 %v1062
    %1804 = vmatpush.bf16.msra.mxu0 %v1058
    %1805 = vmatpush.bf16.msra.mxu0 %v1054
    %1806 = vmatpush.bf16.msra.mxu0 %v1050
    %1807 = vmatmul.bf16.gmra.mxu0 %v1673
    %v1808 = vpop.f32.mrf.mxu0
    %v1809 = vadd.f32 %v1796, %v1808
    %v1810 = vpop.f32.mrf.mxu0
    %1811 = vdwg.mxu0
    %1812 = vmatpush.bf16.msra.mxu0 %v1110
    %1813 = vmatpush.bf16.msra.mxu0 %v1106
    %1814 = vmatpush.bf16.msra.mxu0 %v1102
    %1815 = vmatpush.bf16.msra.mxu0 %v1098
    %1816 = vmatpush.bf16.msra.mxu0 %v1094
    %1817 = vmatpush.bf16.msra.mxu0 %v1090
    %1818 = vmatpush.bf16.msra.mxu0 %v1086
    %1819 = vmatpush.bf16.msra.mxu0 %v1082
    %1820 = vmatmul.bf16.gmra.mxu0 %v1674
    %v1821 = vpop.f32.mrf.mxu0
    %v1822 = vadd.f32 %v1809, %v1821
    %v1823 = vpop.f32.mrf.mxu0
    %1824 = vdwg.mxu0
    %1825 = vmatpush.bf16.msra.mxu0 %v1142
    %1826 = vmatpush.bf16.msra.mxu0 %v1138
    %1827 = vmatpush.bf16.msra.mxu0 %v1134
    %1828 = vmatpush.bf16.msra.mxu0 %v1130
    %1829 = vmatpush.bf16.msra.mxu0 %v1126
    %1830 = vmatpush.bf16.msra.mxu0 %v1122
    %1831 = vmatpush.bf16.msra.mxu0 %v1118
    %1832 = vmatpush.bf16.msra.mxu0 %v1114
    %1833 = vmatmul.bf16.gmra.mxu0 %v1675
    %v1834 = vpop.f32.mrf.mxu0
    %v1835 = vadd.f32 %v1822, %v1834
    %v1836 = vpop.f32.mrf.mxu0
    %1837 = vdwg.mxu0
    %1838 = vmatpush.bf16.msra.mxu0 %v983
    %1839 = vmatpush.bf16.msra.mxu0 %v979
    %1840 = vmatpush.bf16.msra.mxu0 %v975
    %1841 = vmatpush.bf16.msra.mxu0 %v971
    %1842 = vmatpush.bf16.msra.mxu0 %v967
    %1843 = vmatpush.bf16.msra.mxu0 %v963
    %1844 = vmatpush.bf16.msra.mxu0 %v959
    %1845 = vmatpush.bf16.msra.mxu0 %v955
    %1846 = vmatmul.bf16.gmra.mxu0 %v1670
    %v1847 = vpop.f32.mrf.mxu0
    %v1848 = vadd.f32 0.0, %v1847
    %v1849 = vpop.f32.mrf.mxu0
    %1850 = vdwg.mxu0
    %1851 = vmatpush.bf16.msra.mxu0 %v1015
    %1852 = vmatpush.bf16.msra.mxu0 %v1011
    %1853 = vmatpush.bf16.msra.mxu0 %v1007
    %1854 = vmatpush.bf16.msra.mxu0 %v1003
    %1855 = vmatpush.bf16.msra.mxu0 %v999
    %1856 = vmatpush.bf16.msra.mxu0 %v995
    %1857 = vmatpush.bf16.msra.mxu0 %v991
    %1858 = vmatpush.bf16.msra.mxu0 %v987
    %1859 = vmatmul.bf16.gmra.mxu0 %v1671
    %v1860 = vpop.f32.mrf.mxu0
    %v1861 = vadd.f32 %v1848, %v1860
    %v1862 = vpop.f32.mrf.mxu0
    %1863 = vdwg.mxu0
    %1864 = vmatpush.bf16.msra.mxu0 %v1047
    %1865 = vmatpush.bf16.msra.mxu0 %v1043
    %1866 = vmatpush.bf16.msra.mxu0 %v1039
    %1867 = vmatpush.bf16.msra.mxu0 %v1035
    %1868 = vmatpush.bf16.msra.mxu0 %v1031
    %1869 = vmatpush.bf16.msra.mxu0 %v1027
    %1870 = vmatpush.bf16.msra.mxu0 %v1023
    %1871 = vmatpush.bf16.msra.mxu0 %v1019
    %1872 = vmatmul.bf16.gmra.mxu0 %v1672
    %v1873 = vpop.f32.mrf.mxu0
    %v1874 = vadd.f32 %v1861, %v1873
    %v1875 = vpop.f32.mrf.mxu0
    %1876 = vdwg.mxu0
    %1877 = vmatpush.bf16.msra.mxu0 %v1079
    %1878 = vmatpush.bf16.msra.mxu0 %v1075
    %1879 = vmatpush.bf16.msra.mxu0 %v1071
    %1880 = vmatpush.bf16.msra.mxu0 %v1067
    %1881 = vmatpush.bf16.msra.mxu0 %v1063
    %1882 = vmatpush.bf16.msra.mxu0 %v1059
    %1883 = vmatpush.bf16.msra.mxu0 %v1055
    %1884 = vmatpush.bf16.msra.mxu0 %v1051
    %1885 = vmatmul.bf16.gmra.mxu0 %v1673
    %v1886 = vpop.f32.mrf.mxu0
    %v1887 = vadd.f32 %v1874, %v1886
    %v1888 = vpop.f32.mrf.mxu0
    %1889 = vdwg.mxu0
    %1890 = vmatpush.bf16.msra.mxu0 %v1111
    %1891 = vmatpush.bf16.msra.mxu0 %v1107
    %1892 = vmatpush.bf16.msra.mxu0 %v1103
    %1893 = vmatpush.bf16.msra.mxu0 %v1099
    %1894 = vmatpush.bf16.msra.mxu0 %v1095
    %1895 = vmatpush.bf16.msra.mxu0 %v1091
    %1896 = vmatpush.bf16.msra.mxu0 %v1087
    %1897 = vmatpush.bf16.msra.mxu0 %v1083
    %1898 = vmatmul.bf16.gmra.mxu0 %v1674
    %v1899 = vpop.f32.mrf.mxu0
    %v1900 = vadd.f32 %v1887, %v1899
    %v1901 = vpop.f32.mrf.mxu0
    %1902 = vdwg.mxu0
    %1903 = vmatpush.bf16.msra.mxu0 %v1143
    %1904 = vmatpush.bf16.msra.mxu0 %v1139
    %1905 = vmatpush.bf16.msra.mxu0 %v1135
    %1906 = vmatpush.bf16.msra.mxu0 %v1131
    %1907 = vmatpush.bf16.msra.mxu0 %v1127
    %1908 = vmatpush.bf16.msra.mxu0 %v1123
    %1909 = vmatpush.bf16.msra.mxu0 %v1119
    %1910 = vmatpush.bf16.msra.mxu0 %v1115
    %1911 = vmatmul.bf16.gmra.mxu0 %v1675
    %v1912 = vpop.f32.mrf.mxu0
    %v1913 = vadd.f32 %v1900, %v1912
    %v1914 = vpop.f32.mrf.mxu0
    %1915 = vdwg.mxu0
    %1916 = vmatpush.bf16.msra.mxu0 %v984
    %1917 = vmatpush.bf16.msra.mxu0 %v980
    %1918 = vmatpush.bf16.msra.mxu0 %v976
    %1919 = vmatpush.bf16.msra.mxu0 %v972
    %1920 = vmatpush.bf16.msra.mxu0 %v968
    %1921 = vmatpush.bf16.msra.mxu0 %v964
    %1922 = vmatpush.bf16.msra.mxu0 %v960
    %1923 = vmatpush.bf16.msra.mxu0 %v956
    %1924 = vmatmul.bf16.gmra.mxu0 %v1670
    %v1925 = vpop.f32.mrf.mxu0
    %v1926 = vadd.f32 0.0, %v1925
    %v1927 = vpop.f32.mrf.mxu0
    %1928 = vdwg.mxu0
    %1929 = vmatpush.bf16.msra.mxu0 %v1016
    %1930 = vmatpush.bf16.msra.mxu0 %v1012
    %1931 = vmatpush.bf16.msra.mxu0 %v1008
    %1932 = vmatpush.bf16.msra.mxu0 %v1004
    %1933 = vmatpush.bf16.msra.mxu0 %v1000
    %1934 = vmatpush.bf16.msra.mxu0 %v996
    %1935 = vmatpush.bf16.msra.mxu0 %v992
    %1936 = vmatpush.bf16.msra.mxu0 %v988
    %1937 = vmatmul.bf16.gmra.mxu0 %v1671
    %v1938 = vpop.f32.mrf.mxu0
    %v1939 = vadd.f32 %v1926, %v1938
    %v1940 = vpop.f32.mrf.mxu0
    %1941 = vdwg.mxu0
    %1942 = vmatpush.bf16.msra.mxu0 %v1048
    %1943 = vmatpush.bf16.msra.mxu0 %v1044
    %1944 = vmatpush.bf16.msra.mxu0 %v1040
    %1945 = vmatpush.bf16.msra.mxu0 %v1036
    %1946 = vmatpush.bf16.msra.mxu0 %v1032
    %1947 = vmatpush.bf16.msra.mxu0 %v1028
    %1948 = vmatpush.bf16.msra.mxu0 %v1024
    %1949 = vmatpush.bf16.msra.mxu0 %v1020
    %1950 = vmatmul.bf16.gmra.mxu0 %v1672
    %v1951 = vpop.f32.mrf.mxu0
    %v1952 = vadd.f32 %v1939, %v1951
    %v1953 = vpop.f32.mrf.mxu0
    %1954 = vdwg.mxu0
    %1955 = vmatpush.bf16.msra.mxu0 %v1080
    %1956 = vmatpush.bf16.msra.mxu0 %v1076
    %1957 = vmatpush.bf16.msra.mxu0 %v1072
    %1958 = vmatpush.bf16.msra.mxu0 %v1068
    %1959 = vmatpush.bf16.msra.mxu0 %v1064
    %1960 = vmatpush.bf16.msra.mxu0 %v1060
    %1961 = vmatpush.bf16.msra.mxu0 %v1056
    %1962 = vmatpush.bf16.msra.mxu0 %v1052
    %1963 = vmatmul.bf16.gmra.mxu0 %v1673
    %v1964 = vpop.f32.mrf.mxu0
    %v1965 = vadd.f32 %v1952, %v1964
    %v1966 = vpop.f32.mrf.mxu0
    %1967 = vdwg.mxu0
    %1968 = vmatpush.bf16.msra.mxu0 %v1112
    %1969 = vmatpush.bf16.msra.mxu0 %v1108
    %1970 = vmatpush.bf16.msra.mxu0 %v1104
    %1971 = vmatpush.bf16.msra.mxu0 %v1100
    %1972 = vmatpush.bf16.msra.mxu0 %v1096
    %1973 = vmatpush.bf16.msra.mxu0 %v1092
    %1974 = vmatpush.bf16.msra.mxu0 %v1088
    %1975 = vmatpush.bf16.msra.mxu0 %v1084
    %1976 = vmatmul.bf16.gmra.mxu0 %v1674
    %v1977 = vpop.f32.mrf.mxu0
    %v1978 = vadd.f32 %v1965, %v1977
    %v1979 = vpop.f32.mrf.mxu0
    %1980 = vdwg.mxu0
    %1981 = vmatpush.bf16.msra.mxu0 %v1144
    %1982 = vmatpush.bf16.msra.mxu0 %v1140
    %1983 = vmatpush.bf16.msra.mxu0 %v1136
    %1984 = vmatpush.bf16.msra.mxu0 %v1132
    %1985 = vmatpush.bf16.msra.mxu0 %v1128
    %1986 = vmatpush.bf16.msra.mxu0 %v1124
    %1987 = vmatpush.bf16.msra.mxu0 %v1120
    %1988 = vmatpush.bf16.msra.mxu0 %v1116
    %1989 = vmatmul.bf16.gmra.mxu0 %v1675
    %v1990 = vpop.f32.mrf.mxu0
    %v1991 = vadd.f32 %v1978, %v1990
    %v1992 = vpop.f32.mrf.mxu0
    %1993 = vdwg.mxu0
    %v1994 = vadd.f32 %v1657, %v1757
    %v1995 = vadd.f32 %v1658, %v1835
    %v1996 = vadd.f32 %v1659, %v1913
    %v1997 = vadd.f32 %v1660, %v1991
    %1998 = vst [vmem:[#allocation3] sm:$0xff] %v1994
    %1999 = vst [vmem:[#allocation3 + $0x8] sm:$0xff] %v1995
    %2000 = vst [vmem:[#allocation3 + $0x10] sm:$0xff] %v1996
    %2001 = vst [vmem:[#allocation3 + $0x18] sm:$0xff] %v1997
    // Predicated region
    $region74: #{mtcf_forward.1} parent=1 // pred_check
      %p2002 = pneg %p142
    $region75: #{mtcf_forward.1} parent=1 // pred_check_branch
      %2004 = sbr.rel (%p2002) target = $region77
    $region76: #{mtcf_forward.1} parent=1 // pred_region
      %v2005 = vld [vmem:[#allocation2] sm:$0xff]
      %v2006 = vld [vmem:[#allocation2 + $0x8] sm:$0xff]
      %v2007 = vld [vmem:[#allocation2 + $0x10] sm:$0xff]
      %v2008 = vld [vmem:[#allocation2 + $0x18] sm:$0xff]
      %v2009 = vpack.c.bf16 %v2005, %v2005
      %v2010 = vpack.c.bf16 %v2006, %v2006
      %v2011 = vpack.c.bf16 %v2007, %v2007
      %v2012 = vpack.c.bf16 %v2008, %v2008
      %v2013 = vld [vmem:[#allocation3] sm:$0xff]
      %v2014 = vld [vmem:[#allocation3 + $0x8] sm:$0xff]
      %v2015 = vld [vmem:[#allocation3 + $0x10] sm:$0xff]
      %v2016 = vld [vmem:[#allocation3 + $0x18] sm:$0xff]
      %v2017 = vpack.c.bf16 %v2013, %v2013
      %v2018 = vpack.c.bf16 %v2014, %v2014
      %v2019 = vpack.c.bf16 %v2015, %v2015
      %v2020 = vpack.c.bf16 %v2016, %v2016
      %v2021 = vld [vmem:[#allocation6] sm:$0xff]
      %v2022 = vld [vmem:[#allocation6 + $0x8] sm:$0xff]
      %v2023 = vld [vmem:[#allocation6 + $0x10] sm:$0xff]
      %v2024 = vld [vmem:[#allocation6 + $0x18] sm:$0xff]
      %v2025 = vld [vmem:[#allocation6 + $0x20] sm:$0xff]
      %v2026 = vld [vmem:[#allocation6 + $0x28] sm:$0xff]
      %v2027 = vld [vmem:[#allocation6 + $0x30] sm:$0xff]
      %v2028 = vld [vmem:[#allocation6 + $0x38] sm:$0xff]
      %v2029 = vld [vmem:[#allocation6 + $0x40] sm:$0xff]
      %v2030 = vld [vmem:[#allocation6 + $0x48] sm:$0xff]
      %v2031 = vld [vmem:[#allocation6 + $0x50] sm:$0xff]
      %v2032 = vld [vmem:[#allocation6 + $0x58] sm:$0xff]
      %v2033 = vld [vmem:[#allocation6 + $0x60] sm:$0xff]
      %v2034 = vld [vmem:[#allocation6 + $0x68] sm:$0xff]
      %v2035 = vld [vmem:[#allocation6 + $0x70] sm:$0xff]
      %v2036 = vld [vmem:[#allocation6 + $0x78] sm:$0xff]
      %v2037 = vld [vmem:[#allocation6 + $0x80] sm:$0xff]
      %v2038 = vld [vmem:[#allocation6 + $0x88] sm:$0xff]
      %v2039 = vld [vmem:[#allocation6 + $0x90] sm:$0xff]
      %v2040 = vld [vmem:[#allocation6 + $0x98] sm:$0xff]
      %v2041 = vld [vmem:[#allocation6 + $0xa0] sm:$0xff]
      %v2042 = vld [vmem:[#allocation6 + $0xa8] sm:$0xff]
      %v2043 = vld [vmem:[#allocation6 + $0xb0] sm:$0xff]
      %v2044 = vld [vmem:[#allocation6 + $0xb8] sm:$0xff]
      %v2045 = vld [vmem:[#allocation6 + $0xc0] sm:$0xff]
      %v2046 = vld [vmem:[#allocation6 + $0xc8] sm:$0xff]
      %v2047 = vld [vmem:[#allocation6 + $0xd0] sm:$0xff]
      %v2048 = vld [vmem:[#allocation6 + $0xd8] sm:$0xff]
      %v2049 = vld [vmem:[#allocation6 + $0xe0] sm:$0xff]
      %v2050 = vld [vmem:[#allocation6 + $0xe8] sm:$0xff]
      %v2051 = vld [vmem:[#allocation6 + $0xf0] sm:$0xff]
      %v2052 = vld [vmem:[#allocation6 + $0xf8] sm:$0xff]
      %v2053 = vld [vmem:[#allocation6 + $0x100] sm:$0xff]
      %v2054 = vld [vmem:[#allocation6 + $0x108] sm:$0xff]
      %v2055 = vld [vmem:[#allocation6 + $0x110] sm:$0xff]
      %v2056 = vld [vmem:[#allocation6 + $0x118] sm:$0xff]
      %v2057 = vld [vmem:[#allocation6 + $0x120] sm:$0xff]
      %v2058 = vld [vmem:[#allocation6 + $0x128] sm:$0xff]
      %v2059 = vld [vmem:[#allocation6 + $0x130] sm:$0xff]
      %v2060 = vld [vmem:[#allocation6 + $0x138] sm:$0xff]
      %v2061 = vld [vmem:[#allocation6 + $0x140] sm:$0xff]
      %v2062 = vld [vmem:[#allocation6 + $0x148] sm:$0xff]
      %v2063 = vld [vmem:[#allocation6 + $0x150] sm:$0xff]
      %v2064 = vld [vmem:[#allocation6 + $0x158] sm:$0xff]
      %v2065 = vld [vmem:[#allocation6 + $0x160] sm:$0xff]
      %v2066 = vld [vmem:[#allocation6 + $0x168] sm:$0xff]
      %v2067 = vld [vmem:[#allocation6 + $0x170] sm:$0xff]
      %v2068 = vld [vmem:[#allocation6 + $0x178] sm:$0xff]
      %v2069 = vld [vmem:[#allocation6 + $0x180] sm:$0xff]
      %v2070 = vld [vmem:[#allocation6 + $0x188] sm:$0xff]
      %v2071 = vld [vmem:[#allocation6 + $0x190] sm:$0xff]
      %v2072 = vld [vmem:[#allocation6 + $0x198] sm:$0xff]
      %v2073 = vld [vmem:[#allocation6 + $0x1a0] sm:$0xff]
      %v2074 = vld [vmem:[#allocation6 + $0x1a8] sm:$0xff]
      %v2075 = vld [vmem:[#allocation6 + $0x1b0] sm:$0xff]
      %v2076 = vld [vmem:[#allocation6 + $0x1b8] sm:$0xff]
      %v2077 = vld [vmem:[#allocation6 + $0x1c0] sm:$0xff]
      %v2078 = vld [vmem:[#allocation6 + $0x1c8] sm:$0xff]
      %v2079 = vld [vmem:[#allocation6 + $0x1d0] sm:$0xff]
      %v2080 = vld [vmem:[#allocation6 + $0x1d8] sm:$0xff]
      %v2081 = vld [vmem:[#allocation6 + $0x1e0] sm:$0xff]
      %v2082 = vld [vmem:[#allocation6 + $0x1e8] sm:$0xff]
      %v2083 = vld [vmem:[#allocation6 + $0x1f0] sm:$0xff]
      %v2084 = vld [vmem:[#allocation6 + $0x1f8] sm:$0xff]
      %v2085 = vld [vmem:[#allocation8] sm:$0xff]
      %v2086 = vld [vmem:[#allocation8 + $0x8] sm:$0xff]
      %v2087 = vld [vmem:[#allocation8 + $0x10] sm:$0xff]
      %v2088 = vld [vmem:[#allocation8 + $0x18] sm:$0xff]
      %v2089 = vld [vmem:[#allocation8 + $0x20] sm:$0xff]
      %v2090 = vld [vmem:[#allocation8 + $0x28] sm:$0xff]
      %v2091 = vld [vmem:[#allocation8 + $0x30] sm:$0xff]
      %v2092 = vld [vmem:[#allocation8 + $0x38] sm:$0xff]
      %v2093 = vld [vmem:[#allocation8 + $0x40] sm:$0xff]
      %v2094 = vld [vmem:[#allocation8 + $0x48] sm:$0xff]
      %v2095 = vld [vmem:[#allocation8 + $0x50] sm:$0xff]
      %v2096 = vld [vmem:[#allocation8 + $0x58] sm:$0xff]
      %v2097 = vld [vmem:[#allocation8 + $0x60] sm:$0xff]
      %v2098 = vld [vmem:[#allocation8 + $0x68] sm:$0xff]
      %v2099 = vld [vmem:[#allocation8 + $0x70] sm:$0xff]
      %v2100 = vld [vmem:[#allocation8 + $0x78] sm:$0xff]
      %v2101 = vld [vmem:[#allocation8 + $0x80] sm:$0xff]
      %v2102 = vld [vmem:[#allocation8 + $0x88] sm:$0xff]
      %v2103 = vld [vmem:[#allocation8 + $0x90] sm:$0xff]
      %v2104 = vld [vmem:[#allocation8 + $0x98] sm:$0xff]
      %v2105 = vld [vmem:[#allocation8 + $0xa0] sm:$0xff]
      %v2106 = vld [vmem:[#allocation8 + $0xa8] sm:$0xff]
      %v2107 = vld [vmem:[#allocation8 + $0xb0] sm:$0xff]
      %v2108 = vld [vmem:[#allocation8 + $0xb8] sm:$0xff]
      %v2109 = vld [vmem:[#allocation8 + $0xc0] sm:$0xff]
      %v2110 = vld [vmem:[#allocation8 + $0xc8] sm:$0xff]
      %v2111 = vld [vmem:[#allocation8 + $0xd0] sm:$0xff]
      %v2112 = vld [vmem:[#allocation8 + $0xd8] sm:$0xff]
      %v2113 = vld [vmem:[#allocation8 + $0xe0] sm:$0xff]
      %v2114 = vld [vmem:[#allocation8 + $0xe8] sm:$0xff]
      %v2115 = vld [vmem:[#allocation8 + $0xf0] sm:$0xff]
      %v2116 = vld [vmem:[#allocation8 + $0xf8] sm:$0xff]
      %v2117 = vld [vmem:[#allocation8 + $0x100] sm:$0xff]
      %v2118 = vld [vmem:[#allocation8 + $0x108] sm:$0xff]
      %v2119 = vld [vmem:[#allocation8 + $0x110] sm:$0xff]
      %v2120 = vld [vmem:[#allocation8 + $0x118] sm:$0xff]
      %v2121 = vld [vmem:[#allocation8 + $0x120] sm:$0xff]
      %v2122 = vld [vmem:[#allocation8 + $0x128] sm:$0xff]
      %v2123 = vld [vmem:[#allocation8 + $0x130] sm:$0xff]
      %v2124 = vld [vmem:[#allocation8 + $0x138] sm:$0xff]
      %v2125 = vld [vmem:[#allocation8 + $0x140] sm:$0xff]
      %v2126 = vld [vmem:[#allocation8 + $0x148] sm:$0xff]
      %v2127 = vld [vmem:[#allocation8 + $0x150] sm:$0xff]
      %v2128 = vld [vmem:[#allocation8 + $0x158] sm:$0xff]
      %v2129 = vld [vmem:[#allocation8 + $0x160] sm:$0xff]
      %v2130 = vld [vmem:[#allocation8 + $0x168] sm:$0xff]
      %v2131 = vld [vmem:[#allocation8 + $0x170] sm:$0xff]
      %v2132 = vld [vmem:[#allocation8 + $0x178] sm:$0xff]
      %v2133 = vld [vmem:[#allocation8 + $0x180] sm:$0xff]
      %v2134 = vld [vmem:[#allocation8 + $0x188] sm:$0xff]
      %v2135 = vld [vmem:[#allocation8 + $0x190] sm:$0xff]
      %v2136 = vld [vmem:[#allocation8 + $0x198] sm:$0xff]
      %v2137 = vld [vmem:[#allocation8 + $0x1a0] sm:$0xff]
      %v2138 = vld [vmem:[#allocation8 + $0x1a8] sm:$0xff]
      %v2139 = vld [vmem:[#allocation8 + $0x1b0] sm:$0xff]
      %v2140 = vld [vmem:[#allocation8 + $0x1b8] sm:$0xff]
      %v2141 = vld [vmem:[#allocation8 + $0x1c0] sm:$0xff]
      %v2142 = vld [vmem:[#allocation8 + $0x1c8] sm:$0xff]
      %v2143 = vld [vmem:[#allocation8 + $0x1d0] sm:$0xff]
      %v2144 = vld [vmem:[#allocation8 + $0x1d8] sm:$0xff]
      %v2145 = vld [vmem:[#allocation8 + $0x1e0] sm:$0xff]
      %v2146 = vld [vmem:[#allocation8 + $0x1e8] sm:$0xff]
      %v2147 = vld [vmem:[#allocation8 + $0x1f0] sm:$0xff]
      %v2148 = vld [vmem:[#allocation8 + $0x1f8] sm:$0xff]
      %v2213 = vunpack.c.l.b16 %v2085
      %v2214 = vunpack.c.h.b16 %v2085
      %v2215 = vunpack.c.l.b16 %v2086
      %v2216 = vunpack.c.h.b16 %v2086
      %v2217 = vunpack.c.l.b16 %v2087
      %v2218 = vunpack.c.h.b16 %v2087
      %v2219 = vunpack.c.l.b16 %v2088
      %v2220 = vunpack.c.h.b16 %v2088
      %v2221 = vunpack.c.l.b16 %v2089
      %v2222 = vunpack.c.h.b16 %v2089
      %v2223 = vunpack.c.l.b16 %v2090
      %v2224 = vunpack.c.h.b16 %v2090
      %v2225 = vunpack.c.l.b16 %v2091
      %v2226 = vunpack.c.h.b16 %v2091
      %v2227 = vunpack.c.l.b16 %v2092
      %v2228 = vunpack.c.h.b16 %v2092
      %v2229 = vunpack.c.l.b16 %v2093
      %v2230 = vunpack.c.h.b16 %v2093
      %v2231 = vunpack.c.l.b16 %v2094
      %v2232 = vunpack.c.h.b16 %v2094
      %v2233 = vunpack.c.l.b16 %v2095
      %v2234 = vunpack.c.h.b16 %v2095
      %v2235 = vunpack.c.l.b16 %v2096
      %v2236 = vunpack.c.h.b16 %v2096
      %v2237 = vunpack.c.l.b16 %v2097
      %v2238 = vunpack.c.h.b16 %v2097
      %v2239 = vunpack.c.l.b16 %v2098
      %v2240 = vunpack.c.h.b16 %v2098
      %v2241 = vunpack.c.l.b16 %v2099
      %v2242 = vunpack.c.h.b16 %v2099
      %v2243 = vunpack.c.l.b16 %v2100
      %v2244 = vunpack.c.h.b16 %v2100
      %v2245 = vunpack.c.l.b16 %v2101
      %v2246 = vunpack.c.h.b16 %v2101
      %v2247 = vunpack.c.l.b16 %v2102
      %v2248 = vunpack.c.h.b16 %v2102
      %v2249 = vunpack.c.l.b16 %v2103
      %v2250 = vunpack.c.h.b16 %v2103
      %v2251 = vunpack.c.l.b16 %v2104
      %v2252 = vunpack.c.h.b16 %v2104
      %v2253 = vunpack.c.l.b16 %v2105
      %v2254 = vunpack.c.h.b16 %v2105
      %v2255 = vunpack.c.l.b16 %v2106
      %v2256 = vunpack.c.h.b16 %v2106
      %v2257 = vunpack.c.l.b16 %v2107
      %v2258 = vunpack.c.h.b16 %v2107
      %v2259 = vunpack.c.l.b16 %v2108
      %v2260 = vunpack.c.h.b16 %v2108
      %v2261 = vunpack.c.l.b16 %v2109
      %v2262 = vunpack.c.h.b16 %v2109
      %v2263 = vunpack.c.l.b16 %v2110
      %v2264 = vunpack.c.h.b16 %v2110
      %v2265 = vunpack.c.l.b16 %v2111
      %v2266 = vunpack.c.h.b16 %v2111
      %v2267 = vunpack.c.l.b16 %v2112
      %v2268 = vunpack.c.h.b16 %v2112
      %v2269 = vunpack.c.l.b16 %v2113
      %v2270 = vunpack.c.h.b16 %v2113
      %v2271 = vunpack.c.l.b16 %v2114
      %v2272 = vunpack.c.h.b16 %v2114
      %v2273 = vunpack.c.l.b16 %v2115
      %v2274 = vunpack.c.h.b16 %v2115
      %v2275 = vunpack.c.l.b16 %v2116
      %v2276 = vunpack.c.h.b16 %v2116
      %v2277 = vunpack.c.l.b16 %v2117
      %v2278 = vunpack.c.h.b16 %v2117
      %v2279 = vunpack.c.l.b16 %v2118
      %v2280 = vunpack.c.h.b16 %v2118
      %v2281 = vunpack.c.l.b16 %v2119
      %v2282 = vunpack.c.h.b16 %v2119
      %v2283 = vunpack.c.l.b16 %v2120
      %v2284 = vunpack.c.h.b16 %v2120
      %v2285 = vunpack.c.l.b16 %v2121
      %v2286 = vunpack.c.h.b16 %v2121
      %v2287 = vunpack.c.l.b16 %v2122
      %v2288 = vunpack.c.h.b16 %v2122
      %v2289 = vunpack.c.l.b16 %v2123
      %v2290 = vunpack.c.h.b16 %v2123
      %v2291 = vunpack.c.l.b16 %v2124
      %v2292 = vunpack.c.h.b16 %v2124
      %v2293 = vunpack.c.l.b16 %v2125
      %v2294 = vunpack.c.h.b16 %v2125
      %v2295 = vunpack.c.l.b16 %v2126
      %v2296 = vunpack.c.h.b16 %v2126
      %v2297 = vunpack.c.l.b16 %v2127
      %v2298 = vunpack.c.h.b16 %v2127
      %v2299 = vunpack.c.l.b16 %v2128
      %v2300 = vunpack.c.h.b16 %v2128
      %v2301 = vunpack.c.l.b16 %v2129
      %v2302 = vunpack.c.h.b16 %v2129
      %v2303 = vunpack.c.l.b16 %v2130
      %v2304 = vunpack.c.h.b16 %v2130
      %v2305 = vunpack.c.l.b16 %v2131
      %v2306 = vunpack.c.h.b16 %v2131
      %v2307 = vunpack.c.l.b16 %v2132
      %v2308 = vunpack.c.h.b16 %v2132
      %v2309 = vunpack.c.l.b16 %v2133
      %v2310 = vunpack.c.h.b16 %v2133
      %v2311 = vunpack.c.l.b16 %v2134
      %v2312 = vunpack.c.h.b16 %v2134
      %v2313 = vunpack.c.l.b16 %v2135
      %v2314 = vunpack.c.h.b16 %v2135
      %v2315 = vunpack.c.l.b16 %v2136
      %v2316 = vunpack.c.h.b16 %v2136
      %v2317 = vunpack.c.l.b16 %v2137
      %v2318 = vunpack.c.h.b16 %v2137
      %v2319 = vunpack.c.l.b16 %v2138
      %v2320 = vunpack.c.h.b16 %v2138
      %v2321 = vunpack.c.l.b16 %v2139
      %v2322 = vunpack.c.h.b16 %v2139
      %v2323 = vunpack.c.l.b16 %v2140
      %v2324 = vunpack.c.h.b16 %v2140
      %v2325 = vunpack.c.l.b16 %v2141
      %v2326 = vunpack.c.h.b16 %v2141
      %v2327 = vunpack.c.l.b16 %v2142
      %v2328 = vunpack.c.h.b16 %v2142
      %v2329 = vunpack.c.l.b16 %v2143
      %v2330 = vunpack.c.h.b16 %v2143
      %v2331 = vunpack.c.l.b16 %v2144
      %v2332 = vunpack.c.h.b16 %v2144
      %v2333 = vunpack.c.l.b16 %v2145
      %v2334 = vunpack.c.h.b16 %v2145
      %v2335 = vunpack.c.l.b16 %v2146
      %v2336 = vunpack.c.h.b16 %v2146
      %v2337 = vunpack.c.l.b16 %v2147
      %v2338 = vunpack.c.h.b16 %v2147
      %v2339 = vunpack.c.l.b16 %v2148
      %v2340 = vunpack.c.h.b16 %v2148
      %v2341 = vpack.c.b16 %v2215, %v2213
      %v2342 = vpack.c.b16 %v2216, %v2214
      %v2343 = vpack.c.b16 %v2219, %v2217
      %v2344 = vpack.c.b16 %v2220, %v2218
      %v2345 = vpack.c.b16 %v2223, %v2221
      %v2346 = vpack.c.b16 %v2224, %v2222
      %v2347 = vpack.c.b16 %v2227, %v2225
      %v2348 = vpack.c.b16 %v2228, %v2226
      %v2349 = vpack.c.b16 %v2231, %v2229
      %v2350 = vpack.c.b16 %v2232, %v2230
      %v2351 = vpack.c.b16 %v2235, %v2233
      %v2352 = vpack.c.b16 %v2236, %v2234
      %v2353 = vpack.c.b16 %v2239, %v2237
      %v2354 = vpack.c.b16 %v2240, %v2238
      %v2355 = vpack.c.b16 %v2243, %v2241
      %v2356 = vpack.c.b16 %v2244, %v2242
      %v2357 = vpack.c.b16 %v2247, %v2245
      %v2358 = vpack.c.b16 %v2248, %v2246
      %v2359 = vpack.c.b16 %v2251, %v2249
      %v2360 = vpack.c.b16 %v2252, %v2250
      %v2361 = vpack.c.b16 %v2255, %v2253
      %v2362 = vpack.c.b16 %v2256, %v2254
      %v2363 = vpack.c.b16 %v2259, %v2257
      %v2364 = vpack.c.b16 %v2260, %v2258
      %v2365 = vpack.c.b16 %v2263, %v2261
      %v2366 = vpack.c.b16 %v2264, %v2262
      %v2367 = vpack.c.b16 %v2267, %v2265
      %v2368 = vpack.c.b16 %v2268, %v2266
      %v2369 = vpack.c.b16 %v2271, %v2269
      %v2370 = vpack.c.b16 %v2272, %v2270
      %v2371 = vpack.c.b16 %v2275, %v2273
      %v2372 = vpack.c.b16 %v2276, %v2274
      %v2373 = vpack.c.b16 %v2279, %v2277
      %v2374 = vpack.c.b16 %v2280, %v2278
      %v2375 = vpack.c.b16 %v2283, %v2281
      %v2376 = vpack.c.b16 %v2284, %v2282
      %v2377 = vpack.c.b16 %v2287, %v2285
      %v2378 = vpack.c.b16 %v2288, %v2286
      %v2379 = vpack.c.b16 %v2291, %v2289
      %v2380 = vpack.c.b16 %v2292, %v2290
      %v2381 = vpack.c.b16 %v2295, %v2293
      %v2382 = vpack.c.b16 %v2296, %v2294
      %v2383 = vpack.c.b16 %v2299, %v2297
      %v2384 = vpack.c.b16 %v2300, %v2298
      %v2385 = vpack.c.b16 %v2303, %v2301
      %v2386 = vpack.c.b16 %v2304, %v2302
      %v2387 = vpack.c.b16 %v2307, %v2305
      %v2388 = vpack.c.b16 %v2308, %v2306
      %v2389 = vpack.c.b16 %v2311, %v2309
      %v2390 = vpack.c.b16 %v2312, %v2310
      %v2391 = vpack.c.b16 %v2315, %v2313
      %v2392 = vpack.c.b16 %v2316, %v2314
      %v2393 = vpack.c.b16 %v2319, %v2317
      %v2394 = vpack.c.b16 %v2320, %v2318
      %v2395 = vpack.c.b16 %v2323, %v2321
      %v2396 = vpack.c.b16 %v2324, %v2322
      %v2397 = vpack.c.b16 %v2327, %v2325
      %v2398 = vpack.c.b16 %v2328, %v2326
      %v2399 = vpack.c.b16 %v2331, %v2329
      %v2400 = vpack.c.b16 %v2332, %v2330
      %v2401 = vpack.c.b16 %v2335, %v2333
      %v2402 = vpack.c.b16 %v2336, %v2334
      %v2403 = vpack.c.b16 %v2339, %v2337
      %v2404 = vpack.c.b16 %v2340, %v2338
      %2469 = vmatpush.bf16.msra.mxu0 %v2355
      %2470 = vmatpush.bf16.msra.mxu0 %v2353
      %2471 = vmatpush.bf16.msra.mxu0 %v2351
      %2472 = vmatpush.bf16.msra.mxu0 %v2349
      %2473 = vmatpush.bf16.msra.mxu0 %v2347
      %2474 = vmatpush.bf16.msra.mxu0 %v2345
      %2475 = vmatpush.bf16.msra.mxu0 %v2343
      %2476 = vmatpush.bf16.msra.mxu0 %v2341
      %2477 = vmatmul.bf16.gmra.mxu0 %v2017
      %v2478 = vpop.f32.mrf.mxu0
      %v2479 = vadd.f32 0.0, %v2478
      %v2480 = vpop.f32.mrf.mxu0
      %2481 = vdwg.mxu0
      %2482 = vmatpush.bf16.msra.mxu0 %v2371
      %2483 = vmatpush.bf16.msra.mxu0 %v2369
      %2484 = vmatpush.bf16.msra.mxu0 %v2367
      %2485 = vmatpush.bf16.msra.mxu0 %v2365
      %2486 = vmatpush.bf16.msra.mxu0 %v2363
      %2487 = vmatpush.bf16.msra.mxu0 %v2361
      %2488 = vmatpush.bf16.msra.mxu0 %v2359
      %2489 = vmatpush.bf16.msra.mxu0 %v2357
      %2490 = vmatmul.bf16.gmra.mxu0 %v2018
      %v2491 = vpop.f32.mrf.mxu0
      %v2492 = vadd.f32 %v2479, %v2491
      %v2493 = vpop.f32.mrf.mxu0
      %2494 = vdwg.mxu0
      %2495 = vmatpush.bf16.msra.mxu0 %v2387
      %2496 = vmatpush.bf16.msra.mxu0 %v2385
      %2497 = vmatpush.bf16.msra.mxu0 %v2383
      %2498 = vmatpush.bf16.msra.mxu0 %v2381
      %2499 = vmatpush.bf16.msra.mxu0 %v2379
      %2500 = vmatpush.bf16.msra.mxu0 %v2377
      %2501 = vmatpush.bf16.msra.mxu0 %v2375
      %2502 = vmatpush.bf16.msra.mxu0 %v2373
      %2503 = vmatmul.bf16.gmra.mxu0 %v2019
      %v2504 = vpop.f32.mrf.mxu0
      %v2505 = vadd.f32 %v2492, %v2504
      %v2506 = vpop.f32.mrf.mxu0
      %2507 = vdwg.mxu0
      %2508 = vmatpush.bf16.msra.mxu0 %v2403
      %2509 = vmatpush.bf16.msra.mxu0 %v2401
      %2510 = vmatpush.bf16.msra.mxu0 %v2399
      %2511 = vmatpush.bf16.msra.mxu0 %v2397
      %2512 = vmatpush.bf16.msra.mxu0 %v2395
      %2513 = vmatpush.bf16.msra.mxu0 %v2393
      %2514 = vmatpush.bf16.msra.mxu0 %v2391
      %2515 = vmatpush.bf16.msra.mxu0 %v2389
      %2516 = vmatmul.bf16.gmra.mxu0 %v2020
      %v2517 = vpop.f32.mrf.mxu0
      %v2518 = vadd.f32 %v2505, %v2517
      %v2519 = vpop.f32.mrf.mxu0
      %2520 = vdwg.mxu0
      %2521 = vmatpush.bf16.msra.mxu0 %v2356
      %2522 = vmatpush.bf16.msra.mxu0 %v2354
      %2523 = vmatpush.bf16.msra.mxu0 %v2352
      %2524 = vmatpush.bf16.msra.mxu0 %v2350
      %2525 = vmatpush.bf16.msra.mxu0 %v2348
      %2526 = vmatpush.bf16.msra.mxu0 %v2346
      %2527 = vmatpush.bf16.msra.mxu0 %v2344
      %2528 = vmatpush.bf16.msra.mxu0 %v2342
      %2529 = vmatmul.bf16.gmra.mxu0 %v2017
      %v2530 = vpop.f32.mrf.mxu0
      %v2531 = vadd.f32 0.0, %v2530
      %v2532 = vpop.f32.mrf.mxu0
      %2533 = vdwg.mxu0
      %2534 = vmatpush.bf16.msra.mxu0 %v2372
      %2535 = vmatpush.bf16.msra.mxu0 %v2370
      %2536 = vmatpush.bf16.msra.mxu0 %v2368
      %2537 = vmatpush.bf16.msra.mxu0 %v2366
      %2538 = vmatpush.bf16.msra.mxu0 %v2364
      %2539 = vmatpush.bf16.msra.mxu0 %v2362
      %2540 = vmatpush.bf16.msra.mxu0 %v2360
      %2541 = vmatpush.bf16.msra.mxu0 %v2358
      %2542 = vmatmul.bf16.gmra.mxu0 %v2018
      %v2543 = vpop.f32.mrf.mxu0
      %v2544 = vadd.f32 %v2531, %v2543
      %v2545 = vpop.f32.mrf.mxu0
      %2546 = vdwg.mxu0
      %2547 = vmatpush.bf16.msra.mxu0 %v2388
      %2548 = vmatpush.bf16.msra.mxu0 %v2386
      %2549 = vmatpush.bf16.msra.mxu0 %v2384
      %2550 = vmatpush.bf16.msra.mxu0 %v2382
      %2551 = vmatpush.bf16.msra.mxu0 %v2380
      %2552 = vmatpush.bf16.msra.mxu0 %v2378
      %2553 = vmatpush.bf16.msra.mxu0 %v2376
      %2554 = vmatpush.bf16.msra.mxu0 %v2374
      %2555 = vmatmul.bf16.gmra.mxu0 %v2019
      %v2556 = vpop.f32.mrf.mxu0
      %v2557 = vadd.f32 %v2544, %v2556
      %v2558 = vpop.f32.mrf.mxu0
      %2559 = vdwg.mxu0
      %2560 = vmatpush.bf16.msra.mxu0 %v2404
      %2561 = vmatpush.bf16.msra.mxu0 %v2402
      %2562 = vmatpush.bf16.msra.mxu0 %v2400
      %2563 = vmatpush.bf16.msra.mxu0 %v2398
      %2564 = vmatpush.bf16.msra.mxu0 %v2396
      %2565 = vmatpush.bf16.msra.mxu0 %v2394
      %2566 = vmatpush.bf16.msra.mxu0 %v2392
      %2567 = vmatpush.bf16.msra.mxu0 %v2390
      %2568 = vmatmul.bf16.gmra.mxu0 %v2020
      %v2569 = vpop.f32.mrf.mxu0
      %v2570 = vadd.f32 %v2557, %v2569
      %v2571 = vpop.f32.mrf.mxu0
      %2572 = vdwg.mxu0
      %v2637 = vunpack.c.l.b16 %v2021
      %v2638 = vunpack.c.h.b16 %v2021
      %v2639 = vunpack.c.l.b16 %v2022
      %v2640 = vunpack.c.h.b16 %v2022
      %v2641 = vunpack.c.l.b16 %v2023
      %v2642 = vunpack.c.h.b16 %v2023
      %v2643 = vunpack.c.l.b16 %v2024
      %v2644 = vunpack.c.h.b16 %v2024
      %v2645 = vunpack.c.l.b16 %v2025
      %v2646 = vunpack.c.h.b16 %v2025
      %v2647 = vunpack.c.l.b16 %v2026
      %v2648 = vunpack.c.h.b16 %v2026
      %v2649 = vunpack.c.l.b16 %v2027
      %v2650 = vunpack.c.h.b16 %v2027
      %v2651 = vunpack.c.l.b16 %v2028
      %v2652 = vunpack.c.h.b16 %v2028
      %v2653 = vunpack.c.l.b16 %v2029
      %v2654 = vunpack.c.h.b16 %v2029
      %v2655 = vunpack.c.l.b16 %v2030
      %v2656 = vunpack.c.h.b16 %v2030
      %v2657 = vunpack.c.l.b16 %v2031
      %v2658 = vunpack.c.h.b16 %v2031
      %v2659 = vunpack.c.l.b16 %v2032
      %v2660 = vunpack.c.h.b16 %v2032
      %v2661 = vunpack.c.l.b16 %v2033
      %v2662 = vunpack.c.h.b16 %v2033
      %v2663 = vunpack.c.l.b16 %v2034
      %v2664 = vunpack.c.h.b16 %v2034
      %v2665 = vunpack.c.l.b16 %v2035
      %v2666 = vunpack.c.h.b16 %v2035
      %v2667 = vunpack.c.l.b16 %v2036
      %v2668 = vunpack.c.h.b16 %v2036
      %v2669 = vunpack.c.l.b16 %v2037
      %v2670 = vunpack.c.h.b16 %v2037
      %v2671 = vunpack.c.l.b16 %v2038
      %v2672 = vunpack.c.h.b16 %v2038
      %v2673 = vunpack.c.l.b16 %v2039
      %v2674 = vunpack.c.h.b16 %v2039
      %v2675 = vunpack.c.l.b16 %v2040
      %v2676 = vunpack.c.h.b16 %v2040
      %v2677 = vunpack.c.l.b16 %v2041
      %v2678 = vunpack.c.h.b16 %v2041
      %v2679 = vunpack.c.l.b16 %v2042
      %v2680 = vunpack.c.h.b16 %v2042
      %v2681 = vunpack.c.l.b16 %v2043
      %v2682 = vunpack.c.h.b16 %v2043
      %v2683 = vunpack.c.l.b16 %v2044
      %v2684 = vunpack.c.h.b16 %v2044
      %v2685 = vunpack.c.l.b16 %v2045
      %v2686 = vunpack.c.h.b16 %v2045
      %v2687 = vunpack.c.l.b16 %v2046
      %v2688 = vunpack.c.h.b16 %v2046
      %v2689 = vunpack.c.l.b16 %v2047
      %v2690 = vunpack.c.h.b16 %v2047
      %v2691 = vunpack.c.l.b16 %v2048
      %v2692 = vunpack.c.h.b16 %v2048
      %v2693 = vunpack.c.l.b16 %v2049
      %v2694 = vunpack.c.h.b16 %v2049
      %v2695 = vunpack.c.l.b16 %v2050
      %v2696 = vunpack.c.h.b16 %v2050
      %v2697 = vunpack.c.l.b16 %v2051
      %v2698 = vunpack.c.h.b16 %v2051
      %v2699 = vunpack.c.l.b16 %v2052
      %v2700 = vunpack.c.h.b16 %v2052
      %v2701 = vunpack.c.l.b16 %v2053
      %v2702 = vunpack.c.h.b16 %v2053
      %v2703 = vunpack.c.l.b16 %v2054
      %v2704 = vunpack.c.h.b16 %v2054
      %v2705 = vunpack.c.l.b16 %v2055
      %v2706 = vunpack.c.h.b16 %v2055
      %v2707 = vunpack.c.l.b16 %v2056
      %v2708 = vunpack.c.h.b16 %v2056
      %v2709 = vunpack.c.l.b16 %v2057
      %v2710 = vunpack.c.h.b16 %v2057
      %v2711 = vunpack.c.l.b16 %v2058
      %v2712 = vunpack.c.h.b16 %v2058
      %v2713 = vunpack.c.l.b16 %v2059
      %v2714 = vunpack.c.h.b16 %v2059
      %v2715 = vunpack.c.l.b16 %v2060
      %v2716 = vunpack.c.h.b16 %v2060
      %v2717 = vunpack.c.l.b16 %v2061
      %v2718 = vunpack.c.h.b16 %v2061
      %v2719 = vunpack.c.l.b16 %v2062
      %v2720 = vunpack.c.h.b16 %v2062
      %v2721 = vunpack.c.l.b16 %v2063
      %v2722 = vunpack.c.h.b16 %v2063
      %v2723 = vunpack.c.l.b16 %v2064
      %v2724 = vunpack.c.h.b16 %v2064
      %v2725 = vunpack.c.l.b16 %v2065
      %v2726 = vunpack.c.h.b16 %v2065
      %v2727 = vunpack.c.l.b16 %v2066
      %v2728 = vunpack.c.h.b16 %v2066
      %v2729 = vunpack.c.l.b16 %v2067
      %v2730 = vunpack.c.h.b16 %v2067
      %v2731 = vunpack.c.l.b16 %v2068
      %v2732 = vunpack.c.h.b16 %v2068
      %v2733 = vunpack.c.l.b16 %v2069
      %v2734 = vunpack.c.h.b16 %v2069
      %v2735 = vunpack.c.l.b16 %v2070
      %v2736 = vunpack.c.h.b16 %v2070
      %v2737 = vunpack.c.l.b16 %v2071
      %v2738 = vunpack.c.h.b16 %v2071
      %v2739 = vunpack.c.l.b16 %v2072
      %v2740 = vunpack.c.h.b16 %v2072
      %v2741 = vunpack.c.l.b16 %v2073
      %v2742 = vunpack.c.h.b16 %v2073
      %v2743 = vunpack.c.l.b16 %v2074
      %v2744 = vunpack.c.h.b16 %v2074
      %v2745 = vunpack.c.l.b16 %v2075
      %v2746 = vunpack.c.h.b16 %v2075
      %v2747 = vunpack.c.l.b16 %v2076
      %v2748 = vunpack.c.h.b16 %v2076
      %v2749 = vunpack.c.l.b16 %v2077
      %v2750 = vunpack.c.h.b16 %v2077
      %v2751 = vunpack.c.l.b16 %v2078
      %v2752 = vunpack.c.h.b16 %v2078
      %v2753 = vunpack.c.l.b16 %v2079
      %v2754 = vunpack.c.h.b16 %v2079
      %v2755 = vunpack.c.l.b16 %v2080
      %v2756 = vunpack.c.h.b16 %v2080
      %v2757 = vunpack.c.l.b16 %v2081
      %v2758 = vunpack.c.h.b16 %v2081
      %v2759 = vunpack.c.l.b16 %v2082
      %v2760 = vunpack.c.h.b16 %v2082
      %v2761 = vunpack.c.l.b16 %v2083
      %v2762 = vunpack.c.h.b16 %v2083
      %v2763 = vunpack.c.l.b16 %v2084
      %v2764 = vunpack.c.h.b16 %v2084
      %v2765 = vpack.c.b16 %v2639, %v2637
      %v2766 = vpack.c.b16 %v2640, %v2638
      %v2767 = vpack.c.b16 %v2643, %v2641
      %v2768 = vpack.c.b16 %v2644, %v2642
      %v2769 = vpack.c.b16 %v2647, %v2645
      %v2770 = vpack.c.b16 %v2648, %v2646
      %v2771 = vpack.c.b16 %v2651, %v2649
      %v2772 = vpack.c.b16 %v2652, %v2650
      %v2773 = vpack.c.b16 %v2655, %v2653
      %v2774 = vpack.c.b16 %v2656, %v2654
      %v2775 = vpack.c.b16 %v2659, %v2657
      %v2776 = vpack.c.b16 %v2660, %v2658
      %v2777 = vpack.c.b16 %v2663, %v2661
      %v2778 = vpack.c.b16 %v2664, %v2662
      %v2779 = vpack.c.b16 %v2667, %v2665
      %v2780 = vpack.c.b16 %v2668, %v2666
      %v2781 = vpack.c.b16 %v2671, %v2669
      %v2782 = vpack.c.b16 %v2672, %v2670
      %v2783 = vpack.c.b16 %v2675, %v2673
      %v2784 = vpack.c.b16 %v2676, %v2674
      %v2785 = vpack.c.b16 %v2679, %v2677
      %v2786 = vpack.c.b16 %v2680, %v2678
      %v2787 = vpack.c.b16 %v2683, %v2681
      %v2788 = vpack.c.b16 %v2684, %v2682
      %v2789 = vpack.c.b16 %v2687, %v2685
      %v2790 = vpack.c.b16 %v2688, %v2686
      %v2791 = vpack.c.b16 %v2691, %v2689
      %v2792 = vpack.c.b16 %v2692, %v2690
      %v2793 = vpack.c.b16 %v2695, %v2693
      %v2794 = vpack.c.b16 %v2696, %v2694
      %v2795 = vpack.c.b16 %v2699, %v2697
      %v2796 = vpack.c.b16 %v2700, %v2698
      %v2797 = vpack.c.b16 %v2703, %v2701
      %v2798 = vpack.c.b16 %v2704, %v2702
      %v2799 = vpack.c.b16 %v2707, %v2705
      %v2800 = vpack.c.b16 %v2708, %v2706
      %v2801 = vpack.c.b16 %v2711, %v2709
      %v2802 = vpack.c.b16 %v2712, %v2710
      %v2803 = vpack.c.b16 %v2715, %v2713
      %v2804 = vpack.c.b16 %v2716, %v2714
      %v2805 = vpack.c.b16 %v2719, %v2717
      %v2806 = vpack.c.b16 %v2720, %v2718
      %v2807 = vpack.c.b16 %v2723, %v2721
      %v2808 = vpack.c.b16 %v2724, %v2722
      %v2809 = vpack.c.b16 %v2727, %v2725
      %v2810 = vpack.c.b16 %v2728, %v2726
      %v2811 = vpack.c.b16 %v2731, %v2729
      %v2812 = vpack.c.b16 %v2732, %v2730
      %v2813 = vpack.c.b16 %v2735, %v2733
      %v2814 = vpack.c.b16 %v2736, %v2734
      %v2815 = vpack.c.b16 %v2739, %v2737
      %v2816 = vpack.c.b16 %v2740, %v2738
      %v2817 = vpack.c.b16 %v2743, %v2741
      %v2818 = vpack.c.b16 %v2744, %v2742
      %v2819 = vpack.c.b16 %v2747, %v2745
      %v2820 = vpack.c.b16 %v2748, %v2746
      %v2821 = vpack.c.b16 %v2751, %v2749
      %v2822 = vpack.c.b16 %v2752, %v2750
      %v2823 = vpack.c.b16 %v2755, %v2753
      %v2824 = vpack.c.b16 %v2756, %v2754
      %v2825 = vpack.c.b16 %v2759, %v2757
      %v2826 = vpack.c.b16 %v2760, %v2758
      %v2827 = vpack.c.b16 %v2763, %v2761
      %v2828 = vpack.c.b16 %v2764, %v2762
      %2893 = vmatpush.bf16.msra.mxu0 %v2779
      %2894 = vmatpush.bf16.msra.mxu0 %v2777
      %2895 = vmatpush.bf16.msra.mxu0 %v2775
      %2896 = vmatpush.bf16.msra.mxu0 %v2773
      %2897 = vmatpush.bf16.msra.mxu0 %v2771
      %2898 = vmatpush.bf16.msra.mxu0 %v2769
      %2899 = vmatpush.bf16.msra.mxu0 %v2767
      %2900 = vmatpush.bf16.msra.mxu0 %v2765
      %2901 = vmatmul.bf16.gmra.mxu0 %v2009
      %v2902 = vpop.f32.mrf.mxu0
      %v2903 = vadd.f32 %v2518, %v2902
      %v2904 = vpop.f32.mrf.mxu0
      %2905 = vdwg.mxu0
      %2906 = vmatpush.bf16.msra.mxu0 %v2795
      %2907 = vmatpush.bf16.msra.mxu0 %v2793
      %2908 = vmatpush.bf16.msra.mxu0 %v2791
      %2909 = vmatpush.bf16.msra.mxu0 %v2789
      %2910 = vmatpush.bf16.msra.mxu0 %v2787
      %2911 = vmatpush.bf16.msra.mxu0 %v2785
      %2912 = vmatpush.bf16.msra.mxu0 %v2783
      %2913 = vmatpush.bf16.msra.mxu0 %v2781
      %2914 = vmatmul.bf16.gmra.mxu0 %v2010
      %v2915 = vpop.f32.mrf.mxu0
      %v2916 = vadd.f32 %v2903, %v2915
      %v2917 = vpop.f32.mrf.mxu0
      %2918 = vdwg.mxu0
      %2919 = vmatpush.bf16.msra.mxu0 %v2811
      %2920 = vmatpush.bf16.msra.mxu0 %v2809
      %2921 = vmatpush.bf16.msra.mxu0 %v2807
      %2922 = vmatpush.bf16.msra.mxu0 %v2805
      %2923 = vmatpush.bf16.msra.mxu0 %v2803
      %2924 = vmatpush.bf16.msra.mxu0 %v2801
      %2925 = vmatpush.bf16.msra.mxu0 %v2799
      %2926 = vmatpush.bf16.msra.mxu0 %v2797
      %2927 = vmatmul.bf16.gmra.mxu0 %v2011
      %v2928 = vpop.f32.mrf.mxu0
      %v2929 = vadd.f32 %v2916, %v2928
      %v2930 = vpop.f32.mrf.mxu0
      %2931 = vdwg.mxu0
      %2932 = vmatpush.bf16.msra.mxu0 %v2827
      %2933 = vmatpush.bf16.msra.mxu0 %v2825
      %2934 = vmatpush.bf16.msra.mxu0 %v2823
      %2935 = vmatpush.bf16.msra.mxu0 %v2821
      %2936 = vmatpush.bf16.msra.mxu0 %v2819
      %2937 = vmatpush.bf16.msra.mxu0 %v2817
      %2938 = vmatpush.bf16.msra.mxu0 %v2815
      %2939 = vmatpush.bf16.msra.mxu0 %v2813
      %2940 = vmatmul.bf16.gmra.mxu0 %v2012
      %v2941 = vpop.f32.mrf.mxu0
      %v2942 = vadd.f32 %v2929, %v2941
      %v2943 = vpop.f32.mrf.mxu0
      %2944 = vdwg.mxu0
      %2945 = vmatpush.bf16.msra.mxu0 %v2780
      %2946 = vmatpush.bf16.msra.mxu0 %v2778
      %2947 = vmatpush.bf16.msra.mxu0 %v2776
      %2948 = vmatpush.bf16.msra.mxu0 %v2774
      %2949 = vmatpush.bf16.msra.mxu0 %v2772
      %2950 = vmatpush.bf16.msra.mxu0 %v2770
      %2951 = vmatpush.bf16.msra.mxu0 %v2768
      %2952 = vmatpush.bf16.msra.mxu0 %v2766
      %2953 = vmatmul.bf16.gmra.mxu0 %v2009
      %v2954 = vpop.f32.mrf.mxu0
      %v2955 = vadd.f32 %v2570, %v2954
      %v2956 = vpop.f32.mrf.mxu0
      %2957 = vdwg.mxu0
      %2958 = vmatpush.bf16.msra.mxu0 %v2796
      %2959 = vmatpush.bf16.msra.mxu0 %v2794
      %2960 = vmatpush.bf16.msra.mxu0 %v2792
      %2961 = vmatpush.bf16.msra.mxu0 %v2790
      %2962 = vmatpush.bf16.msra.mxu0 %v2788
      %2963 = vmatpush.bf16.msra.mxu0 %v2786
      %2964 = vmatpush.bf16.msra.mxu0 %v2784
      %2965 = vmatpush.bf16.msra.mxu0 %v2782
      %2966 = vmatmul.bf16.gmra.mxu0 %v2010
      %v2967 = vpop.f32.mrf.mxu0
      %v2968 = vadd.f32 %v2955, %v2967
      %v2969 = vpop.f32.mrf.mxu0
      %2970 = vdwg.mxu0
      %2971 = vmatpush.bf16.msra.mxu0 %v2812
      %2972 = vmatpush.bf16.msra.mxu0 %v2810
      %2973 = vmatpush.bf16.msra.mxu0 %v2808
      %2974 = vmatpush.bf16.msra.mxu0 %v2806
      %2975 = vmatpush.bf16.msra.mxu0 %v2804
      %2976 = vmatpush.bf16.msra.mxu0 %v2802
      %2977 = vmatpush.bf16.msra.mxu0 %v2800
      %2978 = vmatpush.bf16.msra.mxu0 %v2798
      %2979 = vmatmul.bf16.gmra.mxu0 %v2011
      %v2980 = vpop.f32.mrf.mxu0
      %v2981 = vadd.f32 %v2968, %v2980
      %v2982 = vpop.f32.mrf.mxu0
      %2983 = vdwg.mxu0
      %2984 = vmatpush.bf16.msra.mxu0 %v2828
      %2985 = vmatpush.bf16.msra.mxu0 %v2826
      %2986 = vmatpush.bf16.msra.mxu0 %v2824
      %2987 = vmatpush.bf16.msra.mxu0 %v2822
      %2988 = vmatpush.bf16.msra.mxu0 %v2820
      %2989 = vmatpush.bf16.msra.mxu0 %v2818
      %2990 = vmatpush.bf16.msra.mxu0 %v2816
      %2991 = vmatpush.bf16.msra.mxu0 %v2814
      %2992 = vmatmul.bf16.gmra.mxu0 %v2012
      %v2993 = vpop.f32.mrf.mxu0
      %v2994 = vadd.f32 %v2981, %v2993
      %v2995 = vpop.f32.mrf.mxu0
      %2996 = vdwg.mxu0
      %v2997 = vld [vmem:[#allocation11] sm:$0x3]
      %v2999 = vperm.slane %v2997, 0
      %v3000 = vperm.slane %v2997, 1
      %v3003 = vadd.f32 %v2942, %v2999
      %v3004 = vadd.f32 %v2994, %v3000
      %vm3005 = vcmp.gt.f32.partialorder %v3003, 0.0
      %vm3006 = vcmp.gt.f32.partialorder %v3004, 0.0
      %v3007 = vmul.f32 %v3003, 0.2
      %v3008 = vmul.f32 %v3004, 0.2
      %v3009 = vsel %vm3005, %v3003, %v3007
      %v3010 = vsel %vm3006, %v3004, %v3008
      %v3011 = vpack.c.bf16 %v3009, %v3009
      %v3012 = vpack.c.bf16 %v3010, %v3010
      %v3013 = vld [vmem:[#allocation12] sm:$0xf]
      %v3014 = vld [vmem:[#allocation12 + $0x4] sm:$0xf]
      %v3015 = vld [vmem:[#allocation12 + $0x8] sm:$0xf]
      %v3016 = vld [vmem:[#allocation12 + $0xc] sm:$0xf]
      %v3017 = vld [vmem:[#allocation12 + $0x10] sm:$0xf]
      %v3018 = vld [vmem:[#allocation12 + $0x14] sm:$0xf]
      %v3019 = vld [vmem:[#allocation12 + $0x18] sm:$0xf]
      %v3020 = vld [vmem:[#allocation12 + $0x1c] sm:$0xf]
      %v3021 = vld [vmem:[#allocation12 + $0x20] sm:$0xf]
      %v3022 = vld [vmem:[#allocation12 + $0x24] sm:$0xf]
      %v3023 = vld [vmem:[#allocation12 + $0x28] sm:$0xf]
      %v3024 = vld [vmem:[#allocation12 + $0x2c] sm:$0xf]
      %v3025 = vld [vmem:[#allocation12 + $0x30] sm:$0xf]
      %v3026 = vld [vmem:[#allocation12 + $0x34] sm:$0xf]
      %v3027 = vld [vmem:[#allocation12 + $0x38] sm:$0xf]
      %v3028 = vld [vmem:[#allocation12 + $0x3c] sm:$0xf]
      %v3029 = vld [vmem:[#allocation12 + $0x40] sm:$0xf]
      %v3030 = vld [vmem:[#allocation12 + $0x44] sm:$0xf]
      %v3031 = vld [vmem:[#allocation12 + $0x48] sm:$0xf]
      %v3032 = vld [vmem:[#allocation12 + $0x4c] sm:$0xf]
      %v3033 = vld [vmem:[#allocation12 + $0x50] sm:$0xf]
      %v3034 = vld [vmem:[#allocation12 + $0x54] sm:$0xf]
      %v3035 = vld [vmem:[#allocation12 + $0x58] sm:$0xf]
      %v3036 = vld [vmem:[#allocation12 + $0x5c] sm:$0xf]
      %v3037 = vld [vmem:[#allocation12 + $0x60] sm:$0xf]
      %v3038 = vld [vmem:[#allocation12 + $0x64] sm:$0xf]
      %v3039 = vld [vmem:[#allocation12 + $0x68] sm:$0xf]
      %v3040 = vld [vmem:[#allocation12 + $0x6c] sm:$0xf]
      %v3041 = vld [vmem:[#allocation12 + $0x70] sm:$0xf]
      %v3042 = vld [vmem:[#allocation12 + $0x74] sm:$0xf]
      %v3043 = vld [vmem:[#allocation12 + $0x78] sm:$0xf]
      %v3044 = vld [vmem:[#allocation12 + $0x7c] sm:$0xf]
      %v3045 = vld [vmem:[#allocation9] sm:$0xff]
      %v3046 = vld [vmem:[#allocation9 + $0x8] sm:$0xff]
      %v3047 = vld [vmem:[#allocation9 + $0x10] sm:$0xff]
      %v3048 = vld [vmem:[#allocation9 + $0x18] sm:$0xff]
      %v3049 = vld [vmem:[#allocation9 + $0x20] sm:$0xff]
      %v3050 = vld [vmem:[#allocation9 + $0x28] sm:$0xff]
      %v3051 = vld [vmem:[#allocation9 + $0x30] sm:$0xff]
      %v3052 = vld [vmem:[#allocation9 + $0x38] sm:$0xff]
      %v3053 = vld [vmem:[#allocation9 + $0x40] sm:$0xff]
      %v3054 = vld [vmem:[#allocation9 + $0x48] sm:$0xff]
      %v3055 = vld [vmem:[#allocation9 + $0x50] sm:$0xff]
      %v3056 = vld [vmem:[#allocation9 + $0x58] sm:$0xff]
      %v3057 = vld [vmem:[#allocation9 + $0x60] sm:$0xff]
      %v3058 = vld [vmem:[#allocation9 + $0x68] sm:$0xff]
      %v3059 = vld [vmem:[#allocation9 + $0x70] sm:$0xff]
      %v3060 = vld [vmem:[#allocation9 + $0x78] sm:$0xff]
      %v3061 = vld [vmem:[#allocation9 + $0x80] sm:$0xff]
      %v3062 = vld [vmem:[#allocation9 + $0x88] sm:$0xff]
      %v3063 = vld [vmem:[#allocation9 + $0x90] sm:$0xff]
      %v3064 = vld [vmem:[#allocation9 + $0x98] sm:$0xff]
      %v3065 = vld [vmem:[#allocation9 + $0xa0] sm:$0xff]
      %v3066 = vld [vmem:[#allocation9 + $0xa8] sm:$0xff]
      %v3067 = vld [vmem:[#allocation9 + $0xb0] sm:$0xff]
      %v3068 = vld [vmem:[#allocation9 + $0xb8] sm:$0xff]
      %v3069 = vld [vmem:[#allocation9 + $0xc0] sm:$0xff]
      %v3070 = vld [vmem:[#allocation9 + $0xc8] sm:$0xff]
      %v3071 = vld [vmem:[#allocation9 + $0xd0] sm:$0xff]
      %v3072 = vld [vmem:[#allocation9 + $0xd8] sm:$0xff]
      %v3073 = vld [vmem:[#allocation9 + $0xe0] sm:$0xff]
      %v3074 = vld [vmem:[#allocation9 + $0xe8] sm:$0xff]
      %v3075 = vld [vmem:[#allocation9 + $0xf0] sm:$0xff]
      %v3076 = vld [vmem:[#allocation9 + $0xf8] sm:$0xff]
      %s3077 = scalar_lea.vmem [#allocation11], 2
      %v3078 = vld [vmem:[%s3077] sm:$0x3]
      %v3080 = vperm.slane %v3078, 0
      %v3081 = vperm.slane %v3078, 1
      %v3116 = vunpack.c.l.b16 %v3045
      %v3117 = vunpack.c.h.b16 %v3045
      %v3118 = vunpack.c.l.b16 %v3046
      %v3119 = vunpack.c.h.b16 %v3046
      %v3120 = vunpack.c.l.b16 %v3047
      %v3121 = vunpack.c.h.b16 %v3047
      %v3122 = vunpack.c.l.b16 %v3048
      %v3123 = vunpack.c.h.b16 %v3048
      %v3124 = vunpack.c.l.b16 %v3049
      %v3125 = vunpack.c.h.b16 %v3049
      %v3126 = vunpack.c.l.b16 %v3050
      %v3127 = vunpack.c.h.b16 %v3050
      %v3128 = vunpack.c.l.b16 %v3051
      %v3129 = vunpack.c.h.b16 %v3051
      %v3130 = vunpack.c.l.b16 %v3052
      %v3131 = vunpack.c.h.b16 %v3052
      %v3132 = vunpack.c.l.b16 %v3053
      %v3133 = vunpack.c.h.b16 %v3053
      %v3134 = vunpack.c.l.b16 %v3054
      %v3135 = vunpack.c.h.b16 %v3054
      %v3136 = vunpack.c.l.b16 %v3055
      %v3137 = vunpack.c.h.b16 %v3055
      %v3138 = vunpack.c.l.b16 %v3056
      %v3139 = vunpack.c.h.b16 %v3056
      %v3140 = vunpack.c.l.b16 %v3057
      %v3141 = vunpack.c.h.b16 %v3057
      %v3142 = vunpack.c.l.b16 %v3058
      %v3143 = vunpack.c.h.b16 %v3058
      %v3144 = vunpack.c.l.b16 %v3059
      %v3145 = vunpack.c.h.b16 %v3059
      %v3146 = vunpack.c.l.b16 %v3060
      %v3147 = vunpack.c.h.b16 %v3060
      %v3148 = vunpack.c.l.b16 %v3061
      %v3149 = vunpack.c.h.b16 %v3061
      %v3150 = vunpack.c.l.b16 %v3062
      %v3151 = vunpack.c.h.b16 %v3062
      %v3152 = vunpack.c.l.b16 %v3063
      %v3153 = vunpack.c.h.b16 %v3063
      %v3154 = vunpack.c.l.b16 %v3064
      %v3155 = vunpack.c.h.b16 %v3064
      %v3156 = vunpack.c.l.b16 %v3065
      %v3157 = vunpack.c.h.b16 %v3065
      %v3158 = vunpack.c.l.b16 %v3066
      %v3159 = vunpack.c.h.b16 %v3066
      %v3160 = vunpack.c.l.b16 %v3067
      %v3161 = vunpack.c.h.b16 %v3067
      %v3162 = vunpack.c.l.b16 %v3068
      %v3163 = vunpack.c.h.b16 %v3068
      %v3164 = vunpack.c.l.b16 %v3069
      %v3165 = vunpack.c.h.b16 %v3069
      %v3166 = vunpack.c.l.b16 %v3070
      %v3167 = vunpack.c.h.b16 %v3070
      %v3168 = vunpack.c.l.b16 %v3071
      %v3169 = vunpack.c.h.b16 %v3071
      %v3170 = vunpack.c.l.b16 %v3072
      %v3171 = vunpack.c.h.b16 %v3072
      %v3172 = vunpack.c.l.b16 %v3073
      %v3173 = vunpack.c.h.b16 %v3073
      %v3174 = vunpack.c.l.b16 %v3074
      %v3175 = vunpack.c.h.b16 %v3074
      %v3176 = vunpack.c.l.b16 %v3075
      %v3177 = vunpack.c.h.b16 %v3075
      %v3178 = vunpack.c.l.b16 %v3076
      %v3179 = vunpack.c.h.b16 %v3076
      %v3180 = vpack.c.b16 %v3118, %v3116
      %v3181 = vpack.c.b16 %v3119, %v3117
      %v3182 = vpack.c.b16 %v3122, %v3120
      %v3183 = vpack.c.b16 %v3123, %v3121
      %v3184 = vpack.c.b16 %v3126, %v3124
      %v3185 = vpack.c.b16 %v3127, %v3125
      %v3186 = vpack.c.b16 %v3130, %v3128
      %v3187 = vpack.c.b16 %v3131, %v3129
      %v3188 = vpack.c.b16 %v3134, %v3132
      %v3189 = vpack.c.b16 %v3135, %v3133
      %v3190 = vpack.c.b16 %v3138, %v3136
      %v3191 = vpack.c.b16 %v3139, %v3137
      %v3192 = vpack.c.b16 %v3142, %v3140
      %v3193 = vpack.c.b16 %v3143, %v3141
      %v3194 = vpack.c.b16 %v3146, %v3144
      %v3195 = vpack.c.b16 %v3147, %v3145
      %v3196 = vpack.c.b16 %v3150, %v3148
      %v3197 = vpack.c.b16 %v3151, %v3149
      %v3198 = vpack.c.b16 %v3154, %v3152
      %v3199 = vpack.c.b16 %v3155, %v3153
      %v3200 = vpack.c.b16 %v3158, %v3156
      %v3201 = vpack.c.b16 %v3159, %v3157
      %v3202 = vpack.c.b16 %v3162, %v3160
      %v3203 = vpack.c.b16 %v3163, %v3161
      %v3204 = vpack.c.b16 %v3166, %v3164
      %v3205 = vpack.c.b16 %v3167, %v3165
      %v3206 = vpack.c.b16 %v3170, %v3168
      %v3207 = vpack.c.b16 %v3171, %v3169
      %v3208 = vpack.c.b16 %v3174, %v3172
      %v3209 = vpack.c.b16 %v3175, %v3173
      %v3210 = vpack.c.b16 %v3178, %v3176
      %v3211 = vpack.c.b16 %v3179, %v3177
      %3244 = vmatpush.bf16.msra.mxu0 %v3194
      %3245 = vmatpush.bf16.msra.mxu0 %v3192
      %3246 = vmatpush.bf16.msra.mxu0 %v3190
      %3247 = vmatpush.bf16.msra.mxu0 %v3188
      %3248 = vmatpush.bf16.msra.mxu0 %v3186
      %3249 = vmatpush.bf16.msra.mxu0 %v3184
      %3250 = vmatpush.bf16.msra.mxu0 %v3182
      %3251 = vmatpush.bf16.msra.mxu0 %v3180
      %3252 = vmatmul.bf16.gmra.mxu0 %v3011
      %v3253 = vpop.f32.mrf.mxu0
      %v3254 = vadd.f32 %v3080, %v3253
      %v3255 = vpop.f32.mrf.mxu0
      %3256 = vdwg.mxu0
      %3257 = vmatpush.bf16.msra.mxu0 %v3210
      %3258 = vmatpush.bf16.msra.mxu0 %v3208
      %3259 = vmatpush.bf16.msra.mxu0 %v3206
      %3260 = vmatpush.bf16.msra.mxu0 %v3204
      %3261 = vmatpush.bf16.msra.mxu0 %v3202
      %3262 = vmatpush.bf16.msra.mxu0 %v3200
      %3263 = vmatpush.bf16.msra.mxu0 %v3198
      %3264 = vmatpush.bf16.msra.mxu0 %v3196
      %3265 = vmatmul.bf16.gmra.mxu0 %v3012
      %v3266 = vpop.f32.mrf.mxu0
      %v3267 = vadd.f32 %v3254, %v3266
      %v3268 = vpop.f32.mrf.mxu0
      %3269 = vdwg.mxu0
      %3270 = vmatpush.bf16.msra.mxu0 %v3195
      %3271 = vmatpush.bf16.msra.mxu0 %v3193
      %3272 = vmatpush.bf16.msra.mxu0 %v3191
      %3273 = vmatpush.bf16.msra.mxu0 %v3189
      %3274 = vmatpush.bf16.msra.mxu0 %v3187
      %3275 = vmatpush.bf16.msra.mxu0 %v3185
      %3276 = vmatpush.bf16.msra.mxu0 %v3183
      %3277 = vmatpush.bf16.msra.mxu0 %v3181
      %3278 = vmatmul.bf16.gmra.mxu0 %v3011
      %v3279 = vpop.f32.mrf.mxu0
      %v3280 = vadd.f32 %v3081, %v3279
      %v3281 = vpop.f32.mrf.mxu0
      %3282 = vdwg.mxu0
      %3283 = vmatpush.bf16.msra.mxu0 %v3211
      %3284 = vmatpush.bf16.msra.mxu0 %v3209
      %3285 = vmatpush.bf16.msra.mxu0 %v3207
      %3286 = vmatpush.bf16.msra.mxu0 %v3205
      %3287 = vmatpush.bf16.msra.mxu0 %v3203
      %3288 = vmatpush.bf16.msra.mxu0 %v3201
      %3289 = vmatpush.bf16.msra.mxu0 %v3199
      %3290 = vmatpush.bf16.msra.mxu0 %v3197
      %3291 = vmatmul.bf16.gmra.mxu0 %v3012
      %v3292 = vpop.f32.mrf.mxu0
      %v3293 = vadd.f32 %v3280, %v3292
      %v3294 = vpop.f32.mrf.mxu0
      %3295 = vdwg.mxu0
      %vm3296 = vcmp.gt.f32.partialorder %v3267, 0.0
      %vm3297 = vcmp.gt.f32.partialorder %v3293, 0.0
      %v3298 = vmul.f32 %v3267, 0.2
      %v3299 = vmul.f32 %v3293, 0.2
      %v3300 = vsel %vm3296, %v3267, %v3298
      %v3301 = vsel %vm3297, %v3293, %v3299
      %v3302 = vpack.c.bf16 %v3300, %v3300
      %v3303 = vpack.c.bf16 %v3301, %v3301
      %s3304 = scalar_lea.vmem [#allocation12], 128
      %v3305 = vld [vmem:[%s3304] sm:$0xf]
      %v3306 = vld [vmem:[%s3304 + $0x4] sm:$0xf]
      %v3307 = vld [vmem:[%s3304 + $0x8] sm:$0xf]
      %v3308 = vld [vmem:[%s3304 + $0xc] sm:$0xf]
      %v3309 = vld [vmem:[%s3304 + $0x10] sm:$0xf]
      %v3310 = vld [vmem:[%s3304 + $0x14] sm:$0xf]
      %v3311 = vld [vmem:[%s3304 + $0x18] sm:$0xf]
      %v3312 = vld [vmem:[%s3304 + $0x1c] sm:$0xf]
      %v3313 = vld [vmem:[%s3304 + $0x20] sm:$0xf]
      %v3314 = vld [vmem:[%s3304 + $0x24] sm:$0xf]
      %v3315 = vld [vmem:[%s3304 + $0x28] sm:$0xf]
      %v3316 = vld [vmem:[%s3304 + $0x2c] sm:$0xf]
      %v3317 = vld [vmem:[%s3304 + $0x30] sm:$0xf]
      %v3318 = vld [vmem:[%s3304 + $0x34] sm:$0xf]
      %v3319 = vld [vmem:[%s3304 + $0x38] sm:$0xf]
      %v3320 = vld [vmem:[%s3304 + $0x3c] sm:$0xf]
      %v3321 = vld [vmem:[%s3304 + $0x40] sm:$0xf]
      %v3322 = vld [vmem:[%s3304 + $0x44] sm:$0xf]
      %v3323 = vld [vmem:[%s3304 + $0x48] sm:$0xf]
      %v3324 = vld [vmem:[%s3304 + $0x4c] sm:$0xf]
      %v3325 = vld [vmem:[%s3304 + $0x50] sm:$0xf]
      %v3326 = vld [vmem:[%s3304 + $0x54] sm:$0xf]
      %v3327 = vld [vmem:[%s3304 + $0x58] sm:$0xf]
      %v3328 = vld [vmem:[%s3304 + $0x5c] sm:$0xf]
      %v3329 = vld [vmem:[%s3304 + $0x60] sm:$0xf]
      %v3330 = vld [vmem:[%s3304 + $0x64] sm:$0xf]
      %v3331 = vld [vmem:[%s3304 + $0x68] sm:$0xf]
      %v3332 = vld [vmem:[%s3304 + $0x6c] sm:$0xf]
      %v3333 = vld [vmem:[%s3304 + $0x70] sm:$0xf]
      %v3334 = vld [vmem:[%s3304 + $0x74] sm:$0xf]
      %v3335 = vld [vmem:[%s3304 + $0x78] sm:$0xf]
      %v3336 = vld [vmem:[%s3304 + $0x7c] sm:$0xf]
      %v3369 = vunpack.c.l.b16 %v3305
      %v3370 = vunpack.c.l.b16 %v3306
      %v3371 = vunpack.c.l.b16 %v3307
      %v3372 = vunpack.c.l.b16 %v3308
      %v3373 = vunpack.c.l.b16 %v3309
      %v3374 = vunpack.c.l.b16 %v3310
      %v3375 = vunpack.c.l.b16 %v3311
      %v3376 = vunpack.c.l.b16 %v3312
      %v3377 = vunpack.c.l.b16 %v3313
      %v3378 = vunpack.c.l.b16 %v3314
      %v3379 = vunpack.c.l.b16 %v3315
      %v3380 = vunpack.c.l.b16 %v3316
      %v3381 = vunpack.c.l.b16 %v3317
      %v3382 = vunpack.c.l.b16 %v3318
      %v3383 = vunpack.c.l.b16 %v3319
      %v3384 = vunpack.c.l.b16 %v3320
      %v3385 = vunpack.c.l.b16 %v3321
      %v3386 = vunpack.c.l.b16 %v3322
      %v3387 = vunpack.c.l.b16 %v3323
      %v3388 = vunpack.c.l.b16 %v3324
      %v3389 = vunpack.c.l.b16 %v3325
      %v3390 = vunpack.c.l.b16 %v3326
      %v3391 = vunpack.c.l.b16 %v3327
      %v3392 = vunpack.c.l.b16 %v3328
      %v3393 = vunpack.c.l.b16 %v3329
      %v3394 = vunpack.c.l.b16 %v3330
      %v3395 = vunpack.c.l.b16 %v3331
      %v3396 = vunpack.c.l.b16 %v3332
      %v3397 = vunpack.c.l.b16 %v3333
      %v3398 = vunpack.c.l.b16 %v3334
      %v3399 = vunpack.c.l.b16 %v3335
      %v3400 = vunpack.c.l.b16 %v3336
      %v3401 = vpack.c.b16 %v3370, %v3369
      %v3402 = vpack.c.b16 %v3372, %v3371
      %v3403 = vpack.c.b16 %v3374, %v3373
      %v3404 = vpack.c.b16 %v3376, %v3375
      %v3405 = vpack.c.b16 %v3378, %v3377
      %v3406 = vpack.c.b16 %v3380, %v3379
      %v3407 = vpack.c.b16 %v3382, %v3381
      %v3408 = vpack.c.b16 %v3384, %v3383
      %v3409 = vpack.c.b16 %v3386, %v3385
      %v3410 = vpack.c.b16 %v3388, %v3387
      %v3411 = vpack.c.b16 %v3390, %v3389
      %v3412 = vpack.c.b16 %v3392, %v3391
      %v3413 = vpack.c.b16 %v3394, %v3393
      %v3414 = vpack.c.b16 %v3396, %v3395
      %v3415 = vpack.c.b16 %v3398, %v3397
      %v3416 = vpack.c.b16 %v3400, %v3399
      %3433 = vmatpush.bf16.msra.mxu0 %v3408
      %3434 = vmatpush.bf16.msra.mxu0 %v3407
      %3435 = vmatpush.bf16.msra.mxu0 %v3406
      %3436 = vmatpush.bf16.msra.mxu0 %v3405
      %3437 = vmatpush.bf16.msra.mxu0 %v3404
      %3438 = vmatpush.bf16.msra.mxu0 %v3403
      %3439 = vmatpush.bf16.msra.mxu0 %v3402
      %3440 = vmatpush.bf16.msra.mxu0 %v3401
      %3441 = vmatmul.bf16.gmra.mxu0 %v3302
      %v3442 = vpop.f32.mrf.mxu0
      %v3443 = vadd.f32 0.0, %v3442
      %v3444 = vpop.f32.mrf.mxu0
      %3445 = vdwg.mxu0
      %3446 = vmatpush.bf16.msra.mxu0 %v3416
      %3447 = vmatpush.bf16.msra.mxu0 %v3415
      %3448 = vmatpush.bf16.msra.mxu0 %v3414
      %3449 = vmatpush.bf16.msra.mxu0 %v3413
      %3450 = vmatpush.bf16.msra.mxu0 %v3412
      %3451 = vmatpush.bf16.msra.mxu0 %v3411
      %3452 = vmatpush.bf16.msra.mxu0 %v3410
      %3453 = vmatpush.bf16.msra.mxu0 %v3409
      %3454 = vmatmul.bf16.gmra.mxu0 %v3303
      %v3455 = vpop.f32.mrf.mxu0
      %v3456 = vadd.f32 %v3443, %v3455
      %v3457 = vpop.f32.mrf.mxu0
      %3458 = vdwg.mxu0
      %v3491 = vunpack.c.l.b16 %v3013
      %v3492 = vunpack.c.l.b16 %v3014
      %v3493 = vunpack.c.l.b16 %v3015
      %v3494 = vunpack.c.l.b16 %v3016
      %v3495 = vunpack.c.l.b16 %v3017
      %v3496 = vunpack.c.l.b16 %v3018
      %v3497 = vunpack.c.l.b16 %v3019
      %v3498 = vunpack.c.l.b16 %v3020
      %v3499 = vunpack.c.l.b16 %v3021
      %v3500 = vunpack.c.l.b16 %v3022
      %v3501 = vunpack.c.l.b16 %v3023
      %v3502 = vunpack.c.l.b16 %v3024
      %v3503 = vunpack.c.l.b16 %v3025
      %v3504 = vunpack.c.l.b16 %v3026
      %v3505 = vunpack.c.l.b16 %v3027
      %v3506 = vunpack.c.l.b16 %v3028
      %v3507 = vunpack.c.l.b16 %v3029
      %v3508 = vunpack.c.l.b16 %v3030
      %v3509 = vunpack.c.l.b16 %v3031
      %v3510 = vunpack.c.l.b16 %v3032
      %v3511 = vunpack.c.l.b16 %v3033
      %v3512 = vunpack.c.l.b16 %v3034
      %v3513 = vunpack.c.l.b16 %v3035
      %v3514 = vunpack.c.l.b16 %v3036
      %v3515 = vunpack.c.l.b16 %v3037
      %v3516 = vunpack.c.l.b16 %v3038
      %v3517 = vunpack.c.l.b16 %v3039
      %v3518 = vunpack.c.l.b16 %v3040
      %v3519 = vunpack.c.l.b16 %v3041
      %v3520 = vunpack.c.l.b16 %v3042
      %v3521 = vunpack.c.l.b16 %v3043
      %v3522 = vunpack.c.l.b16 %v3044
      %v3523 = vpack.c.b16 %v3492, %v3491
      %v3524 = vpack.c.b16 %v3494, %v3493
      %v3525 = vpack.c.b16 %v3496, %v3495
      %v3526 = vpack.c.b16 %v3498, %v3497
      %v3527 = vpack.c.b16 %v3500, %v3499
      %v3528 = vpack.c.b16 %v3502, %v3501
      %v3529 = vpack.c.b16 %v3504, %v3503
      %v3530 = vpack.c.b16 %v3506, %v3505
      %v3531 = vpack.c.b16 %v3508, %v3507
      %v3532 = vpack.c.b16 %v3510, %v3509
      %v3533 = vpack.c.b16 %v3512, %v3511
      %v3534 = vpack.c.b16 %v3514, %v3513
      %v3535 = vpack.c.b16 %v3516, %v3515
      %v3536 = vpack.c.b16 %v3518, %v3517
      %v3537 = vpack.c.b16 %v3520, %v3519
      %v3538 = vpack.c.b16 %v3522, %v3521
      %3555 = vmatpush.bf16.msra.mxu0 %v3530
      %3556 = vmatpush.bf16.msra.mxu0 %v3529
      %3557 = vmatpush.bf16.msra.mxu0 %v3528
      %3558 = vmatpush.bf16.msra.mxu0 %v3527
      %3559 = vmatpush.bf16.msra.mxu0 %v3526
      %3560 = vmatpush.bf16.msra.mxu0 %v3525
      %3561 = vmatpush.bf16.msra.mxu0 %v3524
      %3562 = vmatpush.bf16.msra.mxu0 %v3523
      %3563 = vmatmul.bf16.gmra.mxu0 %v3011
      %v3564 = vpop.f32.mrf.mxu0
      %v3565 = vadd.f32 %v3456, %v3564
      %v3566 = vpop.f32.mrf.mxu0
      %3567 = vdwg.mxu0
      %3568 = vmatpush.bf16.msra.mxu0 %v3538
      %3569 = vmatpush.bf16.msra.mxu0 %v3537
      %3570 = vmatpush.bf16.msra.mxu0 %v3536
      %3571 = vmatpush.bf16.msra.mxu0 %v3535
      %3572 = vmatpush.bf16.msra.mxu0 %v3534
      %3573 = vmatpush.bf16.msra.mxu0 %v3533
      %3574 = vmatpush.bf16.msra.mxu0 %v3532
      %3575 = vmatpush.bf16.msra.mxu0 %v3531
      %3576 = vmatmul.bf16.gmra.mxu0 %v3012
      %v3577 = vpop.f32.mrf.mxu0
      %v3578 = vadd.f32 %v3565, %v3577
      %v3579 = vpop.f32.mrf.mxu0
      %3580 = vdwg.mxu0
      %s3581 = scalar_lea.vmem [#allocation9], 256
      %v3582 = vld [vmem:[%s3581] sm:$0xff]
      %v3583 = vld [vmem:[%s3581 + $0x8] sm:$0xff]
      %v3584 = vld [vmem:[%s3581 + $0x10] sm:$0xff]
      %v3585 = vld [vmem:[%s3581 + $0x18] sm:$0xff]
      %v3586 = vld [vmem:[%s3581 + $0x20] sm:$0xff]
      %v3587 = vld [vmem:[%s3581 + $0x28] sm:$0xff]
      %v3588 = vld [vmem:[%s3581 + $0x30] sm:$0xff]
      %v3589 = vld [vmem:[%s3581 + $0x38] sm:$0xff]
      %v3590 = vld [vmem:[%s3581 + $0x40] sm:$0xff]
      %v3591 = vld [vmem:[%s3581 + $0x48] sm:$0xff]
      %v3592 = vld [vmem:[%s3581 + $0x50] sm:$0xff]
      %v3593 = vld [vmem:[%s3581 + $0x58] sm:$0xff]
      %v3594 = vld [vmem:[%s3581 + $0x60] sm:$0xff]
      %v3595 = vld [vmem:[%s3581 + $0x68] sm:$0xff]
      %v3596 = vld [vmem:[%s3581 + $0x70] sm:$0xff]
      %v3597 = vld [vmem:[%s3581 + $0x78] sm:$0xff]
      %v3598 = vld [vmem:[%s3581 + $0x80] sm:$0xff]
      %v3599 = vld [vmem:[%s3581 + $0x88] sm:$0xff]
      %v3600 = vld [vmem:[%s3581 + $0x90] sm:$0xff]
      %v3601 = vld [vmem:[%s3581 + $0x98] sm:$0xff]
      %v3602 = vld [vmem:[%s3581 + $0xa0] sm:$0xff]
      %v3603 = vld [vmem:[%s3581 + $0xa8] sm:$0xff]
      %v3604 = vld [vmem:[%s3581 + $0xb0] sm:$0xff]
      %v3605 = vld [vmem:[%s3581 + $0xb8] sm:$0xff]
      %v3606 = vld [vmem:[%s3581 + $0xc0] sm:$0xff]
      %v3607 = vld [vmem:[%s3581 + $0xc8] sm:$0xff]
      %v3608 = vld [vmem:[%s3581 + $0xd0] sm:$0xff]
      %v3609 = vld [vmem:[%s3581 + $0xd8] sm:$0xff]
      %v3610 = vld [vmem:[%s3581 + $0xe0] sm:$0xff]
      %v3611 = vld [vmem:[%s3581 + $0xe8] sm:$0xff]
      %v3612 = vld [vmem:[%s3581 + $0xf0] sm:$0xff]
      %v3613 = vld [vmem:[%s3581 + $0xf8] sm:$0xff]
      %s3614 = scalar_lea.vmem [#allocation11], 4
      %v3615 = vld [vmem:[%s3614] sm:$0x3]
      %v3617 = vperm.slane %v3615, 0
      %v3618 = vperm.slane %v3615, 1
      %v3653 = vunpack.c.l.b16 %v3582
      %v3654 = vunpack.c.h.b16 %v3582
      %v3655 = vunpack.c.l.b16 %v3583
      %v3656 = vunpack.c.h.b16 %v3583
      %v3657 = vunpack.c.l.b16 %v3584
      %v3658 = vunpack.c.h.b16 %v3584
      %v3659 = vunpack.c.l.b16 %v3585
      %v3660 = vunpack.c.h.b16 %v3585
      %v3661 = vunpack.c.l.b16 %v3586
      %v3662 = vunpack.c.h.b16 %v3586
      %v3663 = vunpack.c.l.b16 %v3587
      %v3664 = vunpack.c.h.b16 %v3587
      %v3665 = vunpack.c.l.b16 %v3588
      %v3666 = vunpack.c.h.b16 %v3588
      %v3667 = vunpack.c.l.b16 %v3589
      %v3668 = vunpack.c.h.b16 %v3589
      %v3669 = vunpack.c.l.b16 %v3590
      %v3670 = vunpack.c.h.b16 %v3590
      %v3671 = vunpack.c.l.b16 %v3591
      %v3672 = vunpack.c.h.b16 %v3591
      %v3673 = vunpack.c.l.b16 %v3592
      %v3674 = vunpack.c.h.b16 %v3592
      %v3675 = vunpack.c.l.b16 %v3593
      %v3676 = vunpack.c.h.b16 %v3593
      %v3677 = vunpack.c.l.b16 %v3594
      %v3678 = vunpack.c.h.b16 %v3594
      %v3679 = vunpack.c.l.b16 %v3595
      %v3680 = vunpack.c.h.b16 %v3595
      %v3681 = vunpack.c.l.b16 %v3596
      %v3682 = vunpack.c.h.b16 %v3596
      %v3683 = vunpack.c.l.b16 %v3597
      %v3684 = vunpack.c.h.b16 %v3597
      %v3685 = vunpack.c.l.b16 %v3598
      %v3686 = vunpack.c.h.b16 %v3598
      %v3687 = vunpack.c.l.b16 %v3599
      %v3688 = vunpack.c.h.b16 %v3599
      %v3689 = vunpack.c.l.b16 %v3600
      %v3690 = vunpack.c.h.b16 %v3600
      %v3691 = vunpack.c.l.b16 %v3601
      %v3692 = vunpack.c.h.b16 %v3601
      %v3693 = vunpack.c.l.b16 %v3602
      %v3694 = vunpack.c.h.b16 %v3602
      %v3695 = vunpack.c.l.b16 %v3603
      %v3696 = vunpack.c.h.b16 %v3603
      %v3697 = vunpack.c.l.b16 %v3604
      %v3698 = vunpack.c.h.b16 %v3604
      %v3699 = vunpack.c.l.b16 %v3605
      %v3700 = vunpack.c.h.b16 %v3605
      %v3701 = vunpack.c.l.b16 %v3606
      %v3702 = vunpack.c.h.b16 %v3606
      %v3703 = vunpack.c.l.b16 %v3607
      %v3704 = vunpack.c.h.b16 %v3607
      %v3705 = vunpack.c.l.b16 %v3608
      %v3706 = vunpack.c.h.b16 %v3608
      %v3707 = vunpack.c.l.b16 %v3609
      %v3708 = vunpack.c.h.b16 %v3609
      %v3709 = vunpack.c.l.b16 %v3610
      %v3710 = vunpack.c.h.b16 %v3610
      %v3711 = vunpack.c.l.b16 %v3611
      %v3712 = vunpack.c.h.b16 %v3611
      %v3713 = vunpack.c.l.b16 %v3612
      %v3714 = vunpack.c.h.b16 %v3612
      %v3715 = vunpack.c.l.b16 %v3613
      %v3716 = vunpack.c.h.b16 %v3613
      %v3717 = vpack.c.b16 %v3655, %v3653
      %v3718 = vpack.c.b16 %v3656, %v3654
      %v3719 = vpack.c.b16 %v3659, %v3657
      %v3720 = vpack.c.b16 %v3660, %v3658
      %v3721 = vpack.c.b16 %v3663, %v3661
      %v3722 = vpack.c.b16 %v3664, %v3662
      %v3723 = vpack.c.b16 %v3667, %v3665
      %v3724 = vpack.c.b16 %v3668, %v3666
      %v3725 = vpack.c.b16 %v3671, %v3669
      %v3726 = vpack.c.b16 %v3672, %v3670
      %v3727 = vpack.c.b16 %v3675, %v3673
      %v3728 = vpack.c.b16 %v3676, %v3674
      %v3729 = vpack.c.b16 %v3679, %v3677
      %v3730 = vpack.c.b16 %v3680, %v3678
      %v3731 = vpack.c.b16 %v3683, %v3681
      %v3732 = vpack.c.b16 %v3684, %v3682
      %v3733 = vpack.c.b16 %v3687, %v3685
      %v3734 = vpack.c.b16 %v3688, %v3686
      %v3735 = vpack.c.b16 %v3691, %v3689
      %v3736 = vpack.c.b16 %v3692, %v3690
      %v3737 = vpack.c.b16 %v3695, %v3693
      %v3738 = vpack.c.b16 %v3696, %v3694
      %v3739 = vpack.c.b16 %v3699, %v3697
      %v3740 = vpack.c.b16 %v3700, %v3698
      %v3741 = vpack.c.b16 %v3703, %v3701
      %v3742 = vpack.c.b16 %v3704, %v3702
      %v3743 = vpack.c.b16 %v3707, %v3705
      %v3744 = vpack.c.b16 %v3708, %v3706
      %v3745 = vpack.c.b16 %v3711, %v3709
      %v3746 = vpack.c.b16 %v3712, %v3710
      %v3747 = vpack.c.b16 %v3715, %v3713
      %v3748 = vpack.c.b16 %v3716, %v3714
      %3781 = vmatpush.bf16.msra.mxu0 %v3731
      %3782 = vmatpush.bf16.msra.mxu0 %v3729
      %3783 = vmatpush.bf16.msra.mxu0 %v3727
      %3784 = vmatpush.bf16.msra.mxu0 %v3725
      %3785 = vmatpush.bf16.msra.mxu0 %v3723
      %3786 = vmatpush.bf16.msra.mxu0 %v3721
      %3787 = vmatpush.bf16.msra.mxu0 %v3719
      %3788 = vmatpush.bf16.msra.mxu0 %v3717
      %3789 = vmatmul.bf16.gmra.mxu0 %v3302
      %v3790 = vpop.f32.mrf.mxu0
      %v3791 = vadd.f32 %v3617, %v3790
      %v3792 = vpop.f32.mrf.mxu0
      %3793 = vdwg.mxu0
      %3794 = vmatpush.bf16.msra.mxu0 %v3747
      %3795 = vmatpush.bf16.msra.mxu0 %v3745
      %3796 = vmatpush.bf16.msra.mxu0 %v3743
      %3797 = vmatpush.bf16.msra.mxu0 %v3741
      %3798 = vmatpush.bf16.msra.mxu0 %v3739
      %3799 = vmatpush.bf16.msra.mxu0 %v3737
      %3800 = vmatpush.bf16.msra.mxu0 %v3735
      %3801 = vmatpush.bf16.msra.mxu0 %v3733
      %3802 = vmatmul.bf16.gmra.mxu0 %v3303
      %v3803 = vpop.f32.mrf.mxu0
      %v3804 = vadd.f32 %v3791, %v3803
      %v3805 = vpop.f32.mrf.mxu0
      %3806 = vdwg.mxu0
      %3807 = vmatpush.bf16.msra.mxu0 %v3732
      %3808 = vmatpush.bf16.msra.mxu0 %v3730
      %3809 = vmatpush.bf16.msra.mxu0 %v3728
      %3810 = vmatpush.bf16.msra.mxu0 %v3726
      %3811 = vmatpush.bf16.msra.mxu0 %v3724
      %3812 = vmatpush.bf16.msra.mxu0 %v3722
      %3813 = vmatpush.bf16.msra.mxu0 %v3720
      %3814 = vmatpush.bf16.msra.mxu0 %v3718
      %3815 = vmatmul.bf16.gmra.mxu0 %v3302
      %v3816 = vpop.f32.mrf.mxu0
      %v3817 = vadd.f32 %v3618, %v3816
      %v3818 = vpop.f32.mrf.mxu0
      %3819 = vdwg.mxu0
      %3820 = vmatpush.bf16.msra.mxu0 %v3748
      %3821 = vmatpush.bf16.msra.mxu0 %v3746
      %3822 = vmatpush.bf16.msra.mxu0 %v3744
      %3823 = vmatpush.bf16.msra.mxu0 %v3742
      %3824 = vmatpush.bf16.msra.mxu0 %v3740
      %3825 = vmatpush.bf16.msra.mxu0 %v3738
      %3826 = vmatpush.bf16.msra.mxu0 %v3736
      %3827 = vmatpush.bf16.msra.mxu0 %v3734
      %3828 = vmatmul.bf16.gmra.mxu0 %v3303
      %v3829 = vpop.f32.mrf.mxu0
      %v3830 = vadd.f32 %v3817, %v3829
      %v3831 = vpop.f32.mrf.mxu0
      %3832 = vdwg.mxu0
      %vm3833 = vcmp.gt.f32.partialorder %v3804, 0.0
      %vm3834 = vcmp.gt.f32.partialorder %v3830, 0.0
      %v3835 = vmul.f32 %v3804, 0.2
      %v3836 = vmul.f32 %v3830, 0.2
      %v3837 = vsel %vm3833, %v3804, %v3835
      %v3838 = vsel %vm3834, %v3830, %v3836
      %v3839 = vpack.c.bf16 %v3837, %v3837
      %v3840 = vpack.c.bf16 %v3838, %v3838
      %s3841 = scalar_lea.vmem [#allocation12], 256
      %v3842 = vld [vmem:[%s3841] sm:$0xf]
      %v3843 = vld [vmem:[%s3841 + $0x4] sm:$0xf]
      %v3844 = vld [vmem:[%s3841 + $0x8] sm:$0xf]
      %v3845 = vld [vmem:[%s3841 + $0xc] sm:$0xf]
      %v3846 = vld [vmem:[%s3841 + $0x10] sm:$0xf]
      %v3847 = vld [vmem:[%s3841 + $0x14] sm:$0xf]
      %v3848 = vld [vmem:[%s3841 + $0x18] sm:$0xf]
      %v3849 = vld [vmem:[%s3841 + $0x1c] sm:$0xf]
      %v3850 = vld [vmem:[%s3841 + $0x20] sm:$0xf]
      %v3851 = vld [vmem:[%s3841 + $0x24] sm:$0xf]
      %v3852 = vld [vmem:[%s3841 + $0x28] sm:$0xf]
      %v3853 = vld [vmem:[%s3841 + $0x2c] sm:$0xf]
      %v3854 = vld [vmem:[%s3841 + $0x30] sm:$0xf]
      %v3855 = vld [vmem:[%s3841 + $0x34] sm:$0xf]
      %v3856 = vld [vmem:[%s3841 + $0x38] sm:$0xf]
      %v3857 = vld [vmem:[%s3841 + $0x3c] sm:$0xf]
      %v3858 = vld [vmem:[%s3841 + $0x40] sm:$0xf]
      %v3859 = vld [vmem:[%s3841 + $0x44] sm:$0xf]
      %v3860 = vld [vmem:[%s3841 + $0x48] sm:$0xf]
      %v3861 = vld [vmem:[%s3841 + $0x4c] sm:$0xf]
      %v3862 = vld [vmem:[%s3841 + $0x50] sm:$0xf]
      %v3863 = vld [vmem:[%s3841 + $0x54] sm:$0xf]
      %v3864 = vld [vmem:[%s3841 + $0x58] sm:$0xf]
      %v3865 = vld [vmem:[%s3841 + $0x5c] sm:$0xf]
      %v3866 = vld [vmem:[%s3841 + $0x60] sm:$0xf]
      %v3867 = vld [vmem:[%s3841 + $0x64] sm:$0xf]
      %v3868 = vld [vmem:[%s3841 + $0x68] sm:$0xf]
      %v3869 = vld [vmem:[%s3841 + $0x6c] sm:$0xf]
      %v3870 = vld [vmem:[%s3841 + $0x70] sm:$0xf]
      %v3871 = vld [vmem:[%s3841 + $0x74] sm:$0xf]
      %v3872 = vld [vmem:[%s3841 + $0x78] sm:$0xf]
      %v3873 = vld [vmem:[%s3841 + $0x7c] sm:$0xf]
      %v3906 = vunpack.c.l.b16 %v3842
      %v3907 = vunpack.c.l.b16 %v3843
      %v3908 = vunpack.c.l.b16 %v3844
      %v3909 = vunpack.c.l.b16 %v3845
      %v3910 = vunpack.c.l.b16 %v3846
      %v3911 = vunpack.c.l.b16 %v3847
      %v3912 = vunpack.c.l.b16 %v3848
      %v3913 = vunpack.c.l.b16 %v3849
      %v3914 = vunpack.c.l.b16 %v3850
      %v3915 = vunpack.c.l.b16 %v3851
      %v3916 = vunpack.c.l.b16 %v3852
      %v3917 = vunpack.c.l.b16 %v3853
      %v3918 = vunpack.c.l.b16 %v3854
      %v3919 = vunpack.c.l.b16 %v3855
      %v3920 = vunpack.c.l.b16 %v3856
      %v3921 = vunpack.c.l.b16 %v3857
      %v3922 = vunpack.c.l.b16 %v3858
      %v3923 = vunpack.c.l.b16 %v3859
      %v3924 = vunpack.c.l.b16 %v3860
      %v3925 = vunpack.c.l.b16 %v3861
      %v3926 = vunpack.c.l.b16 %v3862
      %v3927 = vunpack.c.l.b16 %v3863
      %v3928 = vunpack.c.l.b16 %v3864
      %v3929 = vunpack.c.l.b16 %v3865
      %v3930 = vunpack.c.l.b16 %v3866
      %v3931 = vunpack.c.l.b16 %v3867
      %v3932 = vunpack.c.l.b16 %v3868
      %v3933 = vunpack.c.l.b16 %v3869
      %v3934 = vunpack.c.l.b16 %v3870
      %v3935 = vunpack.c.l.b16 %v3871
      %v3936 = vunpack.c.l.b16 %v3872
      %v3937 = vunpack.c.l.b16 %v3873
      %v3938 = vpack.c.b16 %v3907, %v3906
      %v3939 = vpack.c.b16 %v3909, %v3908
      %v3940 = vpack.c.b16 %v3911, %v3910
      %v3941 = vpack.c.b16 %v3913, %v3912
      %v3942 = vpack.c.b16 %v3915, %v3914
      %v3943 = vpack.c.b16 %v3917, %v3916
      %v3944 = vpack.c.b16 %v3919, %v3918
      %v3945 = vpack.c.b16 %v3921, %v3920
      %v3946 = vpack.c.b16 %v3923, %v3922
      %v3947 = vpack.c.b16 %v3925, %v3924
      %v3948 = vpack.c.b16 %v3927, %v3926
      %v3949 = vpack.c.b16 %v3929, %v3928
      %v3950 = vpack.c.b16 %v3931, %v3930
      %v3951 = vpack.c.b16 %v3933, %v3932
      %v3952 = vpack.c.b16 %v3935, %v3934
      %v3953 = vpack.c.b16 %v3937, %v3936
      %3970 = vmatpush.bf16.msra.mxu0 %v3945
      %3971 = vmatpush.bf16.msra.mxu0 %v3944
      %3972 = vmatpush.bf16.msra.mxu0 %v3943
      %3973 = vmatpush.bf16.msra.mxu0 %v3942
      %3974 = vmatpush.bf16.msra.mxu0 %v3941
      %3975 = vmatpush.bf16.msra.mxu0 %v3940
      %3976 = vmatpush.bf16.msra.mxu0 %v3939
      %3977 = vmatpush.bf16.msra.mxu0 %v3938
      %3978 = vmatmul.bf16.gmra.mxu0 %v3839
      %v3979 = vpop.f32.mrf.mxu0
      %v3980 = vadd.f32 0.0, %v3979
      %v3981 = vpop.f32.mrf.mxu0
      %3982 = vdwg.mxu0
      %3983 = vmatpush.bf16.msra.mxu0 %v3953
      %3984 = vmatpush.bf16.msra.mxu0 %v3952
      %3985 = vmatpush.bf16.msra.mxu0 %v3951
      %3986 = vmatpush.bf16.msra.mxu0 %v3950
      %3987 = vmatpush.bf16.msra.mxu0 %v3949
      %3988 = vmatpush.bf16.msra.mxu0 %v3948
      %3989 = vmatpush.bf16.msra.mxu0 %v3947
      %3990 = vmatpush.bf16.msra.mxu0 %v3946
      %3991 = vmatmul.bf16.gmra.mxu0 %v3840
      %v3992 = vpop.f32.mrf.mxu0
      %v3993 = vadd.f32 %v3980, %v3992
      %v3994 = vpop.f32.mrf.mxu0
      %3995 = vdwg.mxu0
      %v3996 = vadd.f32 %v3578, %v3993
      %s3997 = scalar_lea.vmem [#allocation9], 512
      %v3998 = vld [vmem:[%s3997] sm:$0xff]
      %v3999 = vld [vmem:[%s3997 + $0x8] sm:$0xff]
      %v4000 = vld [vmem:[%s3997 + $0x10] sm:$0xff]
      %v4001 = vld [vmem:[%s3997 + $0x18] sm:$0xff]
      %v4002 = vld [vmem:[%s3997 + $0x20] sm:$0xff]
      %v4003 = vld [vmem:[%s3997 + $0x28] sm:$0xff]
      %v4004 = vld [vmem:[%s3997 + $0x30] sm:$0xff]
      %v4005 = vld [vmem:[%s3997 + $0x38] sm:$0xff]
      %v4006 = vld [vmem:[%s3997 + $0x40] sm:$0xff]
      %v4007 = vld [vmem:[%s3997 + $0x48] sm:$0xff]
      %v4008 = vld [vmem:[%s3997 + $0x50] sm:$0xff]
      %v4009 = vld [vmem:[%s3997 + $0x58] sm:$0xff]
      %v4010 = vld [vmem:[%s3997 + $0x60] sm:$0xff]
      %v4011 = vld [vmem:[%s3997 + $0x68] sm:$0xff]
      %v4012 = vld [vmem:[%s3997 + $0x70] sm:$0xff]
      %v4013 = vld [vmem:[%s3997 + $0x78] sm:$0xff]
      %v4014 = vld [vmem:[%s3997 + $0x80] sm:$0xff]
      %v4015 = vld [vmem:[%s3997 + $0x88] sm:$0xff]
      %v4016 = vld [vmem:[%s3997 + $0x90] sm:$0xff]
      %v4017 = vld [vmem:[%s3997 + $0x98] sm:$0xff]
      %v4018 = vld [vmem:[%s3997 + $0xa0] sm:$0xff]
      %v4019 = vld [vmem:[%s3997 + $0xa8] sm:$0xff]
      %v4020 = vld [vmem:[%s3997 + $0xb0] sm:$0xff]
      %v4021 = vld [vmem:[%s3997 + $0xb8] sm:$0xff]
      %v4022 = vld [vmem:[%s3997 + $0xc0] sm:$0xff]
      %v4023 = vld [vmem:[%s3997 + $0xc8] sm:$0xff]
      %v4024 = vld [vmem:[%s3997 + $0xd0] sm:$0xff]
      %v4025 = vld [vmem:[%s3997 + $0xd8] sm:$0xff]
      %v4026 = vld [vmem:[%s3997 + $0xe0] sm:$0xff]
      %v4027 = vld [vmem:[%s3997 + $0xe8] sm:$0xff]
      %v4028 = vld [vmem:[%s3997 + $0xf0] sm:$0xff]
      %v4029 = vld [vmem:[%s3997 + $0xf8] sm:$0xff]
      %s4030 = scalar_lea.vmem [#allocation11], 6
      %v4031 = vld [vmem:[%s4030] sm:$0x3]
      %v4033 = vperm.slane %v4031, 0
      %v4034 = vperm.slane %v4031, 1
      %v4069 = vunpack.c.l.b16 %v3998
      %v4070 = vunpack.c.h.b16 %v3998
      %v4071 = vunpack.c.l.b16 %v3999
      %v4072 = vunpack.c.h.b16 %v3999
      %v4073 = vunpack.c.l.b16 %v4000
      %v4074 = vunpack.c.h.b16 %v4000
      %v4075 = vunpack.c.l.b16 %v4001
      %v4076 = vunpack.c.h.b16 %v4001
      %v4077 = vunpack.c.l.b16 %v4002
      %v4078 = vunpack.c.h.b16 %v4002
      %v4079 = vunpack.c.l.b16 %v4003
      %v4080 = vunpack.c.h.b16 %v4003
      %v4081 = vunpack.c.l.b16 %v4004
      %v4082 = vunpack.c.h.b16 %v4004
      %v4083 = vunpack.c.l.b16 %v4005
      %v4084 = vunpack.c.h.b16 %v4005
      %v4085 = vunpack.c.l.b16 %v4006
      %v4086 = vunpack.c.h.b16 %v4006
      %v4087 = vunpack.c.l.b16 %v4007
      %v4088 = vunpack.c.h.b16 %v4007
      %v4089 = vunpack.c.l.b16 %v4008
      %v4090 = vunpack.c.h.b16 %v4008
      %v4091 = vunpack.c.l.b16 %v4009
      %v4092 = vunpack.c.h.b16 %v4009
      %v4093 = vunpack.c.l.b16 %v4010
      %v4094 = vunpack.c.h.b16 %v4010
      %v4095 = vunpack.c.l.b16 %v4011
      %v4096 = vunpack.c.h.b16 %v4011
      %v4097 = vunpack.c.l.b16 %v4012
      %v4098 = vunpack.c.h.b16 %v4012
      %v4099 = vunpack.c.l.b16 %v4013
      %v4100 = vunpack.c.h.b16 %v4013
      %v4101 = vunpack.c.l.b16 %v4014
      %v4102 = vunpack.c.h.b16 %v4014
      %v4103 = vunpack.c.l.b16 %v4015
      %v4104 = vunpack.c.h.b16 %v4015
      %v4105 = vunpack.c.l.b16 %v4016
      %v4106 = vunpack.c.h.b16 %v4016
      %v4107 = vunpack.c.l.b16 %v4017
      %v4108 = vunpack.c.h.b16 %v4017
      %v4109 = vunpack.c.l.b16 %v4018
      %v4110 = vunpack.c.h.b16 %v4018
      %v4111 = vunpack.c.l.b16 %v4019
      %v4112 = vunpack.c.h.b16 %v4019
      %v4113 = vunpack.c.l.b16 %v4020
      %v4114 = vunpack.c.h.b16 %v4020
      %v4115 = vunpack.c.l.b16 %v4021
      %v4116 = vunpack.c.h.b16 %v4021
      %v4117 = vunpack.c.l.b16 %v4022
      %v4118 = vunpack.c.h.b16 %v4022
      %v4119 = vunpack.c.l.b16 %v4023
      %v4120 = vunpack.c.h.b16 %v4023
      %v4121 = vunpack.c.l.b16 %v4024
      %v4122 = vunpack.c.h.b16 %v4024
      %v4123 = vunpack.c.l.b16 %v4025
      %v4124 = vunpack.c.h.b16 %v4025
      %v4125 = vunpack.c.l.b16 %v4026
      %v4126 = vunpack.c.h.b16 %v4026
      %v4127 = vunpack.c.l.b16 %v4027
      %v4128 = vunpack.c.h.b16 %v4027
      %v4129 = vunpack.c.l.b16 %v4028
      %v4130 = vunpack.c.h.b16 %v4028
      %v4131 = vunpack.c.l.b16 %v4029
      %v4132 = vunpack.c.h.b16 %v4029
      %v4133 = vpack.c.b16 %v4071, %v4069
      %v4134 = vpack.c.b16 %v4072, %v4070
      %v4135 = vpack.c.b16 %v4075, %v4073
      %v4136 = vpack.c.b16 %v4076, %v4074
      %v4137 = vpack.c.b16 %v4079, %v4077
      %v4138 = vpack.c.b16 %v4080, %v4078
      %v4139 = vpack.c.b16 %v4083, %v4081
      %v4140 = vpack.c.b16 %v4084, %v4082
      %v4141 = vpack.c.b16 %v4087, %v4085
      %v4142 = vpack.c.b16 %v4088, %v4086
      %v4143 = vpack.c.b16 %v4091, %v4089
      %v4144 = vpack.c.b16 %v4092, %v4090
      %v4145 = vpack.c.b16 %v4095, %v4093
      %v4146 = vpack.c.b16 %v4096, %v4094
      %v4147 = vpack.c.b16 %v4099, %v4097
      %v4148 = vpack.c.b16 %v4100, %v4098
      %v4149 = vpack.c.b16 %v4103, %v4101
      %v4150 = vpack.c.b16 %v4104, %v4102
      %v4151 = vpack.c.b16 %v4107, %v4105
      %v4152 = vpack.c.b16 %v4108, %v4106
      %v4153 = vpack.c.b16 %v4111, %v4109
      %v4154 = vpack.c.b16 %v4112, %v4110
      %v4155 = vpack.c.b16 %v4115, %v4113
      %v4156 = vpack.c.b16 %v4116, %v4114
      %v4157 = vpack.c.b16 %v4119, %v4117
      %v4158 = vpack.c.b16 %v4120, %v4118
      %v4159 = vpack.c.b16 %v4123, %v4121
      %v4160 = vpack.c.b16 %v4124, %v4122
      %v4161 = vpack.c.b16 %v4127, %v4125
      %v4162 = vpack.c.b16 %v4128, %v4126
      %v4163 = vpack.c.b16 %v4131, %v4129
      %v4164 = vpack.c.b16 %v4132, %v4130
      %4197 = vmatpush.bf16.msra.mxu0 %v4147
      %4198 = vmatpush.bf16.msra.mxu0 %v4145
      %4199 = vmatpush.bf16.msra.mxu0 %v4143
      %4200 = vmatpush.bf16.msra.mxu0 %v4141
      %4201 = vmatpush.bf16.msra.mxu0 %v4139
      %4202 = vmatpush.bf16.msra.mxu0 %v4137
      %4203 = vmatpush.bf16.msra.mxu0 %v4135
      %4204 = vmatpush.bf16.msra.mxu0 %v4133
      %4205 = vmatmul.bf16.gmra.mxu0 %v3839
      %v4206 = vpop.f32.mrf.mxu0
      %v4207 = vadd.f32 %v4033, %v4206
      %v4208 = vpop.f32.mrf.mxu0
      %4209 = vdwg.mxu0
      %4210 = vmatpush.bf16.msra.mxu0 %v4163
      %4211 = vmatpush.bf16.msra.mxu0 %v4161
      %4212 = vmatpush.bf16.msra.mxu0 %v4159
      %4213 = vmatpush.bf16.msra.mxu0 %v4157
      %4214 = vmatpush.bf16.msra.mxu0 %v4155
      %4215 = vmatpush.bf16.msra.mxu0 %v4153
      %4216 = vmatpush.bf16.msra.mxu0 %v4151
      %4217 = vmatpush.bf16.msra.mxu0 %v4149
      %4218 = vmatmul.bf16.gmra.mxu0 %v3840
      %v4219 = vpop.f32.mrf.mxu0
      %v4220 = vadd.f32 %v4207, %v4219
      %v4221 = vpop.f32.mrf.mxu0
      %4222 = vdwg.mxu0
      %4223 = vmatpush.bf16.msra.mxu0 %v4148
      %4224 = vmatpush.bf16.msra.mxu0 %v4146
      %4225 = vmatpush.bf16.msra.mxu0 %v4144
      %4226 = vmatpush.bf16.msra.mxu0 %v4142
      %4227 = vmatpush.bf16.msra.mxu0 %v4140
      %4228 = vmatpush.bf16.msra.mxu0 %v4138
      %4229 = vmatpush.bf16.msra.mxu0 %v4136
      %4230 = vmatpush.bf16.msra.mxu0 %v4134
      %4231 = vmatmul.bf16.gmra.mxu0 %v3839
      %v4232 = vpop.f32.mrf.mxu0
      %v4233 = vadd.f32 %v4034, %v4232
      %v4234 = vpop.f32.mrf.mxu0
      %4235 = vdwg.mxu0
      %4236 = vmatpush.bf16.msra.mxu0 %v4164
      %4237 = vmatpush.bf16.msra.mxu0 %v4162
      %4238 = vmatpush.bf16.msra.mxu0 %v4160
      %4239 = vmatpush.bf16.msra.mxu0 %v4158
      %4240 = vmatpush.bf16.msra.mxu0 %v4156
      %4241 = vmatpush.bf16.msra.mxu0 %v4154
      %4242 = vmatpush.bf16.msra.mxu0 %v4152
      %4243 = vmatpush.bf16.msra.mxu0 %v4150
      %4244 = vmatmul.bf16.gmra.mxu0 %v3840
      %v4245 = vpop.f32.mrf.mxu0
      %v4246 = vadd.f32 %v4233, %v4245
      %v4247 = vpop.f32.mrf.mxu0
      %4248 = vdwg.mxu0
      %vm4249 = vcmp.gt.f32.partialorder %v4220, 0.0
      %vm4250 = vcmp.gt.f32.partialorder %v4246, 0.0
      %v4251 = vmul.f32 %v4220, 0.2
      %v4252 = vmul.f32 %v4246, 0.2
      %v4253 = vsel %vm4249, %v4220, %v4251
      %v4254 = vsel %vm4250, %v4246, %v4252
      %v4255 = vpack.c.bf16 %v4253, %v4253
      %v4256 = vpack.c.bf16 %v4254, %v4254
      %s4257 = scalar_lea.vmem [#allocation12], 384
      %v4258 = vld [vmem:[%s4257] sm:$0xf]
      %v4259 = vld [vmem:[%s4257 + $0x4] sm:$0xf]
      %v4260 = vld [vmem:[%s4257 + $0x8] sm:$0xf]
      %v4261 = vld [vmem:[%s4257 + $0xc] sm:$0xf]
      %v4262 = vld [vmem:[%s4257 + $0x10] sm:$0xf]
      %v4263 = vld [vmem:[%s4257 + $0x14] sm:$0xf]
      %v4264 = vld [vmem:[%s4257 + $0x18] sm:$0xf]
      %v4265 = vld [vmem:[%s4257 + $0x1c] sm:$0xf]
      %v4266 = vld [vmem:[%s4257 + $0x20] sm:$0xf]
      %v4267 = vld [vmem:[%s4257 + $0x24] sm:$0xf]
      %v4268 = vld [vmem:[%s4257 + $0x28] sm:$0xf]
      %v4269 = vld [vmem:[%s4257 + $0x2c] sm:$0xf]
      %v4270 = vld [vmem:[%s4257 + $0x30] sm:$0xf]
      %v4271 = vld [vmem:[%s4257 + $0x34] sm:$0xf]
      %v4272 = vld [vmem:[%s4257 + $0x38] sm:$0xf]
      %v4273 = vld [vmem:[%s4257 + $0x3c] sm:$0xf]
      %v4274 = vld [vmem:[%s4257 + $0x40] sm:$0xf]
      %v4275 = vld [vmem:[%s4257 + $0x44] sm:$0xf]
      %v4276 = vld [vmem:[%s4257 + $0x48] sm:$0xf]
      %v4277 = vld [vmem:[%s4257 + $0x4c] sm:$0xf]
      %v4278 = vld [vmem:[%s4257 + $0x50] sm:$0xf]
      %v4279 = vld [vmem:[%s4257 + $0x54] sm:$0xf]
      %v4280 = vld [vmem:[%s4257 + $0x58] sm:$0xf]
      %v4281 = vld [vmem:[%s4257 + $0x5c] sm:$0xf]
      %v4282 = vld [vmem:[%s4257 + $0x60] sm:$0xf]
      %v4283 = vld [vmem:[%s4257 + $0x64] sm:$0xf]
      %v4284 = vld [vmem:[%s4257 + $0x68] sm:$0xf]
      %v4285 = vld [vmem:[%s4257 + $0x6c] sm:$0xf]
      %v4286 = vld [vmem:[%s4257 + $0x70] sm:$0xf]
      %v4287 = vld [vmem:[%s4257 + $0x74] sm:$0xf]
      %v4288 = vld [vmem:[%s4257 + $0x78] sm:$0xf]
      %v4289 = vld [vmem:[%s4257 + $0x7c] sm:$0xf]
      %v4322 = vunpack.c.l.b16 %v4258
      %v4323 = vunpack.c.l.b16 %v4259
      %v4324 = vunpack.c.l.b16 %v4260
      %v4325 = vunpack.c.l.b16 %v4261
      %v4326 = vunpack.c.l.b16 %v4262
      %v4327 = vunpack.c.l.b16 %v4263
      %v4328 = vunpack.c.l.b16 %v4264
      %v4329 = vunpack.c.l.b16 %v4265
      %v4330 = vunpack.c.l.b16 %v4266
      %v4331 = vunpack.c.l.b16 %v4267
      %v4332 = vunpack.c.l.b16 %v4268
      %v4333 = vunpack.c.l.b16 %v4269
      %v4334 = vunpack.c.l.b16 %v4270
      %v4335 = vunpack.c.l.b16 %v4271
      %v4336 = vunpack.c.l.b16 %v4272
      %v4337 = vunpack.c.l.b16 %v4273
      %v4338 = vunpack.c.l.b16 %v4274
      %v4339 = vunpack.c.l.b16 %v4275
      %v4340 = vunpack.c.l.b16 %v4276
      %v4341 = vunpack.c.l.b16 %v4277
      %v4342 = vunpack.c.l.b16 %v4278
      %v4343 = vunpack.c.l.b16 %v4279
      %v4344 = vunpack.c.l.b16 %v4280
      %v4345 = vunpack.c.l.b16 %v4281
      %v4346 = vunpack.c.l.b16 %v4282
      %v4347 = vunpack.c.l.b16 %v4283
      %v4348 = vunpack.c.l.b16 %v4284
      %v4349 = vunpack.c.l.b16 %v4285
      %v4350 = vunpack.c.l.b16 %v4286
      %v4351 = vunpack.c.l.b16 %v4287
      %v4352 = vunpack.c.l.b16 %v4288
      %v4353 = vunpack.c.l.b16 %v4289
      %v4354 = vpack.c.b16 %v4323, %v4322
      %v4355 = vpack.c.b16 %v4325, %v4324
      %v4356 = vpack.c.b16 %v4327, %v4326
      %v4357 = vpack.c.b16 %v4329, %v4328
      %v4358 = vpack.c.b16 %v4331, %v4330
      %v4359 = vpack.c.b16 %v4333, %v4332
      %v4360 = vpack.c.b16 %v4335, %v4334
      %v4361 = vpack.c.b16 %v4337, %v4336
      %v4362 = vpack.c.b16 %v4339, %v4338
      %v4363 = vpack.c.b16 %v4341, %v4340
      %v4364 = vpack.c.b16 %v4343, %v4342
      %v4365 = vpack.c.b16 %v4345, %v4344
      %v4366 = vpack.c.b16 %v4347, %v4346
      %v4367 = vpack.c.b16 %v4349, %v4348
      %v4368 = vpack.c.b16 %v4351, %v4350
      %v4369 = vpack.c.b16 %v4353, %v4352
      %4386 = vmatpush.bf16.msra.mxu0 %v4361
      %4387 = vmatpush.bf16.msra.mxu0 %v4360
      %4388 = vmatpush.bf16.msra.mxu0 %v4359
      %4389 = vmatpush.bf16.msra.mxu0 %v4358
      %4390 = vmatpush.bf16.msra.mxu0 %v4357
      %4391 = vmatpush.bf16.msra.mxu0 %v4356
      %4392 = vmatpush.bf16.msra.mxu0 %v4355
      %4393 = vmatpush.bf16.msra.mxu0 %v4354
      %4394 = vmatmul.bf16.gmra.mxu0 %v4255
      %v4395 = vpop.f32.mrf.mxu0
      %v4396 = vadd.f32 0.0, %v4395
      %v4397 = vpop.f32.mrf.mxu0
      %4398 = vdwg.mxu0
      %4399 = vmatpush.bf16.msra.mxu0 %v4369
      %4400 = vmatpush.bf16.msra.mxu0 %v4368
      %4401 = vmatpush.bf16.msra.mxu0 %v4367
      %4402 = vmatpush.bf16.msra.mxu0 %v4366
      %4403 = vmatpush.bf16.msra.mxu0 %v4365
      %4404 = vmatpush.bf16.msra.mxu0 %v4364
      %4405 = vmatpush.bf16.msra.mxu0 %v4363
      %4406 = vmatpush.bf16.msra.mxu0 %v4362
      %4407 = vmatmul.bf16.gmra.mxu0 %v4256
      %v4408 = vpop.f32.mrf.mxu0
      %v4409 = vadd.f32 %v4396, %v4408
      %v4410 = vpop.f32.mrf.mxu0
      %4411 = vdwg.mxu0
      %v4412 = vadd.f32 %v3996, %v4409
      %s4413 = scalar_lea.vmem [#allocation9], 768
      %v4414 = vld [vmem:[%s4413] sm:$0xff]
      %v4415 = vld [vmem:[%s4413 + $0x8] sm:$0xff]
      %v4416 = vld [vmem:[%s4413 + $0x10] sm:$0xff]
      %v4417 = vld [vmem:[%s4413 + $0x18] sm:$0xff]
      %v4418 = vld [vmem:[%s4413 + $0x20] sm:$0xff]
      %v4419 = vld [vmem:[%s4413 + $0x28] sm:$0xff]
      %v4420 = vld [vmem:[%s4413 + $0x30] sm:$0xff]
      %v4421 = vld [vmem:[%s4413 + $0x38] sm:$0xff]
      %v4422 = vld [vmem:[%s4413 + $0x40] sm:$0xff]
      %v4423 = vld [vmem:[%s4413 + $0x48] sm:$0xff]
      %v4424 = vld [vmem:[%s4413 + $0x50] sm:$0xff]
      %v4425 = vld [vmem:[%s4413 + $0x58] sm:$0xff]
      %v4426 = vld [vmem:[%s4413 + $0x60] sm:$0xff]
      %v4427 = vld [vmem:[%s4413 + $0x68] sm:$0xff]
      %v4428 = vld [vmem:[%s4413 + $0x70] sm:$0xff]
      %v4429 = vld [vmem:[%s4413 + $0x78] sm:$0xff]
      %v4430 = vld [vmem:[%s4413 + $0x80] sm:$0xff]
      %v4431 = vld [vmem:[%s4413 + $0x88] sm:$0xff]
      %v4432 = vld [vmem:[%s4413 + $0x90] sm:$0xff]
      %v4433 = vld [vmem:[%s4413 + $0x98] sm:$0xff]
      %v4434 = vld [vmem:[%s4413 + $0xa0] sm:$0xff]
      %v4435 = vld [vmem:[%s4413 + $0xa8] sm:$0xff]
      %v4436 = vld [vmem:[%s4413 + $0xb0] sm:$0xff]
      %v4437 = vld [vmem:[%s4413 + $0xb8] sm:$0xff]
      %v4438 = vld [vmem:[%s4413 + $0xc0] sm:$0xff]
      %v4439 = vld [vmem:[%s4413 + $0xc8] sm:$0xff]
      %v4440 = vld [vmem:[%s4413 + $0xd0] sm:$0xff]
      %v4441 = vld [vmem:[%s4413 + $0xd8] sm:$0xff]
      %v4442 = vld [vmem:[%s4413 + $0xe0] sm:$0xff]
      %v4443 = vld [vmem:[%s4413 + $0xe8] sm:$0xff]
      %v4444 = vld [vmem:[%s4413 + $0xf0] sm:$0xff]
      %v4445 = vld [vmem:[%s4413 + $0xf8] sm:$0xff]
      %s4446 = scalar_lea.vmem [#allocation11], 8
      %v4447 = vld [vmem:[%s4446] sm:$0x3]
      %v4449 = vperm.slane %v4447, 0
      %v4450 = vperm.slane %v4447, 1
      %v4485 = vunpack.c.l.b16 %v4414
      %v4486 = vunpack.c.h.b16 %v4414
      %v4487 = vunpack.c.l.b16 %v4415
      %v4488 = vunpack.c.h.b16 %v4415
      %v4489 = vunpack.c.l.b16 %v4416
      %v4490 = vunpack.c.h.b16 %v4416
      %v4491 = vunpack.c.l.b16 %v4417
      %v4492 = vunpack.c.h.b16 %v4417
      %v4493 = vunpack.c.l.b16 %v4418
      %v4494 = vunpack.c.h.b16 %v4418
      %v4495 = vunpack.c.l.b16 %v4419
      %v4496 = vunpack.c.h.b16 %v4419
      %v4497 = vunpack.c.l.b16 %v4420
      %v4498 = vunpack.c.h.b16 %v4420
      %v4499 = vunpack.c.l.b16 %v4421
      %v4500 = vunpack.c.h.b16 %v4421
      %v4501 = vunpack.c.l.b16 %v4422
      %v4502 = vunpack.c.h.b16 %v4422
      %v4503 = vunpack.c.l.b16 %v4423
      %v4504 = vunpack.c.h.b16 %v4423
      %v4505 = vunpack.c.l.b16 %v4424
      %v4506 = vunpack.c.h.b16 %v4424
      %v4507 = vunpack.c.l.b16 %v4425
      %v4508 = vunpack.c.h.b16 %v4425
      %v4509 = vunpack.c.l.b16 %v4426
      %v4510 = vunpack.c.h.b16 %v4426
      %v4511 = vunpack.c.l.b16 %v4427
      %v4512 = vunpack.c.h.b16 %v4427
      %v4513 = vunpack.c.l.b16 %v4428
      %v4514 = vunpack.c.h.b16 %v4428
      %v4515 = vunpack.c.l.b16 %v4429
      %v4516 = vunpack.c.h.b16 %v4429
      %v4517 = vunpack.c.l.b16 %v4430
      %v4518 = vunpack.c.h.b16 %v4430
      %v4519 = vunpack.c.l.b16 %v4431
      %v4520 = vunpack.c.h.b16 %v4431
      %v4521 = vunpack.c.l.b16 %v4432
      %v4522 = vunpack.c.h.b16 %v4432
      %v4523 = vunpack.c.l.b16 %v4433
      %v4524 = vunpack.c.h.b16 %v4433
      %v4525 = vunpack.c.l.b16 %v4434
      %v4526 = vunpack.c.h.b16 %v4434
      %v4527 = vunpack.c.l.b16 %v4435
      %v4528 = vunpack.c.h.b16 %v4435
      %v4529 = vunpack.c.l.b16 %v4436
      %v4530 = vunpack.c.h.b16 %v4436
      %v4531 = vunpack.c.l.b16 %v4437
      %v4532 = vunpack.c.h.b16 %v4437
      %v4533 = vunpack.c.l.b16 %v4438
      %v4534 = vunpack.c.h.b16 %v4438
      %v4535 = vunpack.c.l.b16 %v4439
      %v4536 = vunpack.c.h.b16 %v4439
      %v4537 = vunpack.c.l.b16 %v4440
      %v4538 = vunpack.c.h.b16 %v4440
      %v4539 = vunpack.c.l.b16 %v4441
      %v4540 = vunpack.c.h.b16 %v4441
      %v4541 = vunpack.c.l.b16 %v4442
      %v4542 = vunpack.c.h.b16 %v4442
      %v4543 = vunpack.c.l.b16 %v4443
      %v4544 = vunpack.c.h.b16 %v4443
      %v4545 = vunpack.c.l.b16 %v4444
      %v4546 = vunpack.c.h.b16 %v4444
      %v4547 = vunpack.c.l.b16 %v4445
      %v4548 = vunpack.c.h.b16 %v4445
      %v4549 = vpack.c.b16 %v4487, %v4485
      %v4550 = vpack.c.b16 %v4488, %v4486
      %v4551 = vpack.c.b16 %v4491, %v4489
      %v4552 = vpack.c.b16 %v4492, %v4490
      %v4553 = vpack.c.b16 %v4495, %v4493
      %v4554 = vpack.c.b16 %v4496, %v4494
      %v4555 = vpack.c.b16 %v4499, %v4497
      %v4556 = vpack.c.b16 %v4500, %v4498
      %v4557 = vpack.c.b16 %v4503, %v4501
      %v4558 = vpack.c.b16 %v4504, %v4502
      %v4559 = vpack.c.b16 %v4507, %v4505
      %v4560 = vpack.c.b16 %v4508, %v4506
      %v4561 = vpack.c.b16 %v4511, %v4509
      %v4562 = vpack.c.b16 %v4512, %v4510
      %v4563 = vpack.c.b16 %v4515, %v4513
      %v4564 = vpack.c.b16 %v4516, %v4514
      %v4565 = vpack.c.b16 %v4519, %v4517
      %v4566 = vpack.c.b16 %v4520, %v4518
      %v4567 = vpack.c.b16 %v4523, %v4521
      %v4568 = vpack.c.b16 %v4524, %v4522
      %v4569 = vpack.c.b16 %v4527, %v4525
      %v4570 = vpack.c.b16 %v4528, %v4526
      %v4571 = vpack.c.b16 %v4531, %v4529
      %v4572 = vpack.c.b16 %v4532, %v4530
      %v4573 = vpack.c.b16 %v4535, %v4533
      %v4574 = vpack.c.b16 %v4536, %v4534
      %v4575 = vpack.c.b16 %v4539, %v4537
      %v4576 = vpack.c.b16 %v4540, %v4538
      %v4577 = vpack.c.b16 %v4543, %v4541
      %v4578 = vpack.c.b16 %v4544, %v4542
      %v4579 = vpack.c.b16 %v4547, %v4545
      %v4580 = vpack.c.b16 %v4548, %v4546
      %4613 = vmatpush.bf16.msra.mxu0 %v4563
      %4614 = vmatpush.bf16.msra.mxu0 %v4561
      %4615 = vmatpush.bf16.msra.mxu0 %v4559
      %4616 = vmatpush.bf16.msra.mxu0 %v4557
      %4617 = vmatpush.bf16.msra.mxu0 %v4555
      %4618 = vmatpush.bf16.msra.mxu0 %v4553
      %4619 = vmatpush.bf16.msra.mxu0 %v4551
      %4620 = vmatpush.bf16.msra.mxu0 %v4549
      %4621 = vmatmul.bf16.gmra.mxu0 %v4255
      %v4622 = vpop.f32.mrf.mxu0
      %v4623 = vadd.f32 %v4449, %v4622
      %v4624 = vpop.f32.mrf.mxu0
      %4625 = vdwg.mxu0
      %4626 = vmatpush.bf16.msra.mxu0 %v4579
      %4627 = vmatpush.bf16.msra.mxu0 %v4577
      %4628 = vmatpush.bf16.msra.mxu0 %v4575
      %4629 = vmatpush.bf16.msra.mxu0 %v4573
      %4630 = vmatpush.bf16.msra.mxu0 %v4571
      %4631 = vmatpush.bf16.msra.mxu0 %v4569
      %4632 = vmatpush.bf16.msra.mxu0 %v4567
      %4633 = vmatpush.bf16.msra.mxu0 %v4565
      %4634 = vmatmul.bf16.gmra.mxu0 %v4256
      %v4635 = vpop.f32.mrf.mxu0
      %v4636 = vadd.f32 %v4623, %v4635
      %v4637 = vpop.f32.mrf.mxu0
      %4638 = vdwg.mxu0
      %4639 = vmatpush.bf16.msra.mxu0 %v4564
      %4640 = vmatpush.bf16.msra.mxu0 %v4562
      %4641 = vmatpush.bf16.msra.mxu0 %v4560
      %4642 = vmatpush.bf16.msra.mxu0 %v4558
      %4643 = vmatpush.bf16.msra.mxu0 %v4556
      %4644 = vmatpush.bf16.msra.mxu0 %v4554
      %4645 = vmatpush.bf16.msra.mxu0 %v4552
      %4646 = vmatpush.bf16.msra.mxu0 %v4550
      %4647 = vmatmul.bf16.gmra.mxu0 %v4255
      %v4648 = vpop.f32.mrf.mxu0
      %v4649 = vadd.f32 %v4450, %v4648
      %v4650 = vpop.f32.mrf.mxu0
      %4651 = vdwg.mxu0
      %4652 = vmatpush.bf16.msra.mxu0 %v4580
      %4653 = vmatpush.bf16.msra.mxu0 %v4578
      %4654 = vmatpush.bf16.msra.mxu0 %v4576
      %4655 = vmatpush.bf16.msra.mxu0 %v4574
      %4656 = vmatpush.bf16.msra.mxu0 %v4572
      %4657 = vmatpush.bf16.msra.mxu0 %v4570
      %4658 = vmatpush.bf16.msra.mxu0 %v4568
      %4659 = vmatpush.bf16.msra.mxu0 %v4566
      %4660 = vmatmul.bf16.gmra.mxu0 %v4256
      %v4661 = vpop.f32.mrf.mxu0
      %v4662 = vadd.f32 %v4649, %v4661
      %v4663 = vpop.f32.mrf.mxu0
      %4664 = vdwg.mxu0
      %vm4665 = vcmp.gt.f32.partialorder %v4636, 0.0
      %vm4666 = vcmp.gt.f32.partialorder %v4662, 0.0
      %v4667 = vmul.f32 %v4636, 0.2
      %v4668 = vmul.f32 %v4662, 0.2
      %v4669 = vsel %vm4665, %v4636, %v4667
      %v4670 = vsel %vm4666, %v4662, %v4668
      %v4671 = vpack.c.bf16 %v4669, %v4669
      %v4672 = vpack.c.bf16 %v4670, %v4670
      %s4673 = scalar_lea.vmem [#allocation12], 512
      %v4674 = vld [vmem:[%s4673] sm:$0xf]
      %v4675 = vld [vmem:[%s4673 + $0x4] sm:$0xf]
      %v4676 = vld [vmem:[%s4673 + $0x8] sm:$0xf]
      %v4677 = vld [vmem:[%s4673 + $0xc] sm:$0xf]
      %v4678 = vld [vmem:[%s4673 + $0x10] sm:$0xf]
      %v4679 = vld [vmem:[%s4673 + $0x14] sm:$0xf]
      %v4680 = vld [vmem:[%s4673 + $0x18] sm:$0xf]
      %v4681 = vld [vmem:[%s4673 + $0x1c] sm:$0xf]
      %v4682 = vld [vmem:[%s4673 + $0x20] sm:$0xf]
      %v4683 = vld [vmem:[%s4673 + $0x24] sm:$0xf]
      %v4684 = vld [vmem:[%s4673 + $0x28] sm:$0xf]
      %v4685 = vld [vmem:[%s4673 + $0x2c] sm:$0xf]
      %v4686 = vld [vmem:[%s4673 + $0x30] sm:$0xf]
      %v4687 = vld [vmem:[%s4673 + $0x34] sm:$0xf]
      %v4688 = vld [vmem:[%s4673 + $0x38] sm:$0xf]
      %v4689 = vld [vmem:[%s4673 + $0x3c] sm:$0xf]
      %v4690 = vld [vmem:[%s4673 + $0x40] sm:$0xf]
      %v4691 = vld [vmem:[%s4673 + $0x44] sm:$0xf]
      %v4692 = vld [vmem:[%s4673 + $0x48] sm:$0xf]
      %v4693 = vld [vmem:[%s4673 + $0x4c] sm:$0xf]
      %v4694 = vld [vmem:[%s4673 + $0x50] sm:$0xf]
      %v4695 = vld [vmem:[%s4673 + $0x54] sm:$0xf]
      %v4696 = vld [vmem:[%s4673 + $0x58] sm:$0xf]
      %v4697 = vld [vmem:[%s4673 + $0x5c] sm:$0xf]
      %v4698 = vld [vmem:[%s4673 + $0x60] sm:$0xf]
      %v4699 = vld [vmem:[%s4673 + $0x64] sm:$0xf]
      %v4700 = vld [vmem:[%s4673 + $0x68] sm:$0xf]
      %v4701 = vld [vmem:[%s4673 + $0x6c] sm:$0xf]
      %v4702 = vld [vmem:[%s4673 + $0x70] sm:$0xf]
      %v4703 = vld [vmem:[%s4673 + $0x74] sm:$0xf]
      %v4704 = vld [vmem:[%s4673 + $0x78] sm:$0xf]
      %v4705 = vld [vmem:[%s4673 + $0x7c] sm:$0xf]
      %v4738 = vunpack.c.l.b16 %v4674
      %v4739 = vunpack.c.l.b16 %v4675
      %v4740 = vunpack.c.l.b16 %v4676
      %v4741 = vunpack.c.l.b16 %v4677
      %v4742 = vunpack.c.l.b16 %v4678
      %v4743 = vunpack.c.l.b16 %v4679
      %v4744 = vunpack.c.l.b16 %v4680
      %v4745 = vunpack.c.l.b16 %v4681
      %v4746 = vunpack.c.l.b16 %v4682
      %v4747 = vunpack.c.l.b16 %v4683
      %v4748 = vunpack.c.l.b16 %v4684
      %v4749 = vunpack.c.l.b16 %v4685
      %v4750 = vunpack.c.l.b16 %v4686
      %v4751 = vunpack.c.l.b16 %v4687
      %v4752 = vunpack.c.l.b16 %v4688
      %v4753 = vunpack.c.l.b16 %v4689
      %v4754 = vunpack.c.l.b16 %v4690
      %v4755 = vunpack.c.l.b16 %v4691
      %v4756 = vunpack.c.l.b16 %v4692
      %v4757 = vunpack.c.l.b16 %v4693
      %v4758 = vunpack.c.l.b16 %v4694
      %v4759 = vunpack.c.l.b16 %v4695
      %v4760 = vunpack.c.l.b16 %v4696
      %v4761 = vunpack.c.l.b16 %v4697
      %v4762 = vunpack.c.l.b16 %v4698
      %v4763 = vunpack.c.l.b16 %v4699
      %v4764 = vunpack.c.l.b16 %v4700
      %v4765 = vunpack.c.l.b16 %v4701
      %v4766 = vunpack.c.l.b16 %v4702
      %v4767 = vunpack.c.l.b16 %v4703
      %v4768 = vunpack.c.l.b16 %v4704
      %v4769 = vunpack.c.l.b16 %v4705
      %v4770 = vpack.c.b16 %v4739, %v4738
      %v4771 = vpack.c.b16 %v4741, %v4740
      %v4772 = vpack.c.b16 %v4743, %v4742
      %v4773 = vpack.c.b16 %v4745, %v4744
      %v4774 = vpack.c.b16 %v4747, %v4746
      %v4775 = vpack.c.b16 %v4749, %v4748
      %v4776 = vpack.c.b16 %v4751, %v4750
      %v4777 = vpack.c.b16 %v4753, %v4752
      %v4778 = vpack.c.b16 %v4755, %v4754
      %v4779 = vpack.c.b16 %v4757, %v4756
      %v4780 = vpack.c.b16 %v4759, %v4758
      %v4781 = vpack.c.b16 %v4761, %v4760
      %v4782 = vpack.c.b16 %v4763, %v4762
      %v4783 = vpack.c.b16 %v4765, %v4764
      %v4784 = vpack.c.b16 %v4767, %v4766
      %v4785 = vpack.c.b16 %v4769, %v4768
      %4802 = vmatpush.bf16.msra.mxu0 %v4777
      %4803 = vmatpush.bf16.msra.mxu0 %v4776
      %4804 = vmatpush.bf16.msra.mxu0 %v4775
      %4805 = vmatpush.bf16.msra.mxu0 %v4774
      %4806 = vmatpush.bf16.msra.mxu0 %v4773
      %4807 = vmatpush.bf16.msra.mxu0 %v4772
      %4808 = vmatpush.bf16.msra.mxu0 %v4771
      %4809 = vmatpush.bf16.msra.mxu0 %v4770
      %4810 = vmatmul.bf16.gmra.mxu0 %v4671
      %v4811 = vpop.f32.mrf.mxu0
      %v4812 = vadd.f32 0.0, %v4811
      %v4813 = vpop.f32.mrf.mxu0
      %4814 = vdwg.mxu0
      %4815 = vmatpush.bf16.msra.mxu0 %v4785
      %4816 = vmatpush.bf16.msra.mxu0 %v4784
      %4817 = vmatpush.bf16.msra.mxu0 %v4783
      %4818 = vmatpush.bf16.msra.mxu0 %v4782
      %4819 = vmatpush.bf16.msra.mxu0 %v4781
      %4820 = vmatpush.bf16.msra.mxu0 %v4780
      %4821 = vmatpush.bf16.msra.mxu0 %v4779
      %4822 = vmatpush.bf16.msra.mxu0 %v4778
      %4823 = vmatmul.bf16.gmra.mxu0 %v4672
      %v4824 = vpop.f32.mrf.mxu0
      %v4825 = vadd.f32 %v4812, %v4824
      %v4826 = vpop.f32.mrf.mxu0
      %4827 = vdwg.mxu0
      %v4828 = vadd.f32 %v4412, %v4825
      %s4829 = scalar_lea.vmem [#allocation9], 1024
      %v4830 = vld [vmem:[%s4829] sm:$0xff]
      %v4831 = vld [vmem:[%s4829 + $0x8] sm:$0xff]
      %v4832 = vld [vmem:[%s4829 + $0x10] sm:$0xff]
      %v4833 = vld [vmem:[%s4829 + $0x18] sm:$0xff]
      %v4834 = vld [vmem:[%s4829 + $0x20] sm:$0xff]
      %v4835 = vld [vmem:[%s4829 + $0x28] sm:$0xff]
      %v4836 = vld [vmem:[%s4829 + $0x30] sm:$0xff]
      %v4837 = vld [vmem:[%s4829 + $0x38] sm:$0xff]
      %v4838 = vld [vmem:[%s4829 + $0x40] sm:$0xff]
      %v4839 = vld [vmem:[%s4829 + $0x48] sm:$0xff]
      %v4840 = vld [vmem:[%s4829 + $0x50] sm:$0xff]
      %v4841 = vld [vmem:[%s4829 + $0x58] sm:$0xff]
      %v4842 = vld [vmem:[%s4829 + $0x60] sm:$0xff]
      %v4843 = vld [vmem:[%s4829 + $0x68] sm:$0xff]
      %v4844 = vld [vmem:[%s4829 + $0x70] sm:$0xff]
      %v4845 = vld [vmem:[%s4829 + $0x78] sm:$0xff]
      %v4846 = vld [vmem:[%s4829 + $0x80] sm:$0xff]
      %v4847 = vld [vmem:[%s4829 + $0x88] sm:$0xff]
      %v4848 = vld [vmem:[%s4829 + $0x90] sm:$0xff]
      %v4849 = vld [vmem:[%s4829 + $0x98] sm:$0xff]
      %v4850 = vld [vmem:[%s4829 + $0xa0] sm:$0xff]
      %v4851 = vld [vmem:[%s4829 + $0xa8] sm:$0xff]
      %v4852 = vld [vmem:[%s4829 + $0xb0] sm:$0xff]
      %v4853 = vld [vmem:[%s4829 + $0xb8] sm:$0xff]
      %v4854 = vld [vmem:[%s4829 + $0xc0] sm:$0xff]
      %v4855 = vld [vmem:[%s4829 + $0xc8] sm:$0xff]
      %v4856 = vld [vmem:[%s4829 + $0xd0] sm:$0xff]
      %v4857 = vld [vmem:[%s4829 + $0xd8] sm:$0xff]
      %v4858 = vld [vmem:[%s4829 + $0xe0] sm:$0xff]
      %v4859 = vld [vmem:[%s4829 + $0xe8] sm:$0xff]
      %v4860 = vld [vmem:[%s4829 + $0xf0] sm:$0xff]
      %v4861 = vld [vmem:[%s4829 + $0xf8] sm:$0xff]
      %s4862 = scalar_lea.vmem [#allocation11], 10
      %v4863 = vld [vmem:[%s4862] sm:$0x3]
      %v4865 = vperm.slane %v4863, 0
      %v4866 = vperm.slane %v4863, 1
      %v4901 = vunpack.c.l.b16 %v4830
      %v4902 = vunpack.c.h.b16 %v4830
      %v4903 = vunpack.c.l.b16 %v4831
      %v4904 = vunpack.c.h.b16 %v4831
      %v4905 = vunpack.c.l.b16 %v4832
      %v4906 = vunpack.c.h.b16 %v4832
      %v4907 = vunpack.c.l.b16 %v4833
      %v4908 = vunpack.c.h.b16 %v4833
      %v4909 = vunpack.c.l.b16 %v4834
      %v4910 = vunpack.c.h.b16 %v4834
      %v4911 = vunpack.c.l.b16 %v4835
      %v4912 = vunpack.c.h.b16 %v4835
      %v4913 = vunpack.c.l.b16 %v4836
      %v4914 = vunpack.c.h.b16 %v4836
      %v4915 = vunpack.c.l.b16 %v4837
      %v4916 = vunpack.c.h.b16 %v4837
      %v4917 = vunpack.c.l.b16 %v4838
      %v4918 = vunpack.c.h.b16 %v4838
      %v4919 = vunpack.c.l.b16 %v4839
      %v4920 = vunpack.c.h.b16 %v4839
      %v4921 = vunpack.c.l.b16 %v4840
      %v4922 = vunpack.c.h.b16 %v4840
      %v4923 = vunpack.c.l.b16 %v4841
      %v4924 = vunpack.c.h.b16 %v4841
      %v4925 = vunpack.c.l.b16 %v4842
      %v4926 = vunpack.c.h.b16 %v4842
      %v4927 = vunpack.c.l.b16 %v4843
      %v4928 = vunpack.c.h.b16 %v4843
      %v4929 = vunpack.c.l.b16 %v4844
      %v4930 = vunpack.c.h.b16 %v4844
      %v4931 = vunpack.c.l.b16 %v4845
      %v4932 = vunpack.c.h.b16 %v4845
      %v4933 = vunpack.c.l.b16 %v4846
      %v4934 = vunpack.c.h.b16 %v4846
      %v4935 = vunpack.c.l.b16 %v4847
      %v4936 = vunpack.c.h.b16 %v4847
      %v4937 = vunpack.c.l.b16 %v4848
      %v4938 = vunpack.c.h.b16 %v4848
      %v4939 = vunpack.c.l.b16 %v4849
      %v4940 = vunpack.c.h.b16 %v4849
      %v4941 = vunpack.c.l.b16 %v4850
      %v4942 = vunpack.c.h.b16 %v4850
      %v4943 = vunpack.c.l.b16 %v4851
      %v4944 = vunpack.c.h.b16 %v4851
      %v4945 = vunpack.c.l.b16 %v4852
      %v4946 = vunpack.c.h.b16 %v4852
      %v4947 = vunpack.c.l.b16 %v4853
      %v4948 = vunpack.c.h.b16 %v4853
      %v4949 = vunpack.c.l.b16 %v4854
      %v4950 = vunpack.c.h.b16 %v4854
      %v4951 = vunpack.c.l.b16 %v4855
      %v4952 = vunpack.c.h.b16 %v4855
      %v4953 = vunpack.c.l.b16 %v4856
      %v4954 = vunpack.c.h.b16 %v4856
      %v4955 = vunpack.c.l.b16 %v4857
      %v4956 = vunpack.c.h.b16 %v4857
      %v4957 = vunpack.c.l.b16 %v4858
      %v4958 = vunpack.c.h.b16 %v4858
      %v4959 = vunpack.c.l.b16 %v4859
      %v4960 = vunpack.c.h.b16 %v4859
      %v4961 = vunpack.c.l.b16 %v4860
      %v4962 = vunpack.c.h.b16 %v4860
      %v4963 = vunpack.c.l.b16 %v4861
      %v4964 = vunpack.c.h.b16 %v4861
      %v4965 = vpack.c.b16 %v4903, %v4901
      %v4966 = vpack.c.b16 %v4904, %v4902
      %v4967 = vpack.c.b16 %v4907, %v4905
      %v4968 = vpack.c.b16 %v4908, %v4906
      %v4969 = vpack.c.b16 %v4911, %v4909
      %v4970 = vpack.c.b16 %v4912, %v4910
      %v4971 = vpack.c.b16 %v4915, %v4913
      %v4972 = vpack.c.b16 %v4916, %v4914
      %v4973 = vpack.c.b16 %v4919, %v4917
      %v4974 = vpack.c.b16 %v4920, %v4918
      %v4975 = vpack.c.b16 %v4923, %v4921
      %v4976 = vpack.c.b16 %v4924, %v4922
      %v4977 = vpack.c.b16 %v4927, %v4925
      %v4978 = vpack.c.b16 %v4928, %v4926
      %v4979 = vpack.c.b16 %v4931, %v4929
      %v4980 = vpack.c.b16 %v4932, %v4930
      %v4981 = vpack.c.b16 %v4935, %v4933
      %v4982 = vpack.c.b16 %v4936, %v4934
      %v4983 = vpack.c.b16 %v4939, %v4937
      %v4984 = vpack.c.b16 %v4940, %v4938
      %v4985 = vpack.c.b16 %v4943, %v4941
      %v4986 = vpack.c.b16 %v4944, %v4942
      %v4987 = vpack.c.b16 %v4947, %v4945
      %v4988 = vpack.c.b16 %v4948, %v4946
      %v4989 = vpack.c.b16 %v4951, %v4949
      %v4990 = vpack.c.b16 %v4952, %v4950
      %v4991 = vpack.c.b16 %v4955, %v4953
      %v4992 = vpack.c.b16 %v4956, %v4954
      %v4993 = vpack.c.b16 %v4959, %v4957
      %v4994 = vpack.c.b16 %v4960, %v4958
      %v4995 = vpack.c.b16 %v4963, %v4961
      %v4996 = vpack.c.b16 %v4964, %v4962
      %5029 = vmatpush.bf16.msra.mxu0 %v4979
      %5030 = vmatpush.bf16.msra.mxu0 %v4977
      %5031 = vmatpush.bf16.msra.mxu0 %v4975
      %5032 = vmatpush.bf16.msra.mxu0 %v4973
      %5033 = vmatpush.bf16.msra.mxu0 %v4971
      %5034 = vmatpush.bf16.msra.mxu0 %v4969
      %5035 = vmatpush.bf16.msra.mxu0 %v4967
      %5036 = vmatpush.bf16.msra.mxu0 %v4965
      %5037 = vmatmul.bf16.gmra.mxu0 %v4671
      %v5038 = vpop.f32.mrf.mxu0
      %v5039 = vadd.f32 %v4865, %v5038
      %v5040 = vpop.f32.mrf.mxu0
      %5041 = vdwg.mxu0
      %5042 = vmatpush.bf16.msra.mxu0 %v4995
      %5043 = vmatpush.bf16.msra.mxu0 %v4993
      %5044 = vmatpush.bf16.msra.mxu0 %v4991
      %5045 = vmatpush.bf16.msra.mxu0 %v4989
      %5046 = vmatpush.bf16.msra.mxu0 %v4987
      %5047 = vmatpush.bf16.msra.mxu0 %v4985
      %5048 = vmatpush.bf16.msra.mxu0 %v4983
      %5049 = vmatpush.bf16.msra.mxu0 %v4981
      %5050 = vmatmul.bf16.gmra.mxu0 %v4672
      %v5051 = vpop.f32.mrf.mxu0
      %v5052 = vadd.f32 %v5039, %v5051
      %v5053 = vpop.f32.mrf.mxu0
      %5054 = vdwg.mxu0
      %5055 = vmatpush.bf16.msra.mxu0 %v4980
      %5056 = vmatpush.bf16.msra.mxu0 %v4978
      %5057 = vmatpush.bf16.msra.mxu0 %v4976
      %5058 = vmatpush.bf16.msra.mxu0 %v4974
      %5059 = vmatpush.bf16.msra.mxu0 %v4972
      %5060 = vmatpush.bf16.msra.mxu0 %v4970
      %5061 = vmatpush.bf16.msra.mxu0 %v4968
      %5062 = vmatpush.bf16.msra.mxu0 %v4966
      %5063 = vmatmul.bf16.gmra.mxu0 %v4671
      %v5064 = vpop.f32.mrf.mxu0
      %v5065 = vadd.f32 %v4866, %v5064
      %v5066 = vpop.f32.mrf.mxu0
      %5067 = vdwg.mxu0
      %5068 = vmatpush.bf16.msra.mxu0 %v4996
      %5069 = vmatpush.bf16.msra.mxu0 %v4994
      %5070 = vmatpush.bf16.msra.mxu0 %v4992
      %5071 = vmatpush.bf16.msra.mxu0 %v4990
      %5072 = vmatpush.bf16.msra.mxu0 %v4988
      %5073 = vmatpush.bf16.msra.mxu0 %v4986
      %5074 = vmatpush.bf16.msra.mxu0 %v4984
      %5075 = vmatpush.bf16.msra.mxu0 %v4982
      %5076 = vmatmul.bf16.gmra.mxu0 %v4672
      %v5077 = vpop.f32.mrf.mxu0
      %v5078 = vadd.f32 %v5065, %v5077
      %v5079 = vpop.f32.mrf.mxu0
      %5080 = vdwg.mxu0
      %vm5081 = vcmp.gt.f32.partialorder %v5052, 0.0
      %vm5082 = vcmp.gt.f32.partialorder %v5078, 0.0
      %v5083 = vmul.f32 %v5052, 0.2
      %v5084 = vmul.f32 %v5078, 0.2
      %v5085 = vsel %vm5081, %v5052, %v5083
      %v5086 = vsel %vm5082, %v5078, %v5084
      %v5087 = vpack.c.bf16 %v5085, %v5085
      %v5088 = vpack.c.bf16 %v5086, %v5086
      %s5089 = scalar_lea.vmem [#allocation12], 640
      %v5090 = vld [vmem:[%s5089] sm:$0xf]
      %v5091 = vld [vmem:[%s5089 + $0x4] sm:$0xf]
      %v5092 = vld [vmem:[%s5089 + $0x8] sm:$0xf]
      %v5093 = vld [vmem:[%s5089 + $0xc] sm:$0xf]
      %v5094 = vld [vmem:[%s5089 + $0x10] sm:$0xf]
      %v5095 = vld [vmem:[%s5089 + $0x14] sm:$0xf]
      %v5096 = vld [vmem:[%s5089 + $0x18] sm:$0xf]
      %v5097 = vld [vmem:[%s5089 + $0x1c] sm:$0xf]
      %v5098 = vld [vmem:[%s5089 + $0x20] sm:$0xf]
      %v5099 = vld [vmem:[%s5089 + $0x24] sm:$0xf]
      %v5100 = vld [vmem:[%s5089 + $0x28] sm:$0xf]
      %v5101 = vld [vmem:[%s5089 + $0x2c] sm:$0xf]
      %v5102 = vld [vmem:[%s5089 + $0x30] sm:$0xf]
      %v5103 = vld [vmem:[%s5089 + $0x34] sm:$0xf]
      %v5104 = vld [vmem:[%s5089 + $0x38] sm:$0xf]
      %v5105 = vld [vmem:[%s5089 + $0x3c] sm:$0xf]
      %v5106 = vld [vmem:[%s5089 + $0x40] sm:$0xf]
      %v5107 = vld [vmem:[%s5089 + $0x44] sm:$0xf]
      %v5108 = vld [vmem:[%s5089 + $0x48] sm:$0xf]
      %v5109 = vld [vmem:[%s5089 + $0x4c] sm:$0xf]
      %v5110 = vld [vmem:[%s5089 + $0x50] sm:$0xf]
      %v5111 = vld [vmem:[%s5089 + $0x54] sm:$0xf]
      %v5112 = vld [vmem:[%s5089 + $0x58] sm:$0xf]
      %v5113 = vld [vmem:[%s5089 + $0x5c] sm:$0xf]
      %v5114 = vld [vmem:[%s5089 + $0x60] sm:$0xf]
      %v5115 = vld [vmem:[%s5089 + $0x64] sm:$0xf]
      %v5116 = vld [vmem:[%s5089 + $0x68] sm:$0xf]
      %v5117 = vld [vmem:[%s5089 + $0x6c] sm:$0xf]
      %v5118 = vld [vmem:[%s5089 + $0x70] sm:$0xf]
      %v5119 = vld [vmem:[%s5089 + $0x74] sm:$0xf]
      %v5120 = vld [vmem:[%s5089 + $0x78] sm:$0xf]
      %v5121 = vld [vmem:[%s5089 + $0x7c] sm:$0xf]
      %v5154 = vunpack.c.l.b16 %v5090
      %v5155 = vunpack.c.l.b16 %v5091
      %v5156 = vunpack.c.l.b16 %v5092
      %v5157 = vunpack.c.l.b16 %v5093
      %v5158 = vunpack.c.l.b16 %v5094
      %v5159 = vunpack.c.l.b16 %v5095
      %v5160 = vunpack.c.l.b16 %v5096
      %v5161 = vunpack.c.l.b16 %v5097
      %v5162 = vunpack.c.l.b16 %v5098
      %v5163 = vunpack.c.l.b16 %v5099
      %v5164 = vunpack.c.l.b16 %v5100
      %v5165 = vunpack.c.l.b16 %v5101
      %v5166 = vunpack.c.l.b16 %v5102
      %v5167 = vunpack.c.l.b16 %v5103
      %v5168 = vunpack.c.l.b16 %v5104
      %v5169 = vunpack.c.l.b16 %v5105
      %v5170 = vunpack.c.l.b16 %v5106
      %v5171 = vunpack.c.l.b16 %v5107
      %v5172 = vunpack.c.l.b16 %v5108
      %v5173 = vunpack.c.l.b16 %v5109
      %v5174 = vunpack.c.l.b16 %v5110
      %v5175 = vunpack.c.l.b16 %v5111
      %v5176 = vunpack.c.l.b16 %v5112
      %v5177 = vunpack.c.l.b16 %v5113
      %v5178 = vunpack.c.l.b16 %v5114
      %v5179 = vunpack.c.l.b16 %v5115
      %v5180 = vunpack.c.l.b16 %v5116
      %v5181 = vunpack.c.l.b16 %v5117
      %v5182 = vunpack.c.l.b16 %v5118
      %v5183 = vunpack.c.l.b16 %v5119
      %v5184 = vunpack.c.l.b16 %v5120
      %v5185 = vunpack.c.l.b16 %v5121
      %v5186 = vpack.c.b16 %v5155, %v5154
      %v5187 = vpack.c.b16 %v5157, %v5156
      %v5188 = vpack.c.b16 %v5159, %v5158
      %v5189 = vpack.c.b16 %v5161, %v5160
      %v5190 = vpack.c.b16 %v5163, %v5162
      %v5191 = vpack.c.b16 %v5165, %v5164
      %v5192 = vpack.c.b16 %v5167, %v5166
      %v5193 = vpack.c.b16 %v5169, %v5168
      %v5194 = vpack.c.b16 %v5171, %v5170
      %v5195 = vpack.c.b16 %v5173, %v5172
      %v5196 = vpack.c.b16 %v5175, %v5174
      %v5197 = vpack.c.b16 %v5177, %v5176
      %v5198 = vpack.c.b16 %v5179, %v5178
      %v5199 = vpack.c.b16 %v5181, %v5180
      %v5200 = vpack.c.b16 %v5183, %v5182
      %v5201 = vpack.c.b16 %v5185, %v5184
      %5218 = vmatpush.bf16.msra.mxu0 %v5193
      %5219 = vmatpush.bf16.msra.mxu0 %v5192
      %5220 = vmatpush.bf16.msra.mxu0 %v5191
      %5221 = vmatpush.bf16.msra.mxu0 %v5190
      %5222 = vmatpush.bf16.msra.mxu0 %v5189
      %5223 = vmatpush.bf16.msra.mxu0 %v5188
      %5224 = vmatpush.bf16.msra.mxu0 %v5187
      %5225 = vmatpush.bf16.msra.mxu0 %v5186
      %5226 = vmatmul.bf16.gmra.mxu0 %v5087
      %v5227 = vpop.f32.mrf.mxu0
      %v5228 = vadd.f32 0.0, %v5227
      %v5229 = vpop.f32.mrf.mxu0
      %5230 = vdwg.mxu0
      %5231 = vmatpush.bf16.msra.mxu0 %v5201
      %5232 = vmatpush.bf16.msra.mxu0 %v5200
      %5233 = vmatpush.bf16.msra.mxu0 %v5199
      %5234 = vmatpush.bf16.msra.mxu0 %v5198
      %5235 = vmatpush.bf16.msra.mxu0 %v5197
      %5236 = vmatpush.bf16.msra.mxu0 %v5196
      %5237 = vmatpush.bf16.msra.mxu0 %v5195
      %5238 = vmatpush.bf16.msra.mxu0 %v5194
      %5239 = vmatmul.bf16.gmra.mxu0 %v5088
      %v5240 = vpop.f32.mrf.mxu0
      %v5241 = vadd.f32 %v5228, %v5240
      %v5242 = vpop.f32.mrf.mxu0
      %5243 = vdwg.mxu0
      %v5244 = vadd.f32 %v4828, %v5241
      %s5245 = scalar_lea.vmem [#allocation9], 1280
      %v5246 = vld [vmem:[%s5245] sm:$0xff]
      %v5247 = vld [vmem:[%s5245 + $0x8] sm:$0xff]
      %v5248 = vld [vmem:[%s5245 + $0x10] sm:$0xff]
      %v5249 = vld [vmem:[%s5245 + $0x18] sm:$0xff]
      %v5250 = vld [vmem:[%s5245 + $0x20] sm:$0xff]
      %v5251 = vld [vmem:[%s5245 + $0x28] sm:$0xff]
      %v5252 = vld [vmem:[%s5245 + $0x30] sm:$0xff]
      %v5253 = vld [vmem:[%s5245 + $0x38] sm:$0xff]
      %v5254 = vld [vmem:[%s5245 + $0x40] sm:$0xff]
      %v5255 = vld [vmem:[%s5245 + $0x48] sm:$0xff]
      %v5256 = vld [vmem:[%s5245 + $0x50] sm:$0xff]
      %v5257 = vld [vmem:[%s5245 + $0x58] sm:$0xff]
      %v5258 = vld [vmem:[%s5245 + $0x60] sm:$0xff]
      %v5259 = vld [vmem:[%s5245 + $0x68] sm:$0xff]
      %v5260 = vld [vmem:[%s5245 + $0x70] sm:$0xff]
      %v5261 = vld [vmem:[%s5245 + $0x78] sm:$0xff]
      %v5262 = vld [vmem:[%s5245 + $0x80] sm:$0xff]
      %v5263 = vld [vmem:[%s5245 + $0x88] sm:$0xff]
      %v5264 = vld [vmem:[%s5245 + $0x90] sm:$0xff]
      %v5265 = vld [vmem:[%s5245 + $0x98] sm:$0xff]
      %v5266 = vld [vmem:[%s5245 + $0xa0] sm:$0xff]
      %v5267 = vld [vmem:[%s5245 + $0xa8] sm:$0xff]
      %v5268 = vld [vmem:[%s5245 + $0xb0] sm:$0xff]
      %v5269 = vld [vmem:[%s5245 + $0xb8] sm:$0xff]
      %v5270 = vld [vmem:[%s5245 + $0xc0] sm:$0xff]
      %v5271 = vld [vmem:[%s5245 + $0xc8] sm:$0xff]
      %v5272 = vld [vmem:[%s5245 + $0xd0] sm:$0xff]
      %v5273 = vld [vmem:[%s5245 + $0xd8] sm:$0xff]
      %v5274 = vld [vmem:[%s5245 + $0xe0] sm:$0xff]
      %v5275 = vld [vmem:[%s5245 + $0xe8] sm:$0xff]
      %v5276 = vld [vmem:[%s5245 + $0xf0] sm:$0xff]
      %v5277 = vld [vmem:[%s5245 + $0xf8] sm:$0xff]
      %s5278 = scalar_lea.vmem [#allocation11], 12
      %v5279 = vld [vmem:[%s5278] sm:$0x3]
      %v5281 = vperm.slane %v5279, 0
      %v5282 = vperm.slane %v5279, 1
      %v5317 = vunpack.c.l.b16 %v5246
      %v5318 = vunpack.c.h.b16 %v5246
      %v5319 = vunpack.c.l.b16 %v5247
      %v5320 = vunpack.c.h.b16 %v5247
      %v5321 = vunpack.c.l.b16 %v5248
      %v5322 = vunpack.c.h.b16 %v5248
      %v5323 = vunpack.c.l.b16 %v5249
      %v5324 = vunpack.c.h.b16 %v5249
      %v5325 = vunpack.c.l.b16 %v5250
      %v5326 = vunpack.c.h.b16 %v5250
      %v5327 = vunpack.c.l.b16 %v5251
      %v5328 = vunpack.c.h.b16 %v5251
      %v5329 = vunpack.c.l.b16 %v5252
      %v5330 = vunpack.c.h.b16 %v5252
      %v5331 = vunpack.c.l.b16 %v5253
      %v5332 = vunpack.c.h.b16 %v5253
      %v5333 = vunpack.c.l.b16 %v5254
      %v5334 = vunpack.c.h.b16 %v5254
      %v5335 = vunpack.c.l.b16 %v5255
      %v5336 = vunpack.c.h.b16 %v5255
      %v5337 = vunpack.c.l.b16 %v5256
      %v5338 = vunpack.c.h.b16 %v5256
      %v5339 = vunpack.c.l.b16 %v5257
      %v5340 = vunpack.c.h.b16 %v5257
      %v5341 = vunpack.c.l.b16 %v5258
      %v5342 = vunpack.c.h.b16 %v5258
      %v5343 = vunpack.c.l.b16 %v5259
      %v5344 = vunpack.c.h.b16 %v5259
      %v5345 = vunpack.c.l.b16 %v5260
      %v5346 = vunpack.c.h.b16 %v5260
      %v5347 = vunpack.c.l.b16 %v5261
      %v5348 = vunpack.c.h.b16 %v5261
      %v5349 = vunpack.c.l.b16 %v5262
      %v5350 = vunpack.c.h.b16 %v5262
      %v5351 = vunpack.c.l.b16 %v5263
      %v5352 = vunpack.c.h.b16 %v5263
      %v5353 = vunpack.c.l.b16 %v5264
      %v5354 = vunpack.c.h.b16 %v5264
      %v5355 = vunpack.c.l.b16 %v5265
      %v5356 = vunpack.c.h.b16 %v5265
      %v5357 = vunpack.c.l.b16 %v5266
      %v5358 = vunpack.c.h.b16 %v5266
      %v5359 = vunpack.c.l.b16 %v5267
      %v5360 = vunpack.c.h.b16 %v5267
      %v5361 = vunpack.c.l.b16 %v5268
      %v5362 = vunpack.c.h.b16 %v5268
      %v5363 = vunpack.c.l.b16 %v5269
      %v5364 = vunpack.c.h.b16 %v5269
      %v5365 = vunpack.c.l.b16 %v5270
      %v5366 = vunpack.c.h.b16 %v5270
      %v5367 = vunpack.c.l.b16 %v5271
      %v5368 = vunpack.c.h.b16 %v5271
      %v5369 = vunpack.c.l.b16 %v5272
      %v5370 = vunpack.c.h.b16 %v5272
      %v5371 = vunpack.c.l.b16 %v5273
      %v5372 = vunpack.c.h.b16 %v5273
      %v5373 = vunpack.c.l.b16 %v5274
      %v5374 = vunpack.c.h.b16 %v5274
      %v5375 = vunpack.c.l.b16 %v5275
      %v5376 = vunpack.c.h.b16 %v5275
      %v5377 = vunpack.c.l.b16 %v5276
      %v5378 = vunpack.c.h.b16 %v5276
      %v5379 = vunpack.c.l.b16 %v5277
      %v5380 = vunpack.c.h.b16 %v5277
      %v5381 = vpack.c.b16 %v5319, %v5317
      %v5382 = vpack.c.b16 %v5320, %v5318
      %v5383 = vpack.c.b16 %v5323, %v5321
      %v5384 = vpack.c.b16 %v5324, %v5322
      %v5385 = vpack.c.b16 %v5327, %v5325
      %v5386 = vpack.c.b16 %v5328, %v5326
      %v5387 = vpack.c.b16 %v5331, %v5329
      %v5388 = vpack.c.b16 %v5332, %v5330
      %v5389 = vpack.c.b16 %v5335, %v5333
      %v5390 = vpack.c.b16 %v5336, %v5334
      %v5391 = vpack.c.b16 %v5339, %v5337
      %v5392 = vpack.c.b16 %v5340, %v5338
      %v5393 = vpack.c.b16 %v5343, %v5341
      %v5394 = vpack.c.b16 %v5344, %v5342
      %v5395 = vpack.c.b16 %v5347, %v5345
      %v5396 = vpack.c.b16 %v5348, %v5346
      %v5397 = vpack.c.b16 %v5351, %v5349
      %v5398 = vpack.c.b16 %v5352, %v5350
      %v5399 = vpack.c.b16 %v5355, %v5353
      %v5400 = vpack.c.b16 %v5356, %v5354
      %v5401 = vpack.c.b16 %v5359, %v5357
      %v5402 = vpack.c.b16 %v5360, %v5358
      %v5403 = vpack.c.b16 %v5363, %v5361
      %v5404 = vpack.c.b16 %v5364, %v5362
      %v5405 = vpack.c.b16 %v5367, %v5365
      %v5406 = vpack.c.b16 %v5368, %v5366
      %v5407 = vpack.c.b16 %v5371, %v5369
      %v5408 = vpack.c.b16 %v5372, %v5370
      %v5409 = vpack.c.b16 %v5375, %v5373
      %v5410 = vpack.c.b16 %v5376, %v5374
      %v5411 = vpack.c.b16 %v5379, %v5377
      %v5412 = vpack.c.b16 %v5380, %v5378
      %5445 = vmatpush.bf16.msra.mxu0 %v5395
      %5446 = vmatpush.bf16.msra.mxu0 %v5393
      %5447 = vmatpush.bf16.msra.mxu0 %v5391
      %5448 = vmatpush.bf16.msra.mxu0 %v5389
      %5449 = vmatpush.bf16.msra.mxu0 %v5387
      %5450 = vmatpush.bf16.msra.mxu0 %v5385
      %5451 = vmatpush.bf16.msra.mxu0 %v5383
      %5452 = vmatpush.bf16.msra.mxu0 %v5381
      %5453 = vmatmul.bf16.gmra.mxu0 %v5087
      %v5454 = vpop.f32.mrf.mxu0
      %v5455 = vadd.f32 %v5281, %v5454
      %v5456 = vpop.f32.mrf.mxu0
      %5457 = vdwg.mxu0
      %5458 = vmatpush.bf16.msra.mxu0 %v5411
      %5459 = vmatpush.bf16.msra.mxu0 %v5409
      %5460 = vmatpush.bf16.msra.mxu0 %v5407
      %5461 = vmatpush.bf16.msra.mxu0 %v5405
      %5462 = vmatpush.bf16.msra.mxu0 %v5403
      %5463 = vmatpush.bf16.msra.mxu0 %v5401
      %5464 = vmatpush.bf16.msra.mxu0 %v5399
      %5465 = vmatpush.bf16.msra.mxu0 %v5397
      %5466 = vmatmul.bf16.gmra.mxu0 %v5088
      %v5467 = vpop.f32.mrf.mxu0
      %v5468 = vadd.f32 %v5455, %v5467
      %v5469 = vpop.f32.mrf.mxu0
      %5470 = vdwg.mxu0
      %5471 = vmatpush.bf16.msra.mxu0 %v5396
      %5472 = vmatpush.bf16.msra.mxu0 %v5394
      %5473 = vmatpush.bf16.msra.mxu0 %v5392
      %5474 = vmatpush.bf16.msra.mxu0 %v5390
      %5475 = vmatpush.bf16.msra.mxu0 %v5388
      %5476 = vmatpush.bf16.msra.mxu0 %v5386
      %5477 = vmatpush.bf16.msra.mxu0 %v5384
      %5478 = vmatpush.bf16.msra.mxu0 %v5382
      %5479 = vmatmul.bf16.gmra.mxu0 %v5087
      %v5480 = vpop.f32.mrf.mxu0
      %v5481 = vadd.f32 %v5282, %v5480
      %v5482 = vpop.f32.mrf.mxu0
      %5483 = vdwg.mxu0
      %5484 = vmatpush.bf16.msra.mxu0 %v5412
      %5485 = vmatpush.bf16.msra.mxu0 %v5410
      %5486 = vmatpush.bf16.msra.mxu0 %v5408
      %5487 = vmatpush.bf16.msra.mxu0 %v5406
      %5488 = vmatpush.bf16.msra.mxu0 %v5404
      %5489 = vmatpush.bf16.msra.mxu0 %v5402
      %5490 = vmatpush.bf16.msra.mxu0 %v5400
      %5491 = vmatpush.bf16.msra.mxu0 %v5398
      %5492 = vmatmul.bf16.gmra.mxu0 %v5088
      %v5493 = vpop.f32.mrf.mxu0
      %v5494 = vadd.f32 %v5481, %v5493
      %v5495 = vpop.f32.mrf.mxu0
      %5496 = vdwg.mxu0
      %vm5497 = vcmp.gt.f32.partialorder %v5468, 0.0
      %vm5498 = vcmp.gt.f32.partialorder %v5494, 0.0
      %v5499 = vmul.f32 %v5468, 0.2
      %v5500 = vmul.f32 %v5494, 0.2
      %v5501 = vsel %vm5497, %v5468, %v5499
      %v5502 = vsel %vm5498, %v5494, %v5500
      %v5503 = vpack.c.bf16 %v5501, %v5501
      %v5504 = vpack.c.bf16 %v5502, %v5502
      %s5505 = scalar_lea.vmem [#allocation12], 768
      %v5506 = vld [vmem:[%s5505] sm:$0xf]
      %v5507 = vld [vmem:[%s5505 + $0x4] sm:$0xf]
      %v5508 = vld [vmem:[%s5505 + $0x8] sm:$0xf]
      %v5509 = vld [vmem:[%s5505 + $0xc] sm:$0xf]
      %v5510 = vld [vmem:[%s5505 + $0x10] sm:$0xf]
      %v5511 = vld [vmem:[%s5505 + $0x14] sm:$0xf]
      %v5512 = vld [vmem:[%s5505 + $0x18] sm:$0xf]
      %v5513 = vld [vmem:[%s5505 + $0x1c] sm:$0xf]
      %v5514 = vld [vmem:[%s5505 + $0x20] sm:$0xf]
      %v5515 = vld [vmem:[%s5505 + $0x24] sm:$0xf]
      %v5516 = vld [vmem:[%s5505 + $0x28] sm:$0xf]
      %v5517 = vld [vmem:[%s5505 + $0x2c] sm:$0xf]
      %v5518 = vld [vmem:[%s5505 + $0x30] sm:$0xf]
      %v5519 = vld [vmem:[%s5505 + $0x34] sm:$0xf]
      %v5520 = vld [vmem:[%s5505 + $0x38] sm:$0xf]
      %v5521 = vld [vmem:[%s5505 + $0x3c] sm:$0xf]
      %v5522 = vld [vmem:[%s5505 + $0x40] sm:$0xf]
      %v5523 = vld [vmem:[%s5505 + $0x44] sm:$0xf]
      %v5524 = vld [vmem:[%s5505 + $0x48] sm:$0xf]
      %v5525 = vld [vmem:[%s5505 + $0x4c] sm:$0xf]
      %v5526 = vld [vmem:[%s5505 + $0x50] sm:$0xf]
      %v5527 = vld [vmem:[%s5505 + $0x54] sm:$0xf]
      %v5528 = vld [vmem:[%s5505 + $0x58] sm:$0xf]
      %v5529 = vld [vmem:[%s5505 + $0x5c] sm:$0xf]
      %v5530 = vld [vmem:[%s5505 + $0x60] sm:$0xf]
      %v5531 = vld [vmem:[%s5505 + $0x64] sm:$0xf]
      %v5532 = vld [vmem:[%s5505 + $0x68] sm:$0xf]
      %v5533 = vld [vmem:[%s5505 + $0x6c] sm:$0xf]
      %v5534 = vld [vmem:[%s5505 + $0x70] sm:$0xf]
      %v5535 = vld [vmem:[%s5505 + $0x74] sm:$0xf]
      %v5536 = vld [vmem:[%s5505 + $0x78] sm:$0xf]
      %v5537 = vld [vmem:[%s5505 + $0x7c] sm:$0xf]
      %v5570 = vunpack.c.l.b16 %v5506
      %v5571 = vunpack.c.l.b16 %v5507
      %v5572 = vunpack.c.l.b16 %v5508
      %v5573 = vunpack.c.l.b16 %v5509
      %v5574 = vunpack.c.l.b16 %v5510
      %v5575 = vunpack.c.l.b16 %v5511
      %v5576 = vunpack.c.l.b16 %v5512
      %v5577 = vunpack.c.l.b16 %v5513
      %v5578 = vunpack.c.l.b16 %v5514
      %v5579 = vunpack.c.l.b16 %v5515
      %v5580 = vunpack.c.l.b16 %v5516
      %v5581 = vunpack.c.l.b16 %v5517
      %v5582 = vunpack.c.l.b16 %v5518
      %v5583 = vunpack.c.l.b16 %v5519
      %v5584 = vunpack.c.l.b16 %v5520
      %v5585 = vunpack.c.l.b16 %v5521
      %v5586 = vunpack.c.l.b16 %v5522
      %v5587 = vunpack.c.l.b16 %v5523
      %v5588 = vunpack.c.l.b16 %v5524
      %v5589 = vunpack.c.l.b16 %v5525
      %v5590 = vunpack.c.l.b16 %v5526
      %v5591 = vunpack.c.l.b16 %v5527
      %v5592 = vunpack.c.l.b16 %v5528
      %v5593 = vunpack.c.l.b16 %v5529
      %v5594 = vunpack.c.l.b16 %v5530
      %v5595 = vunpack.c.l.b16 %v5531
      %v5596 = vunpack.c.l.b16 %v5532
      %v5597 = vunpack.c.l.b16 %v5533
      %v5598 = vunpack.c.l.b16 %v5534
      %v5599 = vunpack.c.l.b16 %v5535
      %v5600 = vunpack.c.l.b16 %v5536
      %v5601 = vunpack.c.l.b16 %v5537
      %v5602 = vpack.c.b16 %v5571, %v5570
      %v5603 = vpack.c.b16 %v5573, %v5572
      %v5604 = vpack.c.b16 %v5575, %v5574
      %v5605 = vpack.c.b16 %v5577, %v5576
      %v5606 = vpack.c.b16 %v5579, %v5578
      %v5607 = vpack.c.b16 %v5581, %v5580
      %v5608 = vpack.c.b16 %v5583, %v5582
      %v5609 = vpack.c.b16 %v5585, %v5584
      %v5610 = vpack.c.b16 %v5587, %v5586
      %v5611 = vpack.c.b16 %v5589, %v5588
      %v5612 = vpack.c.b16 %v5591, %v5590
      %v5613 = vpack.c.b16 %v5593, %v5592
      %v5614 = vpack.c.b16 %v5595, %v5594
      %v5615 = vpack.c.b16 %v5597, %v5596
      %v5616 = vpack.c.b16 %v5599, %v5598
      %v5617 = vpack.c.b16 %v5601, %v5600
      %5634 = vmatpush.bf16.msra.mxu0 %v5609
      %5635 = vmatpush.bf16.msra.mxu0 %v5608
      %5636 = vmatpush.bf16.msra.mxu0 %v5607
      %5637 = vmatpush.bf16.msra.mxu0 %v5606
      %5638 = vmatpush.bf16.msra.mxu0 %v5605
      %5639 = vmatpush.bf16.msra.mxu0 %v5604
      %5640 = vmatpush.bf16.msra.mxu0 %v5603
      %5641 = vmatpush.bf16.msra.mxu0 %v5602
      %5642 = vmatmul.bf16.gmra.mxu0 %v5503
      %v5643 = vpop.f32.mrf.mxu0
      %v5644 = vadd.f32 0.0, %v5643
      %v5645 = vpop.f32.mrf.mxu0
      %5646 = vdwg.mxu0
      %5647 = vmatpush.bf16.msra.mxu0 %v5617
      %5648 = vmatpush.bf16.msra.mxu0 %v5616
      %5649 = vmatpush.bf16.msra.mxu0 %v5615
      %5650 = vmatpush.bf16.msra.mxu0 %v5614
      %5651 = vmatpush.bf16.msra.mxu0 %v5613
      %5652 = vmatpush.bf16.msra.mxu0 %v5612
      %5653 = vmatpush.bf16.msra.mxu0 %v5611
      %5654 = vmatpush.bf16.msra.mxu0 %v5610
      %5655 = vmatmul.bf16.gmra.mxu0 %v5504
      %v5656 = vpop.f32.mrf.mxu0
      %v5657 = vadd.f32 %v5644, %v5656
      %v5658 = vpop.f32.mrf.mxu0
      %5659 = vdwg.mxu0
      %v5660 = vadd.f32 %v5244, %v5657
      %s5661 = scalar_lea.vmem [#allocation9], 1536
      %v5662 = vld [vmem:[%s5661] sm:$0xff]
      %v5663 = vld [vmem:[%s5661 + $0x8] sm:$0xff]
      %v5664 = vld [vmem:[%s5661 + $0x10] sm:$0xff]
      %v5665 = vld [vmem:[%s5661 + $0x18] sm:$0xff]
      %v5666 = vld [vmem:[%s5661 + $0x20] sm:$0xff]
      %v5667 = vld [vmem:[%s5661 + $0x28] sm:$0xff]
      %v5668 = vld [vmem:[%s5661 + $0x30] sm:$0xff]
      %v5669 = vld [vmem:[%s5661 + $0x38] sm:$0xff]
      %v5670 = vld [vmem:[%s5661 + $0x40] sm:$0xff]
      %v5671 = vld [vmem:[%s5661 + $0x48] sm:$0xff]
      %v5672 = vld [vmem:[%s5661 + $0x50] sm:$0xff]
      %v5673 = vld [vmem:[%s5661 + $0x58] sm:$0xff]
      %v5674 = vld [vmem:[%s5661 + $0x60] sm:$0xff]
      %v5675 = vld [vmem:[%s5661 + $0x68] sm:$0xff]
      %v5676 = vld [vmem:[%s5661 + $0x70] sm:$0xff]
      %v5677 = vld [vmem:[%s5661 + $0x78] sm:$0xff]
      %v5678 = vld [vmem:[%s5661 + $0x80] sm:$0xff]
      %v5679 = vld [vmem:[%s5661 + $0x88] sm:$0xff]
      %v5680 = vld [vmem:[%s5661 + $0x90] sm:$0xff]
      %v5681 = vld [vmem:[%s5661 + $0x98] sm:$0xff]
      %v5682 = vld [vmem:[%s5661 + $0xa0] sm:$0xff]
      %v5683 = vld [vmem:[%s5661 + $0xa8] sm:$0xff]
      %v5684 = vld [vmem:[%s5661 + $0xb0] sm:$0xff]
      %v5685 = vld [vmem:[%s5661 + $0xb8] sm:$0xff]
      %v5686 = vld [vmem:[%s5661 + $0xc0] sm:$0xff]
      %v5687 = vld [vmem:[%s5661 + $0xc8] sm:$0xff]
      %v5688 = vld [vmem:[%s5661 + $0xd0] sm:$0xff]
      %v5689 = vld [vmem:[%s5661 + $0xd8] sm:$0xff]
      %v5690 = vld [vmem:[%s5661 + $0xe0] sm:$0xff]
      %v5691 = vld [vmem:[%s5661 + $0xe8] sm:$0xff]
      %v5692 = vld [vmem:[%s5661 + $0xf0] sm:$0xff]
      %v5693 = vld [vmem:[%s5661 + $0xf8] sm:$0xff]
      %s5694 = scalar_lea.vmem [#allocation11], 14
      %v5695 = vld [vmem:[%s5694] sm:$0x3]
      %v5697 = vperm.slane %v5695, 0
      %v5698 = vperm.slane %v5695, 1
      %v5733 = vunpack.c.l.b16 %v5662
      %v5734 = vunpack.c.h.b16 %v5662
      %v5735 = vunpack.c.l.b16 %v5663
      %v5736 = vunpack.c.h.b16 %v5663
      %v5737 = vunpack.c.l.b16 %v5664
      %v5738 = vunpack.c.h.b16 %v5664
      %v5739 = vunpack.c.l.b16 %v5665
      %v5740 = vunpack.c.h.b16 %v5665
      %v5741 = vunpack.c.l.b16 %v5666
      %v5742 = vunpack.c.h.b16 %v5666
      %v5743 = vunpack.c.l.b16 %v5667
      %v5744 = vunpack.c.h.b16 %v5667
      %v5745 = vunpack.c.l.b16 %v5668
      %v5746 = vunpack.c.h.b16 %v5668
      %v5747 = vunpack.c.l.b16 %v5669
      %v5748 = vunpack.c.h.b16 %v5669
      %v5749 = vunpack.c.l.b16 %v5670
      %v5750 = vunpack.c.h.b16 %v5670
      %v5751 = vunpack.c.l.b16 %v5671
      %v5752 = vunpack.c.h.b16 %v5671
      %v5753 = vunpack.c.l.b16 %v5672
      %v5754 = vunpack.c.h.b16 %v5672
      %v5755 = vunpack.c.l.b16 %v5673
      %v5756 = vunpack.c.h.b16 %v5673
      %v5757 = vunpack.c.l.b16 %v5674
      %v5758 = vunpack.c.h.b16 %v5674
      %v5759 = vunpack.c.l.b16 %v5675
      %v5760 = vunpack.c.h.b16 %v5675
      %v5761 = vunpack.c.l.b16 %v5676
      %v5762 = vunpack.c.h.b16 %v5676
      %v5763 = vunpack.c.l.b16 %v5677
      %v5764 = vunpack.c.h.b16 %v5677
      %v5765 = vunpack.c.l.b16 %v5678
      %v5766 = vunpack.c.h.b16 %v5678
      %v5767 = vunpack.c.l.b16 %v5679
      %v5768 = vunpack.c.h.b16 %v5679
      %v5769 = vunpack.c.l.b16 %v5680
      %v5770 = vunpack.c.h.b16 %v5680
      %v5771 = vunpack.c.l.b16 %v5681
      %v5772 = vunpack.c.h.b16 %v5681
      %v5773 = vunpack.c.l.b16 %v5682
      %v5774 = vunpack.c.h.b16 %v5682
      %v5775 = vunpack.c.l.b16 %v5683
      %v5776 = vunpack.c.h.b16 %v5683
      %v5777 = vunpack.c.l.b16 %v5684
      %v5778 = vunpack.c.h.b16 %v5684
      %v5779 = vunpack.c.l.b16 %v5685
      %v5780 = vunpack.c.h.b16 %v5685
      %v5781 = vunpack.c.l.b16 %v5686
      %v5782 = vunpack.c.h.b16 %v5686
      %v5783 = vunpack.c.l.b16 %v5687
      %v5784 = vunpack.c.h.b16 %v5687
      %v5785 = vunpack.c.l.b16 %v5688
      %v5786 = vunpack.c.h.b16 %v5688
      %v5787 = vunpack.c.l.b16 %v5689
      %v5788 = vunpack.c.h.b16 %v5689
      %v5789 = vunpack.c.l.b16 %v5690
      %v5790 = vunpack.c.h.b16 %v5690
      %v5791 = vunpack.c.l.b16 %v5691
      %v5792 = vunpack.c.h.b16 %v5691
      %v5793 = vunpack.c.l.b16 %v5692
      %v5794 = vunpack.c.h.b16 %v5692
      %v5795 = vunpack.c.l.b16 %v5693
      %v5796 = vunpack.c.h.b16 %v5693
      %v5797 = vpack.c.b16 %v5735, %v5733
      %v5798 = vpack.c.b16 %v5736, %v5734
      %v5799 = vpack.c.b16 %v5739, %v5737
      %v5800 = vpack.c.b16 %v5740, %v5738
      %v5801 = vpack.c.b16 %v5743, %v5741
      %v5802 = vpack.c.b16 %v5744, %v5742
      %v5803 = vpack.c.b16 %v5747, %v5745
      %v5804 = vpack.c.b16 %v5748, %v5746
      %v5805 = vpack.c.b16 %v5751, %v5749
      %v5806 = vpack.c.b16 %v5752, %v5750
      %v5807 = vpack.c.b16 %v5755, %v5753
      %v5808 = vpack.c.b16 %v5756, %v5754
      %v5809 = vpack.c.b16 %v5759, %v5757
      %v5810 = vpack.c.b16 %v5760, %v5758
      %v5811 = vpack.c.b16 %v5763, %v5761
      %v5812 = vpack.c.b16 %v5764, %v5762
      %v5813 = vpack.c.b16 %v5767, %v5765
      %v5814 = vpack.c.b16 %v5768, %v5766
      %v5815 = vpack.c.b16 %v5771, %v5769
      %v5816 = vpack.c.b16 %v5772, %v5770
      %v5817 = vpack.c.b16 %v5775, %v5773
      %v5818 = vpack.c.b16 %v5776, %v5774
      %v5819 = vpack.c.b16 %v5779, %v5777
      %v5820 = vpack.c.b16 %v5780, %v5778
      %v5821 = vpack.c.b16 %v5783, %v5781
      %v5822 = vpack.c.b16 %v5784, %v5782
      %v5823 = vpack.c.b16 %v5787, %v5785
      %v5824 = vpack.c.b16 %v5788, %v5786
      %v5825 = vpack.c.b16 %v5791, %v5789
      %v5826 = vpack.c.b16 %v5792, %v5790
      %v5827 = vpack.c.b16 %v5795, %v5793
      %v5828 = vpack.c.b16 %v5796, %v5794
      %5861 = vmatpush.bf16.msra.mxu0 %v5811
      %5862 = vmatpush.bf16.msra.mxu0 %v5809
      %5863 = vmatpush.bf16.msra.mxu0 %v5807
      %5864 = vmatpush.bf16.msra.mxu0 %v5805
      %5865 = vmatpush.bf16.msra.mxu0 %v5803
      %5866 = vmatpush.bf16.msra.mxu0 %v5801
      %5867 = vmatpush.bf16.msra.mxu0 %v5799
      %5868 = vmatpush.bf16.msra.mxu0 %v5797
      %5869 = vmatmul.bf16.gmra.mxu0 %v5503
      %v5870 = vpop.f32.mrf.mxu0
      %v5871 = vadd.f32 %v5697, %v5870
      %v5872 = vpop.f32.mrf.mxu0
      %5873 = vdwg.mxu0
      %5874 = vmatpush.bf16.msra.mxu0 %v5827
      %5875 = vmatpush.bf16.msra.mxu0 %v5825
      %5876 = vmatpush.bf16.msra.mxu0 %v5823
      %5877 = vmatpush.bf16.msra.mxu0 %v5821
      %5878 = vmatpush.bf16.msra.mxu0 %v5819
      %5879 = vmatpush.bf16.msra.mxu0 %v5817
      %5880 = vmatpush.bf16.msra.mxu0 %v5815
      %5881 = vmatpush.bf16.msra.mxu0 %v5813
      %5882 = vmatmul.bf16.gmra.mxu0 %v5504
      %v5883 = vpop.f32.mrf.mxu0
      %v5884 = vadd.f32 %v5871, %v5883
      %v5885 = vpop.f32.mrf.mxu0
      %5886 = vdwg.mxu0
      %5887 = vmatpush.bf16.msra.mxu0 %v5812
      %5888 = vmatpush.bf16.msra.mxu0 %v5810
      %5889 = vmatpush.bf16.msra.mxu0 %v5808
      %5890 = vmatpush.bf16.msra.mxu0 %v5806
      %5891 = vmatpush.bf16.msra.mxu0 %v5804
      %5892 = vmatpush.bf16.msra.mxu0 %v5802
      %5893 = vmatpush.bf16.msra.mxu0 %v5800
      %5894 = vmatpush.bf16.msra.mxu0 %v5798
      %5895 = vmatmul.bf16.gmra.mxu0 %v5503
      %v5896 = vpop.f32.mrf.mxu0
      %v5897 = vadd.f32 %v5698, %v5896
      %v5898 = vpop.f32.mrf.mxu0
      %5899 = vdwg.mxu0
      %5900 = vmatpush.bf16.msra.mxu0 %v5828
      %5901 = vmatpush.bf16.msra.mxu0 %v5826
      %5902 = vmatpush.bf16.msra.mxu0 %v5824
      %5903 = vmatpush.bf16.msra.mxu0 %v5822
      %5904 = vmatpush.bf16.msra.mxu0 %v5820
      %5905 = vmatpush.bf16.msra.mxu0 %v5818
      %5906 = vmatpush.bf16.msra.mxu0 %v5816
      %5907 = vmatpush.bf16.msra.mxu0 %v5814
      %5908 = vmatmul.bf16.gmra.mxu0 %v5504
      %v5909 = vpop.f32.mrf.mxu0
      %v5910 = vadd.f32 %v5897, %v5909
      %v5911 = vpop.f32.mrf.mxu0
      %5912 = vdwg.mxu0
      %vm5913 = vcmp.gt.f32.partialorder %v5884, 0.0
      %vm5914 = vcmp.gt.f32.partialorder %v5910, 0.0
      %v5915 = vmul.f32 %v5884, 0.2
      %v5916 = vmul.f32 %v5910, 0.2
      %v5917 = vsel %vm5913, %v5884, %v5915
      %v5918 = vsel %vm5914, %v5910, %v5916
      %v5919 = vpack.c.bf16 %v5917, %v5917
      %v5920 = vpack.c.bf16 %v5918, %v5918
      %s5921 = scalar_lea.vmem [#allocation12], 896
      %v5922 = vld [vmem:[%s5921] sm:$0xf]
      %v5923 = vld [vmem:[%s5921 + $0x4] sm:$0xf]
      %v5924 = vld [vmem:[%s5921 + $0x8] sm:$0xf]
      %v5925 = vld [vmem:[%s5921 + $0xc] sm:$0xf]
      %v5926 = vld [vmem:[%s5921 + $0x10] sm:$0xf]
      %v5927 = vld [vmem:[%s5921 + $0x14] sm:$0xf]
      %v5928 = vld [vmem:[%s5921 + $0x18] sm:$0xf]
      %v5929 = vld [vmem:[%s5921 + $0x1c] sm:$0xf]
      %v5930 = vld [vmem:[%s5921 + $0x20] sm:$0xf]
      %v5931 = vld [vmem:[%s5921 + $0x24] sm:$0xf]
      %v5932 = vld [vmem:[%s5921 + $0x28] sm:$0xf]
      %v5933 = vld [vmem:[%s5921 + $0x2c] sm:$0xf]
      %v5934 = vld [vmem:[%s5921 + $0x30] sm:$0xf]
      %v5935 = vld [vmem:[%s5921 + $0x34] sm:$0xf]
      %v5936 = vld [vmem:[%s5921 + $0x38] sm:$0xf]
      %v5937 = vld [vmem:[%s5921 + $0x3c] sm:$0xf]
      %v5938 = vld [vmem:[%s5921 + $0x40] sm:$0xf]
      %v5939 = vld [vmem:[%s5921 + $0x44] sm:$0xf]
      %v5940 = vld [vmem:[%s5921 + $0x48] sm:$0xf]
      %v5941 = vld [vmem:[%s5921 + $0x4c] sm:$0xf]
      %v5942 = vld [vmem:[%s5921 + $0x50] sm:$0xf]
      %v5943 = vld [vmem:[%s5921 + $0x54] sm:$0xf]
      %v5944 = vld [vmem:[%s5921 + $0x58] sm:$0xf]
      %v5945 = vld [vmem:[%s5921 + $0x5c] sm:$0xf]
      %v5946 = vld [vmem:[%s5921 + $0x60] sm:$0xf]
      %v5947 = vld [vmem:[%s5921 + $0x64] sm:$0xf]
      %v5948 = vld [vmem:[%s5921 + $0x68] sm:$0xf]
      %v5949 = vld [vmem:[%s5921 + $0x6c] sm:$0xf]
      %v5950 = vld [vmem:[%s5921 + $0x70] sm:$0xf]
      %v5951 = vld [vmem:[%s5921 + $0x74] sm:$0xf]
      %v5952 = vld [vmem:[%s5921 + $0x78] sm:$0xf]
      %v5953 = vld [vmem:[%s5921 + $0x7c] sm:$0xf]
      %v5986 = vunpack.c.l.b16 %v5922
      %v5987 = vunpack.c.l.b16 %v5923
      %v5988 = vunpack.c.l.b16 %v5924
      %v5989 = vunpack.c.l.b16 %v5925
      %v5990 = vunpack.c.l.b16 %v5926
      %v5991 = vunpack.c.l.b16 %v5927
      %v5992 = vunpack.c.l.b16 %v5928
      %v5993 = vunpack.c.l.b16 %v5929
      %v5994 = vunpack.c.l.b16 %v5930
      %v5995 = vunpack.c.l.b16 %v5931
      %v5996 = vunpack.c.l.b16 %v5932
      %v5997 = vunpack.c.l.b16 %v5933
      %v5998 = vunpack.c.l.b16 %v5934
      %v5999 = vunpack.c.l.b16 %v5935
      %v6000 = vunpack.c.l.b16 %v5936
      %v6001 = vunpack.c.l.b16 %v5937
      %v6002 = vunpack.c.l.b16 %v5938
      %v6003 = vunpack.c.l.b16 %v5939
      %v6004 = vunpack.c.l.b16 %v5940
      %v6005 = vunpack.c.l.b16 %v5941
      %v6006 = vunpack.c.l.b16 %v5942
      %v6007 = vunpack.c.l.b16 %v5943
      %v6008 = vunpack.c.l.b16 %v5944
      %v6009 = vunpack.c.l.b16 %v5945
      %v6010 = vunpack.c.l.b16 %v5946
      %v6011 = vunpack.c.l.b16 %v5947
      %v6012 = vunpack.c.l.b16 %v5948
      %v6013 = vunpack.c.l.b16 %v5949
      %v6014 = vunpack.c.l.b16 %v5950
      %v6015 = vunpack.c.l.b16 %v5951
      %v6016 = vunpack.c.l.b16 %v5952
      %v6017 = vunpack.c.l.b16 %v5953
      %v6018 = vpack.c.b16 %v5987, %v5986
      %v6019 = vpack.c.b16 %v5989, %v5988
      %v6020 = vpack.c.b16 %v5991, %v5990
      %v6021 = vpack.c.b16 %v5993, %v5992
      %v6022 = vpack.c.b16 %v5995, %v5994
      %v6023 = vpack.c.b16 %v5997, %v5996
      %v6024 = vpack.c.b16 %v5999, %v5998
      %v6025 = vpack.c.b16 %v6001, %v6000
      %v6026 = vpack.c.b16 %v6003, %v6002
      %v6027 = vpack.c.b16 %v6005, %v6004
      %v6028 = vpack.c.b16 %v6007, %v6006
      %v6029 = vpack.c.b16 %v6009, %v6008
      %v6030 = vpack.c.b16 %v6011, %v6010
      %v6031 = vpack.c.b16 %v6013, %v6012
      %v6032 = vpack.c.b16 %v6015, %v6014
      %v6033 = vpack.c.b16 %v6017, %v6016
      %6050 = vmatpush.bf16.msra.mxu0 %v6025
      %6051 = vmatpush.bf16.msra.mxu0 %v6024
      %6052 = vmatpush.bf16.msra.mxu0 %v6023
      %6053 = vmatpush.bf16.msra.mxu0 %v6022
      %6054 = vmatpush.bf16.msra.mxu0 %v6021
      %6055 = vmatpush.bf16.msra.mxu0 %v6020
      %6056 = vmatpush.bf16.msra.mxu0 %v6019
      %6057 = vmatpush.bf16.msra.mxu0 %v6018
      %6058 = vmatmul.bf16.gmra.mxu0 %v5919
      %v6059 = vpop.f32.mrf.mxu0
      %v6060 = vadd.f32 0.0, %v6059
      %v6061 = vpop.f32.mrf.mxu0
      %6062 = vdwg.mxu0
      %6063 = vmatpush.bf16.msra.mxu0 %v6033
      %6064 = vmatpush.bf16.msra.mxu0 %v6032
      %6065 = vmatpush.bf16.msra.mxu0 %v6031
      %6066 = vmatpush.bf16.msra.mxu0 %v6030
      %6067 = vmatpush.bf16.msra.mxu0 %v6029
      %6068 = vmatpush.bf16.msra.mxu0 %v6028
      %6069 = vmatpush.bf16.msra.mxu0 %v6027
      %6070 = vmatpush.bf16.msra.mxu0 %v6026
      %6071 = vmatmul.bf16.gmra.mxu0 %v5920
      %v6072 = vpop.f32.mrf.mxu0
      %v6073 = vadd.f32 %v6060, %v6072
      %v6074 = vpop.f32.mrf.mxu0
      %6075 = vdwg.mxu0
      %v6076 = vadd.f32 %v5660, %v6073
      %s6077 = scalar_lea.vmem [#allocation9], 1792
      %v6078 = vld [vmem:[%s6077] sm:$0xff]
      %v6079 = vld [vmem:[%s6077 + $0x8] sm:$0xff]
      %v6080 = vld [vmem:[%s6077 + $0x10] sm:$0xff]
      %v6081 = vld [vmem:[%s6077 + $0x18] sm:$0xff]
      %v6082 = vld [vmem:[%s6077 + $0x20] sm:$0xff]
      %v6083 = vld [vmem:[%s6077 + $0x28] sm:$0xff]
      %v6084 = vld [vmem:[%s6077 + $0x30] sm:$0xff]
      %v6085 = vld [vmem:[%s6077 + $0x38] sm:$0xff]
      %v6086 = vld [vmem:[%s6077 + $0x40] sm:$0xff]
      %v6087 = vld [vmem:[%s6077 + $0x48] sm:$0xff]
      %v6088 = vld [vmem:[%s6077 + $0x50] sm:$0xff]
      %v6089 = vld [vmem:[%s6077 + $0x58] sm:$0xff]
      %v6090 = vld [vmem:[%s6077 + $0x60] sm:$0xff]
      %v6091 = vld [vmem:[%s6077 + $0x68] sm:$0xff]
      %v6092 = vld [vmem:[%s6077 + $0x70] sm:$0xff]
      %v6093 = vld [vmem:[%s6077 + $0x78] sm:$0xff]
      %v6094 = vld [vmem:[%s6077 + $0x80] sm:$0xff]
      %v6095 = vld [vmem:[%s6077 + $0x88] sm:$0xff]
      %v6096 = vld [vmem:[%s6077 + $0x90] sm:$0xff]
      %v6097 = vld [vmem:[%s6077 + $0x98] sm:$0xff]
      %v6098 = vld [vmem:[%s6077 + $0xa0] sm:$0xff]
      %v6099 = vld [vmem:[%s6077 + $0xa8] sm:$0xff]
      %v6100 = vld [vmem:[%s6077 + $0xb0] sm:$0xff]
      %v6101 = vld [vmem:[%s6077 + $0xb8] sm:$0xff]
      %v6102 = vld [vmem:[%s6077 + $0xc0] sm:$0xff]
      %v6103 = vld [vmem:[%s6077 + $0xc8] sm:$0xff]
      %v6104 = vld [vmem:[%s6077 + $0xd0] sm:$0xff]
      %v6105 = vld [vmem:[%s6077 + $0xd8] sm:$0xff]
      %v6106 = vld [vmem:[%s6077 + $0xe0] sm:$0xff]
      %v6107 = vld [vmem:[%s6077 + $0xe8] sm:$0xff]
      %v6108 = vld [vmem:[%s6077 + $0xf0] sm:$0xff]
      %v6109 = vld [vmem:[%s6077 + $0xf8] sm:$0xff]
      %s6110 = scalar_lea.vmem [#allocation11], 16
      %v6111 = vld [vmem:[%s6110] sm:$0x3]
      %v6113 = vperm.slane %v6111, 0
      %v6114 = vperm.slane %v6111, 1
      %v6149 = vunpack.c.l.b16 %v6078
      %v6150 = vunpack.c.h.b16 %v6078
      %v6151 = vunpack.c.l.b16 %v6079
      %v6152 = vunpack.c.h.b16 %v6079
      %v6153 = vunpack.c.l.b16 %v6080
      %v6154 = vunpack.c.h.b16 %v6080
      %v6155 = vunpack.c.l.b16 %v6081
      %v6156 = vunpack.c.h.b16 %v6081
      %v6157 = vunpack.c.l.b16 %v6082
      %v6158 = vunpack.c.h.b16 %v6082
      %v6159 = vunpack.c.l.b16 %v6083
      %v6160 = vunpack.c.h.b16 %v6083
      %v6161 = vunpack.c.l.b16 %v6084
      %v6162 = vunpack.c.h.b16 %v6084
      %v6163 = vunpack.c.l.b16 %v6085
      %v6164 = vunpack.c.h.b16 %v6085
      %v6165 = vunpack.c.l.b16 %v6086
      %v6166 = vunpack.c.h.b16 %v6086
      %v6167 = vunpack.c.l.b16 %v6087
      %v6168 = vunpack.c.h.b16 %v6087
      %v6169 = vunpack.c.l.b16 %v6088
      %v6170 = vunpack.c.h.b16 %v6088
      %v6171 = vunpack.c.l.b16 %v6089
      %v6172 = vunpack.c.h.b16 %v6089
      %v6173 = vunpack.c.l.b16 %v6090
      %v6174 = vunpack.c.h.b16 %v6090
      %v6175 = vunpack.c.l.b16 %v6091
      %v6176 = vunpack.c.h.b16 %v6091
      %v6177 = vunpack.c.l.b16 %v6092
      %v6178 = vunpack.c.h.b16 %v6092
      %v6179 = vunpack.c.l.b16 %v6093
      %v6180 = vunpack.c.h.b16 %v6093
      %v6181 = vunpack.c.l.b16 %v6094
      %v6182 = vunpack.c.h.b16 %v6094
      %v6183 = vunpack.c.l.b16 %v6095
      %v6184 = vunpack.c.h.b16 %v6095
      %v6185 = vunpack.c.l.b16 %v6096
      %v6186 = vunpack.c.h.b16 %v6096
      %v6187 = vunpack.c.l.b16 %v6097
      %v6188 = vunpack.c.h.b16 %v6097
      %v6189 = vunpack.c.l.b16 %v6098
      %v6190 = vunpack.c.h.b16 %v6098
      %v6191 = vunpack.c.l.b16 %v6099
      %v6192 = vunpack.c.h.b16 %v6099
      %v6193 = vunpack.c.l.b16 %v6100
      %v6194 = vunpack.c.h.b16 %v6100
      %v6195 = vunpack.c.l.b16 %v6101
      %v6196 = vunpack.c.h.b16 %v6101
      %v6197 = vunpack.c.l.b16 %v6102
      %v6198 = vunpack.c.h.b16 %v6102
      %v6199 = vunpack.c.l.b16 %v6103
      %v6200 = vunpack.c.h.b16 %v6103
      %v6201 = vunpack.c.l.b16 %v6104
      %v6202 = vunpack.c.h.b16 %v6104
      %v6203 = vunpack.c.l.b16 %v6105
      %v6204 = vunpack.c.h.b16 %v6105
      %v6205 = vunpack.c.l.b16 %v6106
      %v6206 = vunpack.c.h.b16 %v6106
      %v6207 = vunpack.c.l.b16 %v6107
      %v6208 = vunpack.c.h.b16 %v6107
      %v6209 = vunpack.c.l.b16 %v6108
      %v6210 = vunpack.c.h.b16 %v6108
      %v6211 = vunpack.c.l.b16 %v6109
      %v6212 = vunpack.c.h.b16 %v6109
      %v6213 = vpack.c.b16 %v6151, %v6149
      %v6214 = vpack.c.b16 %v6152, %v6150
      %v6215 = vpack.c.b16 %v6155, %v6153
      %v6216 = vpack.c.b16 %v6156, %v6154
      %v6217 = vpack.c.b16 %v6159, %v6157
      %v6218 = vpack.c.b16 %v6160, %v6158
      %v6219 = vpack.c.b16 %v6163, %v6161
      %v6220 = vpack.c.b16 %v6164, %v6162
      %v6221 = vpack.c.b16 %v6167, %v6165
      %v6222 = vpack.c.b16 %v6168, %v6166
      %v6223 = vpack.c.b16 %v6171, %v6169
      %v6224 = vpack.c.b16 %v6172, %v6170
      %v6225 = vpack.c.b16 %v6175, %v6173
      %v6226 = vpack.c.b16 %v6176, %v6174
      %v6227 = vpack.c.b16 %v6179, %v6177
      %v6228 = vpack.c.b16 %v6180, %v6178
      %v6229 = vpack.c.b16 %v6183, %v6181
      %v6230 = vpack.c.b16 %v6184, %v6182
      %v6231 = vpack.c.b16 %v6187, %v6185
      %v6232 = vpack.c.b16 %v6188, %v6186
      %v6233 = vpack.c.b16 %v6191, %v6189
      %v6234 = vpack.c.b16 %v6192, %v6190
      %v6235 = vpack.c.b16 %v6195, %v6193
      %v6236 = vpack.c.b16 %v6196, %v6194
      %v6237 = vpack.c.b16 %v6199, %v6197
      %v6238 = vpack.c.b16 %v6200, %v6198
      %v6239 = vpack.c.b16 %v6203, %v6201
      %v6240 = vpack.c.b16 %v6204, %v6202
      %v6241 = vpack.c.b16 %v6207, %v6205
      %v6242 = vpack.c.b16 %v6208, %v6206
      %v6243 = vpack.c.b16 %v6211, %v6209
      %v6244 = vpack.c.b16 %v6212, %v6210
      %6277 = vmatpush.bf16.msra.mxu0 %v6227
      %6278 = vmatpush.bf16.msra.mxu0 %v6225
      %6279 = vmatpush.bf16.msra.mxu0 %v6223
      %6280 = vmatpush.bf16.msra.mxu0 %v6221
      %6281 = vmatpush.bf16.msra.mxu0 %v6219
      %6282 = vmatpush.bf16.msra.mxu0 %v6217
      %6283 = vmatpush.bf16.msra.mxu0 %v6215
      %6284 = vmatpush.bf16.msra.mxu0 %v6213
      %6285 = vmatmul.bf16.gmra.mxu0 %v5919
      %v6286 = vpop.f32.mrf.mxu0
      %v6287 = vadd.f32 %v6113, %v6286
      %v6288 = vpop.f32.mrf.mxu0
      %6289 = vdwg.mxu0
      %6290 = vmatpush.bf16.msra.mxu0 %v6243
      %6291 = vmatpush.bf16.msra.mxu0 %v6241
      %6292 = vmatpush.bf16.msra.mxu0 %v6239
      %6293 = vmatpush.bf16.msra.mxu0 %v6237
      %6294 = vmatpush.bf16.msra.mxu0 %v6235
      %6295 = vmatpush.bf16.msra.mxu0 %v6233
      %6296 = vmatpush.bf16.msra.mxu0 %v6231
      %6297 = vmatpush.bf16.msra.mxu0 %v6229
      %6298 = vmatmul.bf16.gmra.mxu0 %v5920
      %v6299 = vpop.f32.mrf.mxu0
      %v6300 = vadd.f32 %v6287, %v6299
      %v6301 = vpop.f32.mrf.mxu0
      %6302 = vdwg.mxu0
      %6303 = vmatpush.bf16.msra.mxu0 %v6228
      %6304 = vmatpush.bf16.msra.mxu0 %v6226
      %6305 = vmatpush.bf16.msra.mxu0 %v6224
      %6306 = vmatpush.bf16.msra.mxu0 %v6222
      %6307 = vmatpush.bf16.msra.mxu0 %v6220
      %6308 = vmatpush.bf16.msra.mxu0 %v6218
      %6309 = vmatpush.bf16.msra.mxu0 %v6216
      %6310 = vmatpush.bf16.msra.mxu0 %v6214
      %6311 = vmatmul.bf16.gmra.mxu0 %v5919
      %v6312 = vpop.f32.mrf.mxu0
      %v6313 = vadd.f32 %v6114, %v6312
      %v6314 = vpop.f32.mrf.mxu0
      %6315 = vdwg.mxu0
      %6316 = vmatpush.bf16.msra.mxu0 %v6244
      %6317 = vmatpush.bf16.msra.mxu0 %v6242
      %6318 = vmatpush.bf16.msra.mxu0 %v6240
      %6319 = vmatpush.bf16.msra.mxu0 %v6238
      %6320 = vmatpush.bf16.msra.mxu0 %v6236
      %6321 = vmatpush.bf16.msra.mxu0 %v6234
      %6322 = vmatpush.bf16.msra.mxu0 %v6232
      %6323 = vmatpush.bf16.msra.mxu0 %v6230
      %6324 = vmatmul.bf16.gmra.mxu0 %v5920
      %v6325 = vpop.f32.mrf.mxu0
      %v6326 = vadd.f32 %v6313, %v6325
      %v6327 = vpop.f32.mrf.mxu0
      %6328 = vdwg.mxu0
      %vm6329 = vcmp.gt.f32.partialorder %v6300, 0.0
      %vm6330 = vcmp.gt.f32.partialorder %v6326, 0.0
      %v6331 = vmul.f32 %v6300, 0.2
      %v6332 = vmul.f32 %v6326, 0.2
      %v6333 = vsel %vm6329, %v6300, %v6331
      %v6334 = vsel %vm6330, %v6326, %v6332
      %v6335 = vpack.c.bf16 %v6333, %v6333
      %v6336 = vpack.c.bf16 %v6334, %v6334
      %s6337 = scalar_lea.vmem [#allocation12], 1024
      %v6338 = vld [vmem:[%s6337] sm:$0xf]
      %v6339 = vld [vmem:[%s6337 + $0x4] sm:$0xf]
      %v6340 = vld [vmem:[%s6337 + $0x8] sm:$0xf]
      %v6341 = vld [vmem:[%s6337 + $0xc] sm:$0xf]
      %v6342 = vld [vmem:[%s6337 + $0x10] sm:$0xf]
      %v6343 = vld [vmem:[%s6337 + $0x14] sm:$0xf]
      %v6344 = vld [vmem:[%s6337 + $0x18] sm:$0xf]
      %v6345 = vld [vmem:[%s6337 + $0x1c] sm:$0xf]
      %v6346 = vld [vmem:[%s6337 + $0x20] sm:$0xf]
      %v6347 = vld [vmem:[%s6337 + $0x24] sm:$0xf]
      %v6348 = vld [vmem:[%s6337 + $0x28] sm:$0xf]
      %v6349 = vld [vmem:[%s6337 + $0x2c] sm:$0xf]
      %v6350 = vld [vmem:[%s6337 + $0x30] sm:$0xf]
      %v6351 = vld [vmem:[%s6337 + $0x34] sm:$0xf]
      %v6352 = vld [vmem:[%s6337 + $0x38] sm:$0xf]
      %v6353 = vld [vmem:[%s6337 + $0x3c] sm:$0xf]
      %v6354 = vld [vmem:[%s6337 + $0x40] sm:$0xf]
      %v6355 = vld [vmem:[%s6337 + $0x44] sm:$0xf]
      %v6356 = vld [vmem:[%s6337 + $0x48] sm:$0xf]
      %v6357 = vld [vmem:[%s6337 + $0x4c] sm:$0xf]
      %v6358 = vld [vmem:[%s6337 + $0x50] sm:$0xf]
      %v6359 = vld [vmem:[%s6337 + $0x54] sm:$0xf]
      %v6360 = vld [vmem:[%s6337 + $0x58] sm:$0xf]
      %v6361 = vld [vmem:[%s6337 + $0x5c] sm:$0xf]
      %v6362 = vld [vmem:[%s6337 + $0x60] sm:$0xf]
      %v6363 = vld [vmem:[%s6337 + $0x64] sm:$0xf]
      %v6364 = vld [vmem:[%s6337 + $0x68] sm:$0xf]
      %v6365 = vld [vmem:[%s6337 + $0x6c] sm:$0xf]
      %v6366 = vld [vmem:[%s6337 + $0x70] sm:$0xf]
      %v6367 = vld [vmem:[%s6337 + $0x74] sm:$0xf]
      %v6368 = vld [vmem:[%s6337 + $0x78] sm:$0xf]
      %v6369 = vld [vmem:[%s6337 + $0x7c] sm:$0xf]
      %v6402 = vunpack.c.l.b16 %v6338
      %v6403 = vunpack.c.l.b16 %v6339
      %v6404 = vunpack.c.l.b16 %v6340
      %v6405 = vunpack.c.l.b16 %v6341
      %v6406 = vunpack.c.l.b16 %v6342
      %v6407 = vunpack.c.l.b16 %v6343
      %v6408 = vunpack.c.l.b16 %v6344
      %v6409 = vunpack.c.l.b16 %v6345
      %v6410 = vunpack.c.l.b16 %v6346
      %v6411 = vunpack.c.l.b16 %v6347
      %v6412 = vunpack.c.l.b16 %v6348
      %v6413 = vunpack.c.l.b16 %v6349
      %v6414 = vunpack.c.l.b16 %v6350
      %v6415 = vunpack.c.l.b16 %v6351
      %v6416 = vunpack.c.l.b16 %v6352
      %v6417 = vunpack.c.l.b16 %v6353
      %v6418 = vunpack.c.l.b16 %v6354
      %v6419 = vunpack.c.l.b16 %v6355
      %v6420 = vunpack.c.l.b16 %v6356
      %v6421 = vunpack.c.l.b16 %v6357
      %v6422 = vunpack.c.l.b16 %v6358
      %v6423 = vunpack.c.l.b16 %v6359
      %v6424 = vunpack.c.l.b16 %v6360
      %v6425 = vunpack.c.l.b16 %v6361
      %v6426 = vunpack.c.l.b16 %v6362
      %v6427 = vunpack.c.l.b16 %v6363
      %v6428 = vunpack.c.l.b16 %v6364
      %v6429 = vunpack.c.l.b16 %v6365
      %v6430 = vunpack.c.l.b16 %v6366
      %v6431 = vunpack.c.l.b16 %v6367
      %v6432 = vunpack.c.l.b16 %v6368
      %v6433 = vunpack.c.l.b16 %v6369
      %v6434 = vpack.c.b16 %v6403, %v6402
      %v6435 = vpack.c.b16 %v6405, %v6404
      %v6436 = vpack.c.b16 %v6407, %v6406
      %v6437 = vpack.c.b16 %v6409, %v6408
      %v6438 = vpack.c.b16 %v6411, %v6410
      %v6439 = vpack.c.b16 %v6413, %v6412
      %v6440 = vpack.c.b16 %v6415, %v6414
      %v6441 = vpack.c.b16 %v6417, %v6416
      %v6442 = vpack.c.b16 %v6419, %v6418
      %v6443 = vpack.c.b16 %v6421, %v6420
      %v6444 = vpack.c.b16 %v6423, %v6422
      %v6445 = vpack.c.b16 %v6425, %v6424
      %v6446 = vpack.c.b16 %v6427, %v6426
      %v6447 = vpack.c.b16 %v6429, %v6428
      %v6448 = vpack.c.b16 %v6431, %v6430
      %v6449 = vpack.c.b16 %v6433, %v6432
      %6466 = vmatpush.bf16.msra.mxu0 %v6441
      %6467 = vmatpush.bf16.msra.mxu0 %v6440
      %6468 = vmatpush.bf16.msra.mxu0 %v6439
      %6469 = vmatpush.bf16.msra.mxu0 %v6438
      %6470 = vmatpush.bf16.msra.mxu0 %v6437
      %6471 = vmatpush.bf16.msra.mxu0 %v6436
      %6472 = vmatpush.bf16.msra.mxu0 %v6435
      %6473 = vmatpush.bf16.msra.mxu0 %v6434
      %6474 = vmatmul.bf16.gmra.mxu0 %v6335
      %v6475 = vpop.f32.mrf.mxu0
      %v6476 = vadd.f32 0.0, %v6475
      %v6477 = vpop.f32.mrf.mxu0
      %6478 = vdwg.mxu0
      %6479 = vmatpush.bf16.msra.mxu0 %v6449
      %6480 = vmatpush.bf16.msra.mxu0 %v6448
      %6481 = vmatpush.bf16.msra.mxu0 %v6447
      %6482 = vmatpush.bf16.msra.mxu0 %v6446
      %6483 = vmatpush.bf16.msra.mxu0 %v6445
      %6484 = vmatpush.bf16.msra.mxu0 %v6444
      %6485 = vmatpush.bf16.msra.mxu0 %v6443
      %6486 = vmatpush.bf16.msra.mxu0 %v6442
      %6487 = vmatmul.bf16.gmra.mxu0 %v6336
      %v6488 = vpop.f32.mrf.mxu0
      %v6489 = vadd.f32 %v6476, %v6488
      %v6490 = vpop.f32.mrf.mxu0
      %6491 = vdwg.mxu0
      %v6492 = vadd.f32 %v6076, %v6489
      %s6493 = scalar_lea.vmem [#allocation9], 2048
      %v6494 = vld [vmem:[%s6493] sm:$0xff]
      %v6495 = vld [vmem:[%s6493 + $0x8] sm:$0xff]
      %v6496 = vld [vmem:[%s6493 + $0x10] sm:$0xff]
      %v6497 = vld [vmem:[%s6493 + $0x18] sm:$0xff]
      %v6498 = vld [vmem:[%s6493 + $0x20] sm:$0xff]
      %v6499 = vld [vmem:[%s6493 + $0x28] sm:$0xff]
      %v6500 = vld [vmem:[%s6493 + $0x30] sm:$0xff]
      %v6501 = vld [vmem:[%s6493 + $0x38] sm:$0xff]
      %v6502 = vld [vmem:[%s6493 + $0x40] sm:$0xff]
      %v6503 = vld [vmem:[%s6493 + $0x48] sm:$0xff]
      %v6504 = vld [vmem:[%s6493 + $0x50] sm:$0xff]
      %v6505 = vld [vmem:[%s6493 + $0x58] sm:$0xff]
      %v6506 = vld [vmem:[%s6493 + $0x60] sm:$0xff]
      %v6507 = vld [vmem:[%s6493 + $0x68] sm:$0xff]
      %v6508 = vld [vmem:[%s6493 + $0x70] sm:$0xff]
      %v6509 = vld [vmem:[%s6493 + $0x78] sm:$0xff]
      %v6510 = vld [vmem:[%s6493 + $0x80] sm:$0xff]
      %v6511 = vld [vmem:[%s6493 + $0x88] sm:$0xff]
      %v6512 = vld [vmem:[%s6493 + $0x90] sm:$0xff]
      %v6513 = vld [vmem:[%s6493 + $0x98] sm:$0xff]
      %v6514 = vld [vmem:[%s6493 + $0xa0] sm:$0xff]
      %v6515 = vld [vmem:[%s6493 + $0xa8] sm:$0xff]
      %v6516 = vld [vmem:[%s6493 + $0xb0] sm:$0xff]
      %v6517 = vld [vmem:[%s6493 + $0xb8] sm:$0xff]
      %v6518 = vld [vmem:[%s6493 + $0xc0] sm:$0xff]
      %v6519 = vld [vmem:[%s6493 + $0xc8] sm:$0xff]
      %v6520 = vld [vmem:[%s6493 + $0xd0] sm:$0xff]
      %v6521 = vld [vmem:[%s6493 + $0xd8] sm:$0xff]
      %v6522 = vld [vmem:[%s6493 + $0xe0] sm:$0xff]
      %v6523 = vld [vmem:[%s6493 + $0xe8] sm:$0xff]
      %v6524 = vld [vmem:[%s6493 + $0xf0] sm:$0xff]
      %v6525 = vld [vmem:[%s6493 + $0xf8] sm:$0xff]
      %s6526 = scalar_lea.vmem [#allocation11], 18
      %v6527 = vld [vmem:[%s6526] sm:$0x3]
      %v6529 = vperm.slane %v6527, 0
      %v6530 = vperm.slane %v6527, 1
      %v6565 = vunpack.c.l.b16 %v6494
      %v6566 = vunpack.c.h.b16 %v6494
      %v6567 = vunpack.c.l.b16 %v6495
      %v6568 = vunpack.c.h.b16 %v6495
      %v6569 = vunpack.c.l.b16 %v6496
      %v6570 = vunpack.c.h.b16 %v6496
      %v6571 = vunpack.c.l.b16 %v6497
      %v6572 = vunpack.c.h.b16 %v6497
      %v6573 = vunpack.c.l.b16 %v6498
      %v6574 = vunpack.c.h.b16 %v6498
      %v6575 = vunpack.c.l.b16 %v6499
      %v6576 = vunpack.c.h.b16 %v6499
      %v6577 = vunpack.c.l.b16 %v6500
      %v6578 = vunpack.c.h.b16 %v6500
      %v6579 = vunpack.c.l.b16 %v6501
      %v6580 = vunpack.c.h.b16 %v6501
      %v6581 = vunpack.c.l.b16 %v6502
      %v6582 = vunpack.c.h.b16 %v6502
      %v6583 = vunpack.c.l.b16 %v6503
      %v6584 = vunpack.c.h.b16 %v6503
      %v6585 = vunpack.c.l.b16 %v6504
      %v6586 = vunpack.c.h.b16 %v6504
      %v6587 = vunpack.c.l.b16 %v6505
      %v6588 = vunpack.c.h.b16 %v6505
      %v6589 = vunpack.c.l.b16 %v6506
      %v6590 = vunpack.c.h.b16 %v6506
      %v6591 = vunpack.c.l.b16 %v6507
      %v6592 = vunpack.c.h.b16 %v6507
      %v6593 = vunpack.c.l.b16 %v6508
      %v6594 = vunpack.c.h.b16 %v6508
      %v6595 = vunpack.c.l.b16 %v6509
      %v6596 = vunpack.c.h.b16 %v6509
      %v6597 = vunpack.c.l.b16 %v6510
      %v6598 = vunpack.c.h.b16 %v6510
      %v6599 = vunpack.c.l.b16 %v6511
      %v6600 = vunpack.c.h.b16 %v6511
      %v6601 = vunpack.c.l.b16 %v6512
      %v6602 = vunpack.c.h.b16 %v6512
      %v6603 = vunpack.c.l.b16 %v6513
      %v6604 = vunpack.c.h.b16 %v6513
      %v6605 = vunpack.c.l.b16 %v6514
      %v6606 = vunpack.c.h.b16 %v6514
      %v6607 = vunpack.c.l.b16 %v6515
      %v6608 = vunpack.c.h.b16 %v6515
      %v6609 = vunpack.c.l.b16 %v6516
      %v6610 = vunpack.c.h.b16 %v6516
      %v6611 = vunpack.c.l.b16 %v6517
      %v6612 = vunpack.c.h.b16 %v6517
      %v6613 = vunpack.c.l.b16 %v6518
      %v6614 = vunpack.c.h.b16 %v6518
      %v6615 = vunpack.c.l.b16 %v6519
      %v6616 = vunpack.c.h.b16 %v6519
      %v6617 = vunpack.c.l.b16 %v6520
      %v6618 = vunpack.c.h.b16 %v6520
      %v6619 = vunpack.c.l.b16 %v6521
      %v6620 = vunpack.c.h.b16 %v6521
      %v6621 = vunpack.c.l.b16 %v6522
      %v6622 = vunpack.c.h.b16 %v6522
      %v6623 = vunpack.c.l.b16 %v6523
      %v6624 = vunpack.c.h.b16 %v6523
      %v6625 = vunpack.c.l.b16 %v6524
      %v6626 = vunpack.c.h.b16 %v6524
      %v6627 = vunpack.c.l.b16 %v6525
      %v6628 = vunpack.c.h.b16 %v6525
      %v6629 = vpack.c.b16 %v6567, %v6565
      %v6630 = vpack.c.b16 %v6568, %v6566
      %v6631 = vpack.c.b16 %v6571, %v6569
      %v6632 = vpack.c.b16 %v6572, %v6570
      %v6633 = vpack.c.b16 %v6575, %v6573
      %v6634 = vpack.c.b16 %v6576, %v6574
      %v6635 = vpack.c.b16 %v6579, %v6577
      %v6636 = vpack.c.b16 %v6580, %v6578
      %v6637 = vpack.c.b16 %v6583, %v6581
      %v6638 = vpack.c.b16 %v6584, %v6582
      %v6639 = vpack.c.b16 %v6587, %v6585
      %v6640 = vpack.c.b16 %v6588, %v6586
      %v6641 = vpack.c.b16 %v6591, %v6589
      %v6642 = vpack.c.b16 %v6592, %v6590
      %v6643 = vpack.c.b16 %v6595, %v6593
      %v6644 = vpack.c.b16 %v6596, %v6594
      %v6645 = vpack.c.b16 %v6599, %v6597
      %v6646 = vpack.c.b16 %v6600, %v6598
      %v6647 = vpack.c.b16 %v6603, %v6601
      %v6648 = vpack.c.b16 %v6604, %v6602
      %v6649 = vpack.c.b16 %v6607, %v6605
      %v6650 = vpack.c.b16 %v6608, %v6606
      %v6651 = vpack.c.b16 %v6611, %v6609
      %v6652 = vpack.c.b16 %v6612, %v6610
      %v6653 = vpack.c.b16 %v6615, %v6613
      %v6654 = vpack.c.b16 %v6616, %v6614
      %v6655 = vpack.c.b16 %v6619, %v6617
      %v6656 = vpack.c.b16 %v6620, %v6618
      %v6657 = vpack.c.b16 %v6623, %v6621
      %v6658 = vpack.c.b16 %v6624, %v6622
      %v6659 = vpack.c.b16 %v6627, %v6625
      %v6660 = vpack.c.b16 %v6628, %v6626
      %6693 = vmatpush.bf16.msra.mxu0 %v6643
      %6694 = vmatpush.bf16.msra.mxu0 %v6641
      %6695 = vmatpush.bf16.msra.mxu0 %v6639
      %6696 = vmatpush.bf16.msra.mxu0 %v6637
      %6697 = vmatpush.bf16.msra.mxu0 %v6635
      %6698 = vmatpush.bf16.msra.mxu0 %v6633
      %6699 = vmatpush.bf16.msra.mxu0 %v6631
      %6700 = vmatpush.bf16.msra.mxu0 %v6629
      %6701 = vmatmul.bf16.gmra.mxu0 %v6335
      %v6702 = vpop.f32.mrf.mxu0
      %v6703 = vadd.f32 %v6529, %v6702
      %v6704 = vpop.f32.mrf.mxu0
      %6705 = vdwg.mxu0
      %6706 = vmatpush.bf16.msra.mxu0 %v6659
      %6707 = vmatpush.bf16.msra.mxu0 %v6657
      %6708 = vmatpush.bf16.msra.mxu0 %v6655
      %6709 = vmatpush.bf16.msra.mxu0 %v6653
      %6710 = vmatpush.bf16.msra.mxu0 %v6651
      %6711 = vmatpush.bf16.msra.mxu0 %v6649
      %6712 = vmatpush.bf16.msra.mxu0 %v6647
      %6713 = vmatpush.bf16.msra.mxu0 %v6645
      %6714 = vmatmul.bf16.gmra.mxu0 %v6336
      %v6715 = vpop.f32.mrf.mxu0
      %v6716 = vadd.f32 %v6703, %v6715
      %v6717 = vpop.f32.mrf.mxu0
      %6718 = vdwg.mxu0
      %6719 = vmatpush.bf16.msra.mxu0 %v6644
      %6720 = vmatpush.bf16.msra.mxu0 %v6642
      %6721 = vmatpush.bf16.msra.mxu0 %v6640
      %6722 = vmatpush.bf16.msra.mxu0 %v6638
      %6723 = vmatpush.bf16.msra.mxu0 %v6636
      %6724 = vmatpush.bf16.msra.mxu0 %v6634
      %6725 = vmatpush.bf16.msra.mxu0 %v6632
      %6726 = vmatpush.bf16.msra.mxu0 %v6630
      %6727 = vmatmul.bf16.gmra.mxu0 %v6335
      %v6728 = vpop.f32.mrf.mxu0
      %v6729 = vadd.f32 %v6530, %v6728
      %v6730 = vpop.f32.mrf.mxu0
      %6731 = vdwg.mxu0
      %6732 = vmatpush.bf16.msra.mxu0 %v6660
      %6733 = vmatpush.bf16.msra.mxu0 %v6658
      %6734 = vmatpush.bf16.msra.mxu0 %v6656
      %6735 = vmatpush.bf16.msra.mxu0 %v6654
      %6736 = vmatpush.bf16.msra.mxu0 %v6652
      %6737 = vmatpush.bf16.msra.mxu0 %v6650
      %6738 = vmatpush.bf16.msra.mxu0 %v6648
      %6739 = vmatpush.bf16.msra.mxu0 %v6646
      %6740 = vmatmul.bf16.gmra.mxu0 %v6336
      %v6741 = vpop.f32.mrf.mxu0
      %v6742 = vadd.f32 %v6729, %v6741
      %v6743 = vpop.f32.mrf.mxu0
      %6744 = vdwg.mxu0
      %vm6745 = vcmp.gt.f32.partialorder %v6716, 0.0
      %vm6746 = vcmp.gt.f32.partialorder %v6742, 0.0
      %v6747 = vmul.f32 %v6716, 0.2
      %v6748 = vmul.f32 %v6742, 0.2
      %v6749 = vsel %vm6745, %v6716, %v6747
      %v6750 = vsel %vm6746, %v6742, %v6748
      %v6751 = vpack.c.bf16 %v6749, %v6749
      %v6752 = vpack.c.bf16 %v6750, %v6750
      %s6753 = scalar_lea.vmem [#allocation12], 1152
      %v6754 = vld [vmem:[%s6753] sm:$0xf]
      %v6755 = vld [vmem:[%s6753 + $0x4] sm:$0xf]
      %v6756 = vld [vmem:[%s6753 + $0x8] sm:$0xf]
      %v6757 = vld [vmem:[%s6753 + $0xc] sm:$0xf]
      %v6758 = vld [vmem:[%s6753 + $0x10] sm:$0xf]
      %v6759 = vld [vmem:[%s6753 + $0x14] sm:$0xf]
      %v6760 = vld [vmem:[%s6753 + $0x18] sm:$0xf]
      %v6761 = vld [vmem:[%s6753 + $0x1c] sm:$0xf]
      %v6762 = vld [vmem:[%s6753 + $0x20] sm:$0xf]
      %v6763 = vld [vmem:[%s6753 + $0x24] sm:$0xf]
      %v6764 = vld [vmem:[%s6753 + $0x28] sm:$0xf]
      %v6765 = vld [vmem:[%s6753 + $0x2c] sm:$0xf]
      %v6766 = vld [vmem:[%s6753 + $0x30] sm:$0xf]
      %v6767 = vld [vmem:[%s6753 + $0x34] sm:$0xf]
      %v6768 = vld [vmem:[%s6753 + $0x38] sm:$0xf]
      %v6769 = vld [vmem:[%s6753 + $0x3c] sm:$0xf]
      %v6770 = vld [vmem:[%s6753 + $0x40] sm:$0xf]
      %v6771 = vld [vmem:[%s6753 + $0x44] sm:$0xf]
      %v6772 = vld [vmem:[%s6753 + $0x48] sm:$0xf]
      %v6773 = vld [vmem:[%s6753 + $0x4c] sm:$0xf]
      %v6774 = vld [vmem:[%s6753 + $0x50] sm:$0xf]
      %v6775 = vld [vmem:[%s6753 + $0x54] sm:$0xf]
      %v6776 = vld [vmem:[%s6753 + $0x58] sm:$0xf]
      %v6777 = vld [vmem:[%s6753 + $0x5c] sm:$0xf]
      %v6778 = vld [vmem:[%s6753 + $0x60] sm:$0xf]
      %v6779 = vld [vmem:[%s6753 + $0x64] sm:$0xf]
      %v6780 = vld [vmem:[%s6753 + $0x68] sm:$0xf]
      %v6781 = vld [vmem:[%s6753 + $0x6c] sm:$0xf]
      %v6782 = vld [vmem:[%s6753 + $0x70] sm:$0xf]
      %v6783 = vld [vmem:[%s6753 + $0x74] sm:$0xf]
      %v6784 = vld [vmem:[%s6753 + $0x78] sm:$0xf]
      %v6785 = vld [vmem:[%s6753 + $0x7c] sm:$0xf]
      %v6818 = vunpack.c.l.b16 %v6754
      %v6819 = vunpack.c.l.b16 %v6755
      %v6820 = vunpack.c.l.b16 %v6756
      %v6821 = vunpack.c.l.b16 %v6757
      %v6822 = vunpack.c.l.b16 %v6758
      %v6823 = vunpack.c.l.b16 %v6759
      %v6824 = vunpack.c.l.b16 %v6760
      %v6825 = vunpack.c.l.b16 %v6761
      %v6826 = vunpack.c.l.b16 %v6762
      %v6827 = vunpack.c.l.b16 %v6763
      %v6828 = vunpack.c.l.b16 %v6764
      %v6829 = vunpack.c.l.b16 %v6765
      %v6830 = vunpack.c.l.b16 %v6766
      %v6831 = vunpack.c.l.b16 %v6767
      %v6832 = vunpack.c.l.b16 %v6768
      %v6833 = vunpack.c.l.b16 %v6769
      %v6834 = vunpack.c.l.b16 %v6770
      %v6835 = vunpack.c.l.b16 %v6771
      %v6836 = vunpack.c.l.b16 %v6772
      %v6837 = vunpack.c.l.b16 %v6773
      %v6838 = vunpack.c.l.b16 %v6774
      %v6839 = vunpack.c.l.b16 %v6775
      %v6840 = vunpack.c.l.b16 %v6776
      %v6841 = vunpack.c.l.b16 %v6777
      %v6842 = vunpack.c.l.b16 %v6778
      %v6843 = vunpack.c.l.b16 %v6779
      %v6844 = vunpack.c.l.b16 %v6780
      %v6845 = vunpack.c.l.b16 %v6781
      %v6846 = vunpack.c.l.b16 %v6782
      %v6847 = vunpack.c.l.b16 %v6783
      %v6848 = vunpack.c.l.b16 %v6784
      %v6849 = vunpack.c.l.b16 %v6785
      %v6850 = vpack.c.b16 %v6819, %v6818
      %v6851 = vpack.c.b16 %v6821, %v6820
      %v6852 = vpack.c.b16 %v6823, %v6822
      %v6853 = vpack.c.b16 %v6825, %v6824
      %v6854 = vpack.c.b16 %v6827, %v6826
      %v6855 = vpack.c.b16 %v6829, %v6828
      %v6856 = vpack.c.b16 %v6831, %v6830
      %v6857 = vpack.c.b16 %v6833, %v6832
      %v6858 = vpack.c.b16 %v6835, %v6834
      %v6859 = vpack.c.b16 %v6837, %v6836
      %v6860 = vpack.c.b16 %v6839, %v6838
      %v6861 = vpack.c.b16 %v6841, %v6840
      %v6862 = vpack.c.b16 %v6843, %v6842
      %v6863 = vpack.c.b16 %v6845, %v6844
      %v6864 = vpack.c.b16 %v6847, %v6846
      %v6865 = vpack.c.b16 %v6849, %v6848
      %6882 = vmatpush.bf16.msra.mxu0 %v6857
      %6883 = vmatpush.bf16.msra.mxu0 %v6856
      %6884 = vmatpush.bf16.msra.mxu0 %v6855
      %6885 = vmatpush.bf16.msra.mxu0 %v6854
      %6886 = vmatpush.bf16.msra.mxu0 %v6853
      %6887 = vmatpush.bf16.msra.mxu0 %v6852
      %6888 = vmatpush.bf16.msra.mxu0 %v6851
      %6889 = vmatpush.bf16.msra.mxu0 %v6850
      %6890 = vmatmul.bf16.gmra.mxu0 %v6751
      %v6891 = vpop.f32.mrf.mxu0
      %v6892 = vadd.f32 0.0, %v6891
      %v6893 = vpop.f32.mrf.mxu0
      %6894 = vdwg.mxu0
      %6895 = vmatpush.bf16.msra.mxu0 %v6865
      %6896 = vmatpush.bf16.msra.mxu0 %v6864
      %6897 = vmatpush.bf16.msra.mxu0 %v6863
      %6898 = vmatpush.bf16.msra.mxu0 %v6862
      %6899 = vmatpush.bf16.msra.mxu0 %v6861
      %6900 = vmatpush.bf16.msra.mxu0 %v6860
      %6901 = vmatpush.bf16.msra.mxu0 %v6859
      %6902 = vmatpush.bf16.msra.mxu0 %v6858
      %6903 = vmatmul.bf16.gmra.mxu0 %v6752
      %v6904 = vpop.f32.mrf.mxu0
      %v6905 = vadd.f32 %v6892, %v6904
      %v6906 = vpop.f32.mrf.mxu0
      %6907 = vdwg.mxu0
      %v6908 = vadd.f32 %v6492, %v6905
      %s6909 = scalar_lea.vmem [#allocation9], 2304
      %v6910 = vld [vmem:[%s6909] sm:$0xff]
      %v6911 = vld [vmem:[%s6909 + $0x8] sm:$0xff]
      %v6912 = vld [vmem:[%s6909 + $0x10] sm:$0xff]
      %v6913 = vld [vmem:[%s6909 + $0x18] sm:$0xff]
      %v6914 = vld [vmem:[%s6909 + $0x20] sm:$0xff]
      %v6915 = vld [vmem:[%s6909 + $0x28] sm:$0xff]
      %v6916 = vld [vmem:[%s6909 + $0x30] sm:$0xff]
      %v6917 = vld [vmem:[%s6909 + $0x38] sm:$0xff]
      %v6918 = vld [vmem:[%s6909 + $0x40] sm:$0xff]
      %v6919 = vld [vmem:[%s6909 + $0x48] sm:$0xff]
      %v6920 = vld [vmem:[%s6909 + $0x50] sm:$0xff]
      %v6921 = vld [vmem:[%s6909 + $0x58] sm:$0xff]
      %v6922 = vld [vmem:[%s6909 + $0x60] sm:$0xff]
      %v6923 = vld [vmem:[%s6909 + $0x68] sm:$0xff]
      %v6924 = vld [vmem:[%s6909 + $0x70] sm:$0xff]
      %v6925 = vld [vmem:[%s6909 + $0x78] sm:$0xff]
      %v6926 = vld [vmem:[%s6909 + $0x80] sm:$0xff]
      %v6927 = vld [vmem:[%s6909 + $0x88] sm:$0xff]
      %v6928 = vld [vmem:[%s6909 + $0x90] sm:$0xff]
      %v6929 = vld [vmem:[%s6909 + $0x98] sm:$0xff]
      %v6930 = vld [vmem:[%s6909 + $0xa0] sm:$0xff]
      %v6931 = vld [vmem:[%s6909 + $0xa8] sm:$0xff]
      %v6932 = vld [vmem:[%s6909 + $0xb0] sm:$0xff]
      %v6933 = vld [vmem:[%s6909 + $0xb8] sm:$0xff]
      %v6934 = vld [vmem:[%s6909 + $0xc0] sm:$0xff]
      %v6935 = vld [vmem:[%s6909 + $0xc8] sm:$0xff]
      %v6936 = vld [vmem:[%s6909 + $0xd0] sm:$0xff]
      %v6937 = vld [vmem:[%s6909 + $0xd8] sm:$0xff]
      %v6938 = vld [vmem:[%s6909 + $0xe0] sm:$0xff]
      %v6939 = vld [vmem:[%s6909 + $0xe8] sm:$0xff]
      %v6940 = vld [vmem:[%s6909 + $0xf0] sm:$0xff]
      %v6941 = vld [vmem:[%s6909 + $0xf8] sm:$0xff]
      %s6942 = scalar_lea.vmem [#allocation11], 20
      %v6943 = vld [vmem:[%s6942] sm:$0x3]
      %v6945 = vperm.slane %v6943, 0
      %v6946 = vperm.slane %v6943, 1
      %v6981 = vunpack.c.l.b16 %v6910
      %v6982 = vunpack.c.h.b16 %v6910
      %v6983 = vunpack.c.l.b16 %v6911
      %v6984 = vunpack.c.h.b16 %v6911
      %v6985 = vunpack.c.l.b16 %v6912
      %v6986 = vunpack.c.h.b16 %v6912
      %v6987 = vunpack.c.l.b16 %v6913
      %v6988 = vunpack.c.h.b16 %v6913
      %v6989 = vunpack.c.l.b16 %v6914
      %v6990 = vunpack.c.h.b16 %v6914
      %v6991 = vunpack.c.l.b16 %v6915
      %v6992 = vunpack.c.h.b16 %v6915
      %v6993 = vunpack.c.l.b16 %v6916
      %v6994 = vunpack.c.h.b16 %v6916
      %v6995 = vunpack.c.l.b16 %v6917
      %v6996 = vunpack.c.h.b16 %v6917
      %v6997 = vunpack.c.l.b16 %v6918
      %v6998 = vunpack.c.h.b16 %v6918
      %v6999 = vunpack.c.l.b16 %v6919
      %v7000 = vunpack.c.h.b16 %v6919
      %v7001 = vunpack.c.l.b16 %v6920
      %v7002 = vunpack.c.h.b16 %v6920
      %v7003 = vunpack.c.l.b16 %v6921
      %v7004 = vunpack.c.h.b16 %v6921
      %v7005 = vunpack.c.l.b16 %v6922
      %v7006 = vunpack.c.h.b16 %v6922
      %v7007 = vunpack.c.l.b16 %v6923
      %v7008 = vunpack.c.h.b16 %v6923
      %v7009 = vunpack.c.l.b16 %v6924
      %v7010 = vunpack.c.h.b16 %v6924
      %v7011 = vunpack.c.l.b16 %v6925
      %v7012 = vunpack.c.h.b16 %v6925
      %v7013 = vunpack.c.l.b16 %v6926
      %v7014 = vunpack.c.h.b16 %v6926
      %v7015 = vunpack.c.l.b16 %v6927
      %v7016 = vunpack.c.h.b16 %v6927
      %v7017 = vunpack.c.l.b16 %v6928
      %v7018 = vunpack.c.h.b16 %v6928
      %v7019 = vunpack.c.l.b16 %v6929
      %v7020 = vunpack.c.h.b16 %v6929
      %v7021 = vunpack.c.l.b16 %v6930
      %v7022 = vunpack.c.h.b16 %v6930
      %v7023 = vunpack.c.l.b16 %v6931
      %v7024 = vunpack.c.h.b16 %v6931
      %v7025 = vunpack.c.l.b16 %v6932
      %v7026 = vunpack.c.h.b16 %v6932
      %v7027 = vunpack.c.l.b16 %v6933
      %v7028 = vunpack.c.h.b16 %v6933
      %v7029 = vunpack.c.l.b16 %v6934
      %v7030 = vunpack.c.h.b16 %v6934
      %v7031 = vunpack.c.l.b16 %v6935
      %v7032 = vunpack.c.h.b16 %v6935
      %v7033 = vunpack.c.l.b16 %v6936
      %v7034 = vunpack.c.h.b16 %v6936
      %v7035 = vunpack.c.l.b16 %v6937
      %v7036 = vunpack.c.h.b16 %v6937
      %v7037 = vunpack.c.l.b16 %v6938
      %v7038 = vunpack.c.h.b16 %v6938
      %v7039 = vunpack.c.l.b16 %v6939
      %v7040 = vunpack.c.h.b16 %v6939
      %v7041 = vunpack.c.l.b16 %v6940
      %v7042 = vunpack.c.h.b16 %v6940
      %v7043 = vunpack.c.l.b16 %v6941
      %v7044 = vunpack.c.h.b16 %v6941
      %v7045 = vpack.c.b16 %v6983, %v6981
      %v7046 = vpack.c.b16 %v6984, %v6982
      %v7047 = vpack.c.b16 %v6987, %v6985
      %v7048 = vpack.c.b16 %v6988, %v6986
      %v7049 = vpack.c.b16 %v6991, %v6989
      %v7050 = vpack.c.b16 %v6992, %v6990
      %v7051 = vpack.c.b16 %v6995, %v6993
      %v7052 = vpack.c.b16 %v6996, %v6994
      %v7053 = vpack.c.b16 %v6999, %v6997
      %v7054 = vpack.c.b16 %v7000, %v6998
      %v7055 = vpack.c.b16 %v7003, %v7001
      %v7056 = vpack.c.b16 %v7004, %v7002
      %v7057 = vpack.c.b16 %v7007, %v7005
      %v7058 = vpack.c.b16 %v7008, %v7006
      %v7059 = vpack.c.b16 %v7011, %v7009
      %v7060 = vpack.c.b16 %v7012, %v7010
      %v7061 = vpack.c.b16 %v7015, %v7013
      %v7062 = vpack.c.b16 %v7016, %v7014
      %v7063 = vpack.c.b16 %v7019, %v7017
      %v7064 = vpack.c.b16 %v7020, %v7018
      %v7065 = vpack.c.b16 %v7023, %v7021
      %v7066 = vpack.c.b16 %v7024, %v7022
      %v7067 = vpack.c.b16 %v7027, %v7025
      %v7068 = vpack.c.b16 %v7028, %v7026
      %v7069 = vpack.c.b16 %v7031, %v7029
      %v7070 = vpack.c.b16 %v7032, %v7030
      %v7071 = vpack.c.b16 %v7035, %v7033
      %v7072 = vpack.c.b16 %v7036, %v7034
      %v7073 = vpack.c.b16 %v7039, %v7037
      %v7074 = vpack.c.b16 %v7040, %v7038
      %v7075 = vpack.c.b16 %v7043, %v7041
      %v7076 = vpack.c.b16 %v7044, %v7042
      %7109 = vmatpush.bf16.msra.mxu0 %v7059
      %7110 = vmatpush.bf16.msra.mxu0 %v7057
      %7111 = vmatpush.bf16.msra.mxu0 %v7055
      %7112 = vmatpush.bf16.msra.mxu0 %v7053
      %7113 = vmatpush.bf16.msra.mxu0 %v7051
      %7114 = vmatpush.bf16.msra.mxu0 %v7049
      %7115 = vmatpush.bf16.msra.mxu0 %v7047
      %7116 = vmatpush.bf16.msra.mxu0 %v7045
      %7117 = vmatmul.bf16.gmra.mxu0 %v6751
      %v7118 = vpop.f32.mrf.mxu0
      %v7119 = vadd.f32 %v6945, %v7118
      %v7120 = vpop.f32.mrf.mxu0
      %7121 = vdwg.mxu0
      %7122 = vmatpush.bf16.msra.mxu0 %v7075
      %7123 = vmatpush.bf16.msra.mxu0 %v7073
      %7124 = vmatpush.bf16.msra.mxu0 %v7071
      %7125 = vmatpush.bf16.msra.mxu0 %v7069
      %7126 = vmatpush.bf16.msra.mxu0 %v7067
      %7127 = vmatpush.bf16.msra.mxu0 %v7065
      %7128 = vmatpush.bf16.msra.mxu0 %v7063
      %7129 = vmatpush.bf16.msra.mxu0 %v7061
      %7130 = vmatmul.bf16.gmra.mxu0 %v6752
      %v7131 = vpop.f32.mrf.mxu0
      %v7132 = vadd.f32 %v7119, %v7131
      %v7133 = vpop.f32.mrf.mxu0
      %7134 = vdwg.mxu0
      %7135 = vmatpush.bf16.msra.mxu0 %v7060
      %7136 = vmatpush.bf16.msra.mxu0 %v7058
      %7137 = vmatpush.bf16.msra.mxu0 %v7056
      %7138 = vmatpush.bf16.msra.mxu0 %v7054
      %7139 = vmatpush.bf16.msra.mxu0 %v7052
      %7140 = vmatpush.bf16.msra.mxu0 %v7050
      %7141 = vmatpush.bf16.msra.mxu0 %v7048
      %7142 = vmatpush.bf16.msra.mxu0 %v7046
      %7143 = vmatmul.bf16.gmra.mxu0 %v6751
      %v7144 = vpop.f32.mrf.mxu0
      %v7145 = vadd.f32 %v6946, %v7144
      %v7146 = vpop.f32.mrf.mxu0
      %7147 = vdwg.mxu0
      %7148 = vmatpush.bf16.msra.mxu0 %v7076
      %7149 = vmatpush.bf16.msra.mxu0 %v7074
      %7150 = vmatpush.bf16.msra.mxu0 %v7072
      %7151 = vmatpush.bf16.msra.mxu0 %v7070
      %7152 = vmatpush.bf16.msra.mxu0 %v7068
      %7153 = vmatpush.bf16.msra.mxu0 %v7066
      %7154 = vmatpush.bf16.msra.mxu0 %v7064
      %7155 = vmatpush.bf16.msra.mxu0 %v7062
      %7156 = vmatmul.bf16.gmra.mxu0 %v6752
      %v7157 = vpop.f32.mrf.mxu0
      %v7158 = vadd.f32 %v7145, %v7157
      %v7159 = vpop.f32.mrf.mxu0
      %7160 = vdwg.mxu0
      %vm7161 = vcmp.gt.f32.partialorder %v7132, 0.0
      %vm7162 = vcmp.gt.f32.partialorder %v7158, 0.0
      %v7163 = vmul.f32 %v7132, 0.2
      %v7164 = vmul.f32 %v7158, 0.2
      %v7165 = vsel %vm7161, %v7132, %v7163
      %v7166 = vsel %vm7162, %v7158, %v7164
      %v7167 = vpack.c.bf16 %v7165, %v7165
      %v7168 = vpack.c.bf16 %v7166, %v7166
      %s7169 = scalar_lea.vmem [#allocation12], 1280
      %v7170 = vld [vmem:[%s7169] sm:$0xf]
      %v7171 = vld [vmem:[%s7169 + $0x4] sm:$0xf]
      %v7172 = vld [vmem:[%s7169 + $0x8] sm:$0xf]
      %v7173 = vld [vmem:[%s7169 + $0xc] sm:$0xf]
      %v7174 = vld [vmem:[%s7169 + $0x10] sm:$0xf]
      %v7175 = vld [vmem:[%s7169 + $0x14] sm:$0xf]
      %v7176 = vld [vmem:[%s7169 + $0x18] sm:$0xf]
      %v7177 = vld [vmem:[%s7169 + $0x1c] sm:$0xf]
      %v7178 = vld [vmem:[%s7169 + $0x20] sm:$0xf]
      %v7179 = vld [vmem:[%s7169 + $0x24] sm:$0xf]
      %v7180 = vld [vmem:[%s7169 + $0x28] sm:$0xf]
      %v7181 = vld [vmem:[%s7169 + $0x2c] sm:$0xf]
      %v7182 = vld [vmem:[%s7169 + $0x30] sm:$0xf]
      %v7183 = vld [vmem:[%s7169 + $0x34] sm:$0xf]
      %v7184 = vld [vmem:[%s7169 + $0x38] sm:$0xf]
      %v7185 = vld [vmem:[%s7169 + $0x3c] sm:$0xf]
      %v7186 = vld [vmem:[%s7169 + $0x40] sm:$0xf]
      %v7187 = vld [vmem:[%s7169 + $0x44] sm:$0xf]
      %v7188 = vld [vmem:[%s7169 + $0x48] sm:$0xf]
      %v7189 = vld [vmem:[%s7169 + $0x4c] sm:$0xf]
      %v7190 = vld [vmem:[%s7169 + $0x50] sm:$0xf]
      %v7191 = vld [vmem:[%s7169 + $0x54] sm:$0xf]
      %v7192 = vld [vmem:[%s7169 + $0x58] sm:$0xf]
      %v7193 = vld [vmem:[%s7169 + $0x5c] sm:$0xf]
      %v7194 = vld [vmem:[%s7169 + $0x60] sm:$0xf]
      %v7195 = vld [vmem:[%s7169 + $0x64] sm:$0xf]
      %v7196 = vld [vmem:[%s7169 + $0x68] sm:$0xf]
      %v7197 = vld [vmem:[%s7169 + $0x6c] sm:$0xf]
      %v7198 = vld [vmem:[%s7169 + $0x70] sm:$0xf]
      %v7199 = vld [vmem:[%s7169 + $0x74] sm:$0xf]
      %v7200 = vld [vmem:[%s7169 + $0x78] sm:$0xf]
      %v7201 = vld [vmem:[%s7169 + $0x7c] sm:$0xf]
      %v7234 = vunpack.c.l.b16 %v7170
      %v7235 = vunpack.c.l.b16 %v7171
      %v7236 = vunpack.c.l.b16 %v7172
      %v7237 = vunpack.c.l.b16 %v7173
      %v7238 = vunpack.c.l.b16 %v7174
      %v7239 = vunpack.c.l.b16 %v7175
      %v7240 = vunpack.c.l.b16 %v7176
      %v7241 = vunpack.c.l.b16 %v7177
      %v7242 = vunpack.c.l.b16 %v7178
      %v7243 = vunpack.c.l.b16 %v7179
      %v7244 = vunpack.c.l.b16 %v7180
      %v7245 = vunpack.c.l.b16 %v7181
      %v7246 = vunpack.c.l.b16 %v7182
      %v7247 = vunpack.c.l.b16 %v7183
      %v7248 = vunpack.c.l.b16 %v7184
      %v7249 = vunpack.c.l.b16 %v7185
      %v7250 = vunpack.c.l.b16 %v7186
      %v7251 = vunpack.c.l.b16 %v7187
      %v7252 = vunpack.c.l.b16 %v7188
      %v7253 = vunpack.c.l.b16 %v7189
      %v7254 = vunpack.c.l.b16 %v7190
      %v7255 = vunpack.c.l.b16 %v7191
      %v7256 = vunpack.c.l.b16 %v7192
      %v7257 = vunpack.c.l.b16 %v7193
      %v7258 = vunpack.c.l.b16 %v7194
      %v7259 = vunpack.c.l.b16 %v7195
      %v7260 = vunpack.c.l.b16 %v7196
      %v7261 = vunpack.c.l.b16 %v7197
      %v7262 = vunpack.c.l.b16 %v7198
      %v7263 = vunpack.c.l.b16 %v7199
      %v7264 = vunpack.c.l.b16 %v7200
      %v7265 = vunpack.c.l.b16 %v7201
      %v7266 = vpack.c.b16 %v7235, %v7234
      %v7267 = vpack.c.b16 %v7237, %v7236
      %v7268 = vpack.c.b16 %v7239, %v7238
      %v7269 = vpack.c.b16 %v7241, %v7240
      %v7270 = vpack.c.b16 %v7243, %v7242
      %v7271 = vpack.c.b16 %v7245, %v7244
      %v7272 = vpack.c.b16 %v7247, %v7246
      %v7273 = vpack.c.b16 %v7249, %v7248
      %v7274 = vpack.c.b16 %v7251, %v7250
      %v7275 = vpack.c.b16 %v7253, %v7252
      %v7276 = vpack.c.b16 %v7255, %v7254
      %v7277 = vpack.c.b16 %v7257, %v7256
      %v7278 = vpack.c.b16 %v7259, %v7258
      %v7279 = vpack.c.b16 %v7261, %v7260
      %v7280 = vpack.c.b16 %v7263, %v7262
      %v7281 = vpack.c.b16 %v7265, %v7264
      %7298 = vmatpush.bf16.msra.mxu0 %v7273
      %7299 = vmatpush.bf16.msra.mxu0 %v7272
      %7300 = vmatpush.bf16.msra.mxu0 %v7271
      %7301 = vmatpush.bf16.msra.mxu0 %v7270
      %7302 = vmatpush.bf16.msra.mxu0 %v7269
      %7303 = vmatpush.bf16.msra.mxu0 %v7268
      %7304 = vmatpush.bf16.msra.mxu0 %v7267
      %7305 = vmatpush.bf16.msra.mxu0 %v7266
      %7306 = vmatmul.bf16.gmra.mxu0 %v7167
      %v7307 = vpop.f32.mrf.mxu0
      %v7308 = vadd.f32 0.0, %v7307
      %v7309 = vpop.f32.mrf.mxu0
      %7310 = vdwg.mxu0
      %7311 = vmatpush.bf16.msra.mxu0 %v7281
      %7312 = vmatpush.bf16.msra.mxu0 %v7280
      %7313 = vmatpush.bf16.msra.mxu0 %v7279
      %7314 = vmatpush.bf16.msra.mxu0 %v7278
      %7315 = vmatpush.bf16.msra.mxu0 %v7277
      %7316 = vmatpush.bf16.msra.mxu0 %v7276
      %7317 = vmatpush.bf16.msra.mxu0 %v7275
      %7318 = vmatpush.bf16.msra.mxu0 %v7274
      %7319 = vmatmul.bf16.gmra.mxu0 %v7168
      %v7320 = vpop.f32.mrf.mxu0
      %v7321 = vadd.f32 %v7308, %v7320
      %v7322 = vpop.f32.mrf.mxu0
      %7323 = vdwg.mxu0
      %v7324 = vadd.f32 %v6908, %v7321
      %v7325 = vld [vmem:[#allocation14] sm:$0x1]
      %v7327 = vperm.slane %v7325, 0
      %v7329 = vadd.f32 %v7324, %v7327
      %v7330 = vsub.f32 0.0, %v7329
      %v7331 = vmul.f32 %v7330, 1.442695
      %v7332 = vpow.pop %v7331
      %v7333 = vadd.f32 %v7332, 1.0
      %v7334 = vrcp.pop %v7333
      %v7335 = vld [vmem:[%s3] sm:$0xff]
      %v7336 = vmul.f32 %v7334, %v7335
      %7337 = vst [vmem:[%s10] sm:$0xff] %v7336
    $region77: #{mtcf_forward.1} parent=1 // pred_fallthru
      _
    // Predicated region
    $region78: #{mtcf_forward.1} parent=1 // pred_check
      _
    $region79: #{mtcf_forward.1} parent=1 // pred_check_branch
      %7339 = sbr.rel (0) target = $region81
    $region80: #{mtcf_forward.1} parent=1 // pred_region
      _
    $region81: #{mtcf_forward.1} parent=1 // pred_fallthru
      _
    // Predicated region
    $region82: #{mtcf_forward.1} parent=1 // pred_check
      _
    $region83: #{mtcf_forward.1} parent=1 // pred_check_branch
      %7341 = sbr.rel (0) target = $region85
    $region84: #{mtcf_forward.1} parent=1 // pred_region
      _
    $region85: #{mtcf_forward.1} parent=1 // pred_fallthru
      _
    %7342 = vsyncpa [#allocation5], 1
    %7343 = vsyncpa [#allocation7], 1
    %7344 = vsyncpa [#allocation10], 1
    %7345 = vsyncpa [#allocation13], 1

</llo_original>
